<compile_context>
chip_gen: v5e
topology: v5e:2x2
jax: 0.10.0
libtpu: 0.0.40
codegen_flags: <defaults>
</compile_context>

<pallas_src>
import functools
import math

import jax
import jax.numpy as jnp
from jax.experimental import pallas as pl
from jax.experimental.pallas import tpu as pltpu


# -----------------------------------------------------------------------------
# Pallas kernel: grouped, tiled matmul + bias + activation with K accumulation.
# -----------------------------------------------------------------------------
def _gmm_kernel(x_ref, w_ref, b_ref, o_ref, acc_ref, *, act):
    # zero the accumulator at the start of each K loop
    @pl.when(pl.program_id(3) == 0)
    def _():
        acc_ref[...] = jnp.zeros_like(acc_ref)

    acc_ref[...] += jnp.dot(x_ref[...], w_ref[...],
                            preferred_element_type=jnp.float32)

    # finalize: bias + activation, single lane-dense store
    @pl.when(pl.program_id(3) == pl.num_programs(3) - 1)
    def _():
        y = acc_ref[...] + b_ref[...]            # (tm, tn) + (1, tn)
        if act == "relu":
            y = jnp.maximum(y, 0.0)
        elif act == "tanh":
            y = jnp.tanh(y)
        o_ref[...] = y.astype(o_ref.dtype)


def _round_up(x, m):
    return (x + m - 1) // m * m


def _pick_tile(dim, align, max_tile):
    """Tile size: aligned, <= ~max_tile, minimizing padding waste."""
    if dim <= max_tile:
        return _round_up(dim, align)
    n_tiles = -(-dim // max_tile)
    return _round_up(-(-dim // n_tiles), align)


def grouped_matmul(x, w, b, act="none", tm_max=256, tn_max=256, tk_max=512):
    """x: [G,M,K], w: [G,K,N], b: [G,N] -> f32 [G,M,N] = act(x @ w + b).

    bf16 MXU operands, f32 accumulation, zero-padded to (8,128)-aligned tiles.
    """
    G, M, K = x.shape
    _, _, N = w.shape

    tm = _pick_tile(M, 8, tm_max)
    tk = _pick_tile(K, 128, tk_max)
    tn = _pick_tile(N, 128, tn_max)
    Mp, Kp, Np = _round_up(M, tm), _round_up(K, tk), _round_up(N, tn)

    xp = jnp.pad(x, ((0, 0), (0, Mp - M), (0, Kp - K))).astype(jnp.bfloat16)
    wp = jnp.pad(w, ((0, 0), (0, Kp - K), (0, Np - N))).astype(jnp.bfloat16)
    bp = jnp.pad(b, ((0, 0), (0, Np - N))).astype(jnp.float32).reshape(G, 1, Np)

    grid = (G, Mp // tm, Np // tn, Kp // tk)
    out = pl.pallas_call(
        functools.partial(_gmm_kernel, act=act),
        out_shape=jax.ShapeDtypeStruct((G, Mp, Np), jnp.float32),
        grid=grid,
        in_specs=[
            pl.BlockSpec((None, tm, tk), lambda g, i, j, k: (g, i, k)),
            pl.BlockSpec((None, tk, tn), lambda g, i, j, k: (g, k, j)),
            pl.BlockSpec((None, 1, tn), lambda g, i, j, k: (g, 0, j)),
        ],
        out_specs=pl.BlockSpec((None, tm, tn), lambda g, i, j, k: (g, i, j)),
        scratch_shapes=[pltpu.VMEM((tm, tn), jnp.float32)],
        compiler_params=pltpu.CompilerParams(
            dimension_semantics=("parallel", "parallel", "parallel", "arbitrary")),
    )(xp, wp, bp)
    return out[:, :M, :N]


# -----------------------------------------------------------------------------
# Convolutions (NHWC, 3x3, pad=1) via im2col + the Pallas grouped matmul.
# -----------------------------------------------------------------------------
def _im2col_nhwc(x, ksize, stride, pad):
    """x: [B,H,W,C] -> patches [B*OH*OW, ksize*ksize*C] (kh-major, kw, c)."""
    B, H, W, C = x.shape
    OH = (H + 2 * pad - ksize) // stride + 1
    OW = (W + 2 * pad - ksize) // stride + 1
    xp = jnp.pad(x, ((0, 0), (pad, pad), (pad, pad), (0, 0)))
    cols = []
    for kh in range(ksize):
        for kw in range(ksize):
            cols.append(xp[:,
                           kh:kh + (OH - 1) * stride + 1:stride,
                           kw:kw + (OW - 1) * stride + 1:stride, :])
    patches = jnp.concatenate(cols, axis=-1)          # [B, OH, OW, k*k*C]
    return patches.reshape(B * OH * OW, ksize * ksize * C), (OH, OW)


def conv2d_nhwc(x, w_hwio, b, stride, act="relu"):
    """Single conv: x [B,H,W,Cin], w [KH,KW,Cin,Cout], b [Cout]."""
    B = x.shape[0]
    KH, KW, Cin, Cout = w_hwio.shape
    patches, (OH, OW) = _im2col_nhwc(x, KH, stride, pad=1)
    wm = w_hwio.reshape(KH * KW * Cin, Cout)
    y = grouped_matmul(patches[None], wm[None], b[None], act=act)[0]
    return y.reshape(B, OH, OW, Cout)


def grouped_conv2d_nhwc(x, w_hwio, b, stride, act="relu"):
    """Per-group conv (one pallas_call for all branches):
    x [G,B,H,W,Cin], w [G,KH,KW,Cin,Cout], b [G,Cout]."""
    G, B, H, W, C = x.shape
    _, KH, KW, _, Cout = w_hwio.shape
    patches, (OH, OW) = _im2col_nhwc(x.reshape(G * B, H, W, C), KH, stride, pad=1)
    patches = patches.reshape(G, B * OH * OW, KH * KW * C)
    wm = w_hwio.reshape(G, KH * KW * C, Cout)
    y = grouped_matmul(patches, wm, b, act=act)
    return y.reshape(G, B, OH, OW, Cout)


def upsample2x_nhwc(x):
    """Nearest-neighbor x2 upsample on the H, W axes (works for 4-D or 5-D)."""
    return jnp.repeat(jnp.repeat(x, 2, axis=-3), 2, axis=-2)


# -----------------------------------------------------------------------------
# Losses (tiny; plain JAX glue).
# -----------------------------------------------------------------------------
def classification_loss(logits, label):
    # TODO(synk): ClassificationCriterion source not provided; cross-entropy surrogate.
    logz = jax.nn.logsumexp(logits, axis=-1)
    picked = jnp.take_along_axis(logits, label[:, None], axis=-1)[:, 0]
    return jnp.mean(logz - picked)


def gan_loss(logits, target_is_real):
    # TODO(synk): GANCriterion source not provided; BCE-with-logits surrogate.
    t = 1.0 if target_is_real else 0.0
    return jnp.mean(jax.nn.softplus(logits) - t * logits)


def similarity_loss(recon, real):
    # TODO(synk): SimilarityCriterion source not provided; L1 surrogate.
    return jnp.mean(jnp.abs(recon - real))


# -----------------------------------------------------------------------------
# Model: parameters + forward
# -----------------------------------------------------------------------------
BRANCHES = ("bed", "sofa", "shelf", "seat")
C_SHALLOW1, C_SHALLOW2, C_BRANCH = 16, 32, 64     # scaled-down channel widths
C_DEC1, C_DEC2 = 32, 16
C_DISC1, C_DISC2 = 16, 32
NUM_CLASSES = 10


def init_params(key):
    keys = iter(jax.random.split(key, 16))

    def conv_w(k, kh, kw, cin, cout):
        return jax.random.normal(k, (kh, kw, cin, cout), jnp.float32) / math.sqrt(kh * kw * cin)

    def gconv_w(k, g, kh, kw, cin, cout):
        return jax.random.normal(k, (g, kh, kw, cin, cout), jnp.float32) / math.sqrt(kh * kw * cin)

    p = {}
    # shallow backbone (resnet_shallow surrogate)
    p["sb1_w"] = conv_w(next(keys), 3, 3, 3, C_SHALLOW1)
    p["sb1_b"] = jnp.zeros((C_SHALLOW1,), jnp.float32)
    p["sb2_w"] = conv_w(next(keys), 3, 3, C_SHALLOW1, C_SHALLOW2)
    p["sb2_b"] = jnp.zeros((C_SHALLOW2,), jnp.float32)
    # four branch extractors (resnet_deep surrogates) fused along Cout
    p["br_w"] = conv_w(next(keys), 3, 3, C_SHALLOW2, 4 * C_BRANCH)
    p["br_b"] = jnp.zeros((4 * C_BRANCH,), jnp.float32)
    # classifier (ResNet_Classifier surrogate: global pool + linear)
    p["cls_w"] = jax.random.normal(next(keys), (4 * C_BRANCH, NUM_CLASSES), jnp.float32) / math.sqrt(4 * C_BRANCH)
    p["cls_b"] = jnp.zeros((NUM_CLASSES,), jnp.float32)
    # four reconstructors (ResNet_Reconstructor surrogates), grouped weights
    p["rec1_w"] = gconv_w(next(keys), 4, 3, 3, C_BRANCH, C_DEC1)
    p["rec1_b"] = jnp.zeros((4, C_DEC1), jnp.float32)
    p["rec2_w"] = gconv_w(next(keys), 4, 3, 3, C_DEC1, C_DEC2)
    p["rec2_b"] = jnp.zeros((4, C_DEC2), jnp.float32)
    p["rec3_w"] = gconv_w(next(keys), 4, 3, 3, C_DEC2, 3)
    p["rec3_b"] = jnp.zeros((4, 3), jnp.float32)
    # four discriminators (ResNet_Discriminator surrogates), grouped weights
    p["dis1_w"] = gconv_w(next(keys), 4, 3, 3, 3, C_DISC1)
    p["dis1_b"] = jnp.zeros((4, C_DISC1), jnp.float32)
    p["dis2_w"] = gconv_w(next(keys), 4, 3, 3, C_DISC1, C_DISC2)
    p["dis2_b"] = jnp.zeros((4, C_DISC2), jnp.float32)
    p["dis_fc_w"] = jax.random.normal(next(keys), (4, C_DISC2, 1), jnp.float32) / math.sqrt(C_DISC2)
    p["dis_fc_b"] = jnp.zeros((4, 1), jnp.float32)
    return p


def forward(params, x, label, bed, sofa, shelf, seat):
    """x / bed / sofa / shelf / seat: [B,3,H,W] NCHW; label: [B] int32."""
    B = x.shape[0]
    # NCHW -> NHWC once at the boundary; stay channels-last inside.
    x_nhwc = jnp.transpose(x, (0, 2, 3, 1))
    real = jnp.transpose(jnp.stack([bed, sofa, shelf, seat], 0),
                         (0, 1, 3, 4, 2))                       # [4,B,H,W,3]

    # --- shallow backbone -----------------------------------------------------
    h = conv2d_nhwc(x_nhwc, params["sb1_w"], params["sb1_b"], stride=2)
    h = conv2d_nhwc(h, params["sb2_w"], params["sb2_b"], stride=2)

    # --- four branch feature extractors, fused into ONE conv (Cout=256) -------
    # TODO(synk): spec forward() also references an undefined rest_feature_extractor
    # and a 5-way concat; we follow the consistent 4-branch path from __init__/inference.
    feat = conv2d_nhwc(h, params["br_w"], params["br_b"], stride=2)   # [B,h,w,4C]
    branch_feats = jnp.stack(jnp.split(feat, 4, axis=-1), axis=0)     # [4,B,h,w,C]

    # --- classifier on the concatenated feature -------------------------------
    # tiny [B,4C]@[4C,10]: kept in plain jnp (standalone pallas_call = launch overhead)
    pooled = feat.mean(axis=(1, 2))                                   # [B, 4C]
    pred_class = pooled @ params["cls_w"] + params["cls_b"]           # [B, 10]

    # --- four reconstructors, batched over the group grid axis ----------------
    r = upsample2x_nhwc(branch_feats)
    r = grouped_conv2d_nhwc(r, params["rec1_w"], params["rec1_b"], stride=1)
    r = upsample2x_nhwc(r)
    r = grouped_conv2d_nhwc(r, params["rec2_w"], params["rec2_b"], stride=1)
    r = upsample2x_nhwc(r)
    recon = grouped_conv2d_nhwc(r, params["rec3_w"], params["rec3_b"],
                                stride=1, act="tanh")                 # [4,B,H,W,3]

    # --- four discriminators: real + fake stacked on the batch axis -----------
    d_in = jnp.concatenate([real, recon], axis=1)                     # [4,2B,H,W,3]
    d = grouped_conv2d_nhwc(d_in, params["dis1_w"], params["dis1_b"], stride=2)
    d = grouped_conv2d_nhwc(d, params["dis2_w"], params["dis2_b"], stride=2)
    d = d.mean(axis=(2, 3))                                           # [4,2B,Cd]
    logits = jnp.einsum("gbc,gco->gbo", d, params["dis_fc_w"]) \
        + params["dis_fc_b"][:, None, :]                              # [4,2B,1]
    pred_real, pred_fake = logits[:, :B, 0], logits[:, B:, 0]         # [4,B]

    # --- losses ----------------------------------------------------------------
    loss_C = classification_loss(pred_class, label)
    losses_R, losses_D = [], []
    for g in range(4):
        loss_R = gan_loss(pred_fake[g], True) + similarity_loss(recon[g], real[g])
        loss_D = 0.5 * (gan_loss(pred_real[g], True) + gan_loss(pred_fake[g], False))
        losses_R.append(loss_R)
        losses_D.append(loss_D)

    recon_nchw = jnp.transpose(recon, (0, 1, 4, 2, 3))                # back to NCHW
    reconstruct_result = {name: recon_nchw[i] for i, name in enumerate(BRANCHES)}

    return (pred_class, reconstruct_result, loss_C,
            losses_R[0], losses_D[0], losses_R[1], losses_D[1],
            losses_R[2], losses_D[2], losses_R[3], losses_D[3])


# -----------------------------------------------------------------------------
if __name__ == "__main__":
    key = jax.random.PRNGKey(0)
    k_param, k_x, k_bed, k_sofa, k_shelf, k_seat = jax.random.split(key, 6)

    params = init_params(k_param)

    B, H, W = 2, 32, 32
    x = jax.random.normal(k_x, (B, 3, H, W), jnp.float32)
    label = jnp.array([1, 3], dtype=jnp.int32)
    bed = jax.random.normal(k_bed, (B, 3, H, W), jnp.float32)
    sofa = jax.random.normal(k_sofa, (B, 3, H, W), jnp.float32)
    shelf = jax.random.normal(k_shelf, (B, 3, H, W), jnp.float32)
    seat = jax.random.normal(k_seat, (B, 3, H, W), jnp.float32)

    fwd = jax.jit(forward)
    out = jax.block_until_ready(fwd(params, x, label, bed, sofa, shelf, seat))

    (pred_class, reconstruct_result, loss_C,
     loss_R_bed, loss_D_bed, loss_R_sofa, loss_D_sofa,
     loss_R_shelf, loss_D_shelf, loss_R_seat, loss_D_seat) = out

    assert pred_class.shape == (B, NUM_CLASSES)
    assert bool(jnp.all(jnp.isfinite(pred_class)))
    for name in BRANCHES:
        assert reconstruct_result[name].shape == (B, 3, H, W)
        assert bool(jnp.all(jnp.isfinite(reconstruct_result[name])))
    for l in (loss_C, loss_R_bed, loss_D_bed, loss_R_sofa, loss_D_sofa,
              loss_R_shelf, loss_D_shelf, loss_R_seat, loss_D_seat):
        assert l.shape == ()
        assert bool(jnp.isfinite(l))
    print("KERNEL_OK")
</pallas_src>

<mosaic_0001>
module attributes {stable_mosaic.version = 11 : i64} {
  func.func @_gmm_kernel(%arg0: i32, %arg1: i32, %arg2: i32, %arg3: i32, %arg4: memref<1x256x128xbf16, #tpu.memory_space<vmem>>, %arg5: memref<1x128x128xbf16, #tpu.memory_space<vmem>>, %arg6: memref<1x1x128xf32, #tpu.memory_space<vmem>>, %arg7: memref<1x256x128xf32, #tpu.memory_space<vmem>>, %arg8: memref<256x128xf32, #tpu.memory_space<vmem>>) attributes {dimension_semantics = [#tpu.dimension_semantics<parallel>, #tpu.dimension_semantics<parallel>, #tpu.dimension_semantics<parallel>, #tpu.dimension_semantics<arbitrary>], iteration_bounds = array<i64: 1, 2, 1, 1>, scalar_prefetch = 0 : i64, scratch_operands = 1 : i64, tpu.core_type = #tpu.core_type<tc>, window_params = [{transform_indices = @transform_0, window_bounds = array<i64: 1, 256, 128>}, {transform_indices = @transform_1, window_bounds = array<i64: 1, 128, 128>}, {transform_indices = @transform_2, window_bounds = array<i64: 1, 1, 128>}, {transform_indices = @transform_3, window_bounds = array<i64: 1, 256, 128>}]} {
    %c0_i32 = arith.constant 0 : i32
    %0 = arith.cmpi eq, %arg3, %c0_i32 : i32
    %1 = arith.extui %0 : i1 to i32
    %c0_i32_0 = arith.constant 0 : i32
    %2 = arith.cmpi ne, %1, %c0_i32_0 : i32
    scf.if %2 {
      %cst_12 = arith.constant 0.000000e+00 : f32
      %14 = vector.broadcast %cst_12 : f32 to vector<256x128xf32>
      %c0_13 = arith.constant 0 : index
      %c0_14 = arith.constant 0 : index
      %15 = vector.load %arg8[%c0_13, %c0_14] : memref<256x128xf32, #tpu.memory_space<vmem>>, vector<256x128xf32>
      tpu.vector_store %arg8[%c0_13, %c0_14], %14 {strides = array<i32>} : memref<256x128xf32, #tpu.memory_space<vmem>>, vector<256x128xf32>,
    } else {
    }
    %c0 = arith.constant 0 : index
    %c0_1 = arith.constant 0 : index
    %3 = vector.load %arg8[%c0, %c0_1] : memref<256x128xf32, #tpu.memory_space<vmem>>, vector<256x128xf32>
    %c0_2 = arith.constant 0 : index
    %c0_3 = arith.constant 0 : index
    %c0_4 = arith.constant 0 : index
    %4 = vector.load %arg4[%c0_2, %c0_3, %c0_4] : memref<1x256x128xbf16, #tpu.memory_space<vmem>>, vector<1x256x128xbf16>
    %5 = vector.shape_cast %4 : vector<1x256x128xbf16> to vector<256x128xbf16>
    %c0_5 = arith.constant 0 : index
    %c0_6 = arith.constant 0 : index
    %c0_7 = arith.constant 0 : index
    %6 = vector.load %arg5[%c0_5, %c0_6, %c0_7] : memref<1x128x128xbf16, #tpu.memory_space<vmem>>, vector<1x128x128xbf16>
    %7 = vector.shape_cast %6 : vector<1x128x128xbf16> to vector<128x128xbf16>
    %cst = arith.constant dense<0.000000e+00> : vector<256x128xf32>
    %8 = tpu.matmul %5, %7, %cst {dimension_numbers = #tpu.dot_dimension_numbers<[1], [0], [0], [1], [0, 0, 1, 1], [], []>} : vector<256x128xbf16>, vector<128x128xbf16>, vector<256x128xf32> -> vector<256x128xf32>
    %9 = arith.addf %3, %8 : vector<256x128xf32>
    %c0_8 = arith.constant 0 : index
    %c0_9 = arith.constant 0 : index
    %10 = vector.load %arg8[%c0_8, %c0_9] : memref<256x128xf32, #tpu.memory_space<vmem>>, vector<256x128xf32>
    tpu.vector_store %arg8[%c0_8, %c0_9], %9 {strides = array<i32>} : memref<256x128xf32, #tpu.memory_space<vmem>>, vector<256x128xf32>,
    %c0_i32_10 = arith.constant 0 : i32
    %11 = arith.cmpi eq, %arg3, %c0_i32_10 : i32
    %12 = arith.extui %11 : i1 to i32
    %c0_i32_11 = arith.constant 0 : i32
    %13 = arith.cmpi ne, %12, %c0_i32_11 : i32
    scf.if %13 {
      %c0_12 = arith.constant 0 : index
      %c0_13 = arith.constant 0 : index
      %14 = vector.load %arg8[%c0_12, %c0_13] : memref<256x128xf32, #tpu.memory_space<vmem>>, vector<256x128xf32>
      %c0_14 = arith.constant 0 : index
      %c0_15 = arith.constant 0 : index
      %c0_16 = arith.constant 0 : index
      %15 = vector.load %arg6[%c0_14, %c0_15, %c0_16] : memref<1x1x128xf32, #tpu.memory_space<vmem>>, vector<1x1x128xf32>
      %16 = vector.shape_cast %15 : vector<1x1x128xf32> to vector<1x128xf32>
      %17 = vector.broadcast %16 : vector<1x128xf32> to vector<256x128xf32>
      %18 = arith.addf %14, %17 : vector<256x128xf32>
      %cst_17 = arith.constant 0.000000e+00 : f32
      %19 = vector.broadcast %cst_17 : f32 to vector<256x128xf32>
      %20 = arith.maximumf %18, %19 : vector<256x128xf32>
      %c0_18 = arith.constant 0 : index
      %c0_19 = arith.constant 0 : index
      %c0_20 = arith.constant 0 : index
      %21 = vector.load %arg7[%c0_18, %c0_19, %c0_20] : memref<1x256x128xf32, #tpu.memory_space<vmem>>, vector<1x256x128xf32>
      %22 = vector.shape_cast %21 : vector<1x256x128xf32> to vector<256x128xf32>
      %23 = vector.shape_cast %20 : vector<256x128xf32> to vector<1x256x128xf32>
      tpu.vector_store %arg7[%c0_18, %c0_19, %c0_20], %23 {strides = array<i32>} : memref<1x256x128xf32, #tpu.memory_space<vmem>>, vector<1x256x128xf32>,
    } else {
    }
    return
  }
  func.func @transform_0(%arg0: i32, %arg1: i32, %arg2: i32, %arg3: i32) -> (i32, i32, i32) {
    %c0_i32 = arith.constant 0 : i32
    return %arg0, %arg1, %arg3 : i32, i32, i32
  }
  func.func @transform_1(%arg0: i32, %arg1: i32, %arg2: i32, %arg3: i32) -> (i32, i32, i32) {
    %c0_i32 = arith.constant 0 : i32
    return %arg0, %arg3, %arg2 : i32, i32, i32
  }
  func.func @transform_2(%arg0: i32, %arg1: i32, %arg2: i32, %arg3: i32) -> (i32, i32, i32) {
    %c0_i32 = arith.constant 0 : i32
    %c0_i32_0 = arith.constant 0 : i32
    return %arg0, %c0_i32, %arg2 : i32, i32, i32
  }
  func.func @transform_3(%arg0: i32, %arg1: i32, %arg2: i32, %arg3: i32) -> (i32, i32, i32) {
    %c0_i32 = arith.constant 0 : i32
    return %arg0, %arg1, %arg2 : i32, i32, i32
  }
}

module attributes {stable_mosaic.version = 11 : i64} {
  func.func @_gmm_kernel(%arg0: i32, %arg1: i32, %arg2: i32, %arg3: i32, %arg4: memref<1x128x256xbf16, #tpu.memory_space<vmem>>, %arg5: memref<1x256x128xbf16, #tpu.memory_space<vmem>>, %arg6: memref<1x1x128xf32, #tpu.memory_space<vmem>>, %arg7: memref<1x128x128xf32, #tpu.memory_space<vmem>>, %arg8: memref<128x128xf32, #tpu.memory_space<vmem>>) attributes {dimension_semantics = [#tpu.dimension_semantics<parallel>, #tpu.dimension_semantics<parallel>, #tpu.dimension_semantics<parallel>, #tpu.dimension_semantics<arbitrary>], iteration_bounds = array<i64: 1, 1, 1, 1>, scalar_prefetch = 0 : i64, scratch_operands = 1 : i64, tpu.core_type = #tpu.core_type<tc>, window_params = [{transform_indices = @transform_0, window_bounds = array<i64: 1, 128, 256>}, {transform_indices = @transform_1, window_bounds = array<i64: 1, 256, 128>}, {transform_indices = @transform_2, window_bounds = array<i64: 1, 1, 128>}, {transform_indices = @transform_3, window_bounds = array<i64: 1, 128, 128>}]} {
    %c0_i32 = arith.constant 0 : i32
    %0 = arith.cmpi eq, %arg3, %c0_i32 : i32
    %1 = arith.extui %0 : i1 to i32
    %c0_i32_0 = arith.constant 0 : i32
    %2 = arith.cmpi ne, %1, %c0_i32_0 : i32
    scf.if %2 {
      %cst_12 = arith.constant 0.000000e+00 : f32
      %14 = vector.broadcast %cst_12 : f32 to vector<128x128xf32>
      %c0_13 = arith.constant 0 : index
      %c0_14 = arith.constant 0 : index
      %15 = vector.load %arg8[%c0_13, %c0_14] : memref<128x128xf32, #tpu.memory_space<vmem>>, vector<128x128xf32>
      tpu.vector_store %arg8[%c0_13, %c0_14], %14 {strides = array<i32>} : memref<128x128xf32, #tpu.memory_space<vmem>>, vector<128x128xf32>,
    } else {
    }
    %c0 = arith.constant 0 : index
    %c0_1 = arith.constant 0 : index
    %3 = vector.load %arg8[%c0, %c0_1] : memref<128x128xf32, #tpu.memory_space<vmem>>, vector<128x128xf32>
    %c0_2 = arith.constant 0 : index
    %c0_3 = arith.constant 0 : index
    %c0_4 = arith.constant 0 : index
    %4 = vector.load %arg4[%c0_2, %c0_3, %c0_4] : memref<1x128x256xbf16, #tpu.memory_space<vmem>>, vector<1x128x256xbf16>
    %5 = vector.shape_cast %4 : vector<1x128x256xbf16> to vector<128x256xbf16>
    %c0_5 = arith.constant 0 : index
    %c0_6 = arith.constant 0 : index
    %c0_7 = arith.constant 0 : index
    %6 = vector.load %arg5[%c0_5, %c0_6, %c0_7] : memref<1x256x128xbf16, #tpu.memory_space<vmem>>, vector<1x256x128xbf16>
    %7 = vector.shape_cast %6 : vector<1x256x128xbf16> to vector<256x128xbf16>
    %cst = arith.constant dense<0.000000e+00> : vector<128x128xf32>
    %8 = tpu.matmul %5, %7, %cst {dimension_numbers = #tpu.dot_dimension_numbers<[1], [0], [0], [1], [0, 0, 1, 1], [], []>} : vector<128x256xbf16>, vector<256x128xbf16>, vector<128x128xf32> -> vector<128x128xf32>
    %9 = arith.addf %3, %8 : vector<128x128xf32>
    %c0_8 = arith.constant 0 : index
    %c0_9 = arith.constant 0 : index
    %10 = vector.load %arg8[%c0_8, %c0_9] : memref<128x128xf32, #tpu.memory_space<vmem>>, vector<128x128xf32>
    tpu.vector_store %arg8[%c0_8, %c0_9], %9 {strides = array<i32>} : memref<128x128xf32, #tpu.memory_space<vmem>>, vector<128x128xf32>,
    %c0_i32_10 = arith.constant 0 : i32
    %11 = arith.cmpi eq, %arg3, %c0_i32_10 : i32
    %12 = arith.extui %11 : i1 to i32
    %c0_i32_11 = arith.constant 0 : i32
    %13 = arith.cmpi ne, %12, %c0_i32_11 : i32
    scf.if %13 {
      %c0_12 = arith.constant 0 : index
      %c0_13 = arith.constant 0 : index
      %14 = vector.load %arg8[%c0_12, %c0_13] : memref<128x128xf32, #tpu.memory_space<vmem>>, vector<128x128xf32>
      %c0_14 = arith.constant 0 : index
      %c0_15 = arith.constant 0 : index
      %c0_16 = arith.constant 0 : index
      %15 = vector.load %arg6[%c0_14, %c0_15, %c0_16] : memref<1x1x128xf32, #tpu.memory_space<vmem>>, vector<1x1x128xf32>
      %16 = vector.shape_cast %15 : vector<1x1x128xf32> to vector<1x128xf32>
      %17 = vector.broadcast %16 : vector<1x128xf32> to vector<128x128xf32>
      %18 = arith.addf %14, %17 : vector<128x128xf32>
      %cst_17 = arith.constant 0.000000e+00 : f32
      %19 = vector.broadcast %cst_17 : f32 to vector<128x128xf32>
      %20 = arith.maximumf %18, %19 : vector<128x128xf32>
      %c0_18 = arith.constant 0 : index
      %c0_19 = arith.constant 0 : index
      %c0_20 = arith.constant 0 : index
      %21 = vector.load %arg7[%c0_18, %c0_19, %c0_20] : memref<1x128x128xf32, #tpu.memory_space<vmem>>, vector<1x128x128xf32>
      %22 = vector.shape_cast %21 : vector<1x128x128xf32> to vector<128x128xf32>
      %23 = vector.shape_cast %20 : vector<128x128xf32> to vector<1x128x128xf32>
      tpu.vector_store %arg7[%c0_18, %c0_19, %c0_20], %23 {strides = array<i32>} : memref<1x128x128xf32, #tpu.memory_space<vmem>>, vector<1x128x128xf32>,
    } else {
    }
    return
  }
  func.func @transform_0(%arg0: i32, %arg1: i32, %arg2: i32, %arg3: i32) -> (i32, i32, i32) {
    %c0_i32 = arith.constant 0 : i32
    return %arg0, %arg1, %arg3 : i32, i32, i32
  }
  func.func @transform_1(%arg0: i32, %arg1: i32, %arg2: i32, %arg3: i32) -> (i32, i32, i32) {
    %c0_i32 = arith.constant 0 : i32
    return %arg0, %arg3, %arg2 : i32, i32, i32
  }
  func.func @transform_2(%arg0: i32, %arg1: i32, %arg2: i32, %arg3: i32) -> (i32, i32, i32) {
    %c0_i32 = arith.constant 0 : i32
    %c0_i32_0 = arith.constant 0 : i32
    return %arg0, %c0_i32, %arg2 : i32, i32, i32
  }
  func.func @transform_3(%arg0: i32, %arg1: i32, %arg2: i32, %arg3: i32) -> (i32, i32, i32) {
    %c0_i32 = arith.constant 0 : i32
    return %arg0, %arg1, %arg2 : i32, i32, i32
  }
}

module attributes {stable_mosaic.version = 11 : i64} {
  func.func @_gmm_kernel(%arg0: i32, %arg1: i32, %arg2: i32, %arg3: i32, %arg4: memref<1x32x384xbf16, #tpu.memory_space<vmem>>, %arg5: memref<1x384x256xbf16, #tpu.memory_space<vmem>>, %arg6: memref<1x1x256xf32, #tpu.memory_space<vmem>>, %arg7: memref<1x32x256xf32, #tpu.memory_space<vmem>>, %arg8: memref<32x256xf32, #tpu.memory_space<vmem>>) attributes {dimension_semantics = [#tpu.dimension_semantics<parallel>, #tpu.dimension_semantics<parallel>, #tpu.dimension_semantics<parallel>, #tpu.dimension_semantics<arbitrary>], iteration_bounds = array<i64: 1, 1, 1, 1>, scalar_prefetch = 0 : i64, scratch_operands = 1 : i64, tpu.core_type = #tpu.core_type<tc>, window_params = [{transform_indices = @transform_0, window_bounds = array<i64: 1, 32, 384>}, {transform_indices = @transform_1, window_bounds = array<i64: 1, 384, 256>}, {transform_indices = @transform_2, window_bounds = array<i64: 1, 1, 256>}, {transform_indices = @transform_3, window_bounds = array<i64: 1, 32, 256>}]} {
    %c0_i32 = arith.constant 0 : i32
    %0 = arith.cmpi eq, %arg3, %c0_i32 : i32
    %1 = arith.extui %0 : i1 to i32
    %c0_i32_0 = arith.constant 0 : i32
    %2 = arith.cmpi ne, %1, %c0_i32_0 : i32
    scf.if %2 {
      %cst_12 = arith.constant 0.000000e+00 : f32
      %14 = vector.broadcast %cst_12 : f32 to vector<32x256xf32>
      %c0_13 = arith.constant 0 : index
      %c0_14 = arith.constant 0 : index
      %15 = vector.load %arg8[%c0_13, %c0_14] : memref<32x256xf32, #tpu.memory_space<vmem>>, vector<32x256xf32>
      tpu.vector_store %arg8[%c0_13, %c0_14], %14 {strides = array<i32>} : memref<32x256xf32, #tpu.memory_space<vmem>>, vector<32x256xf32>,
    } else {
    }
    %c0 = arith.constant 0 : index
    %c0_1 = arith.constant 0 : index
    %3 = vector.load %arg8[%c0, %c0_1] : memref<32x256xf32, #tpu.memory_space<vmem>>, vector<32x256xf32>
    %c0_2 = arith.constant 0 : index
    %c0_3 = arith.constant 0 : index
    %c0_4 = arith.constant 0 : index
    %4 = vector.load %arg4[%c0_2, %c0_3, %c0_4] : memref<1x32x384xbf16, #tpu.memory_space<vmem>>, vector<1x32x384xbf16>
    %5 = vector.shape_cast %4 : vector<1x32x384xbf16> to vector<32x384xbf16>
    %c0_5 = arith.constant 0 : index
    %c0_6 = arith.constant 0 : index
    %c0_7 = arith.constant 0 : index
    %6 = vector.load %arg5[%c0_5, %c0_6, %c0_7] : memref<1x384x256xbf16, #tpu.memory_space<vmem>>, vector<1x384x256xbf16>
    %7 = vector.shape_cast %6 : vector<1x384x256xbf16> to vector<384x256xbf16>
    %cst = arith.constant dense<0.000000e+00> : vector<32x256xf32>
    %8 = tpu.matmul %5, %7, %cst {dimension_numbers = #tpu.dot_dimension_numbers<[1], [0], [0], [1], [0, 0, 1, 1], [], []>} : vector<32x384xbf16>, vector<384x256xbf16>, vector<32x256xf32> -> vector<32x256xf32>
    %9 = arith.addf %3, %8 : vector<32x256xf32>
    %c0_8 = arith.constant 0 : index
    %c0_9 = arith.constant 0 : index
    %10 = vector.load %arg8[%c0_8, %c0_9] : memref<32x256xf32, #tpu.memory_space<vmem>>, vector<32x256xf32>
    tpu.vector_store %arg8[%c0_8, %c0_9], %9 {strides = array<i32>} : memref<32x256xf32, #tpu.memory_space<vmem>>, vector<32x256xf32>,
    %c0_i32_10 = arith.constant 0 : i32
    %11 = arith.cmpi eq, %arg3, %c0_i32_10 : i32
    %12 = arith.extui %11 : i1 to i32
    %c0_i32_11 = arith.constant 0 : i32
    %13 = arith.cmpi ne, %12, %c0_i32_11 : i32
    scf.if %13 {
      %c0_12 = arith.constant 0 : index
      %c0_13 = arith.constant 0 : index
      %14 = vector.load %arg8[%c0_12, %c0_13] : memref<32x256xf32, #tpu.memory_space<vmem>>, vector<32x256xf32>
      %c0_14 = arith.constant 0 : index
      %c0_15 = arith.constant 0 : index
      %c0_16 = arith.constant 0 : index
      %15 = vector.load %arg6[%c0_14, %c0_15, %c0_16] : memref<1x1x256xf32, #tpu.memory_space<vmem>>, vector<1x1x256xf32>
      %16 = vector.shape_cast %15 : vector<1x1x256xf32> to vector<1x256xf32>
      %17 = vector.broadcast %16 : vector<1x256xf32> to vector<32x256xf32>
      %18 = arith.addf %14, %17 : vector<32x256xf32>
      %cst_17 = arith.constant 0.000000e+00 : f32
      %19 = vector.broadcast %cst_17 : f32 to vector<32x256xf32>
      %20 = arith.maximumf %18, %19 : vector<32x256xf32>
      %c0_18 = arith.constant 0 : index
      %c0_19 = arith.constant 0 : index
      %c0_20 = arith.constant 0 : index
      %21 = vector.load %arg7[%c0_18, %c0_19, %c0_20] : memref<1x32x256xf32, #tpu.memory_space<vmem>>, vector<1x32x256xf32>
      %22 = vector.shape_cast %21 : vector<1x32x256xf32> to vector<32x256xf32>
      %23 = vector.shape_cast %20 : vector<32x256xf32> to vector<1x32x256xf32>
      tpu.vector_store %arg7[%c0_18, %c0_19, %c0_20], %23 {strides = array<i32>} : memref<1x32x256xf32, #tpu.memory_space<vmem>>, vector<1x32x256xf32>,
    } else {
    }
    return
  }
  func.func @transform_0(%arg0: i32, %arg1: i32, %arg2: i32, %arg3: i32) -> (i32, i32, i32) {
    %c0_i32 = arith.constant 0 : i32
    return %arg0, %arg1, %arg3 : i32, i32, i32
  }
  func.func @transform_1(%arg0: i32, %arg1: i32, %arg2: i32, %arg3: i32) -> (i32, i32, i32) {
    %c0_i32 = arith.constant 0 : i32
    return %arg0, %arg3, %arg2 : i32, i32, i32
  }
  func.func @transform_2(%arg0: i32, %arg1: i32, %arg2: i32, %arg3: i32) -> (i32, i32, i32) {
    %c0_i32 = arith.constant 0 : i32
    %c0_i32_0 = arith.constant 0 : i32
    return %arg0, %c0_i32, %arg2 : i32, i32, i32
  }
  func.func @transform_3(%arg0: i32, %arg1: i32, %arg2: i32, %arg3: i32) -> (i32, i32, i32) {
    %c0_i32 = arith.constant 0 : i32
    return %arg0, %arg1, %arg2 : i32, i32, i32
  }
}

module attributes {stable_mosaic.version = 11 : i64} {
  func.func @_gmm_kernel(%arg0: i32, %arg1: i32, %arg2: i32, %arg3: i32, %arg4: memref<1x128x384xbf16, #tpu.memory_space<vmem>>, %arg5: memref<1x384x128xbf16, #tpu.memory_space<vmem>>, %arg6: memref<1x1x128xf32, #tpu.memory_space<vmem>>, %arg7: memref<1x128x128xf32, #tpu.memory_space<vmem>>, %arg8: memref<128x128xf32, #tpu.memory_space<vmem>>) attributes {dimension_semantics = [#tpu.dimension_semantics<parallel>, #tpu.dimension_semantics<parallel>, #tpu.dimension_semantics<parallel>, #tpu.dimension_semantics<arbitrary>], iteration_bounds = array<i64: 4, 1, 1, 2>, scalar_prefetch = 0 : i64, scratch_operands = 1 : i64, tpu.core_type = #tpu.core_type<tc>, window_params = [{transform_indices = @transform_0, window_bounds = array<i64: 1, 128, 384>}, {transform_indices = @transform_1, window_bounds = array<i64: 1, 384, 128>}, {transform_indices = @transform_2, window_bounds = array<i64: 1, 1, 128>}, {transform_indices = @transform_3, window_bounds = array<i64: 1, 128, 128>}]} {
    %c0_i32 = arith.constant 0 : i32
    %0 = arith.cmpi eq, %arg3, %c0_i32 : i32
    %1 = arith.extui %0 : i1 to i32
    %c0_i32_0 = arith.constant 0 : i32
    %2 = arith.cmpi ne, %1, %c0_i32_0 : i32
    scf.if %2 {
      %cst_11 = arith.constant 0.000000e+00 : f32
      %14 = vector.broadcast %cst_11 : f32 to vector<128x128xf32>
      %c0_12 = arith.constant 0 : index
      %c0_13 = arith.constant 0 : index
      %15 = vector.load %arg8[%c0_12, %c0_13] : memref<128x128xf32, #tpu.memory_space<vmem>>, vector<128x128xf32>
      tpu.vector_store %arg8[%c0_12, %c0_13], %14 {strides = array<i32>} : memref<128x128xf32, #tpu.memory_space<vmem>>, vector<128x128xf32>,
    } else {
    }
    %c0 = arith.constant 0 : index
    %c0_1 = arith.constant 0 : index
    %3 = vector.load %arg8[%c0, %c0_1] : memref<128x128xf32, #tpu.memory_space<vmem>>, vector<128x128xf32>
    %c0_2 = arith.constant 0 : index
    %c0_3 = arith.constant 0 : index
    %c0_4 = arith.constant 0 : index
    %4 = vector.load %arg4[%c0_2, %c0_3, %c0_4] : memref<1x128x384xbf16, #tpu.memory_space<vmem>>, vector<1x128x384xbf16>
    %5 = vector.shape_cast %4 : vector<1x128x384xbf16> to vector<128x384xbf16>
    %c0_5 = arith.constant 0 : index
    %c0_6 = arith.constant 0 : index
    %c0_7 = arith.constant 0 : index
    %6 = vector.load %arg5[%c0_5, %c0_6, %c0_7] : memref<1x384x128xbf16, #tpu.memory_space<vmem>>, vector<1x384x128xbf16>
    %7 = vector.shape_cast %6 : vector<1x384x128xbf16> to vector<384x128xbf16>
    %cst = arith.constant dense<0.000000e+00> : vector<128x128xf32>
    %8 = tpu.matmul %5, %7, %cst {dimension_numbers = #tpu.dot_dimension_numbers<[1], [0], [0], [1], [0, 0, 1, 1], [], []>} : vector<128x384xbf16>, vector<384x128xbf16>, vector<128x128xf32> -> vector<128x128xf32>
    %9 = arith.addf %3, %8 : vector<128x128xf32>
    %c0_8 = arith.constant 0 : index
    %c0_9 = arith.constant 0 : index
    %10 = vector.load %arg8[%c0_8, %c0_9] : memref<128x128xf32, #tpu.memory_space<vmem>>, vector<128x128xf32>
    tpu.vector_store %arg8[%c0_8, %c0_9], %9 {strides = array<i32>} : memref<128x128xf32, #tpu.memory_space<vmem>>, vector<128x128xf32>,
    %c1_i32 = arith.constant 1 : i32
    %11 = arith.cmpi eq, %arg3, %c1_i32 : i32
    %12 = arith.extui %11 : i1 to i32
    %c0_i32_10 = arith.constant 0 : i32
    %13 = arith.cmpi ne, %12, %c0_i32_10 : i32
    scf.if %13 {
      %c0_11 = arith.constant 0 : index
      %c0_12 = arith.constant 0 : index
      %14 = vector.load %arg8[%c0_11, %c0_12] : memref<128x128xf32, #tpu.memory_space<vmem>>, vector<128x128xf32>
      %c0_13 = arith.constant 0 : index
      %c0_14 = arith.constant 0 : index
      %c0_15 = arith.constant 0 : index
      %15 = vector.load %arg6[%c0_13, %c0_14, %c0_15] : memref<1x1x128xf32, #tpu.memory_space<vmem>>, vector<1x1x128xf32>
      %16 = vector.shape_cast %15 : vector<1x1x128xf32> to vector<1x128xf32>
      %17 = vector.broadcast %16 : vector<1x128xf32> to vector<128x128xf32>
      %18 = arith.addf %14, %17 : vector<128x128xf32>
      %cst_16 = arith.constant 0.000000e+00 : f32
      %19 = vector.broadcast %cst_16 : f32 to vector<128x128xf32>
      %20 = arith.maximumf %18, %19 : vector<128x128xf32>
      %c0_17 = arith.constant 0 : index
      %c0_18 = arith.constant 0 : index
      %c0_19 = arith.constant 0 : index
      %21 = vector.load %arg7[%c0_17, %c0_18, %c0_19] : memref<1x128x128xf32, #tpu.memory_space<vmem>>, vector<1x128x128xf32>
      %22 = vector.shape_cast %21 : vector<1x128x128xf32> to vector<128x128xf32>
      %23 = vector.shape_cast %20 : vector<128x128xf32> to vector<1x128x128xf32>
      tpu.vector_store %arg7[%c0_17, %c0_18, %c0_19], %23 {strides = array<i32>} : memref<1x128x128xf32, #tpu.memory_space<vmem>>, vector<1x128x128xf32>,
    } else {
    }
    return
  }
  func.func @transform_0(%arg0: i32, %arg1: i32, %arg2: i32, %arg3: i32) -> (i32, i32, i32) {
    %c0_i32 = arith.constant 0 : i32
    return %arg0, %arg1, %arg3 : i32, i32, i32
  }
  func.func @transform_1(%arg0: i32, %arg1: i32, %arg2: i32, %arg3: i32) -> (i32, i32, i32) {
    %c0_i32 = arith.constant 0 : i32
    return %arg0, %arg3, %arg2 : i32, i32, i32
  }
  func.func @transform_2(%arg0: i32, %arg1: i32, %arg2: i32, %arg3: i32) -> (i32, i32, i32) {
    %c0_i32 = arith.constant 0 : i32
    %c0_i32_0 = arith.constant 0 : i32
    return %arg0, %c0_i32, %arg2 : i32, i32, i32
  }
  func.func @transform_3(%arg0: i32, %arg1: i32, %arg2: i32, %arg3: i32) -> (i32, i32, i32) {
    %c0_i32 = arith.constant 0 : i32
    return %arg0, %arg1, %arg2 : i32, i32, i32
  }
}

module attributes {stable_mosaic.version = 11 : i64} {
  func.func @_gmm_kernel(%arg0: i32, %arg1: i32, %arg2: i32, %arg3: i32, %arg4: memref<1x256x384xbf16, #tpu.memory_space<vmem>>, %arg5: memref<1x384x128xbf16, #tpu.memory_space<vmem>>, %arg6: memref<1x1x128xf32, #tpu.memory_space<vmem>>, %arg7: memref<1x256x128xf32, #tpu.memory_space<vmem>>, %arg8: memref<256x128xf32, #tpu.memory_space<vmem>>) attributes {dimension_semantics = [#tpu.dimension_semantics<parallel>, #tpu.dimension_semantics<parallel>, #tpu.dimension_semantics<parallel>, #tpu.dimension_semantics<arbitrary>], iteration_bounds = array<i64: 4, 2, 1, 1>, scalar_prefetch = 0 : i64, scratch_operands = 1 : i64, tpu.core_type = #tpu.core_type<tc>, window_params = [{transform_indices = @transform_0, window_bounds = array<i64: 1, 256, 384>}, {transform_indices = @transform_1, window_bounds = array<i64: 1, 384, 128>}, {transform_indices = @transform_2, window_bounds = array<i64: 1, 1, 128>}, {transform_indices = @transform_3, window_bounds = array<i64: 1, 256, 128>}]} {
    %c0_i32 = arith.constant 0 : i32
    %0 = arith.cmpi eq, %arg3, %c0_i32 : i32
    %1 = arith.extui %0 : i1 to i32
    %c0_i32_0 = arith.constant 0 : i32
    %2 = arith.cmpi ne, %1, %c0_i32_0 : i32
    scf.if %2 {
      %cst_12 = arith.constant 0.000000e+00 : f32
      %14 = vector.broadcast %cst_12 : f32 to vector<256x128xf32>
      %c0_13 = arith.constant 0 : index
      %c0_14 = arith.constant 0 : index
      %15 = vector.load %arg8[%c0_13, %c0_14] : memref<256x128xf32, #tpu.memory_space<vmem>>, vector<256x128xf32>
      tpu.vector_store %arg8[%c0_13, %c0_14], %14 {strides = array<i32>} : memref<256x128xf32, #tpu.memory_space<vmem>>, vector<256x128xf32>,
    } else {
    }
    %c0 = arith.constant 0 : index
    %c0_1 = arith.constant 0 : index
    %3 = vector.load %arg8[%c0, %c0_1] : memref<256x128xf32, #tpu.memory_space<vmem>>, vector<256x128xf32>
    %c0_2 = arith.constant 0 : index
    %c0_3 = arith.constant 0 : index
    %c0_4 = arith.constant 0 : index
    %4 = vector.load %arg4[%c0_2, %c0_3, %c0_4] : memref<1x256x384xbf16, #tpu.memory_space<vmem>>, vector<1x256x384xbf16>
    %5 = vector.shape_cast %4 : vector<1x256x384xbf16> to vector<256x384xbf16>
    %c0_5 = arith.constant 0 : index
    %c0_6 = arith.constant 0 : index
    %c0_7 = arith.constant 0 : index
    %6 = vector.load %arg5[%c0_5, %c0_6, %c0_7] : memref<1x384x128xbf16, #tpu.memory_space<vmem>>, vector<1x384x128xbf16>
    %7 = vector.shape_cast %6 : vector<1x384x128xbf16> to vector<384x128xbf16>
    %cst = arith.constant dense<0.000000e+00> : vector<256x128xf32>
    %8 = tpu.matmul %5, %7, %cst {dimension_numbers = #tpu.dot_dimension_numbers<[1], [0], [0], [1], [0, 0, 1, 1], [], []>} : vector<256x384xbf16>, vector<384x128xbf16>, vector<256x128xf32> -> vector<256x128xf32>
    %9 = arith.addf %3, %8 : vector<256x128xf32>
    %c0_8 = arith.constant 0 : index
    %c0_9 = arith.constant 0 : index
    %10 = vector.load %arg8[%c0_8, %c0_9] : memref<256x128xf32, #tpu.memory_space<vmem>>, vector<256x128xf32>
    tpu.vector_store %arg8[%c0_8, %c0_9], %9 {strides = array<i32>} : memref<256x128xf32, #tpu.memory_space<vmem>>, vector<256x128xf32>,
    %c0_i32_10 = arith.constant 0 : i32
    %11 = arith.cmpi eq, %arg3, %c0_i32_10 : i32
    %12 = arith.extui %11 : i1 to i32
    %c0_i32_11 = arith.constant 0 : i32
    %13 = arith.cmpi ne, %12, %c0_i32_11 : i32
    scf.if %13 {
      %c0_12 = arith.constant 0 : index
      %c0_13 = arith.constant 0 : index
      %14 = vector.load %arg8[%c0_12, %c0_13] : memref<256x128xf32, #tpu.memory_space<vmem>>, vector<256x128xf32>
      %c0_14 = arith.constant 0 : index
      %c0_15 = arith.constant 0 : index
      %c0_16 = arith.constant 0 : index
      %15 = vector.load %arg6[%c0_14, %c0_15, %c0_16] : memref<1x1x128xf32, #tpu.memory_space<vmem>>, vector<1x1x128xf32>
      %16 = vector.shape_cast %15 : vector<1x1x128xf32> to vector<1x128xf32>
      %17 = vector.broadcast %16 : vector<1x128xf32> to vector<256x128xf32>
      %18 = arith.addf %14, %17 : vector<256x128xf32>
      %cst_17 = arith.constant 0.000000e+00 : f32
      %19 = vector.broadcast %cst_17 : f32 to vector<256x128xf32>
      %20 = arith.maximumf %18, %19 : vector<256x128xf32>
      %c0_18 = arith.constant 0 : index
      %c0_19 = arith.constant 0 : index
      %c0_20 = arith.constant 0 : index
      %21 = vector.load %arg7[%c0_18, %c0_19, %c0_20] : memref<1x256x128xf32, #tpu.memory_space<vmem>>, vector<1x256x128xf32>
      %22 = vector.shape_cast %21 : vector<1x256x128xf32> to vector<256x128xf32>
      %23 = vector.shape_cast %20 : vector<256x128xf32> to vector<1x256x128xf32>
      tpu.vector_store %arg7[%c0_18, %c0_19, %c0_20], %23 {strides = array<i32>} : memref<1x256x128xf32, #tpu.memory_space<vmem>>, vector<1x256x128xf32>,
    } else {
    }
    return
  }
  func.func @transform_0(%arg0: i32, %arg1: i32, %arg2: i32, %arg3: i32) -> (i32, i32, i32) {
    %c0_i32 = arith.constant 0 : i32
    return %arg0, %arg1, %arg3 : i32, i32, i32
  }
  func.func @transform_1(%arg0: i32, %arg1: i32, %arg2: i32, %arg3: i32) -> (i32, i32, i32) {
    %c0_i32 = arith.constant 0 : i32
    return %arg0, %arg3, %arg2 : i32, i32, i32
  }
  func.func @transform_2(%arg0: i32, %arg1: i32, %arg2: i32, %arg3: i32) -> (i32, i32, i32) {
    %c0_i32 = arith.constant 0 : i32
    %c0_i32_0 = arith.constant 0 : i32
    return %arg0, %c0_i32, %arg2 : i32, i32, i32
  }
  func.func @transform_3(%arg0: i32, %arg1: i32, %arg2: i32, %arg3: i32) -> (i32, i32, i32) {
    %c0_i32 = arith.constant 0 : i32
    return %arg0, %arg1, %arg2 : i32, i32, i32
  }
}

module attributes {stable_mosaic.version = 11 : i64} {
  func.func @_gmm_kernel(%arg0: i32, %arg1: i32, %arg2: i32, %arg3: i32, %arg4: memref<1x256x256xbf16, #tpu.memory_space<vmem>>, %arg5: memref<1x256x128xbf16, #tpu.memory_space<vmem>>, %arg6: memref<1x1x128xf32, #tpu.memory_space<vmem>>, %arg7: memref<1x256x128xf32, #tpu.memory_space<vmem>>, %arg8: memref<256x128xf32, #tpu.memory_space<vmem>>) attributes {dimension_semantics = [#tpu.dimension_semantics<parallel>, #tpu.dimension_semantics<parallel>, #tpu.dimension_semantics<parallel>, #tpu.dimension_semantics<arbitrary>], iteration_bounds = array<i64: 4, 8, 1, 1>, scalar_prefetch = 0 : i64, scratch_operands = 1 : i64, tpu.core_type = #tpu.core_type<tc>, window_params = [{transform_indices = @transform_0, window_bounds = array<i64: 1, 256, 256>}, {transform_indices = @transform_1, window_bounds = array<i64: 1, 256, 128>}, {transform_indices = @transform_2, window_bounds = array<i64: 1, 1, 128>}, {transform_indices = @transform_3, window_bounds = array<i64: 1, 256, 128>}]} {
    %c0_i32 = arith.constant 0 : i32
    %0 = arith.cmpi eq, %arg3, %c0_i32 : i32
    %1 = arith.extui %0 : i1 to i32
    %c0_i32_0 = arith.constant 0 : i32
    %2 = arith.cmpi ne, %1, %c0_i32_0 : i32
    scf.if %2 {
      %cst_12 = arith.constant 0.000000e+00 : f32
      %14 = vector.broadcast %cst_12 : f32 to vector<256x128xf32>
      %c0_13 = arith.constant 0 : index
      %c0_14 = arith.constant 0 : index
      %15 = vector.load %arg8[%c0_13, %c0_14] : memref<256x128xf32, #tpu.memory_space<vmem>>, vector<256x128xf32>
      tpu.vector_store %arg8[%c0_13, %c0_14], %14 {strides = array<i32>} : memref<256x128xf32, #tpu.memory_space<vmem>>, vector<256x128xf32>,
    } else {
    }
    %c0 = arith.constant 0 : index
    %c0_1 = arith.constant 0 : index
    %3 = vector.load %arg8[%c0, %c0_1] : memref<256x128xf32, #tpu.memory_space<vmem>>, vector<256x128xf32>
    %c0_2 = arith.constant 0 : index
    %c0_3 = arith.constant 0 : index
    %c0_4 = arith.constant 0 : index
    %4 = vector.load %arg4[%c0_2, %c0_3, %c0_4] : memref<1x256x256xbf16, #tpu.memory_space<vmem>>, vector<1x256x256xbf16>
    %5 = vector.shape_cast %4 : vector<1x256x256xbf16> to vector<256x256xbf16>
    %c0_5 = arith.constant 0 : index
    %c0_6 = arith.constant 0 : index
    %c0_7 = arith.constant 0 : index
    %6 = vector.load %arg5[%c0_5, %c0_6, %c0_7] : memref<1x256x128xbf16, #tpu.memory_space<vmem>>, vector<1x256x128xbf16>
    %7 = vector.shape_cast %6 : vector<1x256x128xbf16> to vector<256x128xbf16>
    %cst = arith.constant dense<0.000000e+00> : vector<256x128xf32>
    %8 = tpu.matmul %5, %7, %cst {dimension_numbers = #tpu.dot_dimension_numbers<[1], [0], [0], [1], [0, 0, 1, 1], [], []>} : vector<256x256xbf16>, vector<256x128xbf16>, vector<256x128xf32> -> vector<256x128xf32>
    %9 = arith.addf %3, %8 : vector<256x128xf32>
    %c0_8 = arith.constant 0 : index
    %c0_9 = arith.constant 0 : index
    %10 = vector.load %arg8[%c0_8, %c0_9] : memref<256x128xf32, #tpu.memory_space<vmem>>, vector<256x128xf32>
    tpu.vector_store %arg8[%c0_8, %c0_9], %9 {strides = array<i32>} : memref<256x128xf32, #tpu.memory_space<vmem>>, vector<256x128xf32>,
    %c0_i32_10 = arith.constant 0 : i32
    %11 = arith.cmpi eq, %arg3, %c0_i32_10 : i32
    %12 = arith.extui %11 : i1 to i32
    %c0_i32_11 = arith.constant 0 : i32
    %13 = arith.cmpi ne, %12, %c0_i32_11 : i32
    scf.if %13 {
      %c0_12 = arith.constant 0 : index
      %c0_13 = arith.constant 0 : index
      %14 = vector.load %arg8[%c0_12, %c0_13] : memref<256x128xf32, #tpu.memory_space<vmem>>, vector<256x128xf32>
      %c0_14 = arith.constant 0 : index
      %c0_15 = arith.constant 0 : index
      %c0_16 = arith.constant 0 : index
      %15 = vector.load %arg6[%c0_14, %c0_15, %c0_16] : memref<1x1x128xf32, #tpu.memory_space<vmem>>, vector<1x1x128xf32>
      %16 = vector.shape_cast %15 : vector<1x1x128xf32> to vector<1x128xf32>
      %17 = vector.broadcast %16 : vector<1x128xf32> to vector<256x128xf32>
      %18 = arith.addf %14, %17 : vector<256x128xf32>
      %19 = math.tanh %18 : vector<256x128xf32>
      %c0_17 = arith.constant 0 : index
      %c0_18 = arith.constant 0 : index
      %c0_19 = arith.constant 0 : index
      %20 = vector.load %arg7[%c0_17, %c0_18, %c0_19] : memref<1x256x128xf32, #tpu.memory_space<vmem>>, vector<1x256x128xf32>
      %21 = vector.shape_cast %20 : vector<1x256x128xf32> to vector<256x128xf32>
      %22 = vector.shape_cast %19 : vector<256x128xf32> to vector<1x256x128xf32>
      tpu.vector_store %arg7[%c0_17, %c0_18, %c0_19], %22 {strides = array<i32>} : memref<1x256x128xf32, #tpu.memory_space<vmem>>, vector<1x256x128xf32>,
    } else {
    }
    return
  }
  func.func @transform_0(%arg0: i32, %arg1: i32, %arg2: i32, %arg3: i32) -> (i32, i32, i32) {
    %c0_i32 = arith.constant 0 : i32
    return %arg0, %arg1, %arg3 : i32, i32, i32
  }
  func.func @transform_1(%arg0: i32, %arg1: i32, %arg2: i32, %arg3: i32) -> (i32, i32, i32) {
    %c0_i32 = arith.constant 0 : i32
    return %arg0, %arg3, %arg2 : i32, i32, i32
  }
  func.func @transform_2(%arg0: i32, %arg1: i32, %arg2: i32, %arg3: i32) -> (i32, i32, i32) {
    %c0_i32 = arith.constant 0 : i32
    %c0_i32_0 = arith.constant 0 : i32
    return %arg0, %c0_i32, %arg2 : i32, i32, i32
  }
  func.func @transform_3(%arg0: i32, %arg1: i32, %arg2: i32, %arg3: i32) -> (i32, i32, i32) {
    %c0_i32 = arith.constant 0 : i32
    return %arg0, %arg1, %arg2 : i32, i32, i32
  }
}

module attributes {stable_mosaic.version = 11 : i64} {
  func.func @_gmm_kernel(%arg0: i32, %arg1: i32, %arg2: i32, %arg3: i32, %arg4: memref<1x256x128xbf16, #tpu.memory_space<vmem>>, %arg5: memref<1x128x128xbf16, #tpu.memory_space<vmem>>, %arg6: memref<1x1x128xf32, #tpu.memory_space<vmem>>, %arg7: memref<1x256x128xf32, #tpu.memory_space<vmem>>, %arg8: memref<256x128xf32, #tpu.memory_space<vmem>>) attributes {dimension_semantics = [#tpu.dimension_semantics<parallel>, #tpu.dimension_semantics<parallel>, #tpu.dimension_semantics<parallel>, #tpu.dimension_semantics<arbitrary>], iteration_bounds = array<i64: 4, 4, 1, 1>, scalar_prefetch = 0 : i64, scratch_operands = 1 : i64, tpu.core_type = #tpu.core_type<tc>, window_params = [{transform_indices = @transform_0, window_bounds = array<i64: 1, 256, 128>}, {transform_indices = @transform_1, window_bounds = array<i64: 1, 128, 128>}, {transform_indices = @transform_2, window_bounds = array<i64: 1, 1, 128>}, {transform_indices = @transform_3, window_bounds = array<i64: 1, 256, 128>}]} {
    %c0_i32 = arith.constant 0 : i32
    %0 = arith.cmpi eq, %arg3, %c0_i32 : i32
    %1 = arith.extui %0 : i1 to i32
    %c0_i32_0 = arith.constant 0 : i32
    %2 = arith.cmpi ne, %1, %c0_i32_0 : i32
    scf.if %2 {
      %cst_12 = arith.constant 0.000000e+00 : f32
      %14 = vector.broadcast %cst_12 : f32 to vector<256x128xf32>
      %c0_13 = arith.constant 0 : index
      %c0_14 = arith.constant 0 : index
      %15 = vector.load %arg8[%c0_13, %c0_14] : memref<256x128xf32, #tpu.memory_space<vmem>>, vector<256x128xf32>
      tpu.vector_store %arg8[%c0_13, %c0_14], %14 {strides = array<i32>} : memref<256x128xf32, #tpu.memory_space<vmem>>, vector<256x128xf32>,
    } else {
    }
    %c0 = arith.constant 0 : index
    %c0_1 = arith.constant 0 : index
    %3 = vector.load %arg8[%c0, %c0_1] : memref<256x128xf32, #tpu.memory_space<vmem>>, vector<256x128xf32>
    %c0_2 = arith.constant 0 : index
    %c0_3 = arith.constant 0 : index
    %c0_4 = arith.constant 0 : index
    %4 = vector.load %arg4[%c0_2, %c0_3, %c0_4] : memref<1x256x128xbf16, #tpu.memory_space<vmem>>, vector<1x256x128xbf16>
    %5 = vector.shape_cast %4 : vector<1x256x128xbf16> to vector<256x128xbf16>
    %c0_5 = arith.constant 0 : index
    %c0_6 = arith.constant 0 : index
    %c0_7 = arith.constant 0 : index
    %6 = vector.load %arg5[%c0_5, %c0_6, %c0_7] : memref<1x128x128xbf16, #tpu.memory_space<vmem>>, vector<1x128x128xbf16>
    %7 = vector.shape_cast %6 : vector<1x128x128xbf16> to vector<128x128xbf16>
    %cst = arith.constant dense<0.000000e+00> : vector<256x128xf32>
    %8 = tpu.matmul %5, %7, %cst {dimension_numbers = #tpu.dot_dimension_numbers<[1], [0], [0], [1], [0, 0, 1, 1], [], []>} : vector<256x128xbf16>, vector<128x128xbf16>, vector<256x128xf32> -> vector<256x128xf32>
    %9 = arith.addf %3, %8 : vector<256x128xf32>
    %c0_8 = arith.constant 0 : index
    %c0_9 = arith.constant 0 : index
    %10 = vector.load %arg8[%c0_8, %c0_9] : memref<256x128xf32, #tpu.memory_space<vmem>>, vector<256x128xf32>
    tpu.vector_store %arg8[%c0_8, %c0_9], %9 {strides = array<i32>} : memref<256x128xf32, #tpu.memory_space<vmem>>, vector<256x128xf32>,
    %c0_i32_10 = arith.constant 0 : i32
    %11 = arith.cmpi eq, %arg3, %c0_i32_10 : i32
    %12 = arith.extui %11 : i1 to i32
    %c0_i32_11 = arith.constant 0 : i32
    %13 = arith.cmpi ne, %12, %c0_i32_11 : i32
    scf.if %13 {
      %c0_12 = arith.constant 0 : index
      %c0_13 = arith.constant 0 : index
      %14 = vector.load %arg8[%c0_12, %c0_13] : memref<256x128xf32, #tpu.memory_space<vmem>>, vector<256x128xf32>
      %c0_14 = arith.constant 0 : index
      %c0_15 = arith.constant 0 : index
      %c0_16 = arith.constant 0 : index
      %15 = vector.load %arg6[%c0_14, %c0_15, %c0_16] : memref<1x1x128xf32, #tpu.memory_space<vmem>>, vector<1x1x128xf32>
      %16 = vector.shape_cast %15 : vector<1x1x128xf32> to vector<1x128xf32>
      %17 = vector.broadcast %16 : vector<1x128xf32> to vector<256x128xf32>
      %18 = arith.addf %14, %17 : vector<256x128xf32>
      %cst_17 = arith.constant 0.000000e+00 : f32
      %19 = vector.broadcast %cst_17 : f32 to vector<256x128xf32>
      %20 = arith.maximumf %18, %19 : vector<256x128xf32>
      %c0_18 = arith.constant 0 : index
      %c0_19 = arith.constant 0 : index
      %c0_20 = arith.constant 0 : index
      %21 = vector.load %arg7[%c0_18, %c0_19, %c0_20] : memref<1x256x128xf32, #tpu.memory_space<vmem>>, vector<1x256x128xf32>
      %22 = vector.shape_cast %21 : vector<1x256x128xf32> to vector<256x128xf32>
      %23 = vector.shape_cast %20 : vector<256x128xf32> to vector<1x256x128xf32>
      tpu.vector_store %arg7[%c0_18, %c0_19, %c0_20], %23 {strides = array<i32>} : memref<1x256x128xf32, #tpu.memory_space<vmem>>, vector<1x256x128xf32>,
    } else {
    }
    return
  }
  func.func @transform_0(%arg0: i32, %arg1: i32, %arg2: i32, %arg3: i32) -> (i32, i32, i32) {
    %c0_i32 = arith.constant 0 : i32
    return %arg0, %arg1, %arg3 : i32, i32, i32
  }
  func.func @transform_1(%arg0: i32, %arg1: i32, %arg2: i32, %arg3: i32) -> (i32, i32, i32) {
    %c0_i32 = arith.constant 0 : i32
    return %arg0, %arg3, %arg2 : i32, i32, i32
  }
  func.func @transform_2(%arg0: i32, %arg1: i32, %arg2: i32, %arg3: i32) -> (i32, i32, i32) {
    %c0_i32 = arith.constant 0 : i32
    %c0_i32_0 = arith.constant 0 : i32
    return %arg0, %c0_i32, %arg2 : i32, i32, i32
  }
  func.func @transform_3(%arg0: i32, %arg1: i32, %arg2: i32, %arg3: i32) -> (i32, i32, i32) {
    %c0_i32 = arith.constant 0 : i32
    return %arg0, %arg1, %arg2 : i32, i32, i32
  }
}

module attributes {stable_mosaic.version = 11 : i64} {
  func.func @_gmm_kernel(%arg0: i32, %arg1: i32, %arg2: i32, %arg3: i32, %arg4: memref<1x256x256xbf16, #tpu.memory_space<vmem>>, %arg5: memref<1x256x128xbf16, #tpu.memory_space<vmem>>, %arg6: memref<1x1x128xf32, #tpu.memory_space<vmem>>, %arg7: memref<1x256x128xf32, #tpu.memory_space<vmem>>, %arg8: memref<256x128xf32, #tpu.memory_space<vmem>>) attributes {dimension_semantics = [#tpu.dimension_semantics<parallel>, #tpu.dimension_semantics<parallel>, #tpu.dimension_semantics<parallel>, #tpu.dimension_semantics<arbitrary>], iteration_bounds = array<i64: 4, 1, 1, 1>, scalar_prefetch = 0 : i64, scratch_operands = 1 : i64, tpu.core_type = #tpu.core_type<tc>, window_params = [{transform_indices = @transform_0, window_bounds = array<i64: 1, 256, 256>}, {transform_indices = @transform_1, window_bounds = array<i64: 1, 256, 128>}, {transform_indices = @transform_2, window_bounds = array<i64: 1, 1, 128>}, {transform_indices = @transform_3, window_bounds = array<i64: 1, 256, 128>}]} {
    %c0_i32 = arith.constant 0 : i32
    %0 = arith.cmpi eq, %arg3, %c0_i32 : i32
    %1 = arith.extui %0 : i1 to i32
    %c0_i32_0 = arith.constant 0 : i32
    %2 = arith.cmpi ne, %1, %c0_i32_0 : i32
    scf.if %2 {
      %cst_12 = arith.constant 0.000000e+00 : f32
      %14 = vector.broadcast %cst_12 : f32 to vector<256x128xf32>
      %c0_13 = arith.constant 0 : index
      %c0_14 = arith.constant 0 : index
      %15 = vector.load %arg8[%c0_13, %c0_14] : memref<256x128xf32, #tpu.memory_space<vmem>>, vector<256x128xf32>
      tpu.vector_store %arg8[%c0_13, %c0_14], %14 {strides = array<i32>} : memref<256x128xf32, #tpu.memory_space<vmem>>, vector<256x128xf32>,
    } else {
    }
    %c0 = arith.constant 0 : index
    %c0_1 = arith.constant 0 : index
    %3 = vector.load %arg8[%c0, %c0_1] : memref<256x128xf32, #tpu.memory_space<vmem>>, vector<256x128xf32>
    %c0_2 = arith.constant 0 : index
    %c0_3 = arith.constant 0 : index
    %c0_4 = arith.constant 0 : index
    %4 = vector.load %arg4[%c0_2, %c0_3, %c0_4] : memref<1x256x256xbf16, #tpu.memory_space<vmem>>, vector<1x256x256xbf16>
    %5 = vector.shape_cast %4 : vector<1x256x256xbf16> to vector<256x256xbf16>
    %c0_5 = arith.constant 0 : index
    %c0_6 = arith.constant 0 : index
    %c0_7 = arith.constant 0 : index
    %6 = vector.load %arg5[%c0_5, %c0_6, %c0_7] : memref<1x256x128xbf16, #tpu.memory_space<vmem>>, vector<1x256x128xbf16>
    %7 = vector.shape_cast %6 : vector<1x256x128xbf16> to vector<256x128xbf16>
    %cst = arith.constant dense<0.000000e+00> : vector<256x128xf32>
    %8 = tpu.matmul %5, %7, %cst {dimension_numbers = #tpu.dot_dimension_numbers<[1], [0], [0], [1], [0, 0, 1, 1], [], []>} : vector<256x256xbf16>, vector<256x128xbf16>, vector<256x128xf32> -> vector<256x128xf32>
    %9 = arith.addf %3, %8 : vector<256x128xf32>
    %c0_8 = arith.constant 0 : index
    %c0_9 = arith.constant 0 : index
    %10 = vector.load %arg8[%c0_8, %c0_9] : memref<256x128xf32, #tpu.memory_space<vmem>>, vector<256x128xf32>
    tpu.vector_store %arg8[%c0_8, %c0_9], %9 {strides = array<i32>} : memref<256x128xf32, #tpu.memory_space<vmem>>, vector<256x128xf32>,
    %c0_i32_10 = arith.constant 0 : i32
    %11 = arith.cmpi eq, %arg3, %c0_i32_10 : i32
    %12 = arith.extui %11 : i1 to i32
    %c0_i32_11 = arith.constant 0 : i32
    %13 = arith.cmpi ne, %12, %c0_i32_11 : i32
    scf.if %13 {
      %c0_12 = arith.constant 0 : index
      %c0_13 = arith.constant 0 : index
      %14 = vector.load %arg8[%c0_12, %c0_13] : memref<256x128xf32, #tpu.memory_space<vmem>>, vector<256x128xf32>
      %c0_14 = arith.constant 0 : index
      %c0_15 = arith.constant 0 : index
      %c0_16 = arith.constant 0 : index
      %15 = vector.load %arg6[%c0_14, %c0_15, %c0_16] : memref<1x1x128xf32, #tpu.memory_space<vmem>>, vector<1x1x128xf32>
      %16 = vector.shape_cast %15 : vector<1x1x128xf32> to vector<1x128xf32>
      %17 = vector.broadcast %16 : vector<1x128xf32> to vector<256x128xf32>
      %18 = arith.addf %14, %17 : vector<256x128xf32>
      %cst_17 = arith.constant 0.000000e+00 : f32
      %19 = vector.broadcast %cst_17 : f32 to vector<256x128xf32>
      %20 = arith.maximumf %18, %19 : vector<256x128xf32>
      %c0_18 = arith.constant 0 : index
      %c0_19 = arith.constant 0 : index
      %c0_20 = arith.constant 0 : index
      %21 = vector.load %arg7[%c0_18, %c0_19, %c0_20] : memref<1x256x128xf32, #tpu.memory_space<vmem>>, vector<1x256x128xf32>
      %22 = vector.shape_cast %21 : vector<1x256x128xf32> to vector<256x128xf32>
      %23 = vector.shape_cast %20 : vector<256x128xf32> to vector<1x256x128xf32>
      tpu.vector_store %arg7[%c0_18, %c0_19, %c0_20], %23 {strides = array<i32>} : memref<1x256x128xf32, #tpu.memory_space<vmem>>, vector<1x256x128xf32>,
    } else {
    }
    return
  }
  func.func @transform_0(%arg0: i32, %arg1: i32, %arg2: i32, %arg3: i32) -> (i32, i32, i32) {
    %c0_i32 = arith.constant 0 : i32
    return %arg0, %arg1, %arg3 : i32, i32, i32
  }
  func.func @transform_1(%arg0: i32, %arg1: i32, %arg2: i32, %arg3: i32) -> (i32, i32, i32) {
    %c0_i32 = arith.constant 0 : i32
    return %arg0, %arg3, %arg2 : i32, i32, i32
  }
  func.func @transform_2(%arg0: i32, %arg1: i32, %arg2: i32, %arg3: i32) -> (i32, i32, i32) {
    %c0_i32 = arith.constant 0 : i32
    %c0_i32_0 = arith.constant 0 : i32
    return %arg0, %c0_i32, %arg2 : i32, i32, i32
  }
  func.func @transform_3(%arg0: i32, %arg1: i32, %arg2: i32, %arg3: i32) -> (i32, i32, i32) {
    %c0_i32 = arith.constant 0 : i32
    return %arg0, %arg1, %arg2 : i32, i32, i32
  }
}

</mosaic_0001>

<llo_original>
// kernel: forward.8
$region0: #{forward.8}
  #allocation0 [shape = 'u32[]', space=smem, size = 0x4, offset = 0x4, fixed_abs, tag = 'smem constant byte address 0x4 - core index']
  #allocation1 [shape = 'u32[72,128]{1,0:T(1,128)}', space=vmem, size = 0x9000, scoped, tag = 'internal scratch']
  #allocation2 [shape = 'f32[256,128]{1,0:T(8,128)}', space=vmem, size = 0x20000, scoped, tag = 'scratch operand']
  %s0 = inlined_call_operand.vmem [shape: bf16[1,512,128], index: 0, kind: input, shape index: {}]
  %s1 = inlined_call_operand.vmem [shape: bf16[1,128,128], index: 1, kind: input, shape index: {}]
  %s2 = inlined_call_operand.vmem [shape: f32[1,1,128], index: 2, kind: input, shape index: {}]
  %s3 = inlined_call_operand.vmem [shape: f32[1,512,128], index: 3, kind: output, shape index: {}]
  %s4 = sld [smem:[#allocation0]]
  $region53: #{forward.8} parent=0
    _
  %s6 = ssub.s32 1, %s4
  %s7 = scalar_select 0, %s6, %s4
  loop: start=0, step=1, limit=4
  $region2: #{forward.8} parent=0 // loop_pre_header
    _
  $region3: #{forward.8} parent=0 // loop_header
    %s9 = sphi 0, %s13
    %p10 = scmp.ge.s32.totalorder %s9, 4
    %s16 = sphi 0, %s42
    %s17 = sphi 0, %s38
    %s18 = sphi 0, %s34
    %s19 = sphi 0, %s30
    %s20 = sphi 0, %s16
    %s21 = sphi 0, %s17
    %s22 = sphi 0, %s18
    %s23 = sphi 0, %s19
    %s24 = sphi 0, %s20
    %s25 = sphi 0, %s21
    %s26 = sphi 0, %s22
    %s27 = sphi 0, %s23
    %s49 = sphi 0, %s51
    %s52 = sphi 0, %s49
    %s53 = sphi 0, %s52
    %s69 = sphi 0, %s53
    %s79 = sphi 0, %s81
    %s82 = sphi 0, %s79
    %s83 = sphi 0, %s82
    %s99 = sphi 0, %s83
    %s107 = sphi 0, %s109
    %s110 = sphi 0, %s107
    %s111 = sphi 0, %s110
    %s127 = sphi 0, %s111
    %s137 = sphi 0, %s139
    %s140 = sphi 0, %s137
    %s141 = sphi 0, %s140
    %s157 = sphi 0, %s141
  $region4: #{forward.8} parent=0 // loop_header_branch
    %12 = sbr.rel (%p10) target = $region8
  $region5: #{forward.8} parent=0 // loop_body
    %s14 = ssub.s32 %s9, 1
    %s15 = ssub.s32 %s9, 2
    %s28 = sadd.s32 1, %s19
    %p29 = scmp.ge.s32.totalorder %s28, 1
    %s30 = scalar_select %p29, 0, %s28
    %s31 = sadd.s32 1, %s18
    %s32 = scalar_select %p29, %s31, %s18
    %p33 = scmp.ge.s32.totalorder %s32, 1
    %s34 = scalar_select %p33, 0, %s32
    %s35 = sadd.s32 1, %s17
    %s36 = scalar_select %p33, %s35, %s17
    %p37 = scmp.ge.s32.totalorder %s36, 2
    %s38 = scalar_select %p37, 0, %s36
    %s39 = sadd.s32 1, %s16
    %s40 = scalar_select %p37, %s39, %s16
    %p41 = scmp.ge.s32.totalorder %s40, 1
    %s42 = scalar_select %p41, 0, %s40
    %s43 = ssub.s32 %s16, %s42
    %s44 = ssub.s32 %s17, %s38
    %s45 = sor.u32 %s43, %s44
    %s46 = ssub.s32 %s19, %s30
    %s47 = sor.u32 %s45, %s46
    %p48 = scmp.eq.s32.totalorder %s47, 0
    %s50 = sadd.s32 %s49, 1
    %s51 = scalar_select %p48, %s49, %s50
    %p54 = pneg %p48
    %p55 = scmp.eq.s32.totalorder %s9, 1
    %p56 = por %p54, %p55
    %p57 = scmp.ne.s32.totalorder %s49, %s52
    %p58 = scmp.eq.s32.totalorder %s9, 0
    %p59 = por %p57, %p58
    %p60 = scmp.ne.s32.totalorder %s49, %s52
    %p61 = scmp.eq.s32.totalorder %s14, 1
    %p62 = por %p60, %p61
    %p63 = scmp.ne.s32.totalorder %s52, %s53
    %p64 = scmp.eq.s32.totalorder %s14, 0
    %p65 = por %p63, %p64
    %p66 = scmp.ne.s32.totalorder %s52, %s53
    %p67 = scmp.eq.s32.totalorder %s15, 1
    %p68 = por %p66, %p67
    %p70 = scmp.ne.s32.totalorder %s53, %s69
    %p71 = scmp.eq.s32.totalorder %s15, 0
    %p72 = por %p70, %p71
    %s73 = ssub.s32 %s16, %s42
    %s74 = ssub.s32 %s19, %s30
    %s75 = sor.u32 %s73, %s74
    %s76 = ssub.s32 %s18, %s34
    %s77 = sor.u32 %s75, %s76
    %p78 = scmp.eq.s32.totalorder %s77, 0
    %s80 = sadd.s32 %s79, 1
    %s81 = scalar_select %p78, %s79, %s80
    %p84 = pneg %p78
    %p85 = scmp.eq.s32.totalorder %s9, 1
    %p86 = por %p84, %p85
    %p87 = scmp.ne.s32.totalorder %s79, %s82
    %p88 = scmp.eq.s32.totalorder %s9, 0
    %p89 = por %p87, %p88
    %p90 = scmp.ne.s32.totalorder %s79, %s82
    %p91 = scmp.eq.s32.totalorder %s14, 1
    %p92 = por %p90, %p91
    %p93 = scmp.ne.s32.totalorder %s82, %s83
    %p94 = scmp.eq.s32.totalorder %s14, 0
    %p95 = por %p93, %p94
    %p96 = scmp.ne.s32.totalorder %s82, %s83
    %p97 = scmp.eq.s32.totalorder %s15, 1
    %p98 = por %p96, %p97
    %p100 = scmp.ne.s32.totalorder %s83, %s99
    %p101 = scmp.eq.s32.totalorder %s15, 0
    %p102 = por %p100, %p101
    %s103 = ssub.s32 %s16, %s42
    %s104 = ssub.s32 %s18, %s34
    %s105 = sor.u32 %s103, %s104
    %p106 = scmp.eq.s32.totalorder %s105, 0
    %s108 = sadd.s32 %s107, 1
    %s109 = scalar_select %p106, %s107, %s108
    %p112 = pneg %p106
    %p113 = scmp.eq.s32.totalorder %s9, 1
    %p114 = por %p112, %p113
    %p115 = scmp.ne.s32.totalorder %s107, %s110
    %p116 = scmp.eq.s32.totalorder %s9, 0
    %p117 = por %p115, %p116
    %p118 = scmp.ne.s32.totalorder %s107, %s110
    %p119 = scmp.eq.s32.totalorder %s14, 1
    %p120 = por %p118, %p119
    %p121 = scmp.ne.s32.totalorder %s110, %s111
    %p122 = scmp.eq.s32.totalorder %s14, 0
    %p123 = por %p121, %p122
    %p124 = scmp.ne.s32.totalorder %s110, %s111
    %p125 = scmp.eq.s32.totalorder %s15, 1
    %p126 = por %p124, %p125
    %p128 = scmp.ne.s32.totalorder %s111, %s127
    %p129 = scmp.eq.s32.totalorder %s15, 0
    %p130 = por %p128, %p129
    %s131 = ssub.s32 %s16, %s42
    %s132 = ssub.s32 %s17, %s38
    %s133 = sor.u32 %s131, %s132
    %s134 = ssub.s32 %s18, %s34
    %s135 = sor.u32 %s133, %s134
    %p136 = scmp.eq.s32.totalorder %s135, 0
    %s138 = sadd.s32 %s137, 1
    %s139 = scalar_select %p136, %s137, %s138
    %p142 = pneg %p136
    %p143 = scmp.eq.s32.totalorder %s9, 1
    %p144 = por %p142, %p143
    %p145 = scmp.ne.s32.totalorder %s137, %s140
    %p146 = scmp.eq.s32.totalorder %s9, 0
    %p147 = por %p145, %p146
    %p148 = scmp.ne.s32.totalorder %s137, %s140
    %p149 = scmp.eq.s32.totalorder %s14, 1
    %p150 = por %p148, %p149
    %p151 = scmp.ne.s32.totalorder %s140, %s141
    %p152 = scmp.eq.s32.totalorder %s14, 0
    %p153 = por %p151, %p152
    %p154 = scmp.ne.s32.totalorder %s140, %s141
    %p155 = scmp.eq.s32.totalorder %s15, 1
    %p156 = por %p154, %p155
    %p158 = scmp.ne.s32.totalorder %s141, %s157
    %p159 = scmp.eq.s32.totalorder %s15, 0
    %p160 = por %p158, %p159
    %p161 = scmp.le.s32.totalorder 1, %s9
    %p162 = scmp.lt.s32.totalorder %s9, 3
    %p163 = pnand %p161, %p162
    %p164 = pneg %p163
    // Predicated region
    $region9: #{forward.8} parent=5 // pred_check
      _
    $region10: #{forward.8} parent=5 // pred_check_branch
      %166 = sbr.rel (%p163) target = $region12
    $region11: #{forward.8} parent=5 // pred_region
      %s167 = ssub.s32 %s9, 1
      // Predicated region
      $region13: #{forward.8} parent=11 // pred_check
        %p168 = pneg %p95
      $region14: #{forward.8} parent=11 // pred_check_branch
        %170 = sbr.rel (%p168) target = $region16
      $region15: #{forward.8} parent=11 // pred_region
        %s171 = smul.u32 16, %s23
        %p172 = scmp.lt.s32.totalorder %s20, 0
        %s173 = scalar_select %p172, %s20, 0
        %p174 = scmp.lt.s32.totalorder %s171, 15
        %s175 = scalar_select %p174, %s171, 15
        %p176 = scmp.lt.s32.totalorder %s22, 0
        %s177 = scalar_select %p176, %s22, 0
        %s178 = sadd.s32 %s177, %s175
        %s179 = smul.addr %s173, 16
        %s180 = sadd.s32 %s178, %s179
        %s181 = smul.addr %s180, 4
        %s182 = scalar_lea.vmem %s1, %s181
        %s183 = smul.u32 16, %s23
      $region16: #{forward.8} parent=11 // pred_fallthru
        _
      // Predicated region
      $region17: #{forward.8} parent=11 // pred_check
        %p184 = pneg %p123
      $region18: #{forward.8} parent=11 // pred_check_branch
        %186 = sbr.rel (%p184) target = $region20
      $region19: #{forward.8} parent=11 // pred_region
        %p187 = scmp.lt.s32.totalorder %s20, 0
        %s188 = scalar_select %p187, %s20, 0
        %p189 = scmp.lt.s32.totalorder %s22, 0
        %s190 = scalar_select %p189, %s22, 0
        %s191 = sadd.s32 %s190, %s188
        %s192 = scalar_lea.vmem %s2, %s191
      $region20: #{forward.8} parent=11 // pred_fallthru
        _
    $region12: #{forward.8} parent=5 // pred_fallthru
      _
    %p193 = scmp.lt.s32.totalorder %s9, 2
    // Predicated region
    $region21: #{forward.8} parent=5 // pred_check
      %p194 = pneg %p193
    $region22: #{forward.8} parent=5 // pred_check_branch
      %196 = sbr.rel (%p194) target = $region24
    $region23: #{forward.8} parent=5 // pred_region
      // Predicated region
      $region25: #{forward.8} parent=23 // pred_check
        %p197 = pneg %p59
      $region26: #{forward.8} parent=23 // pred_check_branch
        %199 = sbr.rel (%p197) target = $region28
      $region27: #{forward.8} parent=23 // pred_region
        %s200 = smul.u32 32, %s17
        %p201 = scmp.lt.s32.totalorder %s16, 0
        %s202 = scalar_select %p201, %s16, 0
        %p203 = scmp.lt.s32.totalorder %s200, 63
        %s204 = scalar_select %p203, %s200, 63
        %p205 = scmp.lt.s32.totalorder %s19, 0
        %s206 = scalar_select %p205, %s19, 0
        %s207 = sadd.s32 %s206, %s204
        %s208 = smul.addr %s202, 64
        %s209 = sadd.s32 %s207, %s208
        %s210 = smul.addr %s209, 4
        %s211 = scalar_lea.vmem %s0, %s210
        %s212 = smul.u32 32, %s17
      $region28: #{forward.8} parent=23 // pred_fallthru
        _
    $region24: #{forward.8} parent=5 // pred_fallthru
      _
    %p213 = scmp.le.s32.totalorder 1, %s9
    %p214 = scmp.lt.s32.totalorder %s9, 3
    %p215 = pnand %p213, %p214
    %p216 = pneg %p215
    // Predicated region
    $region29: #{forward.8} parent=5 // pred_check
      _
    $region30: #{forward.8} parent=5 // pred_check_branch
      %218 = sbr.rel (%p215) target = $region32
    $region31: #{forward.8} parent=5 // pred_region
      %s219 = ssub.s32 %s9, 1
      %s220 = smul.u32 32, %s21
      %p221 = scmp.lt.s32.totalorder %s20, 0
      %s222 = scalar_select %p221, %s20, 0
      %p223 = scmp.lt.s32.totalorder %s220, 63
      %s224 = scalar_select %p223, %s220, 63
      %p225 = scmp.lt.s32.totalorder %s23, 0
      %s226 = scalar_select %p225, %s23, 0
      %s227 = sadd.s32 %s226, %s224
      %s228 = smul.addr %s222, 64
      %s229 = sadd.s32 %s227, %s228
      %s230 = smul.addr %s229, 4
      %s231 = scalar_lea.vmem %s0, %s230
      %p232 = pneg %p65
      %p233 = pneg %p62
      %s234 = smul.u32 16, %s23
      %p235 = scmp.lt.s32.totalorder %s20, 0
      %s236 = scalar_select %p235, %s20, 0
      %p237 = scmp.lt.s32.totalorder %s234, 15
      %s238 = scalar_select %p237, %s234, 15
      %p239 = scmp.lt.s32.totalorder %s22, 0
      %s240 = scalar_select %p239, %s22, 0
      %s241 = sadd.s32 %s240, %s238
      %s242 = smul.addr %s236, 16
      %s243 = sadd.s32 %s241, %s242
      %s244 = smul.addr %s243, 4
      %s245 = scalar_lea.vmem %s1, %s244
      %p246 = pneg %p95
      %p247 = pneg %p92
      %p248 = scmp.lt.s32.totalorder %s20, 0
      %s249 = scalar_select %p248, %s20, 0
      %p250 = scmp.lt.s32.totalorder %s22, 0
      %s251 = scalar_select %p250, %s22, 0
      %s252 = sadd.s32 %s251, %s249
      %s253 = scalar_lea.vmem %s2, %s252
      %p254 = pneg %p123
      %p255 = pneg %p120
      %p256 = pneg %p153
      %p257 = pneg %p150
      %s258 = smul.u32 32, %s21
      %p259 = scmp.lt.s32.totalorder %s20, 0
      %s260 = scalar_select %p259, %s20, 0
      %p261 = scmp.lt.s32.totalorder %s258, 63
      %s262 = scalar_select %p261, %s258, 63
      %p263 = scmp.lt.s32.totalorder %s22, 0
      %s264 = scalar_select %p263, %s22, 0
      %s265 = sadd.s32 %s264, %s262
      %s266 = smul.addr %s260, 64
      %s267 = sadd.s32 %s265, %s266
      %s268 = smul.addr %s267, 8
      %s269 = scalar_lea.vmem %s3, %s268
      %s270 = smul.u32 32, %s21
      %p271 = scmp.lt.s32.totalorder %s20, 0
      %s272 = scalar_select %p271, %s20, 0
      %p273 = scmp.lt.s32.totalorder %s270, 63
      %s274 = scalar_select %p273, %s270, 63
      %p275 = scmp.lt.s32.totalorder %s23, 0
      %s276 = scalar_select %p275, %s23, 0
      %s277 = sadd.s32 %s276, %s274
      %s278 = smul.addr %s272, 64
      %s279 = sadd.s32 %s277, %s278
      %s280 = smul.addr %s279, 4
      %s281 = scalar_lea.vmem %s0, %s280
      %s282 = smul.u32 32, %s21
      %s283 = smul.u32 16, %s23
      %p284 = scmp.lt.s32.totalorder %s20, 0
      %s285 = scalar_select %p284, %s20, 0
      %p286 = scmp.lt.s32.totalorder %s283, 15
      %s287 = scalar_select %p286, %s283, 15
      %p288 = scmp.lt.s32.totalorder %s22, 0
      %s289 = scalar_select %p288, %s22, 0
      %s290 = sadd.s32 %s289, %s287
      %s291 = smul.addr %s285, 16
      %s292 = sadd.s32 %s290, %s291
      %s293 = smul.addr %s292, 4
      %s294 = scalar_lea.vmem %s1, %s293
      %s295 = smul.u32 16, %s23
      %p296 = scmp.lt.s32.totalorder %s20, 0
      %s297 = scalar_select %p296, %s20, 0
      %p298 = scmp.lt.s32.totalorder %s22, 0
      %s299 = scalar_select %p298, %s22, 0
      %s300 = sadd.s32 %s299, %s297
      %s301 = scalar_lea.vmem %s2, %s300
      %s302 = smul.u32 32, %s21
      %p303 = scmp.lt.s32.totalorder %s20, 0
      %s304 = scalar_select %p303, %s20, 0
      %p305 = scmp.lt.s32.totalorder %s302, 63
      %s306 = scalar_select %p305, %s302, 63
      %p307 = scmp.lt.s32.totalorder %s22, 0
      %s308 = scalar_select %p307, %s22, 0
      %s309 = sadd.s32 %s308, %s306
      %s310 = smul.addr %s304, 64
      %s311 = sadd.s32 %s309, %s310
      %s312 = smul.addr %s311, 8
      %s313 = scalar_lea.vmem %s3, %s312
      %s314 = smul.u32 32, %s21
      %p315 = scmp.eq.s32.totalorder %s23, 0
      // Predicated region
      $region33: #{forward.8} parent=31 // pred_check
        %p316 = pneg %p315
      $region34: #{forward.8} parent=31 // pred_check_branch
        %318 = sbr.rel (%p316) target = $region36
      $region35: #{forward.8} parent=31 // pred_region
        %319 = vst [vmem:[#allocation2] sm:$0xff] 0.0
        %320 = vst [vmem:[#allocation2 + $0x8] sm:$0xff] 0.0
        %321 = vst [vmem:[#allocation2 + $0x10] sm:$0xff] 0.0
        %322 = vst [vmem:[#allocation2 + $0x18] sm:$0xff] 0.0
        %323 = vst [vmem:[#allocation2 + $0x20] sm:$0xff] 0.0
        %324 = vst [vmem:[#allocation2 + $0x28] sm:$0xff] 0.0
        %325 = vst [vmem:[#allocation2 + $0x30] sm:$0xff] 0.0
        %326 = vst [vmem:[#allocation2 + $0x38] sm:$0xff] 0.0
        %327 = vst [vmem:[#allocation2 + $0x40] sm:$0xff] 0.0
        %328 = vst [vmem:[#allocation2 + $0x48] sm:$0xff] 0.0
        %329 = vst [vmem:[#allocation2 + $0x50] sm:$0xff] 0.0
        %330 = vst [vmem:[#allocation2 + $0x58] sm:$0xff] 0.0
        %331 = vst [vmem:[#allocation2 + $0x60] sm:$0xff] 0.0
        %332 = vst [vmem:[#allocation2 + $0x68] sm:$0xff] 0.0
        %333 = vst [vmem:[#allocation2 + $0x70] sm:$0xff] 0.0
        %334 = vst [vmem:[#allocation2 + $0x78] sm:$0xff] 0.0
        %335 = vst [vmem:[#allocation2 + $0x80] sm:$0xff] 0.0
        %336 = vst [vmem:[#allocation2 + $0x88] sm:$0xff] 0.0
        %337 = vst [vmem:[#allocation2 + $0x90] sm:$0xff] 0.0
        %338 = vst [vmem:[#allocation2 + $0x98] sm:$0xff] 0.0
        %339 = vst [vmem:[#allocation2 + $0xa0] sm:$0xff] 0.0
        %340 = vst [vmem:[#allocation2 + $0xa8] sm:$0xff] 0.0
        %341 = vst [vmem:[#allocation2 + $0xb0] sm:$0xff] 0.0
        %342 = vst [vmem:[#allocation2 + $0xb8] sm:$0xff] 0.0
        %343 = vst [vmem:[#allocation2 + $0xc0] sm:$0xff] 0.0
        %344 = vst [vmem:[#allocation2 + $0xc8] sm:$0xff] 0.0
        %345 = vst [vmem:[#allocation2 + $0xd0] sm:$0xff] 0.0
        %346 = vst [vmem:[#allocation2 + $0xd8] sm:$0xff] 0.0
        %347 = vst [vmem:[#allocation2 + $0xe0] sm:$0xff] 0.0
        %348 = vst [vmem:[#allocation2 + $0xe8] sm:$0xff] 0.0
        %349 = vst [vmem:[#allocation2 + $0xf0] sm:$0xff] 0.0
        %350 = vst [vmem:[#allocation2 + $0xf8] sm:$0xff] 0.0
      $region36: #{forward.8} parent=31 // pred_fallthru
        _
      %v351 = vld [vmem:[#allocation2] sm:$0xff]
      %v352 = vld [vmem:[#allocation2 + $0x8] sm:$0xff]
      %v353 = vld [vmem:[#allocation2 + $0x10] sm:$0xff]
      %v354 = vld [vmem:[#allocation2 + $0x18] sm:$0xff]
      %v355 = vld [vmem:[#allocation2 + $0x20] sm:$0xff]
      %v356 = vld [vmem:[#allocation2 + $0x28] sm:$0xff]
      %v357 = vld [vmem:[#allocation2 + $0x30] sm:$0xff]
      %v358 = vld [vmem:[#allocation2 + $0x38] sm:$0xff]
      %v359 = vld [vmem:[#allocation2 + $0x40] sm:$0xff]
      %v360 = vld [vmem:[#allocation2 + $0x48] sm:$0xff]
      %v361 = vld [vmem:[#allocation2 + $0x50] sm:$0xff]
      %v362 = vld [vmem:[#allocation2 + $0x58] sm:$0xff]
      %v363 = vld [vmem:[#allocation2 + $0x60] sm:$0xff]
      %v364 = vld [vmem:[#allocation2 + $0x68] sm:$0xff]
      %v365 = vld [vmem:[#allocation2 + $0x70] sm:$0xff]
      %v366 = vld [vmem:[#allocation2 + $0x78] sm:$0xff]
      %v367 = vld [vmem:[#allocation2 + $0x80] sm:$0xff]
      %v368 = vld [vmem:[#allocation2 + $0x88] sm:$0xff]
      %v369 = vld [vmem:[#allocation2 + $0x90] sm:$0xff]
      %v370 = vld [vmem:[#allocation2 + $0x98] sm:$0xff]
      %v371 = vld [vmem:[#allocation2 + $0xa0] sm:$0xff]
      %v372 = vld [vmem:[#allocation2 + $0xa8] sm:$0xff]
      %v373 = vld [vmem:[#allocation2 + $0xb0] sm:$0xff]
      %v374 = vld [vmem:[#allocation2 + $0xb8] sm:$0xff]
      %v375 = vld [vmem:[#allocation2 + $0xc0] sm:$0xff]
      %v376 = vld [vmem:[#allocation2 + $0xc8] sm:$0xff]
      %v377 = vld [vmem:[#allocation2 + $0xd0] sm:$0xff]
      %v378 = vld [vmem:[#allocation2 + $0xd8] sm:$0xff]
      %v379 = vld [vmem:[#allocation2 + $0xe0] sm:$0xff]
      %v380 = vld [vmem:[#allocation2 + $0xe8] sm:$0xff]
      %v381 = vld [vmem:[#allocation2 + $0xf0] sm:$0xff]
      %v382 = vld [vmem:[#allocation2 + $0xf8] sm:$0xff]
      %v383 = vld [vmem:[%s281] sm:$0xf]
      %v384 = vld [vmem:[%s281 + $0x4] sm:$0xf]
      %v385 = vld [vmem:[%s281 + $0x8] sm:$0xf]
      %v386 = vld [vmem:[%s281 + $0xc] sm:$0xf]
      %v387 = vld [vmem:[%s281 + $0x10] sm:$0xf]
      %v388 = vld [vmem:[%s281 + $0x14] sm:$0xf]
      %v389 = vld [vmem:[%s281 + $0x18] sm:$0xf]
      %v390 = vld [vmem:[%s281 + $0x1c] sm:$0xf]
      %v391 = vld [vmem:[%s281 + $0x20] sm:$0xf]
      %v392 = vld [vmem:[%s281 + $0x24] sm:$0xf]
      %v393 = vld [vmem:[%s281 + $0x28] sm:$0xf]
      %v394 = vld [vmem:[%s281 + $0x2c] sm:$0xf]
      %v395 = vld [vmem:[%s281 + $0x30] sm:$0xf]
      %v396 = vld [vmem:[%s281 + $0x34] sm:$0xf]
      %v397 = vld [vmem:[%s281 + $0x38] sm:$0xf]
      %v398 = vld [vmem:[%s281 + $0x3c] sm:$0xf]
      %v399 = vld [vmem:[%s281 + $0x40] sm:$0xf]
      %v400 = vld [vmem:[%s281 + $0x44] sm:$0xf]
      %v401 = vld [vmem:[%s281 + $0x48] sm:$0xf]
      %v402 = vld [vmem:[%s281 + $0x4c] sm:$0xf]
      %v403 = vld [vmem:[%s281 + $0x50] sm:$0xf]
      %v404 = vld [vmem:[%s281 + $0x54] sm:$0xf]
      %v405 = vld [vmem:[%s281 + $0x58] sm:$0xf]
      %v406 = vld [vmem:[%s281 + $0x5c] sm:$0xf]
      %v407 = vld [vmem:[%s281 + $0x60] sm:$0xf]
      %v408 = vld [vmem:[%s281 + $0x64] sm:$0xf]
      %v409 = vld [vmem:[%s281 + $0x68] sm:$0xf]
      %v410 = vld [vmem:[%s281 + $0x6c] sm:$0xf]
      %v411 = vld [vmem:[%s281 + $0x70] sm:$0xf]
      %v412 = vld [vmem:[%s281 + $0x74] sm:$0xf]
      %v413 = vld [vmem:[%s281 + $0x78] sm:$0xf]
      %v414 = vld [vmem:[%s281 + $0x7c] sm:$0xf]
      %v415 = vld [vmem:[%s294] sm:$0xf]
      %v416 = vld [vmem:[%s294 + $0x4] sm:$0xf]
      %v417 = vld [vmem:[%s294 + $0x8] sm:$0xf]
      %v418 = vld [vmem:[%s294 + $0xc] sm:$0xf]
      %v419 = vld [vmem:[%s294 + $0x10] sm:$0xf]
      %v420 = vld [vmem:[%s294 + $0x14] sm:$0xf]
      %v421 = vld [vmem:[%s294 + $0x18] sm:$0xf]
      %v422 = vld [vmem:[%s294 + $0x1c] sm:$0xf]
      %v423 = vld [vmem:[%s294 + $0x20] sm:$0xf]
      %v424 = vld [vmem:[%s294 + $0x24] sm:$0xf]
      %v425 = vld [vmem:[%s294 + $0x28] sm:$0xf]
      %v426 = vld [vmem:[%s294 + $0x2c] sm:$0xf]
      %v427 = vld [vmem:[%s294 + $0x30] sm:$0xf]
      %v428 = vld [vmem:[%s294 + $0x34] sm:$0xf]
      %v429 = vld [vmem:[%s294 + $0x38] sm:$0xf]
      %v430 = vld [vmem:[%s294 + $0x3c] sm:$0xf]
      %v463 = vunpack.c.l.b16 %v383
      %v464 = vunpack.c.l.b16 %v384
      %v465 = vunpack.c.l.b16 %v385
      %v466 = vunpack.c.l.b16 %v386
      %v467 = vunpack.c.l.b16 %v387
      %v468 = vunpack.c.l.b16 %v388
      %v469 = vunpack.c.l.b16 %v389
      %v470 = vunpack.c.l.b16 %v390
      %v471 = vunpack.c.l.b16 %v391
      %v472 = vunpack.c.l.b16 %v392
      %v473 = vunpack.c.l.b16 %v393
      %v474 = vunpack.c.l.b16 %v394
      %v475 = vunpack.c.l.b16 %v395
      %v476 = vunpack.c.l.b16 %v396
      %v477 = vunpack.c.l.b16 %v397
      %v478 = vunpack.c.l.b16 %v398
      %v479 = vunpack.c.l.b16 %v399
      %v480 = vunpack.c.l.b16 %v400
      %v481 = vunpack.c.l.b16 %v401
      %v482 = vunpack.c.l.b16 %v402
      %v483 = vunpack.c.l.b16 %v403
      %v484 = vunpack.c.l.b16 %v404
      %v485 = vunpack.c.l.b16 %v405
      %v486 = vunpack.c.l.b16 %v406
      %v487 = vunpack.c.l.b16 %v407
      %v488 = vunpack.c.l.b16 %v408
      %v489 = vunpack.c.l.b16 %v409
      %v490 = vunpack.c.l.b16 %v410
      %v491 = vunpack.c.l.b16 %v411
      %v492 = vunpack.c.l.b16 %v412
      %v493 = vunpack.c.l.b16 %v413
      %v494 = vunpack.c.l.b16 %v414
      %v495 = vpack.c.b16 %v464, %v463
      %v496 = vpack.c.b16 %v466, %v465
      %v497 = vpack.c.b16 %v468, %v467
      %v498 = vpack.c.b16 %v470, %v469
      %v499 = vpack.c.b16 %v472, %v471
      %v500 = vpack.c.b16 %v474, %v473
      %v501 = vpack.c.b16 %v476, %v475
      %v502 = vpack.c.b16 %v478, %v477
      %v503 = vpack.c.b16 %v480, %v479
      %v504 = vpack.c.b16 %v482, %v481
      %v505 = vpack.c.b16 %v484, %v483
      %v506 = vpack.c.b16 %v486, %v485
      %v507 = vpack.c.b16 %v488, %v487
      %v508 = vpack.c.b16 %v490, %v489
      %v509 = vpack.c.b16 %v492, %v491
      %v510 = vpack.c.b16 %v494, %v493
      %v543 = vunpack.c.l.b16 %v415
      %v544 = vunpack.c.l.b16 %v416
      %v545 = vunpack.c.l.b16 %v417
      %v546 = vunpack.c.l.b16 %v418
      %v547 = vunpack.c.l.b16 %v419
      %v548 = vunpack.c.l.b16 %v420
      %v549 = vunpack.c.l.b16 %v421
      %v550 = vunpack.c.l.b16 %v422
      %v551 = vunpack.c.l.b16 %v423
      %v552 = vunpack.c.l.b16 %v424
      %v553 = vunpack.c.l.b16 %v425
      %v554 = vunpack.c.l.b16 %v426
      %v555 = vunpack.c.l.b16 %v427
      %v556 = vunpack.c.l.b16 %v428
      %v557 = vunpack.c.l.b16 %v429
      %v558 = vunpack.c.l.b16 %v430
      %v559 = vpack.c.b16 %v544, %v543
      %v560 = vpack.c.b16 %v546, %v545
      %v561 = vpack.c.b16 %v548, %v547
      %v562 = vpack.c.b16 %v550, %v549
      %v563 = vpack.c.b16 %v552, %v551
      %v564 = vpack.c.b16 %v554, %v553
      %v565 = vpack.c.b16 %v556, %v555
      %v566 = vpack.c.b16 %v558, %v557
      %575 = vmatpush.bf16.msra.mxu0 %v566
      %576 = vmatpush.bf16.msra.mxu0 %v565
      %577 = vmatpush.bf16.msra.mxu0 %v564
      %578 = vmatpush.bf16.msra.mxu0 %v563
      %579 = vmatpush.bf16.msra.mxu0 %v562
      %580 = vmatpush.bf16.msra.mxu0 %v561
      %581 = vmatpush.bf16.msra.mxu0 %v560
      %582 = vmatpush.bf16.msra.mxu0 %v559
      %583 = vmatmul.bf16.gmra.mxu0 %v495
      %v584 = vpop.f32.mrf.mxu0
      %v585 = vadd.f32 0.0, %v584
      %v586 = vpop.f32.mrf.mxu0
      %v587 = vadd.f32 0.0, %v586
      %588 = vmatmul.bf16.gmra.mxu0 %v496
      %v589 = vpop.f32.mrf.mxu0
      %v590 = vadd.f32 0.0, %v589
      %v591 = vpop.f32.mrf.mxu0
      %v592 = vadd.f32 0.0, %v591
      %593 = vmatmul.bf16.gmra.mxu0 %v497
      %v594 = vpop.f32.mrf.mxu0
      %v595 = vadd.f32 0.0, %v594
      %v596 = vpop.f32.mrf.mxu0
      %v597 = vadd.f32 0.0, %v596
      %598 = vmatmul.bf16.gmra.mxu0 %v498
      %v599 = vpop.f32.mrf.mxu0
      %v600 = vadd.f32 0.0, %v599
      %v601 = vpop.f32.mrf.mxu0
      %v602 = vadd.f32 0.0, %v601
      %603 = vmatmul.bf16.gmra.mxu0 %v499
      %v604 = vpop.f32.mrf.mxu0
      %v605 = vadd.f32 0.0, %v604
      %v606 = vpop.f32.mrf.mxu0
      %v607 = vadd.f32 0.0, %v606
      %608 = vmatmul.bf16.gmra.mxu0 %v500
      %v609 = vpop.f32.mrf.mxu0
      %v610 = vadd.f32 0.0, %v609
      %v611 = vpop.f32.mrf.mxu0
      %v612 = vadd.f32 0.0, %v611
      %613 = vmatmul.bf16.gmra.mxu0 %v501
      %v614 = vpop.f32.mrf.mxu0
      %v615 = vadd.f32 0.0, %v614
      %v616 = vpop.f32.mrf.mxu0
      %v617 = vadd.f32 0.0, %v616
      %618 = vmatmul.bf16.gmra.mxu0 %v502
      %v619 = vpop.f32.mrf.mxu0
      %v620 = vadd.f32 0.0, %v619
      %v621 = vpop.f32.mrf.mxu0
      %v622 = vadd.f32 0.0, %v621
      %623 = vmatmul.bf16.gmra.mxu0 %v503
      %v624 = vpop.f32.mrf.mxu0
      %v625 = vadd.f32 0.0, %v624
      %v626 = vpop.f32.mrf.mxu0
      %v627 = vadd.f32 0.0, %v626
      %628 = vmatmul.bf16.gmra.mxu0 %v504
      %v629 = vpop.f32.mrf.mxu0
      %v630 = vadd.f32 0.0, %v629
      %v631 = vpop.f32.mrf.mxu0
      %v632 = vadd.f32 0.0, %v631
      %633 = vmatmul.bf16.gmra.mxu0 %v505
      %v634 = vpop.f32.mrf.mxu0
      %v635 = vadd.f32 0.0, %v634
      %v636 = vpop.f32.mrf.mxu0
      %v637 = vadd.f32 0.0, %v636
      %638 = vmatmul.bf16.gmra.mxu0 %v506
      %v639 = vpop.f32.mrf.mxu0
      %v640 = vadd.f32 0.0, %v639
      %v641 = vpop.f32.mrf.mxu0
      %v642 = vadd.f32 0.0, %v641
      %643 = vmatmul.bf16.gmra.mxu0 %v507
      %v644 = vpop.f32.mrf.mxu0
      %v645 = vadd.f32 0.0, %v644
      %v646 = vpop.f32.mrf.mxu0
      %v647 = vadd.f32 0.0, %v646
      %648 = vmatmul.bf16.gmra.mxu0 %v508
      %v649 = vpop.f32.mrf.mxu0
      %v650 = vadd.f32 0.0, %v649
      %v651 = vpop.f32.mrf.mxu0
      %v652 = vadd.f32 0.0, %v651
      %653 = vmatmul.bf16.gmra.mxu0 %v509
      %v654 = vpop.f32.mrf.mxu0
      %v655 = vadd.f32 0.0, %v654
      %v656 = vpop.f32.mrf.mxu0
      %v657 = vadd.f32 0.0, %v656
      %658 = vmatmul.bf16.gmra.mxu0 %v510
      %v659 = vpop.f32.mrf.mxu0
      %v660 = vadd.f32 0.0, %v659
      %v661 = vpop.f32.mrf.mxu0
      %v662 = vadd.f32 0.0, %v661
      %663 = vdwg.mxu0
      %v664 = vadd.f32 %v351, %v585
      %v665 = vadd.f32 %v352, %v587
      %v666 = vadd.f32 %v353, %v590
      %v667 = vadd.f32 %v354, %v592
      %v668 = vadd.f32 %v355, %v595
      %v669 = vadd.f32 %v356, %v597
      %v670 = vadd.f32 %v357, %v600
      %v671 = vadd.f32 %v358, %v602
      %v672 = vadd.f32 %v359, %v605
      %v673 = vadd.f32 %v360, %v607
      %v674 = vadd.f32 %v361, %v610
      %v675 = vadd.f32 %v362, %v612
      %v676 = vadd.f32 %v363, %v615
      %v677 = vadd.f32 %v364, %v617
      %v678 = vadd.f32 %v365, %v620
      %v679 = vadd.f32 %v366, %v622
      %v680 = vadd.f32 %v367, %v625
      %v681 = vadd.f32 %v368, %v627
      %v682 = vadd.f32 %v369, %v630
      %v683 = vadd.f32 %v370, %v632
      %v684 = vadd.f32 %v371, %v635
      %v685 = vadd.f32 %v372, %v637
      %v686 = vadd.f32 %v373, %v640
      %v687 = vadd.f32 %v374, %v642
      %v688 = vadd.f32 %v375, %v645
      %v689 = vadd.f32 %v376, %v647
      %v690 = vadd.f32 %v377, %v650
      %v691 = vadd.f32 %v378, %v652
      %v692 = vadd.f32 %v379, %v655
      %v693 = vadd.f32 %v380, %v657
      %v694 = vadd.f32 %v381, %v660
      %v695 = vadd.f32 %v382, %v662
      %696 = vst [vmem:[#allocation2] sm:$0xff] %v664
      %697 = vst [vmem:[#allocation2 + $0x8] sm:$0xff] %v665
      %698 = vst [vmem:[#allocation2 + $0x10] sm:$0xff] %v666
      %699 = vst [vmem:[#allocation2 + $0x18] sm:$0xff] %v667
      %700 = vst [vmem:[#allocation2 + $0x20] sm:$0xff] %v668
      %701 = vst [vmem:[#allocation2 + $0x28] sm:$0xff] %v669
      %702 = vst [vmem:[#allocation2 + $0x30] sm:$0xff] %v670
      %703 = vst [vmem:[#allocation2 + $0x38] sm:$0xff] %v671
      %704 = vst [vmem:[#allocation2 + $0x40] sm:$0xff] %v672
      %705 = vst [vmem:[#allocation2 + $0x48] sm:$0xff] %v673
      %706 = vst [vmem:[#allocation2 + $0x50] sm:$0xff] %v674
      %707 = vst [vmem:[#allocation2 + $0x58] sm:$0xff] %v675
      %708 = vst [vmem:[#allocation2 + $0x60] sm:$0xff] %v676
      %709 = vst [vmem:[#allocation2 + $0x68] sm:$0xff] %v677
      %710 = vst [vmem:[#allocation2 + $0x70] sm:$0xff] %v678
      %711 = vst [vmem:[#allocation2 + $0x78] sm:$0xff] %v679
      %712 = vst [vmem:[#allocation2 + $0x80] sm:$0xff] %v680
      %713 = vst [vmem:[#allocation2 + $0x88] sm:$0xff] %v681
      %714 = vst [vmem:[#allocation2 + $0x90] sm:$0xff] %v682
      %715 = vst [vmem:[#allocation2 + $0x98] sm:$0xff] %v683
      %716 = vst [vmem:[#allocation2 + $0xa0] sm:$0xff] %v684
      %717 = vst [vmem:[#allocation2 + $0xa8] sm:$0xff] %v685
      %718 = vst [vmem:[#allocation2 + $0xb0] sm:$0xff] %v686
      %719 = vst [vmem:[#allocation2 + $0xb8] sm:$0xff] %v687
      %720 = vst [vmem:[#allocation2 + $0xc0] sm:$0xff] %v688
      %721 = vst [vmem:[#allocation2 + $0xc8] sm:$0xff] %v689
      %722 = vst [vmem:[#allocation2 + $0xd0] sm:$0xff] %v690
      %723 = vst [vmem:[#allocation2 + $0xd8] sm:$0xff] %v691
      %724 = vst [vmem:[#allocation2 + $0xe0] sm:$0xff] %v692
      %725 = vst [vmem:[#allocation2 + $0xe8] sm:$0xff] %v693
      %726 = vst [vmem:[#allocation2 + $0xf0] sm:$0xff] %v694
      %727 = vst [vmem:[#allocation2 + $0xf8] sm:$0xff] %v695
      // Predicated region
      $region37: #{forward.8} parent=31 // pred_check
        %p728 = pneg %p315
      $region38: #{forward.8} parent=31 // pred_check_branch
        %730 = sbr.rel (%p728) target = $region40
      $region39: #{forward.8} parent=31 // pred_region
        %v731 = vld [vmem:[#allocation2] sm:$0xff]
        %v732 = vld [vmem:[#allocation2 + $0x8] sm:$0xff]
        %v733 = vld [vmem:[#allocation2 + $0x10] sm:$0xff]
        %v734 = vld [vmem:[#allocation2 + $0x18] sm:$0xff]
        %v735 = vld [vmem:[#allocation2 + $0x20] sm:$0xff]
        %v736 = vld [vmem:[#allocation2 + $0x28] sm:$0xff]
        %v737 = vld [vmem:[#allocation2 + $0x30] sm:$0xff]
        %v738 = vld [vmem:[#allocation2 + $0x38] sm:$0xff]
        %v739 = vld [vmem:[#allocation2 + $0x40] sm:$0xff]
        %v740 = vld [vmem:[#allocation2 + $0x48] sm:$0xff]
        %v741 = vld [vmem:[#allocation2 + $0x50] sm:$0xff]
        %v742 = vld [vmem:[#allocation2 + $0x58] sm:$0xff]
        %v743 = vld [vmem:[#allocation2 + $0x60] sm:$0xff]
        %v744 = vld [vmem:[#allocation2 + $0x68] sm:$0xff]
        %v745 = vld [vmem:[#allocation2 + $0x70] sm:$0xff]
        %v746 = vld [vmem:[#allocation2 + $0x78] sm:$0xff]
        %v747 = vld [vmem:[#allocation2 + $0x80] sm:$0xff]
        %v748 = vld [vmem:[#allocation2 + $0x88] sm:$0xff]
        %v749 = vld [vmem:[#allocation2 + $0x90] sm:$0xff]
        %v750 = vld [vmem:[#allocation2 + $0x98] sm:$0xff]
        %v751 = vld [vmem:[#allocation2 + $0xa0] sm:$0xff]
        %v752 = vld [vmem:[#allocation2 + $0xa8] sm:$0xff]
        %v753 = vld [vmem:[#allocation2 + $0xb0] sm:$0xff]
        %v754 = vld [vmem:[#allocation2 + $0xb8] sm:$0xff]
        %v755 = vld [vmem:[#allocation2 + $0xc0] sm:$0xff]
        %v756 = vld [vmem:[#allocation2 + $0xc8] sm:$0xff]
        %v757 = vld [vmem:[#allocation2 + $0xd0] sm:$0xff]
        %v758 = vld [vmem:[#allocation2 + $0xd8] sm:$0xff]
        %v759 = vld [vmem:[#allocation2 + $0xe0] sm:$0xff]
        %v760 = vld [vmem:[#allocation2 + $0xe8] sm:$0xff]
        %v761 = vld [vmem:[#allocation2 + $0xf0] sm:$0xff]
        %v762 = vld [vmem:[#allocation2 + $0xf8] sm:$0xff]
        %v763 = vld [vmem:[%s301] sm:$0x1]
        %v765 = vperm.slane %v763, 0
        %v767 = vadd.f32 %v731, %v765
        %v768 = vadd.f32 %v732, %v765
        %v769 = vadd.f32 %v733, %v765
        %v770 = vadd.f32 %v734, %v765
        %v771 = vadd.f32 %v735, %v765
        %v772 = vadd.f32 %v736, %v765
        %v773 = vadd.f32 %v737, %v765
        %v774 = vadd.f32 %v738, %v765
        %v775 = vadd.f32 %v739, %v765
        %v776 = vadd.f32 %v740, %v765
        %v777 = vadd.f32 %v741, %v765
        %v778 = vadd.f32 %v742, %v765
        %v779 = vadd.f32 %v743, %v765
        %v780 = vadd.f32 %v744, %v765
        %v781 = vadd.f32 %v745, %v765
        %v782 = vadd.f32 %v746, %v765
        %v783 = vadd.f32 %v747, %v765
        %v784 = vadd.f32 %v748, %v765
        %v785 = vadd.f32 %v749, %v765
        %v786 = vadd.f32 %v750, %v765
        %v787 = vadd.f32 %v751, %v765
        %v788 = vadd.f32 %v752, %v765
        %v789 = vadd.f32 %v753, %v765
        %v790 = vadd.f32 %v754, %v765
        %v791 = vadd.f32 %v755, %v765
        %v792 = vadd.f32 %v756, %v765
        %v793 = vadd.f32 %v757, %v765
        %v794 = vadd.f32 %v758, %v765
        %v795 = vadd.f32 %v759, %v765
        %v796 = vadd.f32 %v760, %v765
        %v797 = vadd.f32 %v761, %v765
        %v798 = vadd.f32 %v762, %v765
        %v799 = vmax.f32 %v767, 0.0
        %v800 = vmax.f32 %v768, 0.0
        %v801 = vmax.f32 %v769, 0.0
        %v802 = vmax.f32 %v770, 0.0
        %v803 = vmax.f32 %v771, 0.0
        %v804 = vmax.f32 %v772, 0.0
        %v805 = vmax.f32 %v773, 0.0
        %v806 = vmax.f32 %v774, 0.0
        %v807 = vmax.f32 %v775, 0.0
        %v808 = vmax.f32 %v776, 0.0
        %v809 = vmax.f32 %v777, 0.0
        %v810 = vmax.f32 %v778, 0.0
        %v811 = vmax.f32 %v779, 0.0
        %v812 = vmax.f32 %v780, 0.0
        %v813 = vmax.f32 %v781, 0.0
        %v814 = vmax.f32 %v782, 0.0
        %v815 = vmax.f32 %v783, 0.0
        %v816 = vmax.f32 %v784, 0.0
        %v817 = vmax.f32 %v785, 0.0
        %v818 = vmax.f32 %v786, 0.0
        %v819 = vmax.f32 %v787, 0.0
        %v820 = vmax.f32 %v788, 0.0
        %v821 = vmax.f32 %v789, 0.0
        %v822 = vmax.f32 %v790, 0.0
        %v823 = vmax.f32 %v791, 0.0
        %v824 = vmax.f32 %v792, 0.0
        %v825 = vmax.f32 %v793, 0.0
        %v826 = vmax.f32 %v794, 0.0
        %v827 = vmax.f32 %v795, 0.0
        %v828 = vmax.f32 %v796, 0.0
        %v829 = vmax.f32 %v797, 0.0
        %v830 = vmax.f32 %v798, 0.0
        %831 = vst [vmem:[%s313] sm:$0xff] %v799
        %832 = vst [vmem:[%s313 + $0x8] sm:$0xff] %v800
        %833 = vst [vmem:[%s313 + $0x10] sm:$0xff] %v801
        %834 = vst [vmem:[%s313 + $0x18] sm:$0xff] %v802
        %835 = vst [vmem:[%s313 + $0x20] sm:$0xff] %v803
        %836 = vst [vmem:[%s313 + $0x28] sm:$0xff] %v804
        %837 = vst [vmem:[%s313 + $0x30] sm:$0xff] %v805
        %838 = vst [vmem:[%s313 + $0x38] sm:$0xff] %v806
        %839 = vst [vmem:[%s313 + $0x40] sm:$0xff] %v807
        %840 = vst [vmem:[%s313 + $0x48] sm:$0xff] %v808
        %841 = vst [vmem:[%s313 + $0x50] sm:$0xff] %v809
        %842 = vst [vmem:[%s313 + $0x58] sm:$0xff] %v810
        %843 = vst [vmem:[%s313 + $0x60] sm:$0xff] %v811
        %844 = vst [vmem:[%s313 + $0x68] sm:$0xff] %v812
        %845 = vst [vmem:[%s313 + $0x70] sm:$0xff] %v813
        %846 = vst [vmem:[%s313 + $0x78] sm:$0xff] %v814
        %847 = vst [vmem:[%s313 + $0x80] sm:$0xff] %v815
        %848 = vst [vmem:[%s313 + $0x88] sm:$0xff] %v816
        %849 = vst [vmem:[%s313 + $0x90] sm:$0xff] %v817
        %850 = vst [vmem:[%s313 + $0x98] sm:$0xff] %v818
        %851 = vst [vmem:[%s313 + $0xa0] sm:$0xff] %v819
        %852 = vst [vmem:[%s313 + $0xa8] sm:$0xff] %v820
        %853 = vst [vmem:[%s313 + $0xb0] sm:$0xff] %v821
        %854 = vst [vmem:[%s313 + $0xb8] sm:$0xff] %v822
        %855 = vst [vmem:[%s313 + $0xc0] sm:$0xff] %v823
        %856 = vst [vmem:[%s313 + $0xc8] sm:$0xff] %v824
        %857 = vst [vmem:[%s313 + $0xd0] sm:$0xff] %v825
        %858 = vst [vmem:[%s313 + $0xd8] sm:$0xff] %v826
        %859 = vst [vmem:[%s313 + $0xe0] sm:$0xff] %v827
        %860 = vst [vmem:[%s313 + $0xe8] sm:$0xff] %v828
        %861 = vst [vmem:[%s313 + $0xf0] sm:$0xff] %v829
        %862 = vst [vmem:[%s313 + $0xf8] sm:$0xff] %v830
      $region40: #{forward.8} parent=31 // pred_fallthru
        _
      %s863 = smul.u32 32, %s21
      %p864 = scmp.lt.s32.totalorder %s20, 0
      %s865 = scalar_select %p864, %s20, 0
      %p866 = scmp.lt.s32.totalorder %s863, 63
      %s867 = scalar_select %p866, %s863, 63
      %p868 = scmp.lt.s32.totalorder %s22, 0
      %s869 = scalar_select %p868, %s22, 0
      %s870 = sadd.s32 %s869, %s867
      %s871 = smul.addr %s865, 64
      %s872 = sadd.s32 %s870, %s871
      %s873 = smul.addr %s872, 8
      %s874 = scalar_lea.vmem %s3, %s873
      // Predicated region
      $region41: #{forward.8} parent=31 // pred_check
        %p875 = pneg %p150
      $region42: #{forward.8} parent=31 // pred_check_branch
        %877 = sbr.rel (%p875) target = $region44
      $region43: #{forward.8} parent=31 // pred_region
        %s878 = smul.u32 32, %s21
      $region44: #{forward.8} parent=31 // pred_fallthru
        _
    $region32: #{forward.8} parent=5 // pred_fallthru
      _
    %p879 = scmp.le.s32.totalorder 2, %s9
    // Predicated region
    $region45: #{forward.8} parent=5 // pred_check
      %p880 = pneg %p879
    $region46: #{forward.8} parent=5 // pred_check_branch
      %882 = sbr.rel (%p880) target = $region48
    $region47: #{forward.8} parent=5 // pred_region
      %s883 = ssub.s32 %s9, 2
      // Predicated region
      $region49: #{forward.8} parent=47 // pred_check
        %p884 = pneg %p156
      $region50: #{forward.8} parent=47 // pred_check_branch
        %886 = sbr.rel (%p884) target = $region52
      $region51: #{forward.8} parent=47 // pred_region
        %s887 = smul.u32 32, %s25
        %p888 = scmp.lt.s32.totalorder %s24, 0
        %s889 = scalar_select %p888, %s24, 0
        %p890 = scmp.lt.s32.totalorder %s887, 63
        %s891 = scalar_select %p890, %s887, 63
        %p892 = scmp.lt.s32.totalorder %s26, 0
        %s893 = scalar_select %p892, %s26, 0
        %s894 = sadd.s32 %s893, %s891
        %s895 = smul.addr %s889, 64
        %s896 = sadd.s32 %s894, %s895
        %s897 = smul.addr %s896, 8
        %s898 = scalar_lea.vmem %s3, %s897
      $region52: #{forward.8} parent=47 // pred_fallthru
        _
    $region48: #{forward.8} parent=5 // pred_fallthru
      _
  $region6: #{forward.8} parent=0 // loop_footer
    %s13 = sadd.s32 1, %s9
  $region7: #{forward.8} parent=0 // loop_footer_branch
    %8 = sbr.rel target = $region3
  $region8: #{forward.8} parent=0 // loop_exit
    _

// kernel: forward.9
$region0: #{forward.9}
  #allocation0 [shape = 'u32[]', space=smem, size = 0x4, offset = 0x4, fixed_abs, tag = 'smem constant byte address 0x4 - core index']
  #allocation1 [shape = 'u32[72,128]{1,0:T(1,128)}', space=vmem, size = 0x9000, scoped, tag = 'internal scratch']
  #allocation2 [shape = 'f32[128,128]{1,0:T(8,128)}', space=vmem, size = 0x10000, scoped, tag = 'scratch operand']
  %s0 = inlined_call_operand.vmem [shape: bf16[1,128,256], index: 0, kind: input, shape index: {}]
  %s1 = inlined_call_operand.vmem [shape: bf16[1,256,128], index: 1, kind: input, shape index: {}]
  %s2 = inlined_call_operand.vmem [shape: f32[1,1,128], index: 2, kind: input, shape index: {}]
  %s3 = inlined_call_operand.vmem [shape: f32[1,128,128], index: 3, kind: output, shape index: {}]
  %s4 = sld [smem:[#allocation0]]
  $region30: #{forward.9} parent=0
    _
  %s6 = ssub.s32 1, %s4
  %s7 = scalar_select 0, %s6, %s4
  // Predicated region
  $region2: #{forward.9} parent=0 // pred_check
    _
  $region3: #{forward.9} parent=0 // pred_check_branch
    %9 = sbr.rel (0) target = $region5
  $region4: #{forward.9} parent=0 // pred_region
    _
  $region5: #{forward.9} parent=0 // pred_fallthru
    _
  // Predicated region
  $region6: #{forward.9} parent=0 // pred_check
    _
  $region7: #{forward.9} parent=0 // pred_check_branch
    %11 = sbr.rel (0) target = $region9
  $region8: #{forward.9} parent=0 // pred_region
    _
  $region9: #{forward.9} parent=0 // pred_fallthru
    _
  // Predicated region
  $region10: #{forward.9} parent=0 // pred_check
    _
  $region11: #{forward.9} parent=0 // pred_check_branch
    %13 = sbr.rel (0) target = $region13
  $region12: #{forward.9} parent=0 // pred_region
    _
  $region13: #{forward.9} parent=0 // pred_fallthru
    _
  %p14 = scmp.eq.s32.totalorder 0, 0
  // Predicated region
  $region14: #{forward.9} parent=0 // pred_check
    %p15 = pneg %p14
  $region15: #{forward.9} parent=0 // pred_check_branch
    %17 = sbr.rel (%p15) target = $region17
  $region16: #{forward.9} parent=0 // pred_region
    %18 = vst [vmem:[#allocation2] sm:$0xff] 0.0
    %19 = vst [vmem:[#allocation2 + $0x8] sm:$0xff] 0.0
    %20 = vst [vmem:[#allocation2 + $0x10] sm:$0xff] 0.0
    %21 = vst [vmem:[#allocation2 + $0x18] sm:$0xff] 0.0
    %22 = vst [vmem:[#allocation2 + $0x20] sm:$0xff] 0.0
    %23 = vst [vmem:[#allocation2 + $0x28] sm:$0xff] 0.0
    %24 = vst [vmem:[#allocation2 + $0x30] sm:$0xff] 0.0
    %25 = vst [vmem:[#allocation2 + $0x38] sm:$0xff] 0.0
    %26 = vst [vmem:[#allocation2 + $0x40] sm:$0xff] 0.0
    %27 = vst [vmem:[#allocation2 + $0x48] sm:$0xff] 0.0
    %28 = vst [vmem:[#allocation2 + $0x50] sm:$0xff] 0.0
    %29 = vst [vmem:[#allocation2 + $0x58] sm:$0xff] 0.0
    %30 = vst [vmem:[#allocation2 + $0x60] sm:$0xff] 0.0
    %31 = vst [vmem:[#allocation2 + $0x68] sm:$0xff] 0.0
    %32 = vst [vmem:[#allocation2 + $0x70] sm:$0xff] 0.0
    %33 = vst [vmem:[#allocation2 + $0x78] sm:$0xff] 0.0
  $region17: #{forward.9} parent=0 // pred_fallthru
    _
  %v34 = vld [vmem:[#allocation2] sm:$0xff]
  %v35 = vld [vmem:[#allocation2 + $0x8] sm:$0xff]
  %v36 = vld [vmem:[#allocation2 + $0x10] sm:$0xff]
  %v37 = vld [vmem:[#allocation2 + $0x18] sm:$0xff]
  %v38 = vld [vmem:[#allocation2 + $0x20] sm:$0xff]
  %v39 = vld [vmem:[#allocation2 + $0x28] sm:$0xff]
  %v40 = vld [vmem:[#allocation2 + $0x30] sm:$0xff]
  %v41 = vld [vmem:[#allocation2 + $0x38] sm:$0xff]
  %v42 = vld [vmem:[#allocation2 + $0x40] sm:$0xff]
  %v43 = vld [vmem:[#allocation2 + $0x48] sm:$0xff]
  %v44 = vld [vmem:[#allocation2 + $0x50] sm:$0xff]
  %v45 = vld [vmem:[#allocation2 + $0x58] sm:$0xff]
  %v46 = vld [vmem:[#allocation2 + $0x60] sm:$0xff]
  %v47 = vld [vmem:[#allocation2 + $0x68] sm:$0xff]
  %v48 = vld [vmem:[#allocation2 + $0x70] sm:$0xff]
  %v49 = vld [vmem:[#allocation2 + $0x78] sm:$0xff]
  %v50 = vld [vmem:[%s0] sm:$0xff]
  %v51 = vld [vmem:[%s0 + $0x8] sm:$0xff]
  %v52 = vld [vmem:[%s0 + $0x10] sm:$0xff]
  %v53 = vld [vmem:[%s0 + $0x18] sm:$0xff]
  %v54 = vld [vmem:[%s0 + $0x20] sm:$0xff]
  %v55 = vld [vmem:[%s0 + $0x28] sm:$0xff]
  %v56 = vld [vmem:[%s0 + $0x30] sm:$0xff]
  %v57 = vld [vmem:[%s0 + $0x38] sm:$0xff]
  %v58 = vld [vmem:[%s0 + $0x40] sm:$0xff]
  %v59 = vld [vmem:[%s0 + $0x48] sm:$0xff]
  %v60 = vld [vmem:[%s0 + $0x50] sm:$0xff]
  %v61 = vld [vmem:[%s0 + $0x58] sm:$0xff]
  %v62 = vld [vmem:[%s0 + $0x60] sm:$0xff]
  %v63 = vld [vmem:[%s0 + $0x68] sm:$0xff]
  %v64 = vld [vmem:[%s0 + $0x70] sm:$0xff]
  %v65 = vld [vmem:[%s0 + $0x78] sm:$0xff]
  %v66 = vld [vmem:[%s1] sm:$0xf]
  %v67 = vld [vmem:[%s1 + $0x4] sm:$0xf]
  %v68 = vld [vmem:[%s1 + $0x8] sm:$0xf]
  %v69 = vld [vmem:[%s1 + $0xc] sm:$0xf]
  %v70 = vld [vmem:[%s1 + $0x10] sm:$0xf]
  %v71 = vld [vmem:[%s1 + $0x14] sm:$0xf]
  %v72 = vld [vmem:[%s1 + $0x18] sm:$0xf]
  %v73 = vld [vmem:[%s1 + $0x1c] sm:$0xf]
  %v74 = vld [vmem:[%s1 + $0x20] sm:$0xf]
  %v75 = vld [vmem:[%s1 + $0x24] sm:$0xf]
  %v76 = vld [vmem:[%s1 + $0x28] sm:$0xf]
  %v77 = vld [vmem:[%s1 + $0x2c] sm:$0xf]
  %v78 = vld [vmem:[%s1 + $0x30] sm:$0xf]
  %v79 = vld [vmem:[%s1 + $0x34] sm:$0xf]
  %v80 = vld [vmem:[%s1 + $0x38] sm:$0xf]
  %v81 = vld [vmem:[%s1 + $0x3c] sm:$0xf]
  %v82 = vld [vmem:[%s1 + $0x40] sm:$0xf]
  %v83 = vld [vmem:[%s1 + $0x44] sm:$0xf]
  %v84 = vld [vmem:[%s1 + $0x48] sm:$0xf]
  %v85 = vld [vmem:[%s1 + $0x4c] sm:$0xf]
  %v86 = vld [vmem:[%s1 + $0x50] sm:$0xf]
  %v87 = vld [vmem:[%s1 + $0x54] sm:$0xf]
  %v88 = vld [vmem:[%s1 + $0x58] sm:$0xf]
  %v89 = vld [vmem:[%s1 + $0x5c] sm:$0xf]
  %v90 = vld [vmem:[%s1 + $0x60] sm:$0xf]
  %v91 = vld [vmem:[%s1 + $0x64] sm:$0xf]
  %v92 = vld [vmem:[%s1 + $0x68] sm:$0xf]
  %v93 = vld [vmem:[%s1 + $0x6c] sm:$0xf]
  %v94 = vld [vmem:[%s1 + $0x70] sm:$0xf]
  %v95 = vld [vmem:[%s1 + $0x74] sm:$0xf]
  %v96 = vld [vmem:[%s1 + $0x78] sm:$0xf]
  %v97 = vld [vmem:[%s1 + $0x7c] sm:$0xf]
  %v114 = vunpack.c.l.b16 %v50
  %v115 = vunpack.c.h.b16 %v50
  %v116 = vunpack.c.l.b16 %v51
  %v117 = vunpack.c.h.b16 %v51
  %v118 = vunpack.c.l.b16 %v52
  %v119 = vunpack.c.h.b16 %v52
  %v120 = vunpack.c.l.b16 %v53
  %v121 = vunpack.c.h.b16 %v53
  %v122 = vunpack.c.l.b16 %v54
  %v123 = vunpack.c.h.b16 %v54
  %v124 = vunpack.c.l.b16 %v55
  %v125 = vunpack.c.h.b16 %v55
  %v126 = vunpack.c.l.b16 %v56
  %v127 = vunpack.c.h.b16 %v56
  %v128 = vunpack.c.l.b16 %v57
  %v129 = vunpack.c.h.b16 %v57
  %v130 = vunpack.c.l.b16 %v58
  %v131 = vunpack.c.h.b16 %v58
  %v132 = vunpack.c.l.b16 %v59
  %v133 = vunpack.c.h.b16 %v59
  %v134 = vunpack.c.l.b16 %v60
  %v135 = vunpack.c.h.b16 %v60
  %v136 = vunpack.c.l.b16 %v61
  %v137 = vunpack.c.h.b16 %v61
  %v138 = vunpack.c.l.b16 %v62
  %v139 = vunpack.c.h.b16 %v62
  %v140 = vunpack.c.l.b16 %v63
  %v141 = vunpack.c.h.b16 %v63
  %v142 = vunpack.c.l.b16 %v64
  %v143 = vunpack.c.h.b16 %v64
  %v144 = vunpack.c.l.b16 %v65
  %v145 = vunpack.c.h.b16 %v65
  %v146 = vpack.c.b16 %v116, %v114
  %v147 = vpack.c.b16 %v117, %v115
  %v148 = vpack.c.b16 %v120, %v118
  %v149 = vpack.c.b16 %v121, %v119
  %v150 = vpack.c.b16 %v124, %v122
  %v151 = vpack.c.b16 %v125, %v123
  %v152 = vpack.c.b16 %v128, %v126
  %v153 = vpack.c.b16 %v129, %v127
  %v154 = vpack.c.b16 %v132, %v130
  %v155 = vpack.c.b16 %v133, %v131
  %v156 = vpack.c.b16 %v136, %v134
  %v157 = vpack.c.b16 %v137, %v135
  %v158 = vpack.c.b16 %v140, %v138
  %v159 = vpack.c.b16 %v141, %v139
  %v160 = vpack.c.b16 %v144, %v142
  %v161 = vpack.c.b16 %v145, %v143
  %v210 = vunpack.c.l.b16 %v66
  %v211 = vunpack.c.l.b16 %v67
  %v212 = vunpack.c.l.b16 %v68
  %v213 = vunpack.c.l.b16 %v69
  %v214 = vunpack.c.l.b16 %v70
  %v215 = vunpack.c.l.b16 %v71
  %v216 = vunpack.c.l.b16 %v72
  %v217 = vunpack.c.l.b16 %v73
  %v218 = vunpack.c.l.b16 %v74
  %v219 = vunpack.c.l.b16 %v75
  %v220 = vunpack.c.l.b16 %v76
  %v221 = vunpack.c.l.b16 %v77
  %v222 = vunpack.c.l.b16 %v78
  %v223 = vunpack.c.l.b16 %v79
  %v224 = vunpack.c.l.b16 %v80
  %v225 = vunpack.c.l.b16 %v81
  %v226 = vunpack.c.l.b16 %v82
  %v227 = vunpack.c.l.b16 %v83
  %v228 = vunpack.c.l.b16 %v84
  %v229 = vunpack.c.l.b16 %v85
  %v230 = vunpack.c.l.b16 %v86
  %v231 = vunpack.c.l.b16 %v87
  %v232 = vunpack.c.l.b16 %v88
  %v233 = vunpack.c.l.b16 %v89
  %v234 = vunpack.c.l.b16 %v90
  %v235 = vunpack.c.l.b16 %v91
  %v236 = vunpack.c.l.b16 %v92
  %v237 = vunpack.c.l.b16 %v93
  %v238 = vunpack.c.l.b16 %v94
  %v239 = vunpack.c.l.b16 %v95
  %v240 = vunpack.c.l.b16 %v96
  %v241 = vunpack.c.l.b16 %v97
  %v242 = vpack.c.b16 %v211, %v210
  %v243 = vpack.c.b16 %v213, %v212
  %v244 = vpack.c.b16 %v215, %v214
  %v245 = vpack.c.b16 %v217, %v216
  %v246 = vpack.c.b16 %v219, %v218
  %v247 = vpack.c.b16 %v221, %v220
  %v248 = vpack.c.b16 %v223, %v222
  %v249 = vpack.c.b16 %v225, %v224
  %v250 = vpack.c.b16 %v227, %v226
  %v251 = vpack.c.b16 %v229, %v228
  %v252 = vpack.c.b16 %v231, %v230
  %v253 = vpack.c.b16 %v233, %v232
  %v254 = vpack.c.b16 %v235, %v234
  %v255 = vpack.c.b16 %v237, %v236
  %v256 = vpack.c.b16 %v239, %v238
  %v257 = vpack.c.b16 %v241, %v240
  %274 = vmatpush.bf16.msra.mxu0 %v249
  %275 = vmatpush.bf16.msra.mxu0 %v248
  %276 = vmatpush.bf16.msra.mxu0 %v247
  %277 = vmatpush.bf16.msra.mxu0 %v246
  %278 = vmatpush.bf16.msra.mxu0 %v245
  %279 = vmatpush.bf16.msra.mxu0 %v244
  %280 = vmatpush.bf16.msra.mxu0 %v243
  %281 = vmatpush.bf16.msra.mxu0 %v242
  %282 = vmatmul.bf16.gmra.mxu0 %v146
  %v283 = vpop.f32.mrf.mxu0
  %v284 = vadd.f32 0.0, %v283
  %v285 = vpop.f32.mrf.mxu0
  %v286 = vadd.f32 0.0, %v285
  %287 = vmatmul.bf16.gmra.mxu0 %v148
  %v288 = vpop.f32.mrf.mxu0
  %v289 = vadd.f32 0.0, %v288
  %v290 = vpop.f32.mrf.mxu0
  %v291 = vadd.f32 0.0, %v290
  %292 = vmatmul.bf16.gmra.mxu0 %v150
  %v293 = vpop.f32.mrf.mxu0
  %v294 = vadd.f32 0.0, %v293
  %v295 = vpop.f32.mrf.mxu0
  %v296 = vadd.f32 0.0, %v295
  %297 = vmatmul.bf16.gmra.mxu0 %v152
  %v298 = vpop.f32.mrf.mxu0
  %v299 = vadd.f32 0.0, %v298
  %v300 = vpop.f32.mrf.mxu0
  %v301 = vadd.f32 0.0, %v300
  %302 = vmatmul.bf16.gmra.mxu0 %v154
  %v303 = vpop.f32.mrf.mxu0
  %v304 = vadd.f32 0.0, %v303
  %v305 = vpop.f32.mrf.mxu0
  %v306 = vadd.f32 0.0, %v305
  %307 = vmatmul.bf16.gmra.mxu0 %v156
  %v308 = vpop.f32.mrf.mxu0
  %v309 = vadd.f32 0.0, %v308
  %v310 = vpop.f32.mrf.mxu0
  %v311 = vadd.f32 0.0, %v310
  %312 = vmatmul.bf16.gmra.mxu0 %v158
  %v313 = vpop.f32.mrf.mxu0
  %v314 = vadd.f32 0.0, %v313
  %v315 = vpop.f32.mrf.mxu0
  %v316 = vadd.f32 0.0, %v315
  %317 = vmatmul.bf16.gmra.mxu0 %v160
  %v318 = vpop.f32.mrf.mxu0
  %v319 = vadd.f32 0.0, %v318
  %v320 = vpop.f32.mrf.mxu0
  %v321 = vadd.f32 0.0, %v320
  %322 = vdwg.mxu0
  %323 = vmatpush.bf16.msra.mxu0 %v257
  %324 = vmatpush.bf16.msra.mxu0 %v256
  %325 = vmatpush.bf16.msra.mxu0 %v255
  %326 = vmatpush.bf16.msra.mxu0 %v254
  %327 = vmatpush.bf16.msra.mxu0 %v253
  %328 = vmatpush.bf16.msra.mxu0 %v252
  %329 = vmatpush.bf16.msra.mxu0 %v251
  %330 = vmatpush.bf16.msra.mxu0 %v250
  %331 = vmatmul.bf16.gmra.mxu0 %v147
  %v332 = vpop.f32.mrf.mxu0
  %v333 = vadd.f32 %v284, %v332
  %v334 = vpop.f32.mrf.mxu0
  %v335 = vadd.f32 %v286, %v334
  %336 = vmatmul.bf16.gmra.mxu0 %v149
  %v337 = vpop.f32.mrf.mxu0
  %v338 = vadd.f32 %v289, %v337
  %v339 = vpop.f32.mrf.mxu0
  %v340 = vadd.f32 %v291, %v339
  %341 = vmatmul.bf16.gmra.mxu0 %v151
  %v342 = vpop.f32.mrf.mxu0
  %v343 = vadd.f32 %v294, %v342
  %v344 = vpop.f32.mrf.mxu0
  %v345 = vadd.f32 %v296, %v344
  %346 = vmatmul.bf16.gmra.mxu0 %v153
  %v347 = vpop.f32.mrf.mxu0
  %v348 = vadd.f32 %v299, %v347
  %v349 = vpop.f32.mrf.mxu0
  %v350 = vadd.f32 %v301, %v349
  %351 = vmatmul.bf16.gmra.mxu0 %v155
  %v352 = vpop.f32.mrf.mxu0
  %v353 = vadd.f32 %v304, %v352
  %v354 = vpop.f32.mrf.mxu0
  %v355 = vadd.f32 %v306, %v354
  %356 = vmatmul.bf16.gmra.mxu0 %v157
  %v357 = vpop.f32.mrf.mxu0
  %v358 = vadd.f32 %v309, %v357
  %v359 = vpop.f32.mrf.mxu0
  %v360 = vadd.f32 %v311, %v359
  %361 = vmatmul.bf16.gmra.mxu0 %v159
  %v362 = vpop.f32.mrf.mxu0
  %v363 = vadd.f32 %v314, %v362
  %v364 = vpop.f32.mrf.mxu0
  %v365 = vadd.f32 %v316, %v364
  %366 = vmatmul.bf16.gmra.mxu0 %v161
  %v367 = vpop.f32.mrf.mxu0
  %v368 = vadd.f32 %v319, %v367
  %v369 = vpop.f32.mrf.mxu0
  %v370 = vadd.f32 %v321, %v369
  %371 = vdwg.mxu0
  %v372 = vadd.f32 %v34, %v333
  %v373 = vadd.f32 %v35, %v335
  %v374 = vadd.f32 %v36, %v338
  %v375 = vadd.f32 %v37, %v340
  %v376 = vadd.f32 %v38, %v343
  %v377 = vadd.f32 %v39, %v345
  %v378 = vadd.f32 %v40, %v348
  %v379 = vadd.f32 %v41, %v350
  %v380 = vadd.f32 %v42, %v353
  %v381 = vadd.f32 %v43, %v355
  %v382 = vadd.f32 %v44, %v358
  %v383 = vadd.f32 %v45, %v360
  %v384 = vadd.f32 %v46, %v363
  %v385 = vadd.f32 %v47, %v365
  %v386 = vadd.f32 %v48, %v368
  %v387 = vadd.f32 %v49, %v370
  %388 = vst [vmem:[#allocation2] sm:$0xff] %v372
  %389 = vst [vmem:[#allocation2 + $0x8] sm:$0xff] %v373
  %390 = vst [vmem:[#allocation2 + $0x10] sm:$0xff] %v374
  %391 = vst [vmem:[#allocation2 + $0x18] sm:$0xff] %v375
  %392 = vst [vmem:[#allocation2 + $0x20] sm:$0xff] %v376
  %393 = vst [vmem:[#allocation2 + $0x28] sm:$0xff] %v377
  %394 = vst [vmem:[#allocation2 + $0x30] sm:$0xff] %v378
  %395 = vst [vmem:[#allocation2 + $0x38] sm:$0xff] %v379
  %396 = vst [vmem:[#allocation2 + $0x40] sm:$0xff] %v380
  %397 = vst [vmem:[#allocation2 + $0x48] sm:$0xff] %v381
  %398 = vst [vmem:[#allocation2 + $0x50] sm:$0xff] %v382
  %399 = vst [vmem:[#allocation2 + $0x58] sm:$0xff] %v383
  %400 = vst [vmem:[#allocation2 + $0x60] sm:$0xff] %v384
  %401 = vst [vmem:[#allocation2 + $0x68] sm:$0xff] %v385
  %402 = vst [vmem:[#allocation2 + $0x70] sm:$0xff] %v386
  %403 = vst [vmem:[#allocation2 + $0x78] sm:$0xff] %v387
  // Predicated region
  $region18: #{forward.9} parent=0 // pred_check
    %p404 = pneg %p14
  $region19: #{forward.9} parent=0 // pred_check_branch
    %406 = sbr.rel (%p404) target = $region21
  $region20: #{forward.9} parent=0 // pred_region
    %v407 = vld [vmem:[#allocation2] sm:$0xff]
    %v408 = vld [vmem:[#allocation2 + $0x8] sm:$0xff]
    %v409 = vld [vmem:[#allocation2 + $0x10] sm:$0xff]
    %v410 = vld [vmem:[#allocation2 + $0x18] sm:$0xff]
    %v411 = vld [vmem:[#allocation2 + $0x20] sm:$0xff]
    %v412 = vld [vmem:[#allocation2 + $0x28] sm:$0xff]
    %v413 = vld [vmem:[#allocation2 + $0x30] sm:$0xff]
    %v414 = vld [vmem:[#allocation2 + $0x38] sm:$0xff]
    %v415 = vld [vmem:[#allocation2 + $0x40] sm:$0xff]
    %v416 = vld [vmem:[#allocation2 + $0x48] sm:$0xff]
    %v417 = vld [vmem:[#allocation2 + $0x50] sm:$0xff]
    %v418 = vld [vmem:[#allocation2 + $0x58] sm:$0xff]
    %v419 = vld [vmem:[#allocation2 + $0x60] sm:$0xff]
    %v420 = vld [vmem:[#allocation2 + $0x68] sm:$0xff]
    %v421 = vld [vmem:[#allocation2 + $0x70] sm:$0xff]
    %v422 = vld [vmem:[#allocation2 + $0x78] sm:$0xff]
    %v423 = vld [vmem:[%s2] sm:$0x1]
    %v425 = vperm.slane %v423, 0
    %v427 = vadd.f32 %v407, %v425
    %v428 = vadd.f32 %v408, %v425
    %v429 = vadd.f32 %v409, %v425
    %v430 = vadd.f32 %v410, %v425
    %v431 = vadd.f32 %v411, %v425
    %v432 = vadd.f32 %v412, %v425
    %v433 = vadd.f32 %v413, %v425
    %v434 = vadd.f32 %v414, %v425
    %v435 = vadd.f32 %v415, %v425
    %v436 = vadd.f32 %v416, %v425
    %v437 = vadd.f32 %v417, %v425
    %v438 = vadd.f32 %v418, %v425
    %v439 = vadd.f32 %v419, %v425
    %v440 = vadd.f32 %v420, %v425
    %v441 = vadd.f32 %v421, %v425
    %v442 = vadd.f32 %v422, %v425
    %v443 = vmax.f32 %v427, 0.0
    %v444 = vmax.f32 %v428, 0.0
    %v445 = vmax.f32 %v429, 0.0
    %v446 = vmax.f32 %v430, 0.0
    %v447 = vmax.f32 %v431, 0.0
    %v448 = vmax.f32 %v432, 0.0
    %v449 = vmax.f32 %v433, 0.0
    %v450 = vmax.f32 %v434, 0.0
    %v451 = vmax.f32 %v435, 0.0
    %v452 = vmax.f32 %v436, 0.0
    %v453 = vmax.f32 %v437, 0.0
    %v454 = vmax.f32 %v438, 0.0
    %v455 = vmax.f32 %v439, 0.0
    %v456 = vmax.f32 %v440, 0.0
    %v457 = vmax.f32 %v441, 0.0
    %v458 = vmax.f32 %v442, 0.0
    %459 = vst [vmem:[%s3] sm:$0xff] %v443
    %460 = vst [vmem:[%s3 + $0x8] sm:$0xff] %v444
    %461 = vst [vmem:[%s3 + $0x10] sm:$0xff] %v445
    %462 = vst [vmem:[%s3 + $0x18] sm:$0xff] %v446
    %463 = vst [vmem:[%s3 + $0x20] sm:$0xff] %v447
    %464 = vst [vmem:[%s3 + $0x28] sm:$0xff] %v448
    %465 = vst [vmem:[%s3 + $0x30] sm:$0xff] %v449
    %466 = vst [vmem:[%s3 + $0x38] sm:$0xff] %v450
    %467 = vst [vmem:[%s3 + $0x40] sm:$0xff] %v451
    %468 = vst [vmem:[%s3 + $0x48] sm:$0xff] %v452
    %469 = vst [vmem:[%s3 + $0x50] sm:$0xff] %v453
    %470 = vst [vmem:[%s3 + $0x58] sm:$0xff] %v454
    %471 = vst [vmem:[%s3 + $0x60] sm:$0xff] %v455
    %472 = vst [vmem:[%s3 + $0x68] sm:$0xff] %v456
    %473 = vst [vmem:[%s3 + $0x70] sm:$0xff] %v457
    %474 = vst [vmem:[%s3 + $0x78] sm:$0xff] %v458
  $region21: #{forward.9} parent=0 // pred_fallthru
    _
  // Predicated region
  $region22: #{forward.9} parent=0 // pred_check
    _
  $region23: #{forward.9} parent=0 // pred_check_branch
    %476 = sbr.rel (0) target = $region25
  $region24: #{forward.9} parent=0 // pred_region
    _
  $region25: #{forward.9} parent=0 // pred_fallthru
    _
  // Predicated region
  $region26: #{forward.9} parent=0 // pred_check
    _
  $region27: #{forward.9} parent=0 // pred_check_branch
    %478 = sbr.rel (0) target = $region29
  $region28: #{forward.9} parent=0 // pred_region
    _
  $region29: #{forward.9} parent=0 // pred_fallthru
    _

// kernel: squeeze.32
$region0: #{squeeze.32}
  %s0 = inlined_call_operand.vmem [shape: f32[1,32,256], index: 0, kind: input, shape index: {}]
  %s1 = inlined_call_operand.vmem [shape: f32[2,4,4,256], index: 1, kind: output, shape index: {}]
  $region1: #{squeeze.32} parent=0
    #allocation0 [shape = 'u8[65536]{0}', space=vmem, size = 0x10000, scoped, tag = 'scoped mem for output reshape']
    %v2 = vld [vmem:[%s0] sm:$0xff]
    %3 = vst [vmem:[#allocation0] sm:$0xf] %v2
    %s4 = scalar_lea.vmem [#allocation0], 12
    %5 = vst [vmem:[%s4] sm:$0xf0] %v2
    %s6 = scalar_lea.vmem %s0, 8
    %v7 = vld [vmem:[%s6] sm:$0xff]
    %s8 = scalar_lea.vmem [#allocation0], 8
    %9 = vst [vmem:[%s8] sm:$0xf] %v7
    %s10 = scalar_lea.vmem [#allocation0], 20
    %11 = vst [vmem:[%s10] sm:$0xf0] %v7
    %s12 = scalar_lea.vmem %s0, 16
    %v13 = vld [vmem:[%s12] sm:$0xff]
    %s14 = scalar_lea.vmem [#allocation0], 32
    %15 = vst [vmem:[%s14] sm:$0xf] %v13
    %s16 = scalar_lea.vmem [#allocation0], 44
    %17 = vst [vmem:[%s16] sm:$0xf0] %v13
    %s18 = scalar_lea.vmem %s0, 24
    %v19 = vld [vmem:[%s18] sm:$0xff]
    %s20 = scalar_lea.vmem [#allocation0], 40
    %21 = vst [vmem:[%s20] sm:$0xf] %v19
    %s22 = scalar_lea.vmem [#allocation0], 52
    %23 = vst [vmem:[%s22] sm:$0xf0] %v19
    %s24 = scalar_lea.vmem %s0, 32
    %v25 = vld [vmem:[%s24] sm:$0xff]
    %s26 = scalar_lea.vmem [#allocation0], 64
    %27 = vst [vmem:[%s26] sm:$0xf] %v25
    %s28 = scalar_lea.vmem [#allocation0], 76
    %29 = vst [vmem:[%s28] sm:$0xf0] %v25
    %s30 = scalar_lea.vmem %s0, 40
    %v31 = vld [vmem:[%s30] sm:$0xff]
    %s32 = scalar_lea.vmem [#allocation0], 72
    %33 = vst [vmem:[%s32] sm:$0xf] %v31
    %s34 = scalar_lea.vmem [#allocation0], 84
    %35 = vst [vmem:[%s34] sm:$0xf0] %v31
    %s36 = scalar_lea.vmem %s0, 48
    %v37 = vld [vmem:[%s36] sm:$0xff]
    %s38 = scalar_lea.vmem [#allocation0], 96
    %39 = vst [vmem:[%s38] sm:$0xf] %v37
    %s40 = scalar_lea.vmem [#allocation0], 108
    %41 = vst [vmem:[%s40] sm:$0xf0] %v37
    %s42 = scalar_lea.vmem %s0, 56
    %v43 = vld [vmem:[%s42] sm:$0xff]
    %s44 = scalar_lea.vmem [#allocation0], 104
    %45 = vst [vmem:[%s44] sm:$0xf] %v43
    %s46 = scalar_lea.vmem [#allocation0], 116
    %47 = vst [vmem:[%s46] sm:$0xf0] %v43
    %s49 = ssub.s32 16, 1
    %v50 = vld [vmem:[#allocation0] sm:%s49]
    %s52 = ssub.s32 16, 1
    %53 = vst [vmem:[%s1] sm:%s52] %v50
    %s54 = scalar_lea.vmem [#allocation0], 8
    %v55 = vld [vmem:[%s54] sm:%s49]
    %s57 = ssub.s32 16, 1
    %s58 = scalar_lea.vmem %s1, 4
    %59 = vst [vmem:[%s58] sm:%s57] %v55
    %s60 = scalar_lea.vmem [#allocation0], 16
    %v61 = vld [vmem:[%s60] sm:%s49]
    %s63 = ssub.s32 16, 1
    %s64 = scalar_lea.vmem %s1, 8
    %65 = vst [vmem:[%s64] sm:%s63] %v61
    %s66 = scalar_lea.vmem [#allocation0], 24
    %v67 = vld [vmem:[%s66] sm:%s49]
    %s69 = ssub.s32 16, 1
    %s70 = scalar_lea.vmem %s1, 12
    %71 = vst [vmem:[%s70] sm:%s69] %v67
    %s72 = scalar_lea.vmem [#allocation0], 32
    %v73 = vld [vmem:[%s72] sm:%s49]
    %s75 = ssub.s32 16, 1
    %s76 = scalar_lea.vmem %s1, 16
    %77 = vst [vmem:[%s76] sm:%s75] %v73
    %s78 = scalar_lea.vmem [#allocation0], 40
    %v79 = vld [vmem:[%s78] sm:%s49]
    %s81 = ssub.s32 16, 1
    %s82 = scalar_lea.vmem %s1, 20
    %83 = vst [vmem:[%s82] sm:%s81] %v79
    %s84 = scalar_lea.vmem [#allocation0], 48
    %v85 = vld [vmem:[%s84] sm:%s49]
    %s87 = ssub.s32 16, 1
    %s88 = scalar_lea.vmem %s1, 24
    %89 = vst [vmem:[%s88] sm:%s87] %v85
    %s90 = scalar_lea.vmem [#allocation0], 56
    %v91 = vld [vmem:[%s90] sm:%s49]
    %s93 = ssub.s32 16, 1
    %s94 = scalar_lea.vmem %s1, 28
    %95 = vst [vmem:[%s94] sm:%s93] %v91
    %s96 = scalar_lea.vmem [#allocation0], 64
    %v97 = vld [vmem:[%s96] sm:%s49]
    %s99 = ssub.s32 16, 1
    %s100 = scalar_lea.vmem %s1, 32
    %101 = vst [vmem:[%s100] sm:%s99] %v97
    %s102 = scalar_lea.vmem [#allocation0], 72
    %v103 = vld [vmem:[%s102] sm:%s49]
    %s105 = ssub.s32 16, 1
    %s106 = scalar_lea.vmem %s1, 36
    %107 = vst [vmem:[%s106] sm:%s105] %v103
    %s108 = scalar_lea.vmem [#allocation0], 80
    %v109 = vld [vmem:[%s108] sm:%s49]
    %s111 = ssub.s32 16, 1
    %s112 = scalar_lea.vmem %s1, 40
    %113 = vst [vmem:[%s112] sm:%s111] %v109
    %s114 = scalar_lea.vmem [#allocation0], 88
    %v115 = vld [vmem:[%s114] sm:%s49]
    %s117 = ssub.s32 16, 1
    %s118 = scalar_lea.vmem %s1, 44
    %119 = vst [vmem:[%s118] sm:%s117] %v115
    %s120 = scalar_lea.vmem [#allocation0], 96
    %v121 = vld [vmem:[%s120] sm:%s49]
    %s123 = ssub.s32 16, 1
    %s124 = scalar_lea.vmem %s1, 48
    %125 = vst [vmem:[%s124] sm:%s123] %v121
    %s126 = scalar_lea.vmem [#allocation0], 104
    %v127 = vld [vmem:[%s126] sm:%s49]
    %s129 = ssub.s32 16, 1
    %s130 = scalar_lea.vmem %s1, 52
    %131 = vst [vmem:[%s130] sm:%s129] %v127
    %s132 = scalar_lea.vmem [#allocation0], 112
    %v133 = vld [vmem:[%s132] sm:%s49]
    %s135 = ssub.s32 16, 1
    %s136 = scalar_lea.vmem %s1, 56
    %137 = vst [vmem:[%s136] sm:%s135] %v133
    %s138 = scalar_lea.vmem [#allocation0], 120
    %v139 = vld [vmem:[%s138] sm:%s49]
    %s141 = ssub.s32 16, 1
    %s142 = scalar_lea.vmem %s1, 60
    %143 = vst [vmem:[%s142] sm:%s141] %v139

// kernel: forward.10
$region0: #{forward.10}
  #allocation0 [shape = 'u32[]', space=smem, size = 0x4, offset = 0x4, fixed_abs, tag = 'smem constant byte address 0x4 - core index']
  #allocation1 [shape = 'u32[72,128]{1,0:T(1,128)}', space=vmem, size = 0x9000, scoped, tag = 'internal scratch']
  #allocation2 [shape = 'f32[32,256]{1,0:T(8,128)}', space=vmem, size = 0x8000, scoped, tag = 'scratch operand']
  %s0 = inlined_call_operand.vmem [shape: bf16[1,32,384], index: 0, kind: input, shape index: {}]
  %s1 = inlined_call_operand.vmem [shape: bf16[1,384,256], index: 1, kind: input, shape index: {}]
  %s2 = inlined_call_operand.vmem [shape: f32[1,1,256], index: 2, kind: input, shape index: {}]
  %s3 = inlined_call_operand.vmem [shape: f32[1,32,256], index: 3, kind: output, shape index: {}]
  %s4 = sld [smem:[#allocation0]]
  $region30: #{forward.10} parent=0
    _
  %s6 = ssub.s32 1, %s4
  %s7 = scalar_select 0, %s6, %s4
  // Predicated region
  $region2: #{forward.10} parent=0 // pred_check
    _
  $region3: #{forward.10} parent=0 // pred_check_branch
    %9 = sbr.rel (0) target = $region5
  $region4: #{forward.10} parent=0 // pred_region
    _
  $region5: #{forward.10} parent=0 // pred_fallthru
    _
  // Predicated region
  $region6: #{forward.10} parent=0 // pred_check
    _
  $region7: #{forward.10} parent=0 // pred_check_branch
    %11 = sbr.rel (0) target = $region9
  $region8: #{forward.10} parent=0 // pred_region
    _
  $region9: #{forward.10} parent=0 // pred_fallthru
    _
  // Predicated region
  $region10: #{forward.10} parent=0 // pred_check
    _
  $region11: #{forward.10} parent=0 // pred_check_branch
    %13 = sbr.rel (0) target = $region13
  $region12: #{forward.10} parent=0 // pred_region
    _
  $region13: #{forward.10} parent=0 // pred_fallthru
    _
  %p14 = scmp.eq.s32.totalorder 0, 0
  // Predicated region
  $region14: #{forward.10} parent=0 // pred_check
    %p15 = pneg %p14
  $region15: #{forward.10} parent=0 // pred_check_branch
    %17 = sbr.rel (%p15) target = $region17
  $region16: #{forward.10} parent=0 // pred_region
    %18 = vst [vmem:[#allocation2] sm:$0xff] 0.0
    %19 = vst [vmem:[#allocation2 + $0x8] sm:$0xff] 0.0
    %20 = vst [vmem:[#allocation2 + $0x10] sm:$0xff] 0.0
    %21 = vst [vmem:[#allocation2 + $0x18] sm:$0xff] 0.0
    %22 = vst [vmem:[#allocation2 + $0x20] sm:$0xff] 0.0
    %23 = vst [vmem:[#allocation2 + $0x28] sm:$0xff] 0.0
    %24 = vst [vmem:[#allocation2 + $0x30] sm:$0xff] 0.0
    %25 = vst [vmem:[#allocation2 + $0x38] sm:$0xff] 0.0
  $region17: #{forward.10} parent=0 // pred_fallthru
    _
  %v26 = vld [vmem:[#allocation2] sm:$0xff]
  %v27 = vld [vmem:[#allocation2 + $0x8] sm:$0xff]
  %v28 = vld [vmem:[#allocation2 + $0x10] sm:$0xff]
  %v29 = vld [vmem:[#allocation2 + $0x18] sm:$0xff]
  %v30 = vld [vmem:[#allocation2 + $0x20] sm:$0xff]
  %v31 = vld [vmem:[#allocation2 + $0x28] sm:$0xff]
  %v32 = vld [vmem:[#allocation2 + $0x30] sm:$0xff]
  %v33 = vld [vmem:[#allocation2 + $0x38] sm:$0xff]
  %v34 = vld [vmem:[%s0] sm:$0xff]
  %v35 = vld [vmem:[%s0 + $0x8] sm:$0xf]
  %v36 = vld [vmem:[%s0 + $0xc] sm:$0xff]
  %v37 = vld [vmem:[%s0 + $0x14] sm:$0xf]
  %v38 = vld [vmem:[%s0 + $0x18] sm:$0xff]
  %v39 = vld [vmem:[%s0 + $0x20] sm:$0xf]
  %v40 = vld [vmem:[%s0 + $0x24] sm:$0xff]
  %v41 = vld [vmem:[%s0 + $0x2c] sm:$0xf]
  %v42 = vld [vmem:[%s1] sm:$0xff]
  %v43 = vld [vmem:[%s1 + $0x8] sm:$0xff]
  %v44 = vld [vmem:[%s1 + $0x10] sm:$0xff]
  %v45 = vld [vmem:[%s1 + $0x18] sm:$0xff]
  %v46 = vld [vmem:[%s1 + $0x20] sm:$0xff]
  %v47 = vld [vmem:[%s1 + $0x28] sm:$0xff]
  %v48 = vld [vmem:[%s1 + $0x30] sm:$0xff]
  %v49 = vld [vmem:[%s1 + $0x38] sm:$0xff]
  %v50 = vld [vmem:[%s1 + $0x40] sm:$0xff]
  %v51 = vld [vmem:[%s1 + $0x48] sm:$0xff]
  %v52 = vld [vmem:[%s1 + $0x50] sm:$0xff]
  %v53 = vld [vmem:[%s1 + $0x58] sm:$0xff]
  %v54 = vld [vmem:[%s1 + $0x60] sm:$0xff]
  %v55 = vld [vmem:[%s1 + $0x68] sm:$0xff]
  %v56 = vld [vmem:[%s1 + $0x70] sm:$0xff]
  %v57 = vld [vmem:[%s1 + $0x78] sm:$0xff]
  %v58 = vld [vmem:[%s1 + $0x80] sm:$0xff]
  %v59 = vld [vmem:[%s1 + $0x88] sm:$0xff]
  %v60 = vld [vmem:[%s1 + $0x90] sm:$0xff]
  %v61 = vld [vmem:[%s1 + $0x98] sm:$0xff]
  %v62 = vld [vmem:[%s1 + $0xa0] sm:$0xff]
  %v63 = vld [vmem:[%s1 + $0xa8] sm:$0xff]
  %v64 = vld [vmem:[%s1 + $0xb0] sm:$0xff]
  %v65 = vld [vmem:[%s1 + $0xb8] sm:$0xff]
  %v66 = vld [vmem:[%s1 + $0xc0] sm:$0xff]
  %v67 = vld [vmem:[%s1 + $0xc8] sm:$0xff]
  %v68 = vld [vmem:[%s1 + $0xd0] sm:$0xff]
  %v69 = vld [vmem:[%s1 + $0xd8] sm:$0xff]
  %v70 = vld [vmem:[%s1 + $0xe0] sm:$0xff]
  %v71 = vld [vmem:[%s1 + $0xe8] sm:$0xff]
  %v72 = vld [vmem:[%s1 + $0xf0] sm:$0xff]
  %v73 = vld [vmem:[%s1 + $0xf8] sm:$0xff]
  %v74 = vld [vmem:[%s1 + $0x100] sm:$0xff]
  %v75 = vld [vmem:[%s1 + $0x108] sm:$0xff]
  %v76 = vld [vmem:[%s1 + $0x110] sm:$0xff]
  %v77 = vld [vmem:[%s1 + $0x118] sm:$0xff]
  %v78 = vld [vmem:[%s1 + $0x120] sm:$0xff]
  %v79 = vld [vmem:[%s1 + $0x128] sm:$0xff]
  %v80 = vld [vmem:[%s1 + $0x130] sm:$0xff]
  %v81 = vld [vmem:[%s1 + $0x138] sm:$0xff]
  %v82 = vld [vmem:[%s1 + $0x140] sm:$0xff]
  %v83 = vld [vmem:[%s1 + $0x148] sm:$0xff]
  %v84 = vld [vmem:[%s1 + $0x150] sm:$0xff]
  %v85 = vld [vmem:[%s1 + $0x158] sm:$0xff]
  %v86 = vld [vmem:[%s1 + $0x160] sm:$0xff]
  %v87 = vld [vmem:[%s1 + $0x168] sm:$0xff]
  %v88 = vld [vmem:[%s1 + $0x170] sm:$0xff]
  %v89 = vld [vmem:[%s1 + $0x178] sm:$0xff]
  %v98 = vunpack.c.l.b16 %v34
  %v99 = vunpack.c.h.b16 %v34
  %v100 = vunpack.c.l.b16 %v35
  %v101 = vunpack.c.l.b16 %v36
  %v102 = vunpack.c.h.b16 %v36
  %v103 = vunpack.c.l.b16 %v37
  %v104 = vunpack.c.l.b16 %v38
  %v105 = vunpack.c.h.b16 %v38
  %v106 = vunpack.c.l.b16 %v39
  %v107 = vunpack.c.l.b16 %v40
  %v108 = vunpack.c.h.b16 %v40
  %v109 = vunpack.c.l.b16 %v41
  %v110 = vpack.c.b16 %v101, %v98
  %v111 = vpack.c.b16 %v102, %v99
  %v112 = vpack.c.b16 %v103, %v100
  %v113 = vpack.c.b16 %v107, %v104
  %v114 = vpack.c.b16 %v108, %v105
  %v115 = vpack.c.b16 %v109, %v106
  %v170 = vunpack.c.l.b16 %v42
  %v171 = vunpack.c.h.b16 %v42
  %v172 = vunpack.c.l.b16 %v43
  %v173 = vunpack.c.h.b16 %v43
  %v174 = vunpack.c.l.b16 %v44
  %v175 = vunpack.c.h.b16 %v44
  %v176 = vunpack.c.l.b16 %v45
  %v177 = vunpack.c.h.b16 %v45
  %v178 = vunpack.c.l.b16 %v46
  %v179 = vunpack.c.h.b16 %v46
  %v180 = vunpack.c.l.b16 %v47
  %v181 = vunpack.c.h.b16 %v47
  %v182 = vunpack.c.l.b16 %v48
  %v183 = vunpack.c.h.b16 %v48
  %v184 = vunpack.c.l.b16 %v49
  %v185 = vunpack.c.h.b16 %v49
  %v186 = vunpack.c.l.b16 %v50
  %v187 = vunpack.c.h.b16 %v50
  %v188 = vunpack.c.l.b16 %v51
  %v189 = vunpack.c.h.b16 %v51
  %v190 = vunpack.c.l.b16 %v52
  %v191 = vunpack.c.h.b16 %v52
  %v192 = vunpack.c.l.b16 %v53
  %v193 = vunpack.c.h.b16 %v53
  %v194 = vunpack.c.l.b16 %v54
  %v195 = vunpack.c.h.b16 %v54
  %v196 = vunpack.c.l.b16 %v55
  %v197 = vunpack.c.h.b16 %v55
  %v198 = vunpack.c.l.b16 %v56
  %v199 = vunpack.c.h.b16 %v56
  %v200 = vunpack.c.l.b16 %v57
  %v201 = vunpack.c.h.b16 %v57
  %v202 = vunpack.c.l.b16 %v58
  %v203 = vunpack.c.h.b16 %v58
  %v204 = vunpack.c.l.b16 %v59
  %v205 = vunpack.c.h.b16 %v59
  %v206 = vunpack.c.l.b16 %v60
  %v207 = vunpack.c.h.b16 %v60
  %v208 = vunpack.c.l.b16 %v61
  %v209 = vunpack.c.h.b16 %v61
  %v210 = vunpack.c.l.b16 %v62
  %v211 = vunpack.c.h.b16 %v62
  %v212 = vunpack.c.l.b16 %v63
  %v213 = vunpack.c.h.b16 %v63
  %v214 = vunpack.c.l.b16 %v64
  %v215 = vunpack.c.h.b16 %v64
  %v216 = vunpack.c.l.b16 %v65
  %v217 = vunpack.c.h.b16 %v65
  %v218 = vunpack.c.l.b16 %v66
  %v219 = vunpack.c.h.b16 %v66
  %v220 = vunpack.c.l.b16 %v67
  %v221 = vunpack.c.h.b16 %v67
  %v222 = vunpack.c.l.b16 %v68
  %v223 = vunpack.c.h.b16 %v68
  %v224 = vunpack.c.l.b16 %v69
  %v225 = vunpack.c.h.b16 %v69
  %v226 = vunpack.c.l.b16 %v70
  %v227 = vunpack.c.h.b16 %v70
  %v228 = vunpack.c.l.b16 %v71
  %v229 = vunpack.c.h.b16 %v71
  %v230 = vunpack.c.l.b16 %v72
  %v231 = vunpack.c.h.b16 %v72
  %v232 = vunpack.c.l.b16 %v73
  %v233 = vunpack.c.h.b16 %v73
  %v234 = vunpack.c.l.b16 %v74
  %v235 = vunpack.c.h.b16 %v74
  %v236 = vunpack.c.l.b16 %v75
  %v237 = vunpack.c.h.b16 %v75
  %v238 = vunpack.c.l.b16 %v76
  %v239 = vunpack.c.h.b16 %v76
  %v240 = vunpack.c.l.b16 %v77
  %v241 = vunpack.c.h.b16 %v77
  %v242 = vunpack.c.l.b16 %v78
  %v243 = vunpack.c.h.b16 %v78
  %v244 = vunpack.c.l.b16 %v79
  %v245 = vunpack.c.h.b16 %v79
  %v246 = vunpack.c.l.b16 %v80
  %v247 = vunpack.c.h.b16 %v80
  %v248 = vunpack.c.l.b16 %v81
  %v249 = vunpack.c.h.b16 %v81
  %v250 = vunpack.c.l.b16 %v82
  %v251 = vunpack.c.h.b16 %v82
  %v252 = vunpack.c.l.b16 %v83
  %v253 = vunpack.c.h.b16 %v83
  %v254 = vunpack.c.l.b16 %v84
  %v255 = vunpack.c.h.b16 %v84
  %v256 = vunpack.c.l.b16 %v85
  %v257 = vunpack.c.h.b16 %v85
  %v258 = vunpack.c.l.b16 %v86
  %v259 = vunpack.c.h.b16 %v86
  %v260 = vunpack.c.l.b16 %v87
  %v261 = vunpack.c.h.b16 %v87
  %v262 = vunpack.c.l.b16 %v88
  %v263 = vunpack.c.h.b16 %v88
  %v264 = vunpack.c.l.b16 %v89
  %v265 = vunpack.c.h.b16 %v89
  %v266 = vpack.c.b16 %v172, %v170
  %v267 = vpack.c.b16 %v173, %v171
  %v268 = vpack.c.b16 %v176, %v174
  %v269 = vpack.c.b16 %v177, %v175
  %v270 = vpack.c.b16 %v180, %v178
  %v271 = vpack.c.b16 %v181, %v179
  %v272 = vpack.c.b16 %v184, %v182
  %v273 = vpack.c.b16 %v185, %v183
  %v274 = vpack.c.b16 %v188, %v186
  %v275 = vpack.c.b16 %v189, %v187
  %v276 = vpack.c.b16 %v192, %v190
  %v277 = vpack.c.b16 %v193, %v191
  %v278 = vpack.c.b16 %v196, %v194
  %v279 = vpack.c.b16 %v197, %v195
  %v280 = vpack.c.b16 %v200, %v198
  %v281 = vpack.c.b16 %v201, %v199
  %v282 = vpack.c.b16 %v204, %v202
  %v283 = vpack.c.b16 %v205, %v203
  %v284 = vpack.c.b16 %v208, %v206
  %v285 = vpack.c.b16 %v209, %v207
  %v286 = vpack.c.b16 %v212, %v210
  %v287 = vpack.c.b16 %v213, %v211
  %v288 = vpack.c.b16 %v216, %v214
  %v289 = vpack.c.b16 %v217, %v215
  %v290 = vpack.c.b16 %v220, %v218
  %v291 = vpack.c.b16 %v221, %v219
  %v292 = vpack.c.b16 %v224, %v222
  %v293 = vpack.c.b16 %v225, %v223
  %v294 = vpack.c.b16 %v228, %v226
  %v295 = vpack.c.b16 %v229, %v227
  %v296 = vpack.c.b16 %v232, %v230
  %v297 = vpack.c.b16 %v233, %v231
  %v298 = vpack.c.b16 %v236, %v234
  %v299 = vpack.c.b16 %v237, %v235
  %v300 = vpack.c.b16 %v240, %v238
  %v301 = vpack.c.b16 %v241, %v239
  %v302 = vpack.c.b16 %v244, %v242
  %v303 = vpack.c.b16 %v245, %v243
  %v304 = vpack.c.b16 %v248, %v246
  %v305 = vpack.c.b16 %v249, %v247
  %v306 = vpack.c.b16 %v252, %v250
  %v307 = vpack.c.b16 %v253, %v251
  %v308 = vpack.c.b16 %v256, %v254
  %v309 = vpack.c.b16 %v257, %v255
  %v310 = vpack.c.b16 %v260, %v258
  %v311 = vpack.c.b16 %v261, %v259
  %v312 = vpack.c.b16 %v264, %v262
  %v313 = vpack.c.b16 %v265, %v263
  %362 = vmatpush.bf16.msra.mxu0 %v280
  %363 = vmatpush.bf16.msra.mxu0 %v278
  %364 = vmatpush.bf16.msra.mxu0 %v276
  %365 = vmatpush.bf16.msra.mxu0 %v274
  %366 = vmatpush.bf16.msra.mxu0 %v272
  %367 = vmatpush.bf16.msra.mxu0 %v270
  %368 = vmatpush.bf16.msra.mxu0 %v268
  %369 = vmatpush.bf16.msra.mxu0 %v266
  %370 = vmatmul.bf16.gmra.mxu0 %v110
  %v371 = vpop.f32.mrf.mxu0
  %v372 = vadd.f32 0.0, %v371
  %v373 = vpop.f32.mrf.mxu0
  %v374 = vadd.f32 0.0, %v373
  %375 = vmatmul.bf16.gmra.mxu0 %v113
  %v376 = vpop.f32.mrf.mxu0
  %v377 = vadd.f32 0.0, %v376
  %v378 = vpop.f32.mrf.mxu0
  %v379 = vadd.f32 0.0, %v378
  %380 = vdwg.mxu0
  %381 = vmatpush.bf16.msra.mxu0 %v296
  %382 = vmatpush.bf16.msra.mxu0 %v294
  %383 = vmatpush.bf16.msra.mxu0 %v292
  %384 = vmatpush.bf16.msra.mxu0 %v290
  %385 = vmatpush.bf16.msra.mxu0 %v288
  %386 = vmatpush.bf16.msra.mxu0 %v286
  %387 = vmatpush.bf16.msra.mxu0 %v284
  %388 = vmatpush.bf16.msra.mxu0 %v282
  %389 = vmatmul.bf16.gmra.mxu0 %v111
  %v390 = vpop.f32.mrf.mxu0
  %v391 = vadd.f32 %v372, %v390
  %v392 = vpop.f32.mrf.mxu0
  %v393 = vadd.f32 %v374, %v392
  %394 = vmatmul.bf16.gmra.mxu0 %v114
  %v395 = vpop.f32.mrf.mxu0
  %v396 = vadd.f32 %v377, %v395
  %v397 = vpop.f32.mrf.mxu0
  %v398 = vadd.f32 %v379, %v397
  %399 = vdwg.mxu0
  %400 = vmatpush.bf16.msra.mxu0 %v312
  %401 = vmatpush.bf16.msra.mxu0 %v310
  %402 = vmatpush.bf16.msra.mxu0 %v308
  %403 = vmatpush.bf16.msra.mxu0 %v306
  %404 = vmatpush.bf16.msra.mxu0 %v304
  %405 = vmatpush.bf16.msra.mxu0 %v302
  %406 = vmatpush.bf16.msra.mxu0 %v300
  %407 = vmatpush.bf16.msra.mxu0 %v298
  %408 = vmatmul.bf16.gmra.mxu0 %v112
  %v409 = vpop.f32.mrf.mxu0
  %v410 = vadd.f32 %v391, %v409
  %v411 = vpop.f32.mrf.mxu0
  %v412 = vadd.f32 %v393, %v411
  %413 = vmatmul.bf16.gmra.mxu0 %v115
  %v414 = vpop.f32.mrf.mxu0
  %v415 = vadd.f32 %v396, %v414
  %v416 = vpop.f32.mrf.mxu0
  %v417 = vadd.f32 %v398, %v416
  %418 = vdwg.mxu0
  %419 = vmatpush.bf16.msra.mxu0 %v281
  %420 = vmatpush.bf16.msra.mxu0 %v279
  %421 = vmatpush.bf16.msra.mxu0 %v277
  %422 = vmatpush.bf16.msra.mxu0 %v275
  %423 = vmatpush.bf16.msra.mxu0 %v273
  %424 = vmatpush.bf16.msra.mxu0 %v271
  %425 = vmatpush.bf16.msra.mxu0 %v269
  %426 = vmatpush.bf16.msra.mxu0 %v267
  %427 = vmatmul.bf16.gmra.mxu0 %v110
  %v428 = vpop.f32.mrf.mxu0
  %v429 = vadd.f32 0.0, %v428
  %v430 = vpop.f32.mrf.mxu0
  %v431 = vadd.f32 0.0, %v430
  %432 = vmatmul.bf16.gmra.mxu0 %v113
  %v433 = vpop.f32.mrf.mxu0
  %v434 = vadd.f32 0.0, %v433
  %v435 = vpop.f32.mrf.mxu0
  %v436 = vadd.f32 0.0, %v435
  %437 = vdwg.mxu0
  %438 = vmatpush.bf16.msra.mxu0 %v297
  %439 = vmatpush.bf16.msra.mxu0 %v295
  %440 = vmatpush.bf16.msra.mxu0 %v293
  %441 = vmatpush.bf16.msra.mxu0 %v291
  %442 = vmatpush.bf16.msra.mxu0 %v289
  %443 = vmatpush.bf16.msra.mxu0 %v287
  %444 = vmatpush.bf16.msra.mxu0 %v285
  %445 = vmatpush.bf16.msra.mxu0 %v283
  %446 = vmatmul.bf16.gmra.mxu0 %v111
  %v447 = vpop.f32.mrf.mxu0
  %v448 = vadd.f32 %v429, %v447
  %v449 = vpop.f32.mrf.mxu0
  %v450 = vadd.f32 %v431, %v449
  %451 = vmatmul.bf16.gmra.mxu0 %v114
  %v452 = vpop.f32.mrf.mxu0
  %v453 = vadd.f32 %v434, %v452
  %v454 = vpop.f32.mrf.mxu0
  %v455 = vadd.f32 %v436, %v454
  %456 = vdwg.mxu0
  %457 = vmatpush.bf16.msra.mxu0 %v313
  %458 = vmatpush.bf16.msra.mxu0 %v311
  %459 = vmatpush.bf16.msra.mxu0 %v309
  %460 = vmatpush.bf16.msra.mxu0 %v307
  %461 = vmatpush.bf16.msra.mxu0 %v305
  %462 = vmatpush.bf16.msra.mxu0 %v303
  %463 = vmatpush.bf16.msra.mxu0 %v301
  %464 = vmatpush.bf16.msra.mxu0 %v299
  %465 = vmatmul.bf16.gmra.mxu0 %v112
  %v466 = vpop.f32.mrf.mxu0
  %v467 = vadd.f32 %v448, %v466
  %v468 = vpop.f32.mrf.mxu0
  %v469 = vadd.f32 %v450, %v468
  %470 = vmatmul.bf16.gmra.mxu0 %v115
  %v471 = vpop.f32.mrf.mxu0
  %v472 = vadd.f32 %v453, %v471
  %v473 = vpop.f32.mrf.mxu0
  %v474 = vadd.f32 %v455, %v473
  %475 = vdwg.mxu0
  %v476 = vadd.f32 %v26, %v410
  %v477 = vadd.f32 %v27, %v467
  %v478 = vadd.f32 %v28, %v412
  %v479 = vadd.f32 %v29, %v469
  %v480 = vadd.f32 %v30, %v415
  %v481 = vadd.f32 %v31, %v472
  %v482 = vadd.f32 %v32, %v417
  %v483 = vadd.f32 %v33, %v474
  %484 = vst [vmem:[#allocation2] sm:$0xff] %v476
  %485 = vst [vmem:[#allocation2 + $0x8] sm:$0xff] %v477
  %486 = vst [vmem:[#allocation2 + $0x10] sm:$0xff] %v478
  %487 = vst [vmem:[#allocation2 + $0x18] sm:$0xff] %v479
  %488 = vst [vmem:[#allocation2 + $0x20] sm:$0xff] %v480
  %489 = vst [vmem:[#allocation2 + $0x28] sm:$0xff] %v481
  %490 = vst [vmem:[#allocation2 + $0x30] sm:$0xff] %v482
  %491 = vst [vmem:[#allocation2 + $0x38] sm:$0xff] %v483
  // Predicated region
  $region18: #{forward.10} parent=0 // pred_check
    %p492 = pneg %p14
  $region19: #{forward.10} parent=0 // pred_check_branch
    %494 = sbr.rel (%p492) target = $region21
  $region20: #{forward.10} parent=0 // pred_region
    %v495 = vld [vmem:[#allocation2] sm:$0xff]
    %v496 = vld [vmem:[#allocation2 + $0x8] sm:$0xff]
    %v497 = vld [vmem:[#allocation2 + $0x10] sm:$0xff]
    %v498 = vld [vmem:[#allocation2 + $0x18] sm:$0xff]
    %v499 = vld [vmem:[#allocation2 + $0x20] sm:$0xff]
    %v500 = vld [vmem:[#allocation2 + $0x28] sm:$0xff]
    %v501 = vld [vmem:[#allocation2 + $0x30] sm:$0xff]
    %v502 = vld [vmem:[#allocation2 + $0x38] sm:$0xff]
    %v503 = vld [vmem:[%s2] sm:$0x3]
    %v505 = vperm.slane %v503, 0
    %v506 = vperm.slane %v503, 1
    %v509 = vadd.f32 %v495, %v505
    %v510 = vadd.f32 %v496, %v506
    %v511 = vadd.f32 %v497, %v505
    %v512 = vadd.f32 %v498, %v506
    %v513 = vadd.f32 %v499, %v505
    %v514 = vadd.f32 %v500, %v506
    %v515 = vadd.f32 %v501, %v505
    %v516 = vadd.f32 %v502, %v506
    %v517 = vmax.f32 %v509, 0.0
    %v518 = vmax.f32 %v510, 0.0
    %v519 = vmax.f32 %v511, 0.0
    %v520 = vmax.f32 %v512, 0.0
    %v521 = vmax.f32 %v513, 0.0
    %v522 = vmax.f32 %v514, 0.0
    %v523 = vmax.f32 %v515, 0.0
    %v524 = vmax.f32 %v516, 0.0
    %525 = vst [vmem:[%s3] sm:$0xff] %v517
    %526 = vst [vmem:[%s3 + $0x8] sm:$0xff] %v518
    %527 = vst [vmem:[%s3 + $0x10] sm:$0xff] %v519
    %528 = vst [vmem:[%s3 + $0x18] sm:$0xff] %v520
    %529 = vst [vmem:[%s3 + $0x20] sm:$0xff] %v521
    %530 = vst [vmem:[%s3 + $0x28] sm:$0xff] %v522
    %531 = vst [vmem:[%s3 + $0x30] sm:$0xff] %v523
    %532 = vst [vmem:[%s3 + $0x38] sm:$0xff] %v524
  $region21: #{forward.10} parent=0 // pred_fallthru
    _
  // Predicated region
  $region22: #{forward.10} parent=0 // pred_check
    _
  $region23: #{forward.10} parent=0 // pred_check_branch
    %534 = sbr.rel (0) target = $region25
  $region24: #{forward.10} parent=0 // pred_region
    _
  $region25: #{forward.10} parent=0 // pred_fallthru
    _
  // Predicated region
  $region26: #{forward.10} parent=0 // pred_check
    _
  $region27: #{forward.10} parent=0 // pred_check_branch
    %536 = sbr.rel (0) target = $region29
  $region28: #{forward.10} parent=0 // pred_region
    _
  $region29: #{forward.10} parent=0 // pred_fallthru
    _

// kernel: forward.11
$region0: #{forward.11}
  #allocation0 [shape = 'u32[]', space=smem, size = 0x4, offset = 0x4, fixed_abs, tag = 'smem constant byte address 0x4 - core index']
  #allocation1 [shape = 'u32[72,128]{1,0:T(1,128)}', space=vmem, size = 0x9000, scoped, tag = 'internal scratch']
  #allocation2 [shape = 'f32[128,128]{1,0:T(8,128)}', space=vmem, size = 0x10000, scoped, tag = 'scratch operand']
  %s0 = inlined_call_operand.vmem [shape: bf16[4,128,768], index: 0, kind: input, shape index: {}]
  %s1 = inlined_call_operand.vmem [shape: bf16[4,768,128], index: 1, kind: input, shape index: {}]
  %s2 = inlined_call_operand.vmem [shape: f32[4,1,128], index: 2, kind: input, shape index: {}]
  %s3 = inlined_call_operand.vmem [shape: f32[4,128,128], index: 3, kind: output, shape index: {}]
  %s4 = sld [smem:[#allocation0]]
  $region79: #{forward.11} parent=0
    _
  %s6 = ssub.s32 1, %s4
  %s7 = scalar_select 0, %s6, %s4
  $region1: #{forward.11} parent=0
    #allocation3 [shape = 'u8[196608]{0}', space=vmem, size = 0x30000, scoped, tag = 'input window, operand 0']
    loop: start=0, step=1, limit=10
    $region2: #{forward.11} parent=1 // loop_pre_header
      _
    $region3: #{forward.11} parent=1 // loop_header
      %s9 = sphi 0, %s13
      %p10 = scmp.ge.s32.totalorder %s9, 10
      %s16 = sphi 0, %s42
      %s17 = sphi 0, %s38
      %s18 = sphi 0, %s34
      %s19 = sphi 0, %s30
      %s20 = sphi 0, %s16
      %s21 = sphi 0, %s17
      %s22 = sphi 0, %s18
      %s23 = sphi 0, %s19
      %s24 = sphi 0, %s20
      %s25 = sphi 0, %s21
      %s26 = sphi 0, %s22
      %s27 = sphi 0, %s23
      %s49 = sphi 0, %s51
      %s52 = sphi 0, %s49
      %s53 = sphi 0, %s52
      %s69 = sphi 0, %s53
      %s79 = sphi 0, %s81
      %s82 = sphi 0, %s79
      %s83 = sphi 0, %s82
      %s99 = sphi 0, %s83
      %s107 = sphi 0, %s109
      %s110 = sphi 0, %s107
      %s111 = sphi 0, %s110
      %s127 = sphi 0, %s111
      %s137 = sphi 0, %s139
      %s140 = sphi 0, %s137
      %s141 = sphi 0, %s140
      %s157 = sphi 0, %s141
    $region4: #{forward.11} parent=1 // loop_header_branch
      %12 = sbr.rel (%p10) target = $region8
    $region5: #{forward.11} parent=1 // loop_body
      %s14 = ssub.s32 %s9, 1
      %s15 = ssub.s32 %s9, 2
      %s28 = sadd.s32 1, %s19
      %p29 = scmp.ge.s32.totalorder %s28, 2
      %s30 = scalar_select %p29, 0, %s28
      %s31 = sadd.s32 1, %s18
      %s32 = scalar_select %p29, %s31, %s18
      %p33 = scmp.ge.s32.totalorder %s32, 1
      %s34 = scalar_select %p33, 0, %s32
      %s35 = sadd.s32 1, %s17
      %s36 = scalar_select %p33, %s35, %s17
      %p37 = scmp.ge.s32.totalorder %s36, 1
      %s38 = scalar_select %p37, 0, %s36
      %s39 = sadd.s32 1, %s16
      %s40 = scalar_select %p37, %s39, %s16
      %p41 = scmp.ge.s32.totalorder %s40, 4
      %s42 = scalar_select %p41, 0, %s40
      %s43 = ssub.s32 %s16, %s42
      %s44 = ssub.s32 %s17, %s38
      %s45 = sor.u32 %s43, %s44
      %s46 = ssub.s32 %s19, %s30
      %s47 = sor.u32 %s45, %s46
      %p48 = scmp.eq.s32.totalorder %s47, 0
      %s50 = sadd.s32 %s49, 1
      %s51 = scalar_select %p48, %s49, %s50
      %p54 = pneg %p48
      %p55 = scmp.eq.s32.totalorder %s9, 7
      %p56 = por %p54, %p55
      %p57 = scmp.ne.s32.totalorder %s49, %s52
      %p58 = scmp.eq.s32.totalorder %s9, 0
      %p59 = por %p57, %p58
      %p60 = scmp.ne.s32.totalorder %s49, %s52
      %p61 = scmp.eq.s32.totalorder %s14, 7
      %p62 = por %p60, %p61
      %p63 = scmp.ne.s32.totalorder %s52, %s53
      %p64 = scmp.eq.s32.totalorder %s14, 0
      %p65 = por %p63, %p64
      %p66 = scmp.ne.s32.totalorder %s52, %s53
      %p67 = scmp.eq.s32.totalorder %s15, 7
      %p68 = por %p66, %p67
      %p70 = scmp.ne.s32.totalorder %s53, %s69
      %p71 = scmp.eq.s32.totalorder %s15, 0
      %p72 = por %p70, %p71
      %s73 = ssub.s32 %s16, %s42
      %s74 = ssub.s32 %s19, %s30
      %s75 = sor.u32 %s73, %s74
      %s76 = ssub.s32 %s18, %s34
      %s77 = sor.u32 %s75, %s76
      %p78 = scmp.eq.s32.totalorder %s77, 0
      %s80 = sadd.s32 %s79, 1
      %s81 = scalar_select %p78, %s79, %s80
      %p84 = pneg %p78
      %p85 = scmp.eq.s32.totalorder %s9, 7
      %p86 = por %p84, %p85
      %p87 = scmp.ne.s32.totalorder %s79, %s82
      %p88 = scmp.eq.s32.totalorder %s9, 0
      %p89 = por %p87, %p88
      %p90 = scmp.ne.s32.totalorder %s79, %s82
      %p91 = scmp.eq.s32.totalorder %s14, 7
      %p92 = por %p90, %p91
      %p93 = scmp.ne.s32.totalorder %s82, %s83
      %p94 = scmp.eq.s32.totalorder %s14, 0
      %p95 = por %p93, %p94
      %p96 = scmp.ne.s32.totalorder %s82, %s83
      %p97 = scmp.eq.s32.totalorder %s15, 7
      %p98 = por %p96, %p97
      %p100 = scmp.ne.s32.totalorder %s83, %s99
      %p101 = scmp.eq.s32.totalorder %s15, 0
      %p102 = por %p100, %p101
      %s103 = ssub.s32 %s16, %s42
      %s104 = ssub.s32 %s18, %s34
      %s105 = sor.u32 %s103, %s104
      %p106 = scmp.eq.s32.totalorder %s105, 0
      %s108 = sadd.s32 %s107, 1
      %s109 = scalar_select %p106, %s107, %s108
      %p112 = pneg %p106
      %p113 = scmp.eq.s32.totalorder %s9, 7
      %p114 = por %p112, %p113
      %p115 = scmp.ne.s32.totalorder %s107, %s110
      %p116 = scmp.eq.s32.totalorder %s9, 0
      %p117 = por %p115, %p116
      %p118 = scmp.ne.s32.totalorder %s107, %s110
      %p119 = scmp.eq.s32.totalorder %s14, 7
      %p120 = por %p118, %p119
      %p121 = scmp.ne.s32.totalorder %s110, %s111
      %p122 = scmp.eq.s32.totalorder %s14, 0
      %p123 = por %p121, %p122
      %p124 = scmp.ne.s32.totalorder %s110, %s111
      %p125 = scmp.eq.s32.totalorder %s15, 7
      %p126 = por %p124, %p125
      %p128 = scmp.ne.s32.totalorder %s111, %s127
      %p129 = scmp.eq.s32.totalorder %s15, 0
      %p130 = por %p128, %p129
      %s131 = ssub.s32 %s16, %s42
      %s132 = ssub.s32 %s17, %s38
      %s133 = sor.u32 %s131, %s132
      %s134 = ssub.s32 %s18, %s34
      %s135 = sor.u32 %s133, %s134
      %p136 = scmp.eq.s32.totalorder %s135, 0
      %s138 = sadd.s32 %s137, 1
      %s139 = scalar_select %p136, %s137, %s138
      %p142 = pneg %p136
      %p143 = scmp.eq.s32.totalorder %s9, 7
      %p144 = por %p142, %p143
      %p145 = scmp.ne.s32.totalorder %s137, %s140
      %p146 = scmp.eq.s32.totalorder %s9, 0
      %p147 = por %p145, %p146
      %p148 = scmp.ne.s32.totalorder %s137, %s140
      %p149 = scmp.eq.s32.totalorder %s14, 7
      %p150 = por %p148, %p149
      %p151 = scmp.ne.s32.totalorder %s140, %s141
      %p152 = scmp.eq.s32.totalorder %s14, 0
      %p153 = por %p151, %p152
      %p154 = scmp.ne.s32.totalorder %s140, %s141
      %p155 = scmp.eq.s32.totalorder %s15, 7
      %p156 = por %p154, %p155
      %p158 = scmp.ne.s32.totalorder %s141, %s157
      %p159 = scmp.eq.s32.totalorder %s15, 0
      %p160 = por %p158, %p159
      %p161 = scmp.le.s32.totalorder 1, %s9
      %p162 = scmp.lt.s32.totalorder %s9, 9
      %p163 = pnand %p161, %p162
      %p164 = pneg %p163
      // Predicated region
      $region9: #{forward.11} parent=5 // pred_check
        _
      $region10: #{forward.11} parent=5 // pred_check_branch
        %166 = sbr.rel (%p163) target = $region12
      $region11: #{forward.11} parent=5 // pred_region
        %s167 = ssub.s32 %s9, 1
      $region12: #{forward.11} parent=5 // pred_fallthru
        _
      %p168 = scmp.lt.s32.totalorder %s9, 8
      // Predicated region
      $region13: #{forward.11} parent=5 // pred_check
        %p169 = pneg %p168
      $region14: #{forward.11} parent=5 // pred_check_branch
        %171 = sbr.rel (%p169) target = $region16
      $region15: #{forward.11} parent=5 // pred_region
        // Predicated region
        $region17: #{forward.11} parent=15 // pred_check
          %p172 = pneg %p59
        $region18: #{forward.11} parent=15 // pred_check_branch
          %174 = sbr.rel (%p172) target = $region20
        $region19: #{forward.11} parent=15 // pred_region
          %s175 = sand.u32 %s49, 1
          %s176 = sand.u32 %s49, 1
          %s177 = smul.addr %s176, 192
          %s178 = scalar_lea.vmem [#allocation3], %s177
          %s179 = smul.u32 16, %s17
          %s180 = smul.u32 3, %s19
          %s181 = smul.addr %s179, 6
          %s182 = sadd.s32 %s180, %s181
          %s183 = smul.addr %s16, 96
          %s184 = sadd.s32 %s182, %s183
          %s185 = smul.addr %s184, 4
          %s186 = scalar_lea.vmem %s0, %s185
          // Predicated region
          $region21: #{forward.11} parent=19 // pred_check
            _
          $region22: #{forward.11} parent=19 // pred_check_branch
            %188 = sbr.rel (0) target = $region24
          $region23: #{forward.11} parent=19 // pred_region
            // Predicated region
            $region25: #{forward.11} parent=23 // pred_check
              _
            $region26: #{forward.11} parent=23 // pred_check_branch
              %190 = sbr.rel (0) target = $region28
            $region27: #{forward.11} parent=23 // pred_region
              %s191 = scalar_lea.vmem %s186, 8
              %s192 = scalar_lea.vmem %s178, 8 [#allocation3]
              loop: start=0, step=1, limit=1
              $region29: #{forward.11} parent=27 // loop_pre_header
                _
              $region30: #{forward.11} parent=27 // loop_header
                %s194 = sphi 0, %s198
                %p195 = scmp.ge.s32.totalorder %s194, 1
                %s199 = sphi %s186, %s186
                %s200 = sphi %s178, %s178
              $region31: #{forward.11} parent=27 // loop_header_branch
                %197 = sbr.rel (%p195) target = $region35
              $region32: #{forward.11} parent=27 // loop_body
                %v201 = vld [vmem:[%s199] sm:$0xff]
                %202 = vst [vmem:[%s200] sm:$0xff] %v201
                %v203 = vld [vmem:[%s199 + $0x18] sm:$0xff]
                %204 = vst [vmem:[%s200 + $0xc] sm:$0xff] %v203
                %v205 = vld [vmem:[%s199 + $0x30] sm:$0xff]
                %206 = vst [vmem:[%s200 + $0x18] sm:$0xff] %v205
                %v207 = vld [vmem:[%s199 + $0x48] sm:$0xff]
                %208 = vst [vmem:[%s200 + $0x24] sm:$0xff] %v207
                %v209 = vld [vmem:[%s199 + $0x60] sm:$0xff]
                %210 = vst [vmem:[%s200 + $0x30] sm:$0xff] %v209
                %v211 = vld [vmem:[%s199 + $0x78] sm:$0xff]
                %212 = vst [vmem:[%s200 + $0x3c] sm:$0xff] %v211
                %v213 = vld [vmem:[%s199 + $0x90] sm:$0xff]
                %214 = vst [vmem:[%s200 + $0x48] sm:$0xff] %v213
                %v215 = vld [vmem:[%s199 + $0xa8] sm:$0xff]
                %216 = vst [vmem:[%s200 + $0x54] sm:$0xff] %v215
                %v217 = vld [vmem:[%s199 + $0xc0] sm:$0xff]
                %218 = vst [vmem:[%s200 + $0x60] sm:$0xff] %v217
                %v219 = vld [vmem:[%s199 + $0xd8] sm:$0xff]
                %220 = vst [vmem:[%s200 + $0x6c] sm:$0xff] %v219
                %v221 = vld [vmem:[%s199 + $0xf0] sm:$0xff]
                %222 = vst [vmem:[%s200 + $0x78] sm:$0xff] %v221
                %v223 = vld [vmem:[%s199 + $0x108] sm:$0xff]
                %224 = vst [vmem:[%s200 + $0x84] sm:$0xff] %v223
                %v225 = vld [vmem:[%s199 + $0x120] sm:$0xff]
                %226 = vst [vmem:[%s200 + $0x90] sm:$0xff] %v225
                %v227 = vld [vmem:[%s199 + $0x138] sm:$0xff]
                %228 = vst [vmem:[%s200 + $0x9c] sm:$0xff] %v227
                %v229 = vld [vmem:[%s199 + $0x150] sm:$0xff]
                %230 = vst [vmem:[%s200 + $0xa8] sm:$0xff] %v229
                %v231 = vld [vmem:[%s199 + $0x168] sm:$0xff]
                %232 = vst [vmem:[%s200 + $0xb4] sm:$0xff] %v231
              $region33: #{forward.11} parent=27 // loop_footer
                %s198 = sadd.s32 1, %s194
              $region34: #{forward.11} parent=27 // loop_footer_branch
                %193 = sbr.rel target = $region30
              $region35: #{forward.11} parent=27 // loop_exit
                _
              %s234 = ssub.s32 16, 1
              loop: start=0, step=1, limit=1
              $region36: #{forward.11} parent=27 // loop_pre_header
                _
              $region37: #{forward.11} parent=27 // loop_header
                %s236 = sphi 0, %s240
                %p237 = scmp.ge.s32.totalorder %s236, 1
                %s241 = sphi %s191, %s191
                %s242 = sphi %s192, %s192
              $region38: #{forward.11} parent=27 // loop_header_branch
                %239 = sbr.rel (%p237) target = $region42
              $region39: #{forward.11} parent=27 // loop_body
                %v243 = vld [vmem:[%s241] sm:%s234]
                %244 = vst [vmem:[%s242] sm:%s234] %v243
                %v245 = vld [vmem:[%s241 + $0x18] sm:%s234]
                %246 = vst [vmem:[%s242 + $0xc] sm:%s234] %v245
                %v247 = vld [vmem:[%s241 + $0x30] sm:%s234]
                %248 = vst [vmem:[%s242 + $0x18] sm:%s234] %v247
                %v249 = vld [vmem:[%s241 + $0x48] sm:%s234]
                %250 = vst [vmem:[%s242 + $0x24] sm:%s234] %v249
                %v251 = vld [vmem:[%s241 + $0x60] sm:%s234]
                %252 = vst [vmem:[%s242 + $0x30] sm:%s234] %v251
                %v253 = vld [vmem:[%s241 + $0x78] sm:%s234]
                %254 = vst [vmem:[%s242 + $0x3c] sm:%s234] %v253
                %v255 = vld [vmem:[%s241 + $0x90] sm:%s234]
                %256 = vst [vmem:[%s242 + $0x48] sm:%s234] %v255
                %v257 = vld [vmem:[%s241 + $0xa8] sm:%s234]
                %258 = vst [vmem:[%s242 + $0x54] sm:%s234] %v257
                %v259 = vld [vmem:[%s241 + $0xc0] sm:%s234]
                %260 = vst [vmem:[%s242 + $0x60] sm:%s234] %v259
                %v261 = vld [vmem:[%s241 + $0xd8] sm:%s234]
                %262 = vst [vmem:[%s242 + $0x6c] sm:%s234] %v261
                %v263 = vld [vmem:[%s241 + $0xf0] sm:%s234]
                %264 = vst [vmem:[%s242 + $0x78] sm:%s234] %v263
                %v265 = vld [vmem:[%s241 + $0x108] sm:%s234]
                %266 = vst [vmem:[%s242 + $0x84] sm:%s234] %v265
                %v267 = vld [vmem:[%s241 + $0x120] sm:%s234]
                %268 = vst [vmem:[%s242 + $0x90] sm:%s234] %v267
                %v269 = vld [vmem:[%s241 + $0x138] sm:%s234]
                %270 = vst [vmem:[%s242 + $0x9c] sm:%s234] %v269
                %v271 = vld [vmem:[%s241 + $0x150] sm:%s234]
                %272 = vst [vmem:[%s242 + $0xa8] sm:%s234] %v271
                %v273 = vld [vmem:[%s241 + $0x168] sm:%s234]
                %274 = vst [vmem:[%s242 + $0xb4] sm:%s234] %v273
              $region40: #{forward.11} parent=27 // loop_footer
                %s240 = sadd.s32 1, %s236
              $region41: #{forward.11} parent=27 // loop_footer_branch
                %235 = sbr.rel target = $region37
              $region42: #{forward.11} parent=27 // loop_exit
                _
            $region28: #{forward.11} parent=23 // pred_fallthru
              _
          $region24: #{forward.11} parent=19 // pred_fallthru
            _
          %275 = vnop
        $region20: #{forward.11} parent=15 // pred_fallthru
          _
        // Predicated region
        $region43: #{forward.11} parent=15 // pred_check
          %p276 = pneg %p89
        $region44: #{forward.11} parent=15 // pred_check_branch
          %278 = sbr.rel (%p276) target = $region46
        $region45: #{forward.11} parent=15 // pred_region
          %s279 = smul.u32 48, %s19
          %p280 = scmp.lt.s32.totalorder %s16, 3
          %s281 = scalar_select %p280, %s16, 3
          %p282 = scmp.lt.s32.totalorder %s279, 95
          %s283 = scalar_select %p282, %s279, 95
          %p284 = scmp.lt.s32.totalorder %s18, 0
          %s285 = scalar_select %p284, %s18, 0
          %s286 = sadd.s32 %s285, %s283
          %s287 = smul.addr %s281, 96
          %s288 = sadd.s32 %s286, %s287
          %s289 = smul.addr %s288, 4
          %s290 = scalar_lea.vmem %s1, %s289
          %s291 = smul.u32 48, %s19
        $region46: #{forward.11} parent=15 // pred_fallthru
          _
        // Predicated region
        $region47: #{forward.11} parent=15 // pred_check
          %p292 = pneg %p117
        $region48: #{forward.11} parent=15 // pred_check_branch
          %294 = sbr.rel (%p292) target = $region50
        $region49: #{forward.11} parent=15 // pred_region
          %p295 = scmp.lt.s32.totalorder %s16, 3
          %s296 = scalar_select %p295, %s16, 3
          %p297 = scmp.lt.s32.totalorder %s18, 0
          %s298 = scalar_select %p297, %s18, 0
          %s299 = sadd.s32 %s298, %s296
          %s300 = scalar_lea.vmem %s2, %s299
        $region50: #{forward.11} parent=15 // pred_fallthru
          _
      $region16: #{forward.11} parent=5 // pred_fallthru
        _
      %p301 = scmp.le.s32.totalorder 1, %s9
      %p302 = scmp.lt.s32.totalorder %s9, 9
      %p303 = pnand %p301, %p302
      %p304 = pneg %p303
      // Predicated region
      $region51: #{forward.11} parent=5 // pred_check
        _
      $region52: #{forward.11} parent=5 // pred_check_branch
        %306 = sbr.rel (%p303) target = $region54
      $region53: #{forward.11} parent=5 // pred_region
        %s307 = ssub.s32 %s9, 1
        %s308 = sand.u32 %s52, 1
        %s309 = sand.u32 %s52, 1
        %s310 = smul.addr %s309, 192
        %s311 = scalar_lea.vmem [#allocation3], %s310
        // Predicated region
        $region55: #{forward.11} parent=53 // pred_check
          %p312 = pneg %p65
        $region56: #{forward.11} parent=53 // pred_check_branch
          %314 = sbr.rel (%p312) target = $region58
        $region57: #{forward.11} parent=53 // pred_region
          _
        $region58: #{forward.11} parent=53 // pred_fallthru
          _
        %s315 = sand.u32 %s52, 1
        %s316 = sand.u32 %s52, 1
        %s317 = smul.addr %s316, 192
        %s318 = scalar_lea.vmem [#allocation3], %s317
        %p319 = pneg %p65
        %p320 = pneg %p62
        %s321 = smul.u32 48, %s23
        %p322 = scmp.lt.s32.totalorder %s20, 3
        %s323 = scalar_select %p322, %s20, 3
        %p324 = scmp.lt.s32.totalorder %s321, 95
        %s325 = scalar_select %p324, %s321, 95
        %p326 = scmp.lt.s32.totalorder %s22, 0
        %s327 = scalar_select %p326, %s22, 0
        %s328 = sadd.s32 %s327, %s325
        %s329 = smul.addr %s323, 96
        %s330 = sadd.s32 %s328, %s329
        %s331 = smul.addr %s330, 4
        %s332 = scalar_lea.vmem %s1, %s331
        %p333 = pneg %p95
        %p334 = pneg %p92
        %p335 = scmp.lt.s32.totalorder %s20, 3
        %s336 = scalar_select %p335, %s20, 3
        %p337 = scmp.lt.s32.totalorder %s22, 0
        %s338 = scalar_select %p337, %s22, 0
        %s339 = sadd.s32 %s338, %s336
        %s340 = scalar_lea.vmem %s2, %s339
        %p341 = pneg %p123
        %p342 = pneg %p120
        %p343 = pneg %p153
        %p344 = pneg %p150
        %s345 = smul.u32 16, %s21
        %p346 = scmp.lt.s32.totalorder %s20, 3
        %s347 = scalar_select %p346, %s20, 3
        %p348 = scmp.lt.s32.totalorder %s345, 15
        %s349 = scalar_select %p348, %s345, 15
        %p350 = scmp.lt.s32.totalorder %s22, 0
        %s351 = scalar_select %p350, %s22, 0
        %s352 = sadd.s32 %s351, %s349
        %s353 = smul.addr %s347, 16
        %s354 = sadd.s32 %s352, %s353
        %s355 = smul.addr %s354, 8
        %s356 = scalar_lea.vmem %s3, %s355
        %s357 = smul.u32 16, %s21
        %s358 = smul.u32 3, %s23
        %s359 = smul.u32 48, %s23
        %p360 = scmp.lt.s32.totalorder %s20, 3
        %s361 = scalar_select %p360, %s20, 3
        %p362 = scmp.lt.s32.totalorder %s359, 95
        %s363 = scalar_select %p362, %s359, 95
        %p364 = scmp.lt.s32.totalorder %s22, 0
        %s365 = scalar_select %p364, %s22, 0
        %s366 = sadd.s32 %s365, %s363
        %s367 = smul.addr %s361, 96
        %s368 = sadd.s32 %s366, %s367
        %s369 = smul.addr %s368, 4
        %s370 = scalar_lea.vmem %s1, %s369
        %s371 = smul.u32 48, %s23
        %p372 = scmp.lt.s32.totalorder %s20, 3
        %s373 = scalar_select %p372, %s20, 3
        %p374 = scmp.lt.s32.totalorder %s22, 0
        %s375 = scalar_select %p374, %s22, 0
        %s376 = sadd.s32 %s375, %s373
        %s377 = scalar_lea.vmem %s2, %s376
        %s378 = smul.u32 16, %s21
        %p379 = scmp.lt.s32.totalorder %s20, 3
        %s380 = scalar_select %p379, %s20, 3
        %p381 = scmp.lt.s32.totalorder %s378, 15
        %s382 = scalar_select %p381, %s378, 15
        %p383 = scmp.lt.s32.totalorder %s22, 0
        %s384 = scalar_select %p383, %s22, 0
        %s385 = sadd.s32 %s384, %s382
        %s386 = smul.addr %s380, 16
        %s387 = sadd.s32 %s385, %s386
        %s388 = smul.addr %s387, 8
        %s389 = scalar_lea.vmem %s3, %s388
        %s390 = smul.u32 16, %s21
        %p391 = scmp.eq.s32.totalorder %s23, 0
        // Predicated region
        $region59: #{forward.11} parent=53 // pred_check
          %p392 = pneg %p391
        $region60: #{forward.11} parent=53 // pred_check_branch
          %394 = sbr.rel (%p392) target = $region62
        $region61: #{forward.11} parent=53 // pred_region
          %395 = vst [vmem:[#allocation2] sm:$0xff] 0.0
          %396 = vst [vmem:[#allocation2 + $0x8] sm:$0xff] 0.0
          %397 = vst [vmem:[#allocation2 + $0x10] sm:$0xff] 0.0
          %398 = vst [vmem:[#allocation2 + $0x18] sm:$0xff] 0.0
          %399 = vst [vmem:[#allocation2 + $0x20] sm:$0xff] 0.0
          %400 = vst [vmem:[#allocation2 + $0x28] sm:$0xff] 0.0
          %401 = vst [vmem:[#allocation2 + $0x30] sm:$0xff] 0.0
          %402 = vst [vmem:[#allocation2 + $0x38] sm:$0xff] 0.0
          %403 = vst [vmem:[#allocation2 + $0x40] sm:$0xff] 0.0
          %404 = vst [vmem:[#allocation2 + $0x48] sm:$0xff] 0.0
          %405 = vst [vmem:[#allocation2 + $0x50] sm:$0xff] 0.0
          %406 = vst [vmem:[#allocation2 + $0x58] sm:$0xff] 0.0
          %407 = vst [vmem:[#allocation2 + $0x60] sm:$0xff] 0.0
          %408 = vst [vmem:[#allocation2 + $0x68] sm:$0xff] 0.0
          %409 = vst [vmem:[#allocation2 + $0x70] sm:$0xff] 0.0
          %410 = vst [vmem:[#allocation2 + $0x78] sm:$0xff] 0.0
        $region62: #{forward.11} parent=53 // pred_fallthru
          _
        %v411 = vld [vmem:[#allocation2] sm:$0xff]
        %v412 = vld [vmem:[#allocation2 + $0x8] sm:$0xff]
        %v413 = vld [vmem:[#allocation2 + $0x10] sm:$0xff]
        %v414 = vld [vmem:[#allocation2 + $0x18] sm:$0xff]
        %v415 = vld [vmem:[#allocation2 + $0x20] sm:$0xff]
        %v416 = vld [vmem:[#allocation2 + $0x28] sm:$0xff]
        %v417 = vld [vmem:[#allocation2 + $0x30] sm:$0xff]
        %v418 = vld [vmem:[#allocation2 + $0x38] sm:$0xff]
        %v419 = vld [vmem:[#allocation2 + $0x40] sm:$0xff]
        %v420 = vld [vmem:[#allocation2 + $0x48] sm:$0xff]
        %v421 = vld [vmem:[#allocation2 + $0x50] sm:$0xff]
        %v422 = vld [vmem:[#allocation2 + $0x58] sm:$0xff]
        %v423 = vld [vmem:[#allocation2 + $0x60] sm:$0xff]
        %v424 = vld [vmem:[#allocation2 + $0x68] sm:$0xff]
        %v425 = vld [vmem:[#allocation2 + $0x70] sm:$0xff]
        %v426 = vld [vmem:[#allocation2 + $0x78] sm:$0xff]
        %v427 = vld [vmem:[%s311] sm:$0xff]
        %v428 = vld [vmem:[%s311 + $0x8] sm:$0xf]
        %v429 = vld [vmem:[%s311 + $0xc] sm:$0xff]
        %v430 = vld [vmem:[%s311 + $0x14] sm:$0xf]
        %v431 = vld [vmem:[%s311 + $0x18] sm:$0xff]
        %v432 = vld [vmem:[%s311 + $0x20] sm:$0xf]
        %v433 = vld [vmem:[%s311 + $0x24] sm:$0xff]
        %v434 = vld [vmem:[%s311 + $0x2c] sm:$0xf]
        %v435 = vld [vmem:[%s311 + $0x30] sm:$0xff]
        %v436 = vld [vmem:[%s311 + $0x38] sm:$0xf]
        %v437 = vld [vmem:[%s311 + $0x3c] sm:$0xff]
        %v438 = vld [vmem:[%s311 + $0x44] sm:$0xf]
        %v439 = vld [vmem:[%s311 + $0x48] sm:$0xff]
        %v440 = vld [vmem:[%s311 + $0x50] sm:$0xf]
        %v441 = vld [vmem:[%s311 + $0x54] sm:$0xff]
        %v442 = vld [vmem:[%s311 + $0x5c] sm:$0xf]
        %v443 = vld [vmem:[%s311 + $0x60] sm:$0xff]
        %v444 = vld [vmem:[%s311 + $0x68] sm:$0xf]
        %v445 = vld [vmem:[%s311 + $0x6c] sm:$0xff]
        %v446 = vld [vmem:[%s311 + $0x74] sm:$0xf]
        %v447 = vld [vmem:[%s311 + $0x78] sm:$0xff]
        %v448 = vld [vmem:[%s311 + $0x80] sm:$0xf]
        %v449 = vld [vmem:[%s311 + $0x84] sm:$0xff]
        %v450 = vld [vmem:[%s311 + $0x8c] sm:$0xf]
        %v451 = vld [vmem:[%s311 + $0x90] sm:$0xff]
        %v452 = vld [vmem:[%s311 + $0x98] sm:$0xf]
        %v453 = vld [vmem:[%s311 + $0x9c] sm:$0xff]
        %v454 = vld [vmem:[%s311 + $0xa4] sm:$0xf]
        %v455 = vld [vmem:[%s311 + $0xa8] sm:$0xff]
        %v456 = vld [vmem:[%s311 + $0xb0] sm:$0xf]
        %v457 = vld [vmem:[%s311 + $0xb4] sm:$0xff]
        %v458 = vld [vmem:[%s311 + $0xbc] sm:$0xf]
        %v459 = vld [vmem:[%s370] sm:$0xf]
        %v460 = vld [vmem:[%s370 + $0x4] sm:$0xf]
        %v461 = vld [vmem:[%s370 + $0x8] sm:$0xf]
        %v462 = vld [vmem:[%s370 + $0xc] sm:$0xf]
        %v463 = vld [vmem:[%s370 + $0x10] sm:$0xf]
        %v464 = vld [vmem:[%s370 + $0x14] sm:$0xf]
        %v465 = vld [vmem:[%s370 + $0x18] sm:$0xf]
        %v466 = vld [vmem:[%s370 + $0x1c] sm:$0xf]
        %v467 = vld [vmem:[%s370 + $0x20] sm:$0xf]
        %v468 = vld [vmem:[%s370 + $0x24] sm:$0xf]
        %v469 = vld [vmem:[%s370 + $0x28] sm:$0xf]
        %v470 = vld [vmem:[%s370 + $0x2c] sm:$0xf]
        %v471 = vld [vmem:[%s370 + $0x30] sm:$0xf]
        %v472 = vld [vmem:[%s370 + $0x34] sm:$0xf]
        %v473 = vld [vmem:[%s370 + $0x38] sm:$0xf]
        %v474 = vld [vmem:[%s370 + $0x3c] sm:$0xf]
        %v475 = vld [vmem:[%s370 + $0x40] sm:$0xf]
        %v476 = vld [vmem:[%s370 + $0x44] sm:$0xf]
        %v477 = vld [vmem:[%s370 + $0x48] sm:$0xf]
        %v478 = vld [vmem:[%s370 + $0x4c] sm:$0xf]
        %v479 = vld [vmem:[%s370 + $0x50] sm:$0xf]
        %v480 = vld [vmem:[%s370 + $0x54] sm:$0xf]
        %v481 = vld [vmem:[%s370 + $0x58] sm:$0xf]
        %v482 = vld [vmem:[%s370 + $0x5c] sm:$0xf]
        %v483 = vld [vmem:[%s370 + $0x60] sm:$0xf]
        %v484 = vld [vmem:[%s370 + $0x64] sm:$0xf]
        %v485 = vld [vmem:[%s370 + $0x68] sm:$0xf]
        %v486 = vld [vmem:[%s370 + $0x6c] sm:$0xf]
        %v487 = vld [vmem:[%s370 + $0x70] sm:$0xf]
        %v488 = vld [vmem:[%s370 + $0x74] sm:$0xf]
        %v489 = vld [vmem:[%s370 + $0x78] sm:$0xf]
        %v490 = vld [vmem:[%s370 + $0x7c] sm:$0xf]
        %v491 = vld [vmem:[%s370 + $0x80] sm:$0xf]
        %v492 = vld [vmem:[%s370 + $0x84] sm:$0xf]
        %v493 = vld [vmem:[%s370 + $0x88] sm:$0xf]
        %v494 = vld [vmem:[%s370 + $0x8c] sm:$0xf]
        %v495 = vld [vmem:[%s370 + $0x90] sm:$0xf]
        %v496 = vld [vmem:[%s370 + $0x94] sm:$0xf]
        %v497 = vld [vmem:[%s370 + $0x98] sm:$0xf]
        %v498 = vld [vmem:[%s370 + $0x9c] sm:$0xf]
        %v499 = vld [vmem:[%s370 + $0xa0] sm:$0xf]
        %v500 = vld [vmem:[%s370 + $0xa4] sm:$0xf]
        %v501 = vld [vmem:[%s370 + $0xa8] sm:$0xf]
        %v502 = vld [vmem:[%s370 + $0xac] sm:$0xf]
        %v503 = vld [vmem:[%s370 + $0xb0] sm:$0xf]
        %v504 = vld [vmem:[%s370 + $0xb4] sm:$0xf]
        %v505 = vld [vmem:[%s370 + $0xb8] sm:$0xf]
        %v506 = vld [vmem:[%s370 + $0xbc] sm:$0xf]
        %v539 = vunpack.c.l.b16 %v427
        %v540 = vunpack.c.h.b16 %v427
        %v541 = vunpack.c.l.b16 %v428
        %v542 = vunpack.c.l.b16 %v429
        %v543 = vunpack.c.h.b16 %v429
        %v544 = vunpack.c.l.b16 %v430
        %v545 = vunpack.c.l.b16 %v431
        %v546 = vunpack.c.h.b16 %v431
        %v547 = vunpack.c.l.b16 %v432
        %v548 = vunpack.c.l.b16 %v433
        %v549 = vunpack.c.h.b16 %v433
        %v550 = vunpack.c.l.b16 %v434
        %v551 = vunpack.c.l.b16 %v435
        %v552 = vunpack.c.h.b16 %v435
        %v553 = vunpack.c.l.b16 %v436
        %v554 = vunpack.c.l.b16 %v437
        %v555 = vunpack.c.h.b16 %v437
        %v556 = vunpack.c.l.b16 %v438
        %v557 = vunpack.c.l.b16 %v439
        %v558 = vunpack.c.h.b16 %v439
        %v559 = vunpack.c.l.b16 %v440
        %v560 = vunpack.c.l.b16 %v441
        %v561 = vunpack.c.h.b16 %v441
        %v562 = vunpack.c.l.b16 %v442
        %v563 = vunpack.c.l.b16 %v443
        %v564 = vunpack.c.h.b16 %v443
        %v565 = vunpack.c.l.b16 %v444
        %v566 = vunpack.c.l.b16 %v445
        %v567 = vunpack.c.h.b16 %v445
        %v568 = vunpack.c.l.b16 %v446
        %v569 = vunpack.c.l.b16 %v447
        %v570 = vunpack.c.h.b16 %v447
        %v571 = vunpack.c.l.b16 %v448
        %v572 = vunpack.c.l.b16 %v449
        %v573 = vunpack.c.h.b16 %v449
        %v574 = vunpack.c.l.b16 %v450
        %v575 = vunpack.c.l.b16 %v451
        %v576 = vunpack.c.h.b16 %v451
        %v577 = vunpack.c.l.b16 %v452
        %v578 = vunpack.c.l.b16 %v453
        %v579 = vunpack.c.h.b16 %v453
        %v580 = vunpack.c.l.b16 %v454
        %v581 = vunpack.c.l.b16 %v455
        %v582 = vunpack.c.h.b16 %v455
        %v583 = vunpack.c.l.b16 %v456
        %v584 = vunpack.c.l.b16 %v457
        %v585 = vunpack.c.h.b16 %v457
        %v586 = vunpack.c.l.b16 %v458
        %v587 = vpack.c.b16 %v542, %v539
        %v588 = vpack.c.b16 %v543, %v540
        %v589 = vpack.c.b16 %v544, %v541
        %v590 = vpack.c.b16 %v548, %v545
        %v591 = vpack.c.b16 %v549, %v546
        %v592 = vpack.c.b16 %v550, %v547
        %v593 = vpack.c.b16 %v554, %v551
        %v594 = vpack.c.b16 %v555, %v552
        %v595 = vpack.c.b16 %v556, %v553
        %v596 = vpack.c.b16 %v560, %v557
        %v597 = vpack.c.b16 %v561, %v558
        %v598 = vpack.c.b16 %v562, %v559
        %v599 = vpack.c.b16 %v566, %v563
        %v600 = vpack.c.b16 %v567, %v564
        %v601 = vpack.c.b16 %v568, %v565
        %v602 = vpack.c.b16 %v572, %v569
        %v603 = vpack.c.b16 %v573, %v570
        %v604 = vpack.c.b16 %v574, %v571
        %v605 = vpack.c.b16 %v578, %v575
        %v606 = vpack.c.b16 %v579, %v576
        %v607 = vpack.c.b16 %v580, %v577
        %v608 = vpack.c.b16 %v584, %v581
        %v609 = vpack.c.b16 %v585, %v582
        %v610 = vpack.c.b16 %v586, %v583
        %v683 = vunpack.c.l.b16 %v459
        %v684 = vunpack.c.l.b16 %v460
        %v685 = vunpack.c.l.b16 %v461
        %v686 = vunpack.c.l.b16 %v462
        %v687 = vunpack.c.l.b16 %v463
        %v688 = vunpack.c.l.b16 %v464
        %v689 = vunpack.c.l.b16 %v465
        %v690 = vunpack.c.l.b16 %v466
        %v691 = vunpack.c.l.b16 %v467
        %v692 = vunpack.c.l.b16 %v468
        %v693 = vunpack.c.l.b16 %v469
        %v694 = vunpack.c.l.b16 %v470
        %v695 = vunpack.c.l.b16 %v471
        %v696 = vunpack.c.l.b16 %v472
        %v697 = vunpack.c.l.b16 %v473
        %v698 = vunpack.c.l.b16 %v474
        %v699 = vunpack.c.l.b16 %v475
        %v700 = vunpack.c.l.b16 %v476
        %v701 = vunpack.c.l.b16 %v477
        %v702 = vunpack.c.l.b16 %v478
        %v703 = vunpack.c.l.b16 %v479
        %v704 = vunpack.c.l.b16 %v480
        %v705 = vunpack.c.l.b16 %v481
        %v706 = vunpack.c.l.b16 %v482
        %v707 = vunpack.c.l.b16 %v483
        %v708 = vunpack.c.l.b16 %v484
        %v709 = vunpack.c.l.b16 %v485
        %v710 = vunpack.c.l.b16 %v486
        %v711 = vunpack.c.l.b16 %v487
        %v712 = vunpack.c.l.b16 %v488
        %v713 = vunpack.c.l.b16 %v489
        %v714 = vunpack.c.l.b16 %v490
        %v715 = vunpack.c.l.b16 %v491
        %v716 = vunpack.c.l.b16 %v492
        %v717 = vunpack.c.l.b16 %v493
        %v718 = vunpack.c.l.b16 %v494
        %v719 = vunpack.c.l.b16 %v495
        %v720 = vunpack.c.l.b16 %v496
        %v721 = vunpack.c.l.b16 %v497
        %v722 = vunpack.c.l.b16 %v498
        %v723 = vunpack.c.l.b16 %v499
        %v724 = vunpack.c.l.b16 %v500
        %v725 = vunpack.c.l.b16 %v501
        %v726 = vunpack.c.l.b16 %v502
        %v727 = vunpack.c.l.b16 %v503
        %v728 = vunpack.c.l.b16 %v504
        %v729 = vunpack.c.l.b16 %v505
        %v730 = vunpack.c.l.b16 %v506
        %v731 = vpack.c.b16 %v684, %v683
        %v732 = vpack.c.b16 %v686, %v685
        %v733 = vpack.c.b16 %v688, %v687
        %v734 = vpack.c.b16 %v690, %v689
        %v735 = vpack.c.b16 %v692, %v691
        %v736 = vpack.c.b16 %v694, %v693
        %v737 = vpack.c.b16 %v696, %v695
        %v738 = vpack.c.b16 %v698, %v697
        %v739 = vpack.c.b16 %v700, %v699
        %v740 = vpack.c.b16 %v702, %v701
        %v741 = vpack.c.b16 %v704, %v703
        %v742 = vpack.c.b16 %v706, %v705
        %v743 = vpack.c.b16 %v708, %v707
        %v744 = vpack.c.b16 %v710, %v709
        %v745 = vpack.c.b16 %v712, %v711
        %v746 = vpack.c.b16 %v714, %v713
        %v747 = vpack.c.b16 %v716, %v715
        %v748 = vpack.c.b16 %v718, %v717
        %v749 = vpack.c.b16 %v720, %v719
        %v750 = vpack.c.b16 %v722, %v721
        %v751 = vpack.c.b16 %v724, %v723
        %v752 = vpack.c.b16 %v726, %v725
        %v753 = vpack.c.b16 %v728, %v727
        %v754 = vpack.c.b16 %v730, %v729
        %779 = vmatpush.bf16.msra.mxu0 %v738
        %780 = vmatpush.bf16.msra.mxu0 %v737
        %781 = vmatpush.bf16.msra.mxu0 %v736
        %782 = vmatpush.bf16.msra.mxu0 %v735
        %783 = vmatpush.bf16.msra.mxu0 %v734
        %784 = vmatpush.bf16.msra.mxu0 %v733
        %785 = vmatpush.bf16.msra.mxu0 %v732
        %786 = vmatpush.bf16.msra.mxu0 %v731
        %787 = vmatmul.bf16.gmra.mxu0 %v587
        %v788 = vpop.f32.mrf.mxu0
        %v789 = vadd.f32 0.0, %v788
        %v790 = vpop.f32.mrf.mxu0
        %v791 = vadd.f32 0.0, %v790
        %792 = vmatmul.bf16.gmra.mxu0 %v590
        %v793 = vpop.f32.mrf.mxu0
        %v794 = vadd.f32 0.0, %v793
        %v795 = vpop.f32.mrf.mxu0
        %v796 = vadd.f32 0.0, %v795
        %797 = vmatmul.bf16.gmra.mxu0 %v593
        %v798 = vpop.f32.mrf.mxu0
        %v799 = vadd.f32 0.0, %v798
        %v800 = vpop.f32.mrf.mxu0
        %v801 = vadd.f32 0.0, %v800
        %802 = vmatmul.bf16.gmra.mxu0 %v596
        %v803 = vpop.f32.mrf.mxu0
        %v804 = vadd.f32 0.0, %v803
        %v805 = vpop.f32.mrf.mxu0
        %v806 = vadd.f32 0.0, %v805
        %807 = vmatmul.bf16.gmra.mxu0 %v599
        %v808 = vpop.f32.mrf.mxu0
        %v809 = vadd.f32 0.0, %v808
        %v810 = vpop.f32.mrf.mxu0
        %v811 = vadd.f32 0.0, %v810
        %812 = vmatmul.bf16.gmra.mxu0 %v602
        %v813 = vpop.f32.mrf.mxu0
        %v814 = vadd.f32 0.0, %v813
        %v815 = vpop.f32.mrf.mxu0
        %v816 = vadd.f32 0.0, %v815
        %817 = vmatmul.bf16.gmra.mxu0 %v605
        %v818 = vpop.f32.mrf.mxu0
        %v819 = vadd.f32 0.0, %v818
        %v820 = vpop.f32.mrf.mxu0
        %v821 = vadd.f32 0.0, %v820
        %822 = vmatmul.bf16.gmra.mxu0 %v608
        %v823 = vpop.f32.mrf.mxu0
        %v824 = vadd.f32 0.0, %v823
        %v825 = vpop.f32.mrf.mxu0
        %v826 = vadd.f32 0.0, %v825
        %827 = vdwg.mxu0
        %828 = vmatpush.bf16.msra.mxu0 %v746
        %829 = vmatpush.bf16.msra.mxu0 %v745
        %830 = vmatpush.bf16.msra.mxu0 %v744
        %831 = vmatpush.bf16.msra.mxu0 %v743
        %832 = vmatpush.bf16.msra.mxu0 %v742
        %833 = vmatpush.bf16.msra.mxu0 %v741
        %834 = vmatpush.bf16.msra.mxu0 %v740
        %835 = vmatpush.bf16.msra.mxu0 %v739
        %836 = vmatmul.bf16.gmra.mxu0 %v588
        %v837 = vpop.f32.mrf.mxu0
        %v838 = vadd.f32 %v789, %v837
        %v839 = vpop.f32.mrf.mxu0
        %v840 = vadd.f32 %v791, %v839
        %841 = vmatmul.bf16.gmra.mxu0 %v591
        %v842 = vpop.f32.mrf.mxu0
        %v843 = vadd.f32 %v794, %v842
        %v844 = vpop.f32.mrf.mxu0
        %v845 = vadd.f32 %v796, %v844
        %846 = vmatmul.bf16.gmra.mxu0 %v594
        %v847 = vpop.f32.mrf.mxu0
        %v848 = vadd.f32 %v799, %v847
        %v849 = vpop.f32.mrf.mxu0
        %v850 = vadd.f32 %v801, %v849
        %851 = vmatmul.bf16.gmra.mxu0 %v597
        %v852 = vpop.f32.mrf.mxu0
        %v853 = vadd.f32 %v804, %v852
        %v854 = vpop.f32.mrf.mxu0
        %v855 = vadd.f32 %v806, %v854
        %856 = vmatmul.bf16.gmra.mxu0 %v600
        %v857 = vpop.f32.mrf.mxu0
        %v858 = vadd.f32 %v809, %v857
        %v859 = vpop.f32.mrf.mxu0
        %v860 = vadd.f32 %v811, %v859
        %861 = vmatmul.bf16.gmra.mxu0 %v603
        %v862 = vpop.f32.mrf.mxu0
        %v863 = vadd.f32 %v814, %v862
        %v864 = vpop.f32.mrf.mxu0
        %v865 = vadd.f32 %v816, %v864
        %866 = vmatmul.bf16.gmra.mxu0 %v606
        %v867 = vpop.f32.mrf.mxu0
        %v868 = vadd.f32 %v819, %v867
        %v869 = vpop.f32.mrf.mxu0
        %v870 = vadd.f32 %v821, %v869
        %871 = vmatmul.bf16.gmra.mxu0 %v609
        %v872 = vpop.f32.mrf.mxu0
        %v873 = vadd.f32 %v824, %v872
        %v874 = vpop.f32.mrf.mxu0
        %v875 = vadd.f32 %v826, %v874
        %876 = vdwg.mxu0
        %877 = vmatpush.bf16.msra.mxu0 %v754
        %878 = vmatpush.bf16.msra.mxu0 %v753
        %879 = vmatpush.bf16.msra.mxu0 %v752
        %880 = vmatpush.bf16.msra.mxu0 %v751
        %881 = vmatpush.bf16.msra.mxu0 %v750
        %882 = vmatpush.bf16.msra.mxu0 %v749
        %883 = vmatpush.bf16.msra.mxu0 %v748
        %884 = vmatpush.bf16.msra.mxu0 %v747
        %885 = vmatmul.bf16.gmra.mxu0 %v589
        %v886 = vpop.f32.mrf.mxu0
        %v887 = vadd.f32 %v838, %v886
        %v888 = vpop.f32.mrf.mxu0
        %v889 = vadd.f32 %v840, %v888
        %890 = vmatmul.bf16.gmra.mxu0 %v592
        %v891 = vpop.f32.mrf.mxu0
        %v892 = vadd.f32 %v843, %v891
        %v893 = vpop.f32.mrf.mxu0
        %v894 = vadd.f32 %v845, %v893
        %895 = vmatmul.bf16.gmra.mxu0 %v595
        %v896 = vpop.f32.mrf.mxu0
        %v897 = vadd.f32 %v848, %v896
        %v898 = vpop.f32.mrf.mxu0
        %v899 = vadd.f32 %v850, %v898
        %900 = vmatmul.bf16.gmra.mxu0 %v598
        %v901 = vpop.f32.mrf.mxu0
        %v902 = vadd.f32 %v853, %v901
        %v903 = vpop.f32.mrf.mxu0
        %v904 = vadd.f32 %v855, %v903
        %905 = vmatmul.bf16.gmra.mxu0 %v601
        %v906 = vpop.f32.mrf.mxu0
        %v907 = vadd.f32 %v858, %v906
        %v908 = vpop.f32.mrf.mxu0
        %v909 = vadd.f32 %v860, %v908
        %910 = vmatmul.bf16.gmra.mxu0 %v604
        %v911 = vpop.f32.mrf.mxu0
        %v912 = vadd.f32 %v863, %v911
        %v913 = vpop.f32.mrf.mxu0
        %v914 = vadd.f32 %v865, %v913
        %915 = vmatmul.bf16.gmra.mxu0 %v607
        %v916 = vpop.f32.mrf.mxu0
        %v917 = vadd.f32 %v868, %v916
        %v918 = vpop.f32.mrf.mxu0
        %v919 = vadd.f32 %v870, %v918
        %920 = vmatmul.bf16.gmra.mxu0 %v610
        %v921 = vpop.f32.mrf.mxu0
        %v922 = vadd.f32 %v873, %v921
        %v923 = vpop.f32.mrf.mxu0
        %v924 = vadd.f32 %v875, %v923
        %925 = vdwg.mxu0
        %v926 = vadd.f32 %v411, %v887
        %v927 = vadd.f32 %v412, %v889
        %v928 = vadd.f32 %v413, %v892
        %v929 = vadd.f32 %v414, %v894
        %v930 = vadd.f32 %v415, %v897
        %v931 = vadd.f32 %v416, %v899
        %v932 = vadd.f32 %v417, %v902
        %v933 = vadd.f32 %v418, %v904
        %v934 = vadd.f32 %v419, %v907
        %v935 = vadd.f32 %v420, %v909
        %v936 = vadd.f32 %v421, %v912
        %v937 = vadd.f32 %v422, %v914
        %v938 = vadd.f32 %v423, %v917
        %v939 = vadd.f32 %v424, %v919
        %v940 = vadd.f32 %v425, %v922
        %v941 = vadd.f32 %v426, %v924
        %942 = vst [vmem:[#allocation2] sm:$0xff] %v926
        %943 = vst [vmem:[#allocation2 + $0x8] sm:$0xff] %v927
        %944 = vst [vmem:[#allocation2 + $0x10] sm:$0xff] %v928
        %945 = vst [vmem:[#allocation2 + $0x18] sm:$0xff] %v929
        %946 = vst [vmem:[#allocation2 + $0x20] sm:$0xff] %v930
        %947 = vst [vmem:[#allocation2 + $0x28] sm:$0xff] %v931
        %948 = vst [vmem:[#allocation2 + $0x30] sm:$0xff] %v932
        %949 = vst [vmem:[#allocation2 + $0x38] sm:$0xff] %v933
        %950 = vst [vmem:[#allocation2 + $0x40] sm:$0xff] %v934
        %951 = vst [vmem:[#allocation2 + $0x48] sm:$0xff] %v935
        %952 = vst [vmem:[#allocation2 + $0x50] sm:$0xff] %v936
        %953 = vst [vmem:[#allocation2 + $0x58] sm:$0xff] %v937
        %954 = vst [vmem:[#allocation2 + $0x60] sm:$0xff] %v938
        %955 = vst [vmem:[#allocation2 + $0x68] sm:$0xff] %v939
        %956 = vst [vmem:[#allocation2 + $0x70] sm:$0xff] %v940
        %957 = vst [vmem:[#allocation2 + $0x78] sm:$0xff] %v941
        %p958 = scmp.eq.s32.totalorder %s23, 1
        // Predicated region
        $region63: #{forward.11} parent=53 // pred_check
          %p959 = pneg %p958
        $region64: #{forward.11} parent=53 // pred_check_branch
          %961 = sbr.rel (%p959) target = $region66
        $region65: #{forward.11} parent=53 // pred_region
          %v962 = vld [vmem:[#allocation2] sm:$0xff]
          %v963 = vld [vmem:[#allocation2 + $0x8] sm:$0xff]
          %v964 = vld [vmem:[#allocation2 + $0x10] sm:$0xff]
          %v965 = vld [vmem:[#allocation2 + $0x18] sm:$0xff]
          %v966 = vld [vmem:[#allocation2 + $0x20] sm:$0xff]
          %v967 = vld [vmem:[#allocation2 + $0x28] sm:$0xff]
          %v968 = vld [vmem:[#allocation2 + $0x30] sm:$0xff]
          %v969 = vld [vmem:[#allocation2 + $0x38] sm:$0xff]
          %v970 = vld [vmem:[#allocation2 + $0x40] sm:$0xff]
          %v971 = vld [vmem:[#allocation2 + $0x48] sm:$0xff]
          %v972 = vld [vmem:[#allocation2 + $0x50] sm:$0xff]
          %v973 = vld [vmem:[#allocation2 + $0x58] sm:$0xff]
          %v974 = vld [vmem:[#allocation2 + $0x60] sm:$0xff]
          %v975 = vld [vmem:[#allocation2 + $0x68] sm:$0xff]
          %v976 = vld [vmem:[#allocation2 + $0x70] sm:$0xff]
          %v977 = vld [vmem:[#allocation2 + $0x78] sm:$0xff]
          %v978 = vld [vmem:[%s377] sm:$0x1]
          %v980 = vperm.slane %v978, 0
          %v982 = vadd.f32 %v962, %v980
          %v983 = vadd.f32 %v963, %v980
          %v984 = vadd.f32 %v964, %v980
          %v985 = vadd.f32 %v965, %v980
          %v986 = vadd.f32 %v966, %v980
          %v987 = vadd.f32 %v967, %v980
          %v988 = vadd.f32 %v968, %v980
          %v989 = vadd.f32 %v969, %v980
          %v990 = vadd.f32 %v970, %v980
          %v991 = vadd.f32 %v971, %v980
          %v992 = vadd.f32 %v972, %v980
          %v993 = vadd.f32 %v973, %v980
          %v994 = vadd.f32 %v974, %v980
          %v995 = vadd.f32 %v975, %v980
          %v996 = vadd.f32 %v976, %v980
          %v997 = vadd.f32 %v977, %v980
          %v998 = vmax.f32 %v982, 0.0
          %v999 = vmax.f32 %v983, 0.0
          %v1000 = vmax.f32 %v984, 0.0
          %v1001 = vmax.f32 %v985, 0.0
          %v1002 = vmax.f32 %v986, 0.0
          %v1003 = vmax.f32 %v987, 0.0
          %v1004 = vmax.f32 %v988, 0.0
          %v1005 = vmax.f32 %v989, 0.0
          %v1006 = vmax.f32 %v990, 0.0
          %v1007 = vmax.f32 %v991, 0.0
          %v1008 = vmax.f32 %v992, 0.0
          %v1009 = vmax.f32 %v993, 0.0
          %v1010 = vmax.f32 %v994, 0.0
          %v1011 = vmax.f32 %v995, 0.0
          %v1012 = vmax.f32 %v996, 0.0
          %v1013 = vmax.f32 %v997, 0.0
          %1014 = vst [vmem:[%s389] sm:$0xff] %v998
          %1015 = vst [vmem:[%s389 + $0x8] sm:$0xff] %v999
          %1016 = vst [vmem:[%s389 + $0x10] sm:$0xff] %v1000
          %1017 = vst [vmem:[%s389 + $0x18] sm:$0xff] %v1001
          %1018 = vst [vmem:[%s389 + $0x20] sm:$0xff] %v1002
          %1019 = vst [vmem:[%s389 + $0x28] sm:$0xff] %v1003
          %1020 = vst [vmem:[%s389 + $0x30] sm:$0xff] %v1004
          %1021 = vst [vmem:[%s389 + $0x38] sm:$0xff] %v1005
          %1022 = vst [vmem:[%s389 + $0x40] sm:$0xff] %v1006
          %1023 = vst [vmem:[%s389 + $0x48] sm:$0xff] %v1007
          %1024 = vst [vmem:[%s389 + $0x50] sm:$0xff] %v1008
          %1025 = vst [vmem:[%s389 + $0x58] sm:$0xff] %v1009
          %1026 = vst [vmem:[%s389 + $0x60] sm:$0xff] %v1010
          %1027 = vst [vmem:[%s389 + $0x68] sm:$0xff] %v1011
          %1028 = vst [vmem:[%s389 + $0x70] sm:$0xff] %v1012
          %1029 = vst [vmem:[%s389 + $0x78] sm:$0xff] %v1013
        $region66: #{forward.11} parent=53 // pred_fallthru
          _
        %s1030 = smul.u32 16, %s21
        %p1031 = scmp.lt.s32.totalorder %s20, 3
        %s1032 = scalar_select %p1031, %s20, 3
        %p1033 = scmp.lt.s32.totalorder %s1030, 15
        %s1034 = scalar_select %p1033, %s1030, 15
        %p1035 = scmp.lt.s32.totalorder %s22, 0
        %s1036 = scalar_select %p1035, %s22, 0
        %s1037 = sadd.s32 %s1036, %s1034
        %s1038 = smul.addr %s1032, 16
        %s1039 = sadd.s32 %s1037, %s1038
        %s1040 = smul.addr %s1039, 8
        %s1041 = scalar_lea.vmem %s3, %s1040
        // Predicated region
        $region67: #{forward.11} parent=53 // pred_check
          %p1042 = pneg %p150
        $region68: #{forward.11} parent=53 // pred_check_branch
          %1044 = sbr.rel (%p1042) target = $region70
        $region69: #{forward.11} parent=53 // pred_region
          %s1045 = smul.u32 16, %s21
        $region70: #{forward.11} parent=53 // pred_fallthru
          _
      $region54: #{forward.11} parent=5 // pred_fallthru
        _
      %p1046 = scmp.le.s32.totalorder 2, %s9
      // Predicated region
      $region71: #{forward.11} parent=5 // pred_check
        %p1047 = pneg %p1046
      $region72: #{forward.11} parent=5 // pred_check_branch
        %1049 = sbr.rel (%p1047) target = $region74
      $region73: #{forward.11} parent=5 // pred_region
        %s1050 = ssub.s32 %s9, 2
        // Predicated region
        $region75: #{forward.11} parent=73 // pred_check
          %p1051 = pneg %p156
        $region76: #{forward.11} parent=73 // pred_check_branch
          %1053 = sbr.rel (%p1051) target = $region78
        $region77: #{forward.11} parent=73 // pred_region
          %s1054 = smul.u32 16, %s25
          %p1055 = scmp.lt.s32.totalorder %s24, 3
          %s1056 = scalar_select %p1055, %s24, 3
          %p1057 = scmp.lt.s32.totalorder %s1054, 15
          %s1058 = scalar_select %p1057, %s1054, 15
          %p1059 = scmp.lt.s32.totalorder %s26, 0
          %s1060 = scalar_select %p1059, %s26, 0
          %s1061 = sadd.s32 %s1060, %s1058
          %s1062 = smul.addr %s1056, 16
          %s1063 = sadd.s32 %s1061, %s1062
          %s1064 = smul.addr %s1063, 8
          %s1065 = scalar_lea.vmem %s3, %s1064
        $region78: #{forward.11} parent=73 // pred_fallthru
          _
      $region74: #{forward.11} parent=5 // pred_fallthru
        _
    $region6: #{forward.11} parent=1 // loop_footer
      %s13 = sadd.s32 1, %s9
    $region7: #{forward.11} parent=1 // loop_footer_branch
      %8 = sbr.rel target = $region3
    $region8: #{forward.11} parent=1 // loop_exit
      _

// kernel: forward.12
$region0: #{forward.12}
  #allocation0 [shape = 'u32[]', space=smem, size = 0x4, offset = 0x4, fixed_abs, tag = 'smem constant byte address 0x4 - core index']
  #allocation1 [shape = 'u32[72,128]{1,0:T(1,128)}', space=vmem, size = 0x9000, scoped, tag = 'internal scratch']
  #allocation2 [shape = 'f32[256,128]{1,0:T(8,128)}', space=vmem, size = 0x20000, scoped, tag = 'scratch operand']
  %s0 = inlined_call_operand.vmem [shape: bf16[4,512,384], index: 0, kind: input, shape index: {}]
  %s1 = inlined_call_operand.vmem [shape: bf16[4,384,128], index: 1, kind: input, shape index: {}]
  %s2 = inlined_call_operand.vmem [shape: f32[4,1,128], index: 2, kind: input, shape index: {}]
  %s3 = inlined_call_operand.vmem [shape: f32[4,512,128], index: 3, kind: output, shape index: {}]
  %s4 = sld [smem:[#allocation0]]
  $region53: #{forward.12} parent=0
    _
  %s6 = ssub.s32 1, %s4
  %s7 = scalar_select 0, %s6, %s4
  loop: start=0, step=1, limit=10
  $region2: #{forward.12} parent=0 // loop_pre_header
    _
  $region3: #{forward.12} parent=0 // loop_header
    %s9 = sphi 0, %s13
    %p10 = scmp.ge.s32.totalorder %s9, 10
    %s16 = sphi 0, %s42
    %s17 = sphi 0, %s38
    %s18 = sphi 0, %s34
    %s19 = sphi 0, %s30
    %s20 = sphi 0, %s16
    %s21 = sphi 0, %s17
    %s22 = sphi 0, %s18
    %s23 = sphi 0, %s19
    %s24 = sphi 0, %s20
    %s25 = sphi 0, %s21
    %s26 = sphi 0, %s22
    %s27 = sphi 0, %s23
    %s49 = sphi 0, %s51
    %s52 = sphi 0, %s49
    %s53 = sphi 0, %s52
    %s69 = sphi 0, %s53
    %s79 = sphi 0, %s81
    %s82 = sphi 0, %s79
    %s83 = sphi 0, %s82
    %s99 = sphi 0, %s83
    %s107 = sphi 0, %s109
    %s110 = sphi 0, %s107
    %s111 = sphi 0, %s110
    %s127 = sphi 0, %s111
    %s137 = sphi 0, %s139
    %s140 = sphi 0, %s137
    %s141 = sphi 0, %s140
    %s157 = sphi 0, %s141
  $region4: #{forward.12} parent=0 // loop_header_branch
    %12 = sbr.rel (%p10) target = $region8
  $region5: #{forward.12} parent=0 // loop_body
    %s14 = ssub.s32 %s9, 1
    %s15 = ssub.s32 %s9, 2
    %s28 = sadd.s32 1, %s19
    %p29 = scmp.ge.s32.totalorder %s28, 1
    %s30 = scalar_select %p29, 0, %s28
    %s31 = sadd.s32 1, %s18
    %s32 = scalar_select %p29, %s31, %s18
    %p33 = scmp.ge.s32.totalorder %s32, 1
    %s34 = scalar_select %p33, 0, %s32
    %s35 = sadd.s32 1, %s17
    %s36 = scalar_select %p33, %s35, %s17
    %p37 = scmp.ge.s32.totalorder %s36, 2
    %s38 = scalar_select %p37, 0, %s36
    %s39 = sadd.s32 1, %s16
    %s40 = scalar_select %p37, %s39, %s16
    %p41 = scmp.ge.s32.totalorder %s40, 4
    %s42 = scalar_select %p41, 0, %s40
    %s43 = ssub.s32 %s16, %s42
    %s44 = ssub.s32 %s17, %s38
    %s45 = sor.u32 %s43, %s44
    %s46 = ssub.s32 %s19, %s30
    %s47 = sor.u32 %s45, %s46
    %p48 = scmp.eq.s32.totalorder %s47, 0
    %s50 = sadd.s32 %s49, 1
    %s51 = scalar_select %p48, %s49, %s50
    %p54 = pneg %p48
    %p55 = scmp.eq.s32.totalorder %s9, 7
    %p56 = por %p54, %p55
    %p57 = scmp.ne.s32.totalorder %s49, %s52
    %p58 = scmp.eq.s32.totalorder %s9, 0
    %p59 = por %p57, %p58
    %p60 = scmp.ne.s32.totalorder %s49, %s52
    %p61 = scmp.eq.s32.totalorder %s14, 7
    %p62 = por %p60, %p61
    %p63 = scmp.ne.s32.totalorder %s52, %s53
    %p64 = scmp.eq.s32.totalorder %s14, 0
    %p65 = por %p63, %p64
    %p66 = scmp.ne.s32.totalorder %s52, %s53
    %p67 = scmp.eq.s32.totalorder %s15, 7
    %p68 = por %p66, %p67
    %p70 = scmp.ne.s32.totalorder %s53, %s69
    %p71 = scmp.eq.s32.totalorder %s15, 0
    %p72 = por %p70, %p71
    %s73 = ssub.s32 %s16, %s42
    %s74 = ssub.s32 %s19, %s30
    %s75 = sor.u32 %s73, %s74
    %s76 = ssub.s32 %s18, %s34
    %s77 = sor.u32 %s75, %s76
    %p78 = scmp.eq.s32.totalorder %s77, 0
    %s80 = sadd.s32 %s79, 1
    %s81 = scalar_select %p78, %s79, %s80
    %p84 = pneg %p78
    %p85 = scmp.eq.s32.totalorder %s9, 7
    %p86 = por %p84, %p85
    %p87 = scmp.ne.s32.totalorder %s79, %s82
    %p88 = scmp.eq.s32.totalorder %s9, 0
    %p89 = por %p87, %p88
    %p90 = scmp.ne.s32.totalorder %s79, %s82
    %p91 = scmp.eq.s32.totalorder %s14, 7
    %p92 = por %p90, %p91
    %p93 = scmp.ne.s32.totalorder %s82, %s83
    %p94 = scmp.eq.s32.totalorder %s14, 0
    %p95 = por %p93, %p94
    %p96 = scmp.ne.s32.totalorder %s82, %s83
    %p97 = scmp.eq.s32.totalorder %s15, 7
    %p98 = por %p96, %p97
    %p100 = scmp.ne.s32.totalorder %s83, %s99
    %p101 = scmp.eq.s32.totalorder %s15, 0
    %p102 = por %p100, %p101
    %s103 = ssub.s32 %s16, %s42
    %s104 = ssub.s32 %s18, %s34
    %s105 = sor.u32 %s103, %s104
    %p106 = scmp.eq.s32.totalorder %s105, 0
    %s108 = sadd.s32 %s107, 1
    %s109 = scalar_select %p106, %s107, %s108
    %p112 = pneg %p106
    %p113 = scmp.eq.s32.totalorder %s9, 7
    %p114 = por %p112, %p113
    %p115 = scmp.ne.s32.totalorder %s107, %s110
    %p116 = scmp.eq.s32.totalorder %s9, 0
    %p117 = por %p115, %p116
    %p118 = scmp.ne.s32.totalorder %s107, %s110
    %p119 = scmp.eq.s32.totalorder %s14, 7
    %p120 = por %p118, %p119
    %p121 = scmp.ne.s32.totalorder %s110, %s111
    %p122 = scmp.eq.s32.totalorder %s14, 0
    %p123 = por %p121, %p122
    %p124 = scmp.ne.s32.totalorder %s110, %s111
    %p125 = scmp.eq.s32.totalorder %s15, 7
    %p126 = por %p124, %p125
    %p128 = scmp.ne.s32.totalorder %s111, %s127
    %p129 = scmp.eq.s32.totalorder %s15, 0
    %p130 = por %p128, %p129
    %s131 = ssub.s32 %s16, %s42
    %s132 = ssub.s32 %s17, %s38
    %s133 = sor.u32 %s131, %s132
    %s134 = ssub.s32 %s18, %s34
    %s135 = sor.u32 %s133, %s134
    %p136 = scmp.eq.s32.totalorder %s135, 0
    %s138 = sadd.s32 %s137, 1
    %s139 = scalar_select %p136, %s137, %s138
    %p142 = pneg %p136
    %p143 = scmp.eq.s32.totalorder %s9, 7
    %p144 = por %p142, %p143
    %p145 = scmp.ne.s32.totalorder %s137, %s140
    %p146 = scmp.eq.s32.totalorder %s9, 0
    %p147 = por %p145, %p146
    %p148 = scmp.ne.s32.totalorder %s137, %s140
    %p149 = scmp.eq.s32.totalorder %s14, 7
    %p150 = por %p148, %p149
    %p151 = scmp.ne.s32.totalorder %s140, %s141
    %p152 = scmp.eq.s32.totalorder %s14, 0
    %p153 = por %p151, %p152
    %p154 = scmp.ne.s32.totalorder %s140, %s141
    %p155 = scmp.eq.s32.totalorder %s15, 7
    %p156 = por %p154, %p155
    %p158 = scmp.ne.s32.totalorder %s141, %s157
    %p159 = scmp.eq.s32.totalorder %s15, 0
    %p160 = por %p158, %p159
    %p161 = scmp.le.s32.totalorder 1, %s9
    %p162 = scmp.lt.s32.totalorder %s9, 9
    %p163 = pnand %p161, %p162
    %p164 = pneg %p163
    // Predicated region
    $region9: #{forward.12} parent=5 // pred_check
      _
    $region10: #{forward.12} parent=5 // pred_check_branch
      %166 = sbr.rel (%p163) target = $region12
    $region11: #{forward.12} parent=5 // pred_region
      %s167 = ssub.s32 %s9, 1
    $region12: #{forward.12} parent=5 // pred_fallthru
      _
    %p168 = scmp.lt.s32.totalorder %s9, 8
    // Predicated region
    $region13: #{forward.12} parent=5 // pred_check
      %p169 = pneg %p168
    $region14: #{forward.12} parent=5 // pred_check_branch
      %171 = sbr.rel (%p169) target = $region16
    $region15: #{forward.12} parent=5 // pred_region
      // Predicated region
      $region17: #{forward.12} parent=15 // pred_check
        %p172 = pneg %p59
      $region18: #{forward.12} parent=15 // pred_check_branch
        %174 = sbr.rel (%p172) target = $region20
      $region19: #{forward.12} parent=15 // pred_region
        %s175 = smul.u32 32, %s17
        %s176 = smul.u32 3, %s19
        %p177 = scmp.lt.s32.totalorder %s16, 3
        %s178 = scalar_select %p177, %s16, 3
        %p179 = scmp.lt.s32.totalorder %s175, 63
        %s180 = scalar_select %p179, %s175, 63
        %p181 = scmp.lt.s32.totalorder %s176, 2
        %s182 = scalar_select %p181, %s176, 2
        %s183 = smul.addr %s180, 3
        %s184 = sadd.s32 %s182, %s183
        %s185 = smul.addr %s178, 192
        %s186 = sadd.s32 %s184, %s185
        %s187 = smul.addr %s186, 4
        %s188 = scalar_lea.vmem %s0, %s187
        %s189 = smul.u32 32, %s17
        %s190 = smul.u32 3, %s19
      $region20: #{forward.12} parent=15 // pred_fallthru
        _
      // Predicated region
      $region21: #{forward.12} parent=15 // pred_check
        %p191 = pneg %p89
      $region22: #{forward.12} parent=15 // pred_check_branch
        %193 = sbr.rel (%p191) target = $region24
      $region23: #{forward.12} parent=15 // pred_region
        %s194 = smul.u32 48, %s19
        %p195 = scmp.lt.s32.totalorder %s16, 3
        %s196 = scalar_select %p195, %s16, 3
        %p197 = scmp.lt.s32.totalorder %s194, 47
        %s198 = scalar_select %p197, %s194, 47
        %p199 = scmp.lt.s32.totalorder %s18, 0
        %s200 = scalar_select %p199, %s18, 0
        %s201 = sadd.s32 %s200, %s198
        %s202 = smul.addr %s196, 48
        %s203 = sadd.s32 %s201, %s202
        %s204 = smul.addr %s203, 4
        %s205 = scalar_lea.vmem %s1, %s204
        %s206 = smul.u32 48, %s19
      $region24: #{forward.12} parent=15 // pred_fallthru
        _
      // Predicated region
      $region25: #{forward.12} parent=15 // pred_check
        %p207 = pneg %p117
      $region26: #{forward.12} parent=15 // pred_check_branch
        %209 = sbr.rel (%p207) target = $region28
      $region27: #{forward.12} parent=15 // pred_region
        %p210 = scmp.lt.s32.totalorder %s16, 3
        %s211 = scalar_select %p210, %s16, 3
        %p212 = scmp.lt.s32.totalorder %s18, 0
        %s213 = scalar_select %p212, %s18, 0
        %s214 = sadd.s32 %s213, %s211
        %s215 = scalar_lea.vmem %s2, %s214
      $region28: #{forward.12} parent=15 // pred_fallthru
        _
    $region16: #{forward.12} parent=5 // pred_fallthru
      _
    %p216 = scmp.le.s32.totalorder 1, %s9
    %p217 = scmp.lt.s32.totalorder %s9, 9
    %p218 = pnand %p216, %p217
    %p219 = pneg %p218
    // Predicated region
    $region29: #{forward.12} parent=5 // pred_check
      _
    $region30: #{forward.12} parent=5 // pred_check_branch
      %221 = sbr.rel (%p218) target = $region32
    $region31: #{forward.12} parent=5 // pred_region
      %s222 = ssub.s32 %s9, 1
      %s223 = smul.u32 32, %s21
      %s224 = smul.u32 3, %s23
      %p225 = scmp.lt.s32.totalorder %s20, 3
      %s226 = scalar_select %p225, %s20, 3
      %p227 = scmp.lt.s32.totalorder %s223, 63
      %s228 = scalar_select %p227, %s223, 63
      %p229 = scmp.lt.s32.totalorder %s224, 2
      %s230 = scalar_select %p229, %s224, 2
      %s231 = smul.addr %s228, 3
      %s232 = sadd.s32 %s230, %s231
      %s233 = smul.addr %s226, 192
      %s234 = sadd.s32 %s232, %s233
      %s235 = smul.addr %s234, 4
      %s236 = scalar_lea.vmem %s0, %s235
      %p237 = pneg %p65
      %p238 = pneg %p62
      %s239 = smul.u32 48, %s23
      %p240 = scmp.lt.s32.totalorder %s20, 3
      %s241 = scalar_select %p240, %s20, 3
      %p242 = scmp.lt.s32.totalorder %s239, 47
      %s243 = scalar_select %p242, %s239, 47
      %p244 = scmp.lt.s32.totalorder %s22, 0
      %s245 = scalar_select %p244, %s22, 0
      %s246 = sadd.s32 %s245, %s243
      %s247 = smul.addr %s241, 48
      %s248 = sadd.s32 %s246, %s247
      %s249 = smul.addr %s248, 4
      %s250 = scalar_lea.vmem %s1, %s249
      %p251 = pneg %p95
      %p252 = pneg %p92
      %p253 = scmp.lt.s32.totalorder %s20, 3
      %s254 = scalar_select %p253, %s20, 3
      %p255 = scmp.lt.s32.totalorder %s22, 0
      %s256 = scalar_select %p255, %s22, 0
      %s257 = sadd.s32 %s256, %s254
      %s258 = scalar_lea.vmem %s2, %s257
      %p259 = pneg %p123
      %p260 = pneg %p120
      %p261 = pneg %p153
      %p262 = pneg %p150
      %s263 = smul.u32 32, %s21
      %p264 = scmp.lt.s32.totalorder %s20, 3
      %s265 = scalar_select %p264, %s20, 3
      %p266 = scmp.lt.s32.totalorder %s263, 63
      %s267 = scalar_select %p266, %s263, 63
      %p268 = scmp.lt.s32.totalorder %s22, 0
      %s269 = scalar_select %p268, %s22, 0
      %s270 = sadd.s32 %s269, %s267
      %s271 = smul.addr %s265, 64
      %s272 = sadd.s32 %s270, %s271
      %s273 = smul.addr %s272, 8
      %s274 = scalar_lea.vmem %s3, %s273
      %s275 = smul.u32 32, %s21
      %s276 = smul.u32 3, %s23
      %p277 = scmp.lt.s32.totalorder %s20, 3
      %s278 = scalar_select %p277, %s20, 3
      %p279 = scmp.lt.s32.totalorder %s275, 63
      %s280 = scalar_select %p279, %s275, 63
      %p281 = scmp.lt.s32.totalorder %s276, 2
      %s282 = scalar_select %p281, %s276, 2
      %s283 = smul.addr %s280, 3
      %s284 = sadd.s32 %s282, %s283
      %s285 = smul.addr %s278, 192
      %s286 = sadd.s32 %s284, %s285
      %s287 = smul.addr %s286, 4
      %s288 = scalar_lea.vmem %s0, %s287
      %s289 = smul.u32 32, %s21
      %s290 = smul.u32 3, %s23
      %s291 = smul.u32 48, %s23
      %p292 = scmp.lt.s32.totalorder %s20, 3
      %s293 = scalar_select %p292, %s20, 3
      %p294 = scmp.lt.s32.totalorder %s291, 47
      %s295 = scalar_select %p294, %s291, 47
      %p296 = scmp.lt.s32.totalorder %s22, 0
      %s297 = scalar_select %p296, %s22, 0
      %s298 = sadd.s32 %s297, %s295
      %s299 = smul.addr %s293, 48
      %s300 = sadd.s32 %s298, %s299
      %s301 = smul.addr %s300, 4
      %s302 = scalar_lea.vmem %s1, %s301
      %s303 = smul.u32 48, %s23
      %p304 = scmp.lt.s32.totalorder %s20, 3
      %s305 = scalar_select %p304, %s20, 3
      %p306 = scmp.lt.s32.totalorder %s22, 0
      %s307 = scalar_select %p306, %s22, 0
      %s308 = sadd.s32 %s307, %s305
      %s309 = scalar_lea.vmem %s2, %s308
      %s310 = smul.u32 32, %s21
      %p311 = scmp.lt.s32.totalorder %s20, 3
      %s312 = scalar_select %p311, %s20, 3
      %p313 = scmp.lt.s32.totalorder %s310, 63
      %s314 = scalar_select %p313, %s310, 63
      %p315 = scmp.lt.s32.totalorder %s22, 0
      %s316 = scalar_select %p315, %s22, 0
      %s317 = sadd.s32 %s316, %s314
      %s318 = smul.addr %s312, 64
      %s319 = sadd.s32 %s317, %s318
      %s320 = smul.addr %s319, 8
      %s321 = scalar_lea.vmem %s3, %s320
      %s322 = smul.u32 32, %s21
      %p323 = scmp.eq.s32.totalorder %s23, 0
      // Predicated region
      $region33: #{forward.12} parent=31 // pred_check
        %p324 = pneg %p323
      $region34: #{forward.12} parent=31 // pred_check_branch
        %326 = sbr.rel (%p324) target = $region36
      $region35: #{forward.12} parent=31 // pred_region
        %327 = vst [vmem:[#allocation2] sm:$0xff] 0.0
        %328 = vst [vmem:[#allocation2 + $0x8] sm:$0xff] 0.0
        %329 = vst [vmem:[#allocation2 + $0x10] sm:$0xff] 0.0
        %330 = vst [vmem:[#allocation2 + $0x18] sm:$0xff] 0.0
        %331 = vst [vmem:[#allocation2 + $0x20] sm:$0xff] 0.0
        %332 = vst [vmem:[#allocation2 + $0x28] sm:$0xff] 0.0
        %333 = vst [vmem:[#allocation2 + $0x30] sm:$0xff] 0.0
        %334 = vst [vmem:[#allocation2 + $0x38] sm:$0xff] 0.0
        %335 = vst [vmem:[#allocation2 + $0x40] sm:$0xff] 0.0
        %336 = vst [vmem:[#allocation2 + $0x48] sm:$0xff] 0.0
        %337 = vst [vmem:[#allocation2 + $0x50] sm:$0xff] 0.0
        %338 = vst [vmem:[#allocation2 + $0x58] sm:$0xff] 0.0
        %339 = vst [vmem:[#allocation2 + $0x60] sm:$0xff] 0.0
        %340 = vst [vmem:[#allocation2 + $0x68] sm:$0xff] 0.0
        %341 = vst [vmem:[#allocation2 + $0x70] sm:$0xff] 0.0
        %342 = vst [vmem:[#allocation2 + $0x78] sm:$0xff] 0.0
        %343 = vst [vmem:[#allocation2 + $0x80] sm:$0xff] 0.0
        %344 = vst [vmem:[#allocation2 + $0x88] sm:$0xff] 0.0
        %345 = vst [vmem:[#allocation2 + $0x90] sm:$0xff] 0.0
        %346 = vst [vmem:[#allocation2 + $0x98] sm:$0xff] 0.0
        %347 = vst [vmem:[#allocation2 + $0xa0] sm:$0xff] 0.0
        %348 = vst [vmem:[#allocation2 + $0xa8] sm:$0xff] 0.0
        %349 = vst [vmem:[#allocation2 + $0xb0] sm:$0xff] 0.0
        %350 = vst [vmem:[#allocation2 + $0xb8] sm:$0xff] 0.0
        %351 = vst [vmem:[#allocation2 + $0xc0] sm:$0xff] 0.0
        %352 = vst [vmem:[#allocation2 + $0xc8] sm:$0xff] 0.0
        %353 = vst [vmem:[#allocation2 + $0xd0] sm:$0xff] 0.0
        %354 = vst [vmem:[#allocation2 + $0xd8] sm:$0xff] 0.0
        %355 = vst [vmem:[#allocation2 + $0xe0] sm:$0xff] 0.0
        %356 = vst [vmem:[#allocation2 + $0xe8] sm:$0xff] 0.0
        %357 = vst [vmem:[#allocation2 + $0xf0] sm:$0xff] 0.0
        %358 = vst [vmem:[#allocation2 + $0xf8] sm:$0xff] 0.0
      $region36: #{forward.12} parent=31 // pred_fallthru
        _
      %v359 = vld [vmem:[#allocation2] sm:$0xff]
      %v360 = vld [vmem:[#allocation2 + $0x8] sm:$0xff]
      %v361 = vld [vmem:[#allocation2 + $0x10] sm:$0xff]
      %v362 = vld [vmem:[#allocation2 + $0x18] sm:$0xff]
      %v363 = vld [vmem:[#allocation2 + $0x20] sm:$0xff]
      %v364 = vld [vmem:[#allocation2 + $0x28] sm:$0xff]
      %v365 = vld [vmem:[#allocation2 + $0x30] sm:$0xff]
      %v366 = vld [vmem:[#allocation2 + $0x38] sm:$0xff]
      %v367 = vld [vmem:[#allocation2 + $0x40] sm:$0xff]
      %v368 = vld [vmem:[#allocation2 + $0x48] sm:$0xff]
      %v369 = vld [vmem:[#allocation2 + $0x50] sm:$0xff]
      %v370 = vld [vmem:[#allocation2 + $0x58] sm:$0xff]
      %v371 = vld [vmem:[#allocation2 + $0x60] sm:$0xff]
      %v372 = vld [vmem:[#allocation2 + $0x68] sm:$0xff]
      %v373 = vld [vmem:[#allocation2 + $0x70] sm:$0xff]
      %v374 = vld [vmem:[#allocation2 + $0x78] sm:$0xff]
      %v375 = vld [vmem:[#allocation2 + $0x80] sm:$0xff]
      %v376 = vld [vmem:[#allocation2 + $0x88] sm:$0xff]
      %v377 = vld [vmem:[#allocation2 + $0x90] sm:$0xff]
      %v378 = vld [vmem:[#allocation2 + $0x98] sm:$0xff]
      %v379 = vld [vmem:[#allocation2 + $0xa0] sm:$0xff]
      %v380 = vld [vmem:[#allocation2 + $0xa8] sm:$0xff]
      %v381 = vld [vmem:[#allocation2 + $0xb0] sm:$0xff]
      %v382 = vld [vmem:[#allocation2 + $0xb8] sm:$0xff]
      %v383 = vld [vmem:[#allocation2 + $0xc0] sm:$0xff]
      %v384 = vld [vmem:[#allocation2 + $0xc8] sm:$0xff]
      %v385 = vld [vmem:[#allocation2 + $0xd0] sm:$0xff]
      %v386 = vld [vmem:[#allocation2 + $0xd8] sm:$0xff]
      %v387 = vld [vmem:[#allocation2 + $0xe0] sm:$0xff]
      %v388 = vld [vmem:[#allocation2 + $0xe8] sm:$0xff]
      %v389 = vld [vmem:[#allocation2 + $0xf0] sm:$0xff]
      %v390 = vld [vmem:[#allocation2 + $0xf8] sm:$0xff]
      %v391 = vld [vmem:[%s288] sm:$0xff]
      %v392 = vld [vmem:[%s288 + $0x8] sm:$0xf]
      %v393 = vld [vmem:[%s288 + $0xc] sm:$0xff]
      %v394 = vld [vmem:[%s288 + $0x14] sm:$0xf]
      %v395 = vld [vmem:[%s288 + $0x18] sm:$0xff]
      %v396 = vld [vmem:[%s288 + $0x20] sm:$0xf]
      %v397 = vld [vmem:[%s288 + $0x24] sm:$0xff]
      %v398 = vld [vmem:[%s288 + $0x2c] sm:$0xf]
      %v399 = vld [vmem:[%s288 + $0x30] sm:$0xff]
      %v400 = vld [vmem:[%s288 + $0x38] sm:$0xf]
      %v401 = vld [vmem:[%s288 + $0x3c] sm:$0xff]
      %v402 = vld [vmem:[%s288 + $0x44] sm:$0xf]
      %v403 = vld [vmem:[%s288 + $0x48] sm:$0xff]
      %v404 = vld [vmem:[%s288 + $0x50] sm:$0xf]
      %v405 = vld [vmem:[%s288 + $0x54] sm:$0xff]
      %v406 = vld [vmem:[%s288 + $0x5c] sm:$0xf]
      %v407 = vld [vmem:[%s288 + $0x60] sm:$0xff]
      %v408 = vld [vmem:[%s288 + $0x68] sm:$0xf]
      %v409 = vld [vmem:[%s288 + $0x6c] sm:$0xff]
      %v410 = vld [vmem:[%s288 + $0x74] sm:$0xf]
      %v411 = vld [vmem:[%s288 + $0x78] sm:$0xff]
      %v412 = vld [vmem:[%s288 + $0x80] sm:$0xf]
      %v413 = vld [vmem:[%s288 + $0x84] sm:$0xff]
      %v414 = vld [vmem:[%s288 + $0x8c] sm:$0xf]
      %v415 = vld [vmem:[%s288 + $0x90] sm:$0xff]
      %v416 = vld [vmem:[%s288 + $0x98] sm:$0xf]
      %v417 = vld [vmem:[%s288 + $0x9c] sm:$0xff]
      %v418 = vld [vmem:[%s288 + $0xa4] sm:$0xf]
      %v419 = vld [vmem:[%s288 + $0xa8] sm:$0xff]
      %v420 = vld [vmem:[%s288 + $0xb0] sm:$0xf]
      %v421 = vld [vmem:[%s288 + $0xb4] sm:$0xff]
      %v422 = vld [vmem:[%s288 + $0xbc] sm:$0xf]
      %v423 = vld [vmem:[%s288 + $0xc0] sm:$0xff]
      %v424 = vld [vmem:[%s288 + $0xc8] sm:$0xf]
      %v425 = vld [vmem:[%s288 + $0xcc] sm:$0xff]
      %v426 = vld [vmem:[%s288 + $0xd4] sm:$0xf]
      %v427 = vld [vmem:[%s288 + $0xd8] sm:$0xff]
      %v428 = vld [vmem:[%s288 + $0xe0] sm:$0xf]
      %v429 = vld [vmem:[%s288 + $0xe4] sm:$0xff]
      %v430 = vld [vmem:[%s288 + $0xec] sm:$0xf]
      %v431 = vld [vmem:[%s288 + $0xf0] sm:$0xff]
      %v432 = vld [vmem:[%s288 + $0xf8] sm:$0xf]
      %v433 = vld [vmem:[%s288 + $0xfc] sm:$0xff]
      %v434 = vld [vmem:[%s288 + $0x104] sm:$0xf]
      %v435 = vld [vmem:[%s288 + $0x108] sm:$0xff]
      %v436 = vld [vmem:[%s288 + $0x110] sm:$0xf]
      %v437 = vld [vmem:[%s288 + $0x114] sm:$0xff]
      %v438 = vld [vmem:[%s288 + $0x11c] sm:$0xf]
      %v439 = vld [vmem:[%s288 + $0x120] sm:$0xff]
      %v440 = vld [vmem:[%s288 + $0x128] sm:$0xf]
      %v441 = vld [vmem:[%s288 + $0x12c] sm:$0xff]
      %v442 = vld [vmem:[%s288 + $0x134] sm:$0xf]
      %v443 = vld [vmem:[%s288 + $0x138] sm:$0xff]
      %v444 = vld [vmem:[%s288 + $0x140] sm:$0xf]
      %v445 = vld [vmem:[%s288 + $0x144] sm:$0xff]
      %v446 = vld [vmem:[%s288 + $0x14c] sm:$0xf]
      %v447 = vld [vmem:[%s288 + $0x150] sm:$0xff]
      %v448 = vld [vmem:[%s288 + $0x158] sm:$0xf]
      %v449 = vld [vmem:[%s288 + $0x15c] sm:$0xff]
      %v450 = vld [vmem:[%s288 + $0x164] sm:$0xf]
      %v451 = vld [vmem:[%s288 + $0x168] sm:$0xff]
      %v452 = vld [vmem:[%s288 + $0x170] sm:$0xf]
      %v453 = vld [vmem:[%s288 + $0x174] sm:$0xff]
      %v454 = vld [vmem:[%s288 + $0x17c] sm:$0xf]
      %v455 = vld [vmem:[%s302] sm:$0xf]
      %v456 = vld [vmem:[%s302 + $0x4] sm:$0xf]
      %v457 = vld [vmem:[%s302 + $0x8] sm:$0xf]
      %v458 = vld [vmem:[%s302 + $0xc] sm:$0xf]
      %v459 = vld [vmem:[%s302 + $0x10] sm:$0xf]
      %v460 = vld [vmem:[%s302 + $0x14] sm:$0xf]
      %v461 = vld [vmem:[%s302 + $0x18] sm:$0xf]
      %v462 = vld [vmem:[%s302 + $0x1c] sm:$0xf]
      %v463 = vld [vmem:[%s302 + $0x20] sm:$0xf]
      %v464 = vld [vmem:[%s302 + $0x24] sm:$0xf]
      %v465 = vld [vmem:[%s302 + $0x28] sm:$0xf]
      %v466 = vld [vmem:[%s302 + $0x2c] sm:$0xf]
      %v467 = vld [vmem:[%s302 + $0x30] sm:$0xf]
      %v468 = vld [vmem:[%s302 + $0x34] sm:$0xf]
      %v469 = vld [vmem:[%s302 + $0x38] sm:$0xf]
      %v470 = vld [vmem:[%s302 + $0x3c] sm:$0xf]
      %v471 = vld [vmem:[%s302 + $0x40] sm:$0xf]
      %v472 = vld [vmem:[%s302 + $0x44] sm:$0xf]
      %v473 = vld [vmem:[%s302 + $0x48] sm:$0xf]
      %v474 = vld [vmem:[%s302 + $0x4c] sm:$0xf]
      %v475 = vld [vmem:[%s302 + $0x50] sm:$0xf]
      %v476 = vld [vmem:[%s302 + $0x54] sm:$0xf]
      %v477 = vld [vmem:[%s302 + $0x58] sm:$0xf]
      %v478 = vld [vmem:[%s302 + $0x5c] sm:$0xf]
      %v479 = vld [vmem:[%s302 + $0x60] sm:$0xf]
      %v480 = vld [vmem:[%s302 + $0x64] sm:$0xf]
      %v481 = vld [vmem:[%s302 + $0x68] sm:$0xf]
      %v482 = vld [vmem:[%s302 + $0x6c] sm:$0xf]
      %v483 = vld [vmem:[%s302 + $0x70] sm:$0xf]
      %v484 = vld [vmem:[%s302 + $0x74] sm:$0xf]
      %v485 = vld [vmem:[%s302 + $0x78] sm:$0xf]
      %v486 = vld [vmem:[%s302 + $0x7c] sm:$0xf]
      %v487 = vld [vmem:[%s302 + $0x80] sm:$0xf]
      %v488 = vld [vmem:[%s302 + $0x84] sm:$0xf]
      %v489 = vld [vmem:[%s302 + $0x88] sm:$0xf]
      %v490 = vld [vmem:[%s302 + $0x8c] sm:$0xf]
      %v491 = vld [vmem:[%s302 + $0x90] sm:$0xf]
      %v492 = vld [vmem:[%s302 + $0x94] sm:$0xf]
      %v493 = vld [vmem:[%s302 + $0x98] sm:$0xf]
      %v494 = vld [vmem:[%s302 + $0x9c] sm:$0xf]
      %v495 = vld [vmem:[%s302 + $0xa0] sm:$0xf]
      %v496 = vld [vmem:[%s302 + $0xa4] sm:$0xf]
      %v497 = vld [vmem:[%s302 + $0xa8] sm:$0xf]
      %v498 = vld [vmem:[%s302 + $0xac] sm:$0xf]
      %v499 = vld [vmem:[%s302 + $0xb0] sm:$0xf]
      %v500 = vld [vmem:[%s302 + $0xb4] sm:$0xf]
      %v501 = vld [vmem:[%s302 + $0xb8] sm:$0xf]
      %v502 = vld [vmem:[%s302 + $0xbc] sm:$0xf]
      %v567 = vunpack.c.l.b16 %v391
      %v568 = vunpack.c.h.b16 %v391
      %v569 = vunpack.c.l.b16 %v392
      %v570 = vunpack.c.l.b16 %v393
      %v571 = vunpack.c.h.b16 %v393
      %v572 = vunpack.c.l.b16 %v394
      %v573 = vunpack.c.l.b16 %v395
      %v574 = vunpack.c.h.b16 %v395
      %v575 = vunpack.c.l.b16 %v396
      %v576 = vunpack.c.l.b16 %v397
      %v577 = vunpack.c.h.b16 %v397
      %v578 = vunpack.c.l.b16 %v398
      %v579 = vunpack.c.l.b16 %v399
      %v580 = vunpack.c.h.b16 %v399
      %v581 = vunpack.c.l.b16 %v400
      %v582 = vunpack.c.l.b16 %v401
      %v583 = vunpack.c.h.b16 %v401
      %v584 = vunpack.c.l.b16 %v402
      %v585 = vunpack.c.l.b16 %v403
      %v586 = vunpack.c.h.b16 %v403
      %v587 = vunpack.c.l.b16 %v404
      %v588 = vunpack.c.l.b16 %v405
      %v589 = vunpack.c.h.b16 %v405
      %v590 = vunpack.c.l.b16 %v406
      %v591 = vunpack.c.l.b16 %v407
      %v592 = vunpack.c.h.b16 %v407
      %v593 = vunpack.c.l.b16 %v408
      %v594 = vunpack.c.l.b16 %v409
      %v595 = vunpack.c.h.b16 %v409
      %v596 = vunpack.c.l.b16 %v410
      %v597 = vunpack.c.l.b16 %v411
      %v598 = vunpack.c.h.b16 %v411
      %v599 = vunpack.c.l.b16 %v412
      %v600 = vunpack.c.l.b16 %v413
      %v601 = vunpack.c.h.b16 %v413
      %v602 = vunpack.c.l.b16 %v414
      %v603 = vunpack.c.l.b16 %v415
      %v604 = vunpack.c.h.b16 %v415
      %v605 = vunpack.c.l.b16 %v416
      %v606 = vunpack.c.l.b16 %v417
      %v607 = vunpack.c.h.b16 %v417
      %v608 = vunpack.c.l.b16 %v418
      %v609 = vunpack.c.l.b16 %v419
      %v610 = vunpack.c.h.b16 %v419
      %v611 = vunpack.c.l.b16 %v420
      %v612 = vunpack.c.l.b16 %v421
      %v613 = vunpack.c.h.b16 %v421
      %v614 = vunpack.c.l.b16 %v422
      %v615 = vunpack.c.l.b16 %v423
      %v616 = vunpack.c.h.b16 %v423
      %v617 = vunpack.c.l.b16 %v424
      %v618 = vunpack.c.l.b16 %v425
      %v619 = vunpack.c.h.b16 %v425
      %v620 = vunpack.c.l.b16 %v426
      %v621 = vunpack.c.l.b16 %v427
      %v622 = vunpack.c.h.b16 %v427
      %v623 = vunpack.c.l.b16 %v428
      %v624 = vunpack.c.l.b16 %v429
      %v625 = vunpack.c.h.b16 %v429
      %v626 = vunpack.c.l.b16 %v430
      %v627 = vunpack.c.l.b16 %v431
      %v628 = vunpack.c.h.b16 %v431
      %v629 = vunpack.c.l.b16 %v432
      %v630 = vunpack.c.l.b16 %v433
      %v631 = vunpack.c.h.b16 %v433
      %v632 = vunpack.c.l.b16 %v434
      %v633 = vunpack.c.l.b16 %v435
      %v634 = vunpack.c.h.b16 %v435
      %v635 = vunpack.c.l.b16 %v436
      %v636 = vunpack.c.l.b16 %v437
      %v637 = vunpack.c.h.b16 %v437
      %v638 = vunpack.c.l.b16 %v438
      %v639 = vunpack.c.l.b16 %v439
      %v640 = vunpack.c.h.b16 %v439
      %v641 = vunpack.c.l.b16 %v440
      %v642 = vunpack.c.l.b16 %v441
      %v643 = vunpack.c.h.b16 %v441
      %v644 = vunpack.c.l.b16 %v442
      %v645 = vunpack.c.l.b16 %v443
      %v646 = vunpack.c.h.b16 %v443
      %v647 = vunpack.c.l.b16 %v444
      %v648 = vunpack.c.l.b16 %v445
      %v649 = vunpack.c.h.b16 %v445
      %v650 = vunpack.c.l.b16 %v446
      %v651 = vunpack.c.l.b16 %v447
      %v652 = vunpack.c.h.b16 %v447
      %v653 = vunpack.c.l.b16 %v448
      %v654 = vunpack.c.l.b16 %v449
      %v655 = vunpack.c.h.b16 %v449
      %v656 = vunpack.c.l.b16 %v450
      %v657 = vunpack.c.l.b16 %v451
      %v658 = vunpack.c.h.b16 %v451
      %v659 = vunpack.c.l.b16 %v452
      %v660 = vunpack.c.l.b16 %v453
      %v661 = vunpack.c.h.b16 %v453
      %v662 = vunpack.c.l.b16 %v454
      %v663 = vpack.c.b16 %v570, %v567
      %v664 = vpack.c.b16 %v571, %v568
      %v665 = vpack.c.b16 %v572, %v569
      %v666 = vpack.c.b16 %v576, %v573
      %v667 = vpack.c.b16 %v577, %v574
      %v668 = vpack.c.b16 %v578, %v575
      %v669 = vpack.c.b16 %v582, %v579
      %v670 = vpack.c.b16 %v583, %v580
      %v671 = vpack.c.b16 %v584, %v581
      %v672 = vpack.c.b16 %v588, %v585
      %v673 = vpack.c.b16 %v589, %v586
      %v674 = vpack.c.b16 %v590, %v587
      %v675 = vpack.c.b16 %v594, %v591
      %v676 = vpack.c.b16 %v595, %v592
      %v677 = vpack.c.b16 %v596, %v593
      %v678 = vpack.c.b16 %v600, %v597
      %v679 = vpack.c.b16 %v601, %v598
      %v680 = vpack.c.b16 %v602, %v599
      %v681 = vpack.c.b16 %v606, %v603
      %v682 = vpack.c.b16 %v607, %v604
      %v683 = vpack.c.b16 %v608, %v605
      %v684 = vpack.c.b16 %v612, %v609
      %v685 = vpack.c.b16 %v613, %v610
      %v686 = vpack.c.b16 %v614, %v611
      %v687 = vpack.c.b16 %v618, %v615
      %v688 = vpack.c.b16 %v619, %v616
      %v689 = vpack.c.b16 %v620, %v617
      %v690 = vpack.c.b16 %v624, %v621
      %v691 = vpack.c.b16 %v625, %v622
      %v692 = vpack.c.b16 %v626, %v623
      %v693 = vpack.c.b16 %v630, %v627
      %v694 = vpack.c.b16 %v631, %v628
      %v695 = vpack.c.b16 %v632, %v629
      %v696 = vpack.c.b16 %v636, %v633
      %v697 = vpack.c.b16 %v637, %v634
      %v698 = vpack.c.b16 %v638, %v635
      %v699 = vpack.c.b16 %v642, %v639
      %v700 = vpack.c.b16 %v643, %v640
      %v701 = vpack.c.b16 %v644, %v641
      %v702 = vpack.c.b16 %v648, %v645
      %v703 = vpack.c.b16 %v649, %v646
      %v704 = vpack.c.b16 %v650, %v647
      %v705 = vpack.c.b16 %v654, %v651
      %v706 = vpack.c.b16 %v655, %v652
      %v707 = vpack.c.b16 %v656, %v653
      %v708 = vpack.c.b16 %v660, %v657
      %v709 = vpack.c.b16 %v661, %v658
      %v710 = vpack.c.b16 %v662, %v659
      %v807 = vunpack.c.l.b16 %v455
      %v808 = vunpack.c.l.b16 %v456
      %v809 = vunpack.c.l.b16 %v457
      %v810 = vunpack.c.l.b16 %v458
      %v811 = vunpack.c.l.b16 %v459
      %v812 = vunpack.c.l.b16 %v460
      %v813 = vunpack.c.l.b16 %v461
      %v814 = vunpack.c.l.b16 %v462
      %v815 = vunpack.c.l.b16 %v463
      %v816 = vunpack.c.l.b16 %v464
      %v817 = vunpack.c.l.b16 %v465
      %v818 = vunpack.c.l.b16 %v466
      %v819 = vunpack.c.l.b16 %v467
      %v820 = vunpack.c.l.b16 %v468
      %v821 = vunpack.c.l.b16 %v469
      %v822 = vunpack.c.l.b16 %v470
      %v823 = vunpack.c.l.b16 %v471
      %v824 = vunpack.c.l.b16 %v472
      %v825 = vunpack.c.l.b16 %v473
      %v826 = vunpack.c.l.b16 %v474
      %v827 = vunpack.c.l.b16 %v475
      %v828 = vunpack.c.l.b16 %v476
      %v829 = vunpack.c.l.b16 %v477
      %v830 = vunpack.c.l.b16 %v478
      %v831 = vunpack.c.l.b16 %v479
      %v832 = vunpack.c.l.b16 %v480
      %v833 = vunpack.c.l.b16 %v481
      %v834 = vunpack.c.l.b16 %v482
      %v835 = vunpack.c.l.b16 %v483
      %v836 = vunpack.c.l.b16 %v484
      %v837 = vunpack.c.l.b16 %v485
      %v838 = vunpack.c.l.b16 %v486
      %v839 = vunpack.c.l.b16 %v487
      %v840 = vunpack.c.l.b16 %v488
      %v841 = vunpack.c.l.b16 %v489
      %v842 = vunpack.c.l.b16 %v490
      %v843 = vunpack.c.l.b16 %v491
      %v844 = vunpack.c.l.b16 %v492
      %v845 = vunpack.c.l.b16 %v493
      %v846 = vunpack.c.l.b16 %v494
      %v847 = vunpack.c.l.b16 %v495
      %v848 = vunpack.c.l.b16 %v496
      %v849 = vunpack.c.l.b16 %v497
      %v850 = vunpack.c.l.b16 %v498
      %v851 = vunpack.c.l.b16 %v499
      %v852 = vunpack.c.l.b16 %v500
      %v853 = vunpack.c.l.b16 %v501
      %v854 = vunpack.c.l.b16 %v502
      %v855 = vpack.c.b16 %v808, %v807
      %v856 = vpack.c.b16 %v810, %v809
      %v857 = vpack.c.b16 %v812, %v811
      %v858 = vpack.c.b16 %v814, %v813
      %v859 = vpack.c.b16 %v816, %v815
      %v860 = vpack.c.b16 %v818, %v817
      %v861 = vpack.c.b16 %v820, %v819
      %v862 = vpack.c.b16 %v822, %v821
      %v863 = vpack.c.b16 %v824, %v823
      %v864 = vpack.c.b16 %v826, %v825
      %v865 = vpack.c.b16 %v828, %v827
      %v866 = vpack.c.b16 %v830, %v829
      %v867 = vpack.c.b16 %v832, %v831
      %v868 = vpack.c.b16 %v834, %v833
      %v869 = vpack.c.b16 %v836, %v835
      %v870 = vpack.c.b16 %v838, %v837
      %v871 = vpack.c.b16 %v840, %v839
      %v872 = vpack.c.b16 %v842, %v841
      %v873 = vpack.c.b16 %v844, %v843
      %v874 = vpack.c.b16 %v846, %v845
      %v875 = vpack.c.b16 %v848, %v847
      %v876 = vpack.c.b16 %v850, %v849
      %v877 = vpack.c.b16 %v852, %v851
      %v878 = vpack.c.b16 %v854, %v853
      %903 = vmatpush.bf16.msra.mxu0 %v862
      %904 = vmatpush.bf16.msra.mxu0 %v861
      %905 = vmatpush.bf16.msra.mxu0 %v860
      %906 = vmatpush.bf16.msra.mxu0 %v859
      %907 = vmatpush.bf16.msra.mxu0 %v858
      %908 = vmatpush.bf16.msra.mxu0 %v857
      %909 = vmatpush.bf16.msra.mxu0 %v856
      %910 = vmatpush.bf16.msra.mxu0 %v855
      %911 = vmatmul.bf16.gmra.mxu0 %v663
      %v912 = vpop.f32.mrf.mxu0
      %v913 = vadd.f32 0.0, %v912
      %v914 = vpop.f32.mrf.mxu0
      %v915 = vadd.f32 0.0, %v914
      %916 = vmatmul.bf16.gmra.mxu0 %v666
      %v917 = vpop.f32.mrf.mxu0
      %v918 = vadd.f32 0.0, %v917
      %v919 = vpop.f32.mrf.mxu0
      %v920 = vadd.f32 0.0, %v919
      %921 = vmatmul.bf16.gmra.mxu0 %v669
      %v922 = vpop.f32.mrf.mxu0
      %v923 = vadd.f32 0.0, %v922
      %v924 = vpop.f32.mrf.mxu0
      %v925 = vadd.f32 0.0, %v924
      %926 = vmatmul.bf16.gmra.mxu0 %v672
      %v927 = vpop.f32.mrf.mxu0
      %v928 = vadd.f32 0.0, %v927
      %v929 = vpop.f32.mrf.mxu0
      %v930 = vadd.f32 0.0, %v929
      %931 = vmatmul.bf16.gmra.mxu0 %v675
      %v932 = vpop.f32.mrf.mxu0
      %v933 = vadd.f32 0.0, %v932
      %v934 = vpop.f32.mrf.mxu0
      %v935 = vadd.f32 0.0, %v934
      %936 = vmatmul.bf16.gmra.mxu0 %v678
      %v937 = vpop.f32.mrf.mxu0
      %v938 = vadd.f32 0.0, %v937
      %v939 = vpop.f32.mrf.mxu0
      %v940 = vadd.f32 0.0, %v939
      %941 = vmatmul.bf16.gmra.mxu0 %v681
      %v942 = vpop.f32.mrf.mxu0
      %v943 = vadd.f32 0.0, %v942
      %v944 = vpop.f32.mrf.mxu0
      %v945 = vadd.f32 0.0, %v944
      %946 = vmatmul.bf16.gmra.mxu0 %v684
      %v947 = vpop.f32.mrf.mxu0
      %v948 = vadd.f32 0.0, %v947
      %v949 = vpop.f32.mrf.mxu0
      %v950 = vadd.f32 0.0, %v949
      %951 = vmatmul.bf16.gmra.mxu0 %v687
      %v952 = vpop.f32.mrf.mxu0
      %v953 = vadd.f32 0.0, %v952
      %v954 = vpop.f32.mrf.mxu0
      %v955 = vadd.f32 0.0, %v954
      %956 = vmatmul.bf16.gmra.mxu0 %v690
      %v957 = vpop.f32.mrf.mxu0
      %v958 = vadd.f32 0.0, %v957
      %v959 = vpop.f32.mrf.mxu0
      %v960 = vadd.f32 0.0, %v959
      %961 = vmatmul.bf16.gmra.mxu0 %v693
      %v962 = vpop.f32.mrf.mxu0
      %v963 = vadd.f32 0.0, %v962
      %v964 = vpop.f32.mrf.mxu0
      %v965 = vadd.f32 0.0, %v964
      %966 = vmatmul.bf16.gmra.mxu0 %v696
      %v967 = vpop.f32.mrf.mxu0
      %v968 = vadd.f32 0.0, %v967
      %v969 = vpop.f32.mrf.mxu0
      %v970 = vadd.f32 0.0, %v969
      %971 = vmatmul.bf16.gmra.mxu0 %v699
      %v972 = vpop.f32.mrf.mxu0
      %v973 = vadd.f32 0.0, %v972
      %v974 = vpop.f32.mrf.mxu0
      %v975 = vadd.f32 0.0, %v974
      %976 = vmatmul.bf16.gmra.mxu0 %v702
      %v977 = vpop.f32.mrf.mxu0
      %v978 = vadd.f32 0.0, %v977
      %v979 = vpop.f32.mrf.mxu0
      %v980 = vadd.f32 0.0, %v979
      %981 = vmatmul.bf16.gmra.mxu0 %v705
      %v982 = vpop.f32.mrf.mxu0
      %v983 = vadd.f32 0.0, %v982
      %v984 = vpop.f32.mrf.mxu0
      %v985 = vadd.f32 0.0, %v984
      %986 = vmatmul.bf16.gmra.mxu0 %v708
      %v987 = vpop.f32.mrf.mxu0
      %v988 = vadd.f32 0.0, %v987
      %v989 = vpop.f32.mrf.mxu0
      %v990 = vadd.f32 0.0, %v989
      %991 = vdwg.mxu0
      %992 = vmatpush.bf16.msra.mxu0 %v870
      %993 = vmatpush.bf16.msra.mxu0 %v869
      %994 = vmatpush.bf16.msra.mxu0 %v868
      %995 = vmatpush.bf16.msra.mxu0 %v867
      %996 = vmatpush.bf16.msra.mxu0 %v866
      %997 = vmatpush.bf16.msra.mxu0 %v865
      %998 = vmatpush.bf16.msra.mxu0 %v864
      %999 = vmatpush.bf16.msra.mxu0 %v863
      %1000 = vmatmul.bf16.gmra.mxu0 %v664
      %v1001 = vpop.f32.mrf.mxu0
      %v1002 = vadd.f32 %v913, %v1001
      %v1003 = vpop.f32.mrf.mxu0
      %v1004 = vadd.f32 %v915, %v1003
      %1005 = vmatmul.bf16.gmra.mxu0 %v667
      %v1006 = vpop.f32.mrf.mxu0
      %v1007 = vadd.f32 %v918, %v1006
      %v1008 = vpop.f32.mrf.mxu0
      %v1009 = vadd.f32 %v920, %v1008
      %1010 = vmatmul.bf16.gmra.mxu0 %v670
      %v1011 = vpop.f32.mrf.mxu0
      %v1012 = vadd.f32 %v923, %v1011
      %v1013 = vpop.f32.mrf.mxu0
      %v1014 = vadd.f32 %v925, %v1013
      %1015 = vmatmul.bf16.gmra.mxu0 %v673
      %v1016 = vpop.f32.mrf.mxu0
      %v1017 = vadd.f32 %v928, %v1016
      %v1018 = vpop.f32.mrf.mxu0
      %v1019 = vadd.f32 %v930, %v1018
      %1020 = vmatmul.bf16.gmra.mxu0 %v676
      %v1021 = vpop.f32.mrf.mxu0
      %v1022 = vadd.f32 %v933, %v1021
      %v1023 = vpop.f32.mrf.mxu0
      %v1024 = vadd.f32 %v935, %v1023
      %1025 = vmatmul.bf16.gmra.mxu0 %v679
      %v1026 = vpop.f32.mrf.mxu0
      %v1027 = vadd.f32 %v938, %v1026
      %v1028 = vpop.f32.mrf.mxu0
      %v1029 = vadd.f32 %v940, %v1028
      %1030 = vmatmul.bf16.gmra.mxu0 %v682
      %v1031 = vpop.f32.mrf.mxu0
      %v1032 = vadd.f32 %v943, %v1031
      %v1033 = vpop.f32.mrf.mxu0
      %v1034 = vadd.f32 %v945, %v1033
      %1035 = vmatmul.bf16.gmra.mxu0 %v685
      %v1036 = vpop.f32.mrf.mxu0
      %v1037 = vadd.f32 %v948, %v1036
      %v1038 = vpop.f32.mrf.mxu0
      %v1039 = vadd.f32 %v950, %v1038
      %1040 = vmatmul.bf16.gmra.mxu0 %v688
      %v1041 = vpop.f32.mrf.mxu0
      %v1042 = vadd.f32 %v953, %v1041
      %v1043 = vpop.f32.mrf.mxu0
      %v1044 = vadd.f32 %v955, %v1043
      %1045 = vmatmul.bf16.gmra.mxu0 %v691
      %v1046 = vpop.f32.mrf.mxu0
      %v1047 = vadd.f32 %v958, %v1046
      %v1048 = vpop.f32.mrf.mxu0
      %v1049 = vadd.f32 %v960, %v1048
      %1050 = vmatmul.bf16.gmra.mxu0 %v694
      %v1051 = vpop.f32.mrf.mxu0
      %v1052 = vadd.f32 %v963, %v1051
      %v1053 = vpop.f32.mrf.mxu0
      %v1054 = vadd.f32 %v965, %v1053
      %1055 = vmatmul.bf16.gmra.mxu0 %v697
      %v1056 = vpop.f32.mrf.mxu0
      %v1057 = vadd.f32 %v968, %v1056
      %v1058 = vpop.f32.mrf.mxu0
      %v1059 = vadd.f32 %v970, %v1058
      %1060 = vmatmul.bf16.gmra.mxu0 %v700
      %v1061 = vpop.f32.mrf.mxu0
      %v1062 = vadd.f32 %v973, %v1061
      %v1063 = vpop.f32.mrf.mxu0
      %v1064 = vadd.f32 %v975, %v1063
      %1065 = vmatmul.bf16.gmra.mxu0 %v703
      %v1066 = vpop.f32.mrf.mxu0
      %v1067 = vadd.f32 %v978, %v1066
      %v1068 = vpop.f32.mrf.mxu0
      %v1069 = vadd.f32 %v980, %v1068
      %1070 = vmatmul.bf16.gmra.mxu0 %v706
      %v1071 = vpop.f32.mrf.mxu0
      %v1072 = vadd.f32 %v983, %v1071
      %v1073 = vpop.f32.mrf.mxu0
      %v1074 = vadd.f32 %v985, %v1073
      %1075 = vmatmul.bf16.gmra.mxu0 %v709
      %v1076 = vpop.f32.mrf.mxu0
      %v1077 = vadd.f32 %v988, %v1076
      %v1078 = vpop.f32.mrf.mxu0
      %v1079 = vadd.f32 %v990, %v1078
      %1080 = vdwg.mxu0
      %1081 = vmatpush.bf16.msra.mxu0 %v878
      %1082 = vmatpush.bf16.msra.mxu0 %v877
      %1083 = vmatpush.bf16.msra.mxu0 %v876
      %1084 = vmatpush.bf16.msra.mxu0 %v875
      %1085 = vmatpush.bf16.msra.mxu0 %v874
      %1086 = vmatpush.bf16.msra.mxu0 %v873
      %1087 = vmatpush.bf16.msra.mxu0 %v872
      %1088 = vmatpush.bf16.msra.mxu0 %v871
      %1089 = vmatmul.bf16.gmra.mxu0 %v665
      %v1090 = vpop.f32.mrf.mxu0
      %v1091 = vadd.f32 %v1002, %v1090
      %v1092 = vpop.f32.mrf.mxu0
      %v1093 = vadd.f32 %v1004, %v1092
      %1094 = vmatmul.bf16.gmra.mxu0 %v668
      %v1095 = vpop.f32.mrf.mxu0
      %v1096 = vadd.f32 %v1007, %v1095
      %v1097 = vpop.f32.mrf.mxu0
      %v1098 = vadd.f32 %v1009, %v1097
      %1099 = vmatmul.bf16.gmra.mxu0 %v671
      %v1100 = vpop.f32.mrf.mxu0
      %v1101 = vadd.f32 %v1012, %v1100
      %v1102 = vpop.f32.mrf.mxu0
      %v1103 = vadd.f32 %v1014, %v1102
      %1104 = vmatmul.bf16.gmra.mxu0 %v674
      %v1105 = vpop.f32.mrf.mxu0
      %v1106 = vadd.f32 %v1017, %v1105
      %v1107 = vpop.f32.mrf.mxu0
      %v1108 = vadd.f32 %v1019, %v1107
      %1109 = vmatmul.bf16.gmra.mxu0 %v677
      %v1110 = vpop.f32.mrf.mxu0
      %v1111 = vadd.f32 %v1022, %v1110
      %v1112 = vpop.f32.mrf.mxu0
      %v1113 = vadd.f32 %v1024, %v1112
      %1114 = vmatmul.bf16.gmra.mxu0 %v680
      %v1115 = vpop.f32.mrf.mxu0
      %v1116 = vadd.f32 %v1027, %v1115
      %v1117 = vpop.f32.mrf.mxu0
      %v1118 = vadd.f32 %v1029, %v1117
      %1119 = vmatmul.bf16.gmra.mxu0 %v683
      %v1120 = vpop.f32.mrf.mxu0
      %v1121 = vadd.f32 %v1032, %v1120
      %v1122 = vpop.f32.mrf.mxu0
      %v1123 = vadd.f32 %v1034, %v1122
      %1124 = vmatmul.bf16.gmra.mxu0 %v686
      %v1125 = vpop.f32.mrf.mxu0
      %v1126 = vadd.f32 %v1037, %v1125
      %v1127 = vpop.f32.mrf.mxu0
      %v1128 = vadd.f32 %v1039, %v1127
      %1129 = vmatmul.bf16.gmra.mxu0 %v689
      %v1130 = vpop.f32.mrf.mxu0
      %v1131 = vadd.f32 %v1042, %v1130
      %v1132 = vpop.f32.mrf.mxu0
      %v1133 = vadd.f32 %v1044, %v1132
      %1134 = vmatmul.bf16.gmra.mxu0 %v692
      %v1135 = vpop.f32.mrf.mxu0
      %v1136 = vadd.f32 %v1047, %v1135
      %v1137 = vpop.f32.mrf.mxu0
      %v1138 = vadd.f32 %v1049, %v1137
      %1139 = vmatmul.bf16.gmra.mxu0 %v695
      %v1140 = vpop.f32.mrf.mxu0
      %v1141 = vadd.f32 %v1052, %v1140
      %v1142 = vpop.f32.mrf.mxu0
      %v1143 = vadd.f32 %v1054, %v1142
      %1144 = vmatmul.bf16.gmra.mxu0 %v698
      %v1145 = vpop.f32.mrf.mxu0
      %v1146 = vadd.f32 %v1057, %v1145
      %v1147 = vpop.f32.mrf.mxu0
      %v1148 = vadd.f32 %v1059, %v1147
      %1149 = vmatmul.bf16.gmra.mxu0 %v701
      %v1150 = vpop.f32.mrf.mxu0
      %v1151 = vadd.f32 %v1062, %v1150
      %v1152 = vpop.f32.mrf.mxu0
      %v1153 = vadd.f32 %v1064, %v1152
      %1154 = vmatmul.bf16.gmra.mxu0 %v704
      %v1155 = vpop.f32.mrf.mxu0
      %v1156 = vadd.f32 %v1067, %v1155
      %v1157 = vpop.f32.mrf.mxu0
      %v1158 = vadd.f32 %v1069, %v1157
      %1159 = vmatmul.bf16.gmra.mxu0 %v707
      %v1160 = vpop.f32.mrf.mxu0
      %v1161 = vadd.f32 %v1072, %v1160
      %v1162 = vpop.f32.mrf.mxu0
      %v1163 = vadd.f32 %v1074, %v1162
      %1164 = vmatmul.bf16.gmra.mxu0 %v710
      %v1165 = vpop.f32.mrf.mxu0
      %v1166 = vadd.f32 %v1077, %v1165
      %v1167 = vpop.f32.mrf.mxu0
      %v1168 = vadd.f32 %v1079, %v1167
      %1169 = vdwg.mxu0
      %v1170 = vadd.f32 %v359, %v1091
      %v1171 = vadd.f32 %v360, %v1093
      %v1172 = vadd.f32 %v361, %v1096
      %v1173 = vadd.f32 %v362, %v1098
      %v1174 = vadd.f32 %v363, %v1101
      %v1175 = vadd.f32 %v364, %v1103
      %v1176 = vadd.f32 %v365, %v1106
      %v1177 = vadd.f32 %v366, %v1108
      %v1178 = vadd.f32 %v367, %v1111
      %v1179 = vadd.f32 %v368, %v1113
      %v1180 = vadd.f32 %v369, %v1116
      %v1181 = vadd.f32 %v370, %v1118
      %v1182 = vadd.f32 %v371, %v1121
      %v1183 = vadd.f32 %v372, %v1123
      %v1184 = vadd.f32 %v373, %v1126
      %v1185 = vadd.f32 %v374, %v1128
      %v1186 = vadd.f32 %v375, %v1131
      %v1187 = vadd.f32 %v376, %v1133
      %v1188 = vadd.f32 %v377, %v1136
      %v1189 = vadd.f32 %v378, %v1138
      %v1190 = vadd.f32 %v379, %v1141
      %v1191 = vadd.f32 %v380, %v1143
      %v1192 = vadd.f32 %v381, %v1146
      %v1193 = vadd.f32 %v382, %v1148
      %v1194 = vadd.f32 %v383, %v1151
      %v1195 = vadd.f32 %v384, %v1153
      %v1196 = vadd.f32 %v385, %v1156
      %v1197 = vadd.f32 %v386, %v1158
      %v1198 = vadd.f32 %v387, %v1161
      %v1199 = vadd.f32 %v388, %v1163
      %v1200 = vadd.f32 %v389, %v1166
      %v1201 = vadd.f32 %v390, %v1168
      %1202 = vst [vmem:[#allocation2] sm:$0xff] %v1170
      %1203 = vst [vmem:[#allocation2 + $0x8] sm:$0xff] %v1171
      %1204 = vst [vmem:[#allocation2 + $0x10] sm:$0xff] %v1172
      %1205 = vst [vmem:[#allocation2 + $0x18] sm:$0xff] %v1173
      %1206 = vst [vmem:[#allocation2 + $0x20] sm:$0xff] %v1174
      %1207 = vst [vmem:[#allocation2 + $0x28] sm:$0xff] %v1175
      %1208 = vst [vmem:[#allocation2 + $0x30] sm:$0xff] %v1176
      %1209 = vst [vmem:[#allocation2 + $0x38] sm:$0xff] %v1177
      %1210 = vst [vmem:[#allocation2 + $0x40] sm:$0xff] %v1178
      %1211 = vst [vmem:[#allocation2 + $0x48] sm:$0xff] %v1179
      %1212 = vst [vmem:[#allocation2 + $0x50] sm:$0xff] %v1180
      %1213 = vst [vmem:[#allocation2 + $0x58] sm:$0xff] %v1181
      %1214 = vst [vmem:[#allocation2 + $0x60] sm:$0xff] %v1182
      %1215 = vst [vmem:[#allocation2 + $0x68] sm:$0xff] %v1183
      %1216 = vst [vmem:[#allocation2 + $0x70] sm:$0xff] %v1184
      %1217 = vst [vmem:[#allocation2 + $0x78] sm:$0xff] %v1185
      %1218 = vst [vmem:[#allocation2 + $0x80] sm:$0xff] %v1186
      %1219 = vst [vmem:[#allocation2 + $0x88] sm:$0xff] %v1187
      %1220 = vst [vmem:[#allocation2 + $0x90] sm:$0xff] %v1188
      %1221 = vst [vmem:[#allocation2 + $0x98] sm:$0xff] %v1189
      %1222 = vst [vmem:[#allocation2 + $0xa0] sm:$0xff] %v1190
      %1223 = vst [vmem:[#allocation2 + $0xa8] sm:$0xff] %v1191
      %1224 = vst [vmem:[#allocation2 + $0xb0] sm:$0xff] %v1192
      %1225 = vst [vmem:[#allocation2 + $0xb8] sm:$0xff] %v1193
      %1226 = vst [vmem:[#allocation2 + $0xc0] sm:$0xff] %v1194
      %1227 = vst [vmem:[#allocation2 + $0xc8] sm:$0xff] %v1195
      %1228 = vst [vmem:[#allocation2 + $0xd0] sm:$0xff] %v1196
      %1229 = vst [vmem:[#allocation2 + $0xd8] sm:$0xff] %v1197
      %1230 = vst [vmem:[#allocation2 + $0xe0] sm:$0xff] %v1198
      %1231 = vst [vmem:[#allocation2 + $0xe8] sm:$0xff] %v1199
      %1232 = vst [vmem:[#allocation2 + $0xf0] sm:$0xff] %v1200
      %1233 = vst [vmem:[#allocation2 + $0xf8] sm:$0xff] %v1201
      // Predicated region
      $region37: #{forward.12} parent=31 // pred_check
        %p1234 = pneg %p323
      $region38: #{forward.12} parent=31 // pred_check_branch
        %1236 = sbr.rel (%p1234) target = $region40
      $region39: #{forward.12} parent=31 // pred_region
        %v1237 = vld [vmem:[#allocation2] sm:$0xff]
        %v1238 = vld [vmem:[#allocation2 + $0x8] sm:$0xff]
        %v1239 = vld [vmem:[#allocation2 + $0x10] sm:$0xff]
        %v1240 = vld [vmem:[#allocation2 + $0x18] sm:$0xff]
        %v1241 = vld [vmem:[#allocation2 + $0x20] sm:$0xff]
        %v1242 = vld [vmem:[#allocation2 + $0x28] sm:$0xff]
        %v1243 = vld [vmem:[#allocation2 + $0x30] sm:$0xff]
        %v1244 = vld [vmem:[#allocation2 + $0x38] sm:$0xff]
        %v1245 = vld [vmem:[#allocation2 + $0x40] sm:$0xff]
        %v1246 = vld [vmem:[#allocation2 + $0x48] sm:$0xff]
        %v1247 = vld [vmem:[#allocation2 + $0x50] sm:$0xff]
        %v1248 = vld [vmem:[#allocation2 + $0x58] sm:$0xff]
        %v1249 = vld [vmem:[#allocation2 + $0x60] sm:$0xff]
        %v1250 = vld [vmem:[#allocation2 + $0x68] sm:$0xff]
        %v1251 = vld [vmem:[#allocation2 + $0x70] sm:$0xff]
        %v1252 = vld [vmem:[#allocation2 + $0x78] sm:$0xff]
        %v1253 = vld [vmem:[#allocation2 + $0x80] sm:$0xff]
        %v1254 = vld [vmem:[#allocation2 + $0x88] sm:$0xff]
        %v1255 = vld [vmem:[#allocation2 + $0x90] sm:$0xff]
        %v1256 = vld [vmem:[#allocation2 + $0x98] sm:$0xff]
        %v1257 = vld [vmem:[#allocation2 + $0xa0] sm:$0xff]
        %v1258 = vld [vmem:[#allocation2 + $0xa8] sm:$0xff]
        %v1259 = vld [vmem:[#allocation2 + $0xb0] sm:$0xff]
        %v1260 = vld [vmem:[#allocation2 + $0xb8] sm:$0xff]
        %v1261 = vld [vmem:[#allocation2 + $0xc0] sm:$0xff]
        %v1262 = vld [vmem:[#allocation2 + $0xc8] sm:$0xff]
        %v1263 = vld [vmem:[#allocation2 + $0xd0] sm:$0xff]
        %v1264 = vld [vmem:[#allocation2 + $0xd8] sm:$0xff]
        %v1265 = vld [vmem:[#allocation2 + $0xe0] sm:$0xff]
        %v1266 = vld [vmem:[#allocation2 + $0xe8] sm:$0xff]
        %v1267 = vld [vmem:[#allocation2 + $0xf0] sm:$0xff]
        %v1268 = vld [vmem:[#allocation2 + $0xf8] sm:$0xff]
        %v1269 = vld [vmem:[%s309] sm:$0x1]
        %v1271 = vperm.slane %v1269, 0
        %v1273 = vadd.f32 %v1237, %v1271
        %v1274 = vadd.f32 %v1238, %v1271
        %v1275 = vadd.f32 %v1239, %v1271
        %v1276 = vadd.f32 %v1240, %v1271
        %v1277 = vadd.f32 %v1241, %v1271
        %v1278 = vadd.f32 %v1242, %v1271
        %v1279 = vadd.f32 %v1243, %v1271
        %v1280 = vadd.f32 %v1244, %v1271
        %v1281 = vadd.f32 %v1245, %v1271
        %v1282 = vadd.f32 %v1246, %v1271
        %v1283 = vadd.f32 %v1247, %v1271
        %v1284 = vadd.f32 %v1248, %v1271
        %v1285 = vadd.f32 %v1249, %v1271
        %v1286 = vadd.f32 %v1250, %v1271
        %v1287 = vadd.f32 %v1251, %v1271
        %v1288 = vadd.f32 %v1252, %v1271
        %v1289 = vadd.f32 %v1253, %v1271
        %v1290 = vadd.f32 %v1254, %v1271
        %v1291 = vadd.f32 %v1255, %v1271
        %v1292 = vadd.f32 %v1256, %v1271
        %v1293 = vadd.f32 %v1257, %v1271
        %v1294 = vadd.f32 %v1258, %v1271
        %v1295 = vadd.f32 %v1259, %v1271
        %v1296 = vadd.f32 %v1260, %v1271
        %v1297 = vadd.f32 %v1261, %v1271
        %v1298 = vadd.f32 %v1262, %v1271
        %v1299 = vadd.f32 %v1263, %v1271
        %v1300 = vadd.f32 %v1264, %v1271
        %v1301 = vadd.f32 %v1265, %v1271
        %v1302 = vadd.f32 %v1266, %v1271
        %v1303 = vadd.f32 %v1267, %v1271
        %v1304 = vadd.f32 %v1268, %v1271
        %v1305 = vmax.f32 %v1273, 0.0
        %v1306 = vmax.f32 %v1274, 0.0
        %v1307 = vmax.f32 %v1275, 0.0
        %v1308 = vmax.f32 %v1276, 0.0
        %v1309 = vmax.f32 %v1277, 0.0
        %v1310 = vmax.f32 %v1278, 0.0
        %v1311 = vmax.f32 %v1279, 0.0
        %v1312 = vmax.f32 %v1280, 0.0
        %v1313 = vmax.f32 %v1281, 0.0
        %v1314 = vmax.f32 %v1282, 0.0
        %v1315 = vmax.f32 %v1283, 0.0
        %v1316 = vmax.f32 %v1284, 0.0
        %v1317 = vmax.f32 %v1285, 0.0
        %v1318 = vmax.f32 %v1286, 0.0
        %v1319 = vmax.f32 %v1287, 0.0
        %v1320 = vmax.f32 %v1288, 0.0
        %v1321 = vmax.f32 %v1289, 0.0
        %v1322 = vmax.f32 %v1290, 0.0
        %v1323 = vmax.f32 %v1291, 0.0
        %v1324 = vmax.f32 %v1292, 0.0
        %v1325 = vmax.f32 %v1293, 0.0
        %v1326 = vmax.f32 %v1294, 0.0
        %v1327 = vmax.f32 %v1295, 0.0
        %v1328 = vmax.f32 %v1296, 0.0
        %v1329 = vmax.f32 %v1297, 0.0
        %v1330 = vmax.f32 %v1298, 0.0
        %v1331 = vmax.f32 %v1299, 0.0
        %v1332 = vmax.f32 %v1300, 0.0
        %v1333 = vmax.f32 %v1301, 0.0
        %v1334 = vmax.f32 %v1302, 0.0
        %v1335 = vmax.f32 %v1303, 0.0
        %v1336 = vmax.f32 %v1304, 0.0
        %1337 = vst [vmem:[%s321] sm:$0xff] %v1305
        %1338 = vst [vmem:[%s321 + $0x8] sm:$0xff] %v1306
        %1339 = vst [vmem:[%s321 + $0x10] sm:$0xff] %v1307
        %1340 = vst [vmem:[%s321 + $0x18] sm:$0xff] %v1308
        %1341 = vst [vmem:[%s321 + $0x20] sm:$0xff] %v1309
        %1342 = vst [vmem:[%s321 + $0x28] sm:$0xff] %v1310
        %1343 = vst [vmem:[%s321 + $0x30] sm:$0xff] %v1311
        %1344 = vst [vmem:[%s321 + $0x38] sm:$0xff] %v1312
        %1345 = vst [vmem:[%s321 + $0x40] sm:$0xff] %v1313
        %1346 = vst [vmem:[%s321 + $0x48] sm:$0xff] %v1314
        %1347 = vst [vmem:[%s321 + $0x50] sm:$0xff] %v1315
        %1348 = vst [vmem:[%s321 + $0x58] sm:$0xff] %v1316
        %1349 = vst [vmem:[%s321 + $0x60] sm:$0xff] %v1317
        %1350 = vst [vmem:[%s321 + $0x68] sm:$0xff] %v1318
        %1351 = vst [vmem:[%s321 + $0x70] sm:$0xff] %v1319
        %1352 = vst [vmem:[%s321 + $0x78] sm:$0xff] %v1320
        %1353 = vst [vmem:[%s321 + $0x80] sm:$0xff] %v1321
        %1354 = vst [vmem:[%s321 + $0x88] sm:$0xff] %v1322
        %1355 = vst [vmem:[%s321 + $0x90] sm:$0xff] %v1323
        %1356 = vst [vmem:[%s321 + $0x98] sm:$0xff] %v1324
        %1357 = vst [vmem:[%s321 + $0xa0] sm:$0xff] %v1325
        %1358 = vst [vmem:[%s321 + $0xa8] sm:$0xff] %v1326
        %1359 = vst [vmem:[%s321 + $0xb0] sm:$0xff] %v1327
        %1360 = vst [vmem:[%s321 + $0xb8] sm:$0xff] %v1328
        %1361 = vst [vmem:[%s321 + $0xc0] sm:$0xff] %v1329
        %1362 = vst [vmem:[%s321 + $0xc8] sm:$0xff] %v1330
        %1363 = vst [vmem:[%s321 + $0xd0] sm:$0xff] %v1331
        %1364 = vst [vmem:[%s321 + $0xd8] sm:$0xff] %v1332
        %1365 = vst [vmem:[%s321 + $0xe0] sm:$0xff] %v1333
        %1366 = vst [vmem:[%s321 + $0xe8] sm:$0xff] %v1334
        %1367 = vst [vmem:[%s321 + $0xf0] sm:$0xff] %v1335
        %1368 = vst [vmem:[%s321 + $0xf8] sm:$0xff] %v1336
      $region40: #{forward.12} parent=31 // pred_fallthru
        _
      %s1369 = smul.u32 32, %s21
      %p1370 = scmp.lt.s32.totalorder %s20, 3
      %s1371 = scalar_select %p1370, %s20, 3
      %p1372 = scmp.lt.s32.totalorder %s1369, 63
      %s1373 = scalar_select %p1372, %s1369, 63
      %p1374 = scmp.lt.s32.totalorder %s22, 0
      %s1375 = scalar_select %p1374, %s22, 0
      %s1376 = sadd.s32 %s1375, %s1373
      %s1377 = smul.addr %s1371, 64
      %s1378 = sadd.s32 %s1376, %s1377
      %s1379 = smul.addr %s1378, 8
      %s1380 = scalar_lea.vmem %s3, %s1379
      // Predicated region
      $region41: #{forward.12} parent=31 // pred_check
        %p1381 = pneg %p150
      $region42: #{forward.12} parent=31 // pred_check_branch
        %1383 = sbr.rel (%p1381) target = $region44
      $region43: #{forward.12} parent=31 // pred_region
        %s1384 = smul.u32 32, %s21
      $region44: #{forward.12} parent=31 // pred_fallthru
        _
    $region32: #{forward.12} parent=5 // pred_fallthru
      _
    %p1385 = scmp.le.s32.totalorder 2, %s9
    // Predicated region
    $region45: #{forward.12} parent=5 // pred_check
      %p1386 = pneg %p1385
    $region46: #{forward.12} parent=5 // pred_check_branch
      %1388 = sbr.rel (%p1386) target = $region48
    $region47: #{forward.12} parent=5 // pred_region
      %s1389 = ssub.s32 %s9, 2
      // Predicated region
      $region49: #{forward.12} parent=47 // pred_check
        %p1390 = pneg %p156
      $region50: #{forward.12} parent=47 // pred_check_branch
        %1392 = sbr.rel (%p1390) target = $region52
      $region51: #{forward.12} parent=47 // pred_region
        %s1393 = smul.u32 32, %s25
        %p1394 = scmp.lt.s32.totalorder %s24, 3
        %s1395 = scalar_select %p1394, %s24, 3
        %p1396 = scmp.lt.s32.totalorder %s1393, 63
        %s1397 = scalar_select %p1396, %s1393, 63
        %p1398 = scmp.lt.s32.totalorder %s26, 0
        %s1399 = scalar_select %p1398, %s26, 0
        %s1400 = sadd.s32 %s1399, %s1397
        %s1401 = smul.addr %s1395, 64
        %s1402 = sadd.s32 %s1400, %s1401
        %s1403 = smul.addr %s1402, 8
        %s1404 = scalar_lea.vmem %s3, %s1403
      $region52: #{forward.12} parent=47 // pred_fallthru
        _
    $region48: #{forward.12} parent=5 // pred_fallthru
      _
  $region6: #{forward.12} parent=0 // loop_footer
    %s13 = sadd.s32 1, %s9
  $region7: #{forward.12} parent=0 // loop_footer_branch
    %8 = sbr.rel target = $region3
  $region8: #{forward.12} parent=0 // loop_exit
    _

// kernel: forward.13
$region0: #{forward.13}
  #allocation0 [shape = 'u32[]', space=smem, size = 0x4, offset = 0x4, fixed_abs, tag = 'smem constant byte address 0x4 - core index']
  #allocation1 [shape = 'u32[72,128]{1,0:T(1,128)}', space=vmem, size = 0x9000, scoped, tag = 'internal scratch']
  #allocation2 [shape = 'f32[256,128]{1,0:T(8,128)}', space=vmem, size = 0x20000, scoped, tag = 'scratch operand']
  %s0 = inlined_call_operand.vmem [shape: bf16[4,2048,256], index: 0, kind: input, shape index: {}]
  %s1 = inlined_call_operand.vmem [shape: bf16[4,256,128], index: 1, kind: input, shape index: {}]
  %s2 = inlined_call_operand.vmem [shape: f32[4,1,128], index: 2, kind: input, shape index: {}]
  %s3 = inlined_call_operand.vmem [shape: f32[4,2048,128], index: 3, kind: output, shape index: {}]
  %s4 = sld [smem:[#allocation0]]
  $region53: #{forward.13} parent=0
    _
  %s6 = ssub.s32 1, %s4
  %s7 = scalar_select 0, %s6, %s4
  loop: start=0, step=1, limit=34
  $region2: #{forward.13} parent=0 // loop_pre_header
    _
  $region3: #{forward.13} parent=0 // loop_header
    %s9 = sphi 0, %s13
    %p10 = scmp.ge.s32.totalorder %s9, 34
    %s16 = sphi 0, %s42
    %s17 = sphi 0, %s38
    %s18 = sphi 0, %s34
    %s19 = sphi 0, %s30
    %s20 = sphi 0, %s16
    %s21 = sphi 0, %s17
    %s22 = sphi 0, %s18
    %s23 = sphi 0, %s19
    %s24 = sphi 0, %s20
    %s25 = sphi 0, %s21
    %s26 = sphi 0, %s22
    %s27 = sphi 0, %s23
    %s49 = sphi 0, %s51
    %s52 = sphi 0, %s49
    %s53 = sphi 0, %s52
    %s69 = sphi 0, %s53
    %s79 = sphi 0, %s81
    %s82 = sphi 0, %s79
    %s83 = sphi 0, %s82
    %s99 = sphi 0, %s83
    %s107 = sphi 0, %s109
    %s110 = sphi 0, %s107
    %s111 = sphi 0, %s110
    %s127 = sphi 0, %s111
    %s137 = sphi 0, %s139
    %s140 = sphi 0, %s137
    %s141 = sphi 0, %s140
    %s157 = sphi 0, %s141
  $region4: #{forward.13} parent=0 // loop_header_branch
    %12 = sbr.rel (%p10) target = $region8
  $region5: #{forward.13} parent=0 // loop_body
    %s14 = ssub.s32 %s9, 1
    %s15 = ssub.s32 %s9, 2
    %s28 = sadd.s32 1, %s19
    %p29 = scmp.ge.s32.totalorder %s28, 1
    %s30 = scalar_select %p29, 0, %s28
    %s31 = sadd.s32 1, %s18
    %s32 = scalar_select %p29, %s31, %s18
    %p33 = scmp.ge.s32.totalorder %s32, 1
    %s34 = scalar_select %p33, 0, %s32
    %s35 = sadd.s32 1, %s17
    %s36 = scalar_select %p33, %s35, %s17
    %p37 = scmp.ge.s32.totalorder %s36, 8
    %s38 = scalar_select %p37, 0, %s36
    %s39 = sadd.s32 1, %s16
    %s40 = scalar_select %p37, %s39, %s16
    %p41 = scmp.ge.s32.totalorder %s40, 4
    %s42 = scalar_select %p41, 0, %s40
    %s43 = ssub.s32 %s16, %s42
    %s44 = ssub.s32 %s17, %s38
    %s45 = sor.u32 %s43, %s44
    %s46 = ssub.s32 %s19, %s30
    %s47 = sor.u32 %s45, %s46
    %p48 = scmp.eq.s32.totalorder %s47, 0
    %s50 = sadd.s32 %s49, 1
    %s51 = scalar_select %p48, %s49, %s50
    %p54 = pneg %p48
    %p55 = scmp.eq.s32.totalorder %s9, 31
    %p56 = por %p54, %p55
    %p57 = scmp.ne.s32.totalorder %s49, %s52
    %p58 = scmp.eq.s32.totalorder %s9, 0
    %p59 = por %p57, %p58
    %p60 = scmp.ne.s32.totalorder %s49, %s52
    %p61 = scmp.eq.s32.totalorder %s14, 31
    %p62 = por %p60, %p61
    %p63 = scmp.ne.s32.totalorder %s52, %s53
    %p64 = scmp.eq.s32.totalorder %s14, 0
    %p65 = por %p63, %p64
    %p66 = scmp.ne.s32.totalorder %s52, %s53
    %p67 = scmp.eq.s32.totalorder %s15, 31
    %p68 = por %p66, %p67
    %p70 = scmp.ne.s32.totalorder %s53, %s69
    %p71 = scmp.eq.s32.totalorder %s15, 0
    %p72 = por %p70, %p71
    %s73 = ssub.s32 %s16, %s42
    %s74 = ssub.s32 %s19, %s30
    %s75 = sor.u32 %s73, %s74
    %s76 = ssub.s32 %s18, %s34
    %s77 = sor.u32 %s75, %s76
    %p78 = scmp.eq.s32.totalorder %s77, 0
    %s80 = sadd.s32 %s79, 1
    %s81 = scalar_select %p78, %s79, %s80
    %p84 = pneg %p78
    %p85 = scmp.eq.s32.totalorder %s9, 31
    %p86 = por %p84, %p85
    %p87 = scmp.ne.s32.totalorder %s79, %s82
    %p88 = scmp.eq.s32.totalorder %s9, 0
    %p89 = por %p87, %p88
    %p90 = scmp.ne.s32.totalorder %s79, %s82
    %p91 = scmp.eq.s32.totalorder %s14, 31
    %p92 = por %p90, %p91
    %p93 = scmp.ne.s32.totalorder %s82, %s83
    %p94 = scmp.eq.s32.totalorder %s14, 0
    %p95 = por %p93, %p94
    %p96 = scmp.ne.s32.totalorder %s82, %s83
    %p97 = scmp.eq.s32.totalorder %s15, 31
    %p98 = por %p96, %p97
    %p100 = scmp.ne.s32.totalorder %s83, %s99
    %p101 = scmp.eq.s32.totalorder %s15, 0
    %p102 = por %p100, %p101
    %s103 = ssub.s32 %s16, %s42
    %s104 = ssub.s32 %s18, %s34
    %s105 = sor.u32 %s103, %s104
    %p106 = scmp.eq.s32.totalorder %s105, 0
    %s108 = sadd.s32 %s107, 1
    %s109 = scalar_select %p106, %s107, %s108
    %p112 = pneg %p106
    %p113 = scmp.eq.s32.totalorder %s9, 31
    %p114 = por %p112, %p113
    %p115 = scmp.ne.s32.totalorder %s107, %s110
    %p116 = scmp.eq.s32.totalorder %s9, 0
    %p117 = por %p115, %p116
    %p118 = scmp.ne.s32.totalorder %s107, %s110
    %p119 = scmp.eq.s32.totalorder %s14, 31
    %p120 = por %p118, %p119
    %p121 = scmp.ne.s32.totalorder %s110, %s111
    %p122 = scmp.eq.s32.totalorder %s14, 0
    %p123 = por %p121, %p122
    %p124 = scmp.ne.s32.totalorder %s110, %s111
    %p125 = scmp.eq.s32.totalorder %s15, 31
    %p126 = por %p124, %p125
    %p128 = scmp.ne.s32.totalorder %s111, %s127
    %p129 = scmp.eq.s32.totalorder %s15, 0
    %p130 = por %p128, %p129
    %s131 = ssub.s32 %s16, %s42
    %s132 = ssub.s32 %s17, %s38
    %s133 = sor.u32 %s131, %s132
    %s134 = ssub.s32 %s18, %s34
    %s135 = sor.u32 %s133, %s134
    %p136 = scmp.eq.s32.totalorder %s135, 0
    %s138 = sadd.s32 %s137, 1
    %s139 = scalar_select %p136, %s137, %s138
    %p142 = pneg %p136
    %p143 = scmp.eq.s32.totalorder %s9, 31
    %p144 = por %p142, %p143
    %p145 = scmp.ne.s32.totalorder %s137, %s140
    %p146 = scmp.eq.s32.totalorder %s9, 0
    %p147 = por %p145, %p146
    %p148 = scmp.ne.s32.totalorder %s137, %s140
    %p149 = scmp.eq.s32.totalorder %s14, 31
    %p150 = por %p148, %p149
    %p151 = scmp.ne.s32.totalorder %s140, %s141
    %p152 = scmp.eq.s32.totalorder %s14, 0
    %p153 = por %p151, %p152
    %p154 = scmp.ne.s32.totalorder %s140, %s141
    %p155 = scmp.eq.s32.totalorder %s15, 31
    %p156 = por %p154, %p155
    %p158 = scmp.ne.s32.totalorder %s141, %s157
    %p159 = scmp.eq.s32.totalorder %s15, 0
    %p160 = por %p158, %p159
    %p161 = scmp.le.s32.totalorder 1, %s9
    %p162 = scmp.lt.s32.totalorder %s9, 33
    %p163 = pnand %p161, %p162
    %p164 = pneg %p163
    // Predicated region
    $region9: #{forward.13} parent=5 // pred_check
      _
    $region10: #{forward.13} parent=5 // pred_check_branch
      %166 = sbr.rel (%p163) target = $region12
    $region11: #{forward.13} parent=5 // pred_region
      %s167 = ssub.s32 %s9, 1
    $region12: #{forward.13} parent=5 // pred_fallthru
      _
    %p168 = scmp.lt.s32.totalorder %s9, 32
    // Predicated region
    $region13: #{forward.13} parent=5 // pred_check
      %p169 = pneg %p168
    $region14: #{forward.13} parent=5 // pred_check_branch
      %171 = sbr.rel (%p169) target = $region16
    $region15: #{forward.13} parent=5 // pred_region
      // Predicated region
      $region17: #{forward.13} parent=15 // pred_check
        %p172 = pneg %p59
      $region18: #{forward.13} parent=15 // pred_check_branch
        %174 = sbr.rel (%p172) target = $region20
      $region19: #{forward.13} parent=15 // pred_region
        %s175 = smul.u32 32, %s17
        %s176 = smul.u32 2, %s19
        %p177 = scmp.lt.s32.totalorder %s16, 3
        %s178 = scalar_select %p177, %s16, 3
        %p179 = scmp.lt.s32.totalorder %s175, 255
        %s180 = scalar_select %p179, %s175, 255
        %p181 = scmp.lt.s32.totalorder %s176, 1
        %s182 = scalar_select %p181, %s176, 1
        %s183 = smul.addr %s180, 2
        %s184 = sadd.s32 %s182, %s183
        %s185 = smul.addr %s178, 512
        %s186 = sadd.s32 %s184, %s185
        %s187 = smul.addr %s186, 4
        %s188 = scalar_lea.vmem %s0, %s187
        %s189 = smul.u32 32, %s17
        %s190 = smul.u32 2, %s19
      $region20: #{forward.13} parent=15 // pred_fallthru
        _
      // Predicated region
      $region21: #{forward.13} parent=15 // pred_check
        %p191 = pneg %p89
      $region22: #{forward.13} parent=15 // pred_check_branch
        %193 = sbr.rel (%p191) target = $region24
      $region23: #{forward.13} parent=15 // pred_region
        %s194 = smul.u32 32, %s19
        %p195 = scmp.lt.s32.totalorder %s16, 3
        %s196 = scalar_select %p195, %s16, 3
        %p197 = scmp.lt.s32.totalorder %s194, 31
        %s198 = scalar_select %p197, %s194, 31
        %p199 = scmp.lt.s32.totalorder %s18, 0
        %s200 = scalar_select %p199, %s18, 0
        %s201 = sadd.s32 %s200, %s198
        %s202 = smul.addr %s196, 32
        %s203 = sadd.s32 %s201, %s202
        %s204 = smul.addr %s203, 4
        %s205 = scalar_lea.vmem %s1, %s204
        %s206 = smul.u32 32, %s19
      $region24: #{forward.13} parent=15 // pred_fallthru
        _
      // Predicated region
      $region25: #{forward.13} parent=15 // pred_check
        %p207 = pneg %p117
      $region26: #{forward.13} parent=15 // pred_check_branch
        %209 = sbr.rel (%p207) target = $region28
      $region27: #{forward.13} parent=15 // pred_region
        %p210 = scmp.lt.s32.totalorder %s16, 3
        %s211 = scalar_select %p210, %s16, 3
        %p212 = scmp.lt.s32.totalorder %s18, 0
        %s213 = scalar_select %p212, %s18, 0
        %s214 = sadd.s32 %s213, %s211
        %s215 = scalar_lea.vmem %s2, %s214
      $region28: #{forward.13} parent=15 // pred_fallthru
        _
    $region16: #{forward.13} parent=5 // pred_fallthru
      _
    %p216 = scmp.le.s32.totalorder 1, %s9
    %p217 = scmp.lt.s32.totalorder %s9, 33
    %p218 = pnand %p216, %p217
    %p219 = pneg %p218
    // Predicated region
    $region29: #{forward.13} parent=5 // pred_check
      _
    $region30: #{forward.13} parent=5 // pred_check_branch
      %221 = sbr.rel (%p218) target = $region32
    $region31: #{forward.13} parent=5 // pred_region
      %s222 = ssub.s32 %s9, 1
      %s223 = smul.u32 32, %s21
      %s224 = smul.u32 2, %s23
      %p225 = scmp.lt.s32.totalorder %s20, 3
      %s226 = scalar_select %p225, %s20, 3
      %p227 = scmp.lt.s32.totalorder %s223, 255
      %s228 = scalar_select %p227, %s223, 255
      %p229 = scmp.lt.s32.totalorder %s224, 1
      %s230 = scalar_select %p229, %s224, 1
      %s231 = smul.addr %s228, 2
      %s232 = sadd.s32 %s230, %s231
      %s233 = smul.addr %s226, 512
      %s234 = sadd.s32 %s232, %s233
      %s235 = smul.addr %s234, 4
      %s236 = scalar_lea.vmem %s0, %s235
      %p237 = pneg %p65
      %p238 = pneg %p62
      %s239 = smul.u32 32, %s23
      %p240 = scmp.lt.s32.totalorder %s20, 3
      %s241 = scalar_select %p240, %s20, 3
      %p242 = scmp.lt.s32.totalorder %s239, 31
      %s243 = scalar_select %p242, %s239, 31
      %p244 = scmp.lt.s32.totalorder %s22, 0
      %s245 = scalar_select %p244, %s22, 0
      %s246 = sadd.s32 %s245, %s243
      %s247 = smul.addr %s241, 32
      %s248 = sadd.s32 %s246, %s247
      %s249 = smul.addr %s248, 4
      %s250 = scalar_lea.vmem %s1, %s249
      %p251 = pneg %p95
      %p252 = pneg %p92
      %p253 = scmp.lt.s32.totalorder %s20, 3
      %s254 = scalar_select %p253, %s20, 3
      %p255 = scmp.lt.s32.totalorder %s22, 0
      %s256 = scalar_select %p255, %s22, 0
      %s257 = sadd.s32 %s256, %s254
      %s258 = scalar_lea.vmem %s2, %s257
      %p259 = pneg %p123
      %p260 = pneg %p120
      %p261 = pneg %p153
      %p262 = pneg %p150
      %s263 = smul.u32 32, %s21
      %p264 = scmp.lt.s32.totalorder %s20, 3
      %s265 = scalar_select %p264, %s20, 3
      %p266 = scmp.lt.s32.totalorder %s263, 255
      %s267 = scalar_select %p266, %s263, 255
      %p268 = scmp.lt.s32.totalorder %s22, 0
      %s269 = scalar_select %p268, %s22, 0
      %s270 = sadd.s32 %s269, %s267
      %s271 = smul.addr %s265, 256
      %s272 = sadd.s32 %s270, %s271
      %s273 = smul.addr %s272, 8
      %s274 = scalar_lea.vmem %s3, %s273
      %s275 = smul.u32 32, %s21
      %s276 = smul.u32 2, %s23
      %p277 = scmp.lt.s32.totalorder %s20, 3
      %s278 = scalar_select %p277, %s20, 3
      %p279 = scmp.lt.s32.totalorder %s275, 255
      %s280 = scalar_select %p279, %s275, 255
      %p281 = scmp.lt.s32.totalorder %s276, 1
      %s282 = scalar_select %p281, %s276, 1
      %s283 = smul.addr %s280, 2
      %s284 = sadd.s32 %s282, %s283
      %s285 = smul.addr %s278, 512
      %s286 = sadd.s32 %s284, %s285
      %s287 = smul.addr %s286, 4
      %s288 = scalar_lea.vmem %s0, %s287
      %s289 = smul.u32 32, %s21
      %s290 = smul.u32 2, %s23
      %s291 = smul.u32 32, %s23
      %p292 = scmp.lt.s32.totalorder %s20, 3
      %s293 = scalar_select %p292, %s20, 3
      %p294 = scmp.lt.s32.totalorder %s291, 31
      %s295 = scalar_select %p294, %s291, 31
      %p296 = scmp.lt.s32.totalorder %s22, 0
      %s297 = scalar_select %p296, %s22, 0
      %s298 = sadd.s32 %s297, %s295
      %s299 = smul.addr %s293, 32
      %s300 = sadd.s32 %s298, %s299
      %s301 = smul.addr %s300, 4
      %s302 = scalar_lea.vmem %s1, %s301
      %s303 = smul.u32 32, %s23
      %p304 = scmp.lt.s32.totalorder %s20, 3
      %s305 = scalar_select %p304, %s20, 3
      %p306 = scmp.lt.s32.totalorder %s22, 0
      %s307 = scalar_select %p306, %s22, 0
      %s308 = sadd.s32 %s307, %s305
      %s309 = scalar_lea.vmem %s2, %s308
      %s310 = smul.u32 32, %s21
      %p311 = scmp.lt.s32.totalorder %s20, 3
      %s312 = scalar_select %p311, %s20, 3
      %p313 = scmp.lt.s32.totalorder %s310, 255
      %s314 = scalar_select %p313, %s310, 255
      %p315 = scmp.lt.s32.totalorder %s22, 0
      %s316 = scalar_select %p315, %s22, 0
      %s317 = sadd.s32 %s316, %s314
      %s318 = smul.addr %s312, 256
      %s319 = sadd.s32 %s317, %s318
      %s320 = smul.addr %s319, 8
      %s321 = scalar_lea.vmem %s3, %s320
      %s322 = smul.u32 32, %s21
      %p323 = scmp.eq.s32.totalorder %s23, 0
      // Predicated region
      $region33: #{forward.13} parent=31 // pred_check
        %p324 = pneg %p323
      $region34: #{forward.13} parent=31 // pred_check_branch
        %326 = sbr.rel (%p324) target = $region36
      $region35: #{forward.13} parent=31 // pred_region
        %327 = vst [vmem:[#allocation2] sm:$0xff] 0.0
        %328 = vst [vmem:[#allocation2 + $0x8] sm:$0xff] 0.0
        %329 = vst [vmem:[#allocation2 + $0x10] sm:$0xff] 0.0
        %330 = vst [vmem:[#allocation2 + $0x18] sm:$0xff] 0.0
        %331 = vst [vmem:[#allocation2 + $0x20] sm:$0xff] 0.0
        %332 = vst [vmem:[#allocation2 + $0x28] sm:$0xff] 0.0
        %333 = vst [vmem:[#allocation2 + $0x30] sm:$0xff] 0.0
        %334 = vst [vmem:[#allocation2 + $0x38] sm:$0xff] 0.0
        %335 = vst [vmem:[#allocation2 + $0x40] sm:$0xff] 0.0
        %336 = vst [vmem:[#allocation2 + $0x48] sm:$0xff] 0.0
        %337 = vst [vmem:[#allocation2 + $0x50] sm:$0xff] 0.0
        %338 = vst [vmem:[#allocation2 + $0x58] sm:$0xff] 0.0
        %339 = vst [vmem:[#allocation2 + $0x60] sm:$0xff] 0.0
        %340 = vst [vmem:[#allocation2 + $0x68] sm:$0xff] 0.0
        %341 = vst [vmem:[#allocation2 + $0x70] sm:$0xff] 0.0
        %342 = vst [vmem:[#allocation2 + $0x78] sm:$0xff] 0.0
        %343 = vst [vmem:[#allocation2 + $0x80] sm:$0xff] 0.0
        %344 = vst [vmem:[#allocation2 + $0x88] sm:$0xff] 0.0
        %345 = vst [vmem:[#allocation2 + $0x90] sm:$0xff] 0.0
        %346 = vst [vmem:[#allocation2 + $0x98] sm:$0xff] 0.0
        %347 = vst [vmem:[#allocation2 + $0xa0] sm:$0xff] 0.0
        %348 = vst [vmem:[#allocation2 + $0xa8] sm:$0xff] 0.0
        %349 = vst [vmem:[#allocation2 + $0xb0] sm:$0xff] 0.0
        %350 = vst [vmem:[#allocation2 + $0xb8] sm:$0xff] 0.0
        %351 = vst [vmem:[#allocation2 + $0xc0] sm:$0xff] 0.0
        %352 = vst [vmem:[#allocation2 + $0xc8] sm:$0xff] 0.0
        %353 = vst [vmem:[#allocation2 + $0xd0] sm:$0xff] 0.0
        %354 = vst [vmem:[#allocation2 + $0xd8] sm:$0xff] 0.0
        %355 = vst [vmem:[#allocation2 + $0xe0] sm:$0xff] 0.0
        %356 = vst [vmem:[#allocation2 + $0xe8] sm:$0xff] 0.0
        %357 = vst [vmem:[#allocation2 + $0xf0] sm:$0xff] 0.0
        %358 = vst [vmem:[#allocation2 + $0xf8] sm:$0xff] 0.0
      $region36: #{forward.13} parent=31 // pred_fallthru
        _
      %v359 = vld [vmem:[#allocation2] sm:$0xff]
      %v360 = vld [vmem:[#allocation2 + $0x8] sm:$0xff]
      %v361 = vld [vmem:[#allocation2 + $0x10] sm:$0xff]
      %v362 = vld [vmem:[#allocation2 + $0x18] sm:$0xff]
      %v363 = vld [vmem:[#allocation2 + $0x20] sm:$0xff]
      %v364 = vld [vmem:[#allocation2 + $0x28] sm:$0xff]
      %v365 = vld [vmem:[#allocation2 + $0x30] sm:$0xff]
      %v366 = vld [vmem:[#allocation2 + $0x38] sm:$0xff]
      %v367 = vld [vmem:[#allocation2 + $0x40] sm:$0xff]
      %v368 = vld [vmem:[#allocation2 + $0x48] sm:$0xff]
      %v369 = vld [vmem:[#allocation2 + $0x50] sm:$0xff]
      %v370 = vld [vmem:[#allocation2 + $0x58] sm:$0xff]
      %v371 = vld [vmem:[#allocation2 + $0x60] sm:$0xff]
      %v372 = vld [vmem:[#allocation2 + $0x68] sm:$0xff]
      %v373 = vld [vmem:[#allocation2 + $0x70] sm:$0xff]
      %v374 = vld [vmem:[#allocation2 + $0x78] sm:$0xff]
      %v375 = vld [vmem:[#allocation2 + $0x80] sm:$0xff]
      %v376 = vld [vmem:[#allocation2 + $0x88] sm:$0xff]
      %v377 = vld [vmem:[#allocation2 + $0x90] sm:$0xff]
      %v378 = vld [vmem:[#allocation2 + $0x98] sm:$0xff]
      %v379 = vld [vmem:[#allocation2 + $0xa0] sm:$0xff]
      %v380 = vld [vmem:[#allocation2 + $0xa8] sm:$0xff]
      %v381 = vld [vmem:[#allocation2 + $0xb0] sm:$0xff]
      %v382 = vld [vmem:[#allocation2 + $0xb8] sm:$0xff]
      %v383 = vld [vmem:[#allocation2 + $0xc0] sm:$0xff]
      %v384 = vld [vmem:[#allocation2 + $0xc8] sm:$0xff]
      %v385 = vld [vmem:[#allocation2 + $0xd0] sm:$0xff]
      %v386 = vld [vmem:[#allocation2 + $0xd8] sm:$0xff]
      %v387 = vld [vmem:[#allocation2 + $0xe0] sm:$0xff]
      %v388 = vld [vmem:[#allocation2 + $0xe8] sm:$0xff]
      %v389 = vld [vmem:[#allocation2 + $0xf0] sm:$0xff]
      %v390 = vld [vmem:[#allocation2 + $0xf8] sm:$0xff]
      %v391 = vld [vmem:[%s288] sm:$0xff]
      %v392 = vld [vmem:[%s288 + $0x8] sm:$0xff]
      %v393 = vld [vmem:[%s288 + $0x10] sm:$0xff]
      %v394 = vld [vmem:[%s288 + $0x18] sm:$0xff]
      %v395 = vld [vmem:[%s288 + $0x20] sm:$0xff]
      %v396 = vld [vmem:[%s288 + $0x28] sm:$0xff]
      %v397 = vld [vmem:[%s288 + $0x30] sm:$0xff]
      %v398 = vld [vmem:[%s288 + $0x38] sm:$0xff]
      %v399 = vld [vmem:[%s288 + $0x40] sm:$0xff]
      %v400 = vld [vmem:[%s288 + $0x48] sm:$0xff]
      %v401 = vld [vmem:[%s288 + $0x50] sm:$0xff]
      %v402 = vld [vmem:[%s288 + $0x58] sm:$0xff]
      %v403 = vld [vmem:[%s288 + $0x60] sm:$0xff]
      %v404 = vld [vmem:[%s288 + $0x68] sm:$0xff]
      %v405 = vld [vmem:[%s288 + $0x70] sm:$0xff]
      %v406 = vld [vmem:[%s288 + $0x78] sm:$0xff]
      %v407 = vld [vmem:[%s288 + $0x80] sm:$0xff]
      %v408 = vld [vmem:[%s288 + $0x88] sm:$0xff]
      %v409 = vld [vmem:[%s288 + $0x90] sm:$0xff]
      %v410 = vld [vmem:[%s288 + $0x98] sm:$0xff]
      %v411 = vld [vmem:[%s288 + $0xa0] sm:$0xff]
      %v412 = vld [vmem:[%s288 + $0xa8] sm:$0xff]
      %v413 = vld [vmem:[%s288 + $0xb0] sm:$0xff]
      %v414 = vld [vmem:[%s288 + $0xb8] sm:$0xff]
      %v415 = vld [vmem:[%s288 + $0xc0] sm:$0xff]
      %v416 = vld [vmem:[%s288 + $0xc8] sm:$0xff]
      %v417 = vld [vmem:[%s288 + $0xd0] sm:$0xff]
      %v418 = vld [vmem:[%s288 + $0xd8] sm:$0xff]
      %v419 = vld [vmem:[%s288 + $0xe0] sm:$0xff]
      %v420 = vld [vmem:[%s288 + $0xe8] sm:$0xff]
      %v421 = vld [vmem:[%s288 + $0xf0] sm:$0xff]
      %v422 = vld [vmem:[%s288 + $0xf8] sm:$0xff]
      %v423 = vld [vmem:[%s302] sm:$0xf]
      %v424 = vld [vmem:[%s302 + $0x4] sm:$0xf]
      %v425 = vld [vmem:[%s302 + $0x8] sm:$0xf]
      %v426 = vld [vmem:[%s302 + $0xc] sm:$0xf]
      %v427 = vld [vmem:[%s302 + $0x10] sm:$0xf]
      %v428 = vld [vmem:[%s302 + $0x14] sm:$0xf]
      %v429 = vld [vmem:[%s302 + $0x18] sm:$0xf]
      %v430 = vld [vmem:[%s302 + $0x1c] sm:$0xf]
      %v431 = vld [vmem:[%s302 + $0x20] sm:$0xf]
      %v432 = vld [vmem:[%s302 + $0x24] sm:$0xf]
      %v433 = vld [vmem:[%s302 + $0x28] sm:$0xf]
      %v434 = vld [vmem:[%s302 + $0x2c] sm:$0xf]
      %v435 = vld [vmem:[%s302 + $0x30] sm:$0xf]
      %v436 = vld [vmem:[%s302 + $0x34] sm:$0xf]
      %v437 = vld [vmem:[%s302 + $0x38] sm:$0xf]
      %v438 = vld [vmem:[%s302 + $0x3c] sm:$0xf]
      %v439 = vld [vmem:[%s302 + $0x40] sm:$0xf]
      %v440 = vld [vmem:[%s302 + $0x44] sm:$0xf]
      %v441 = vld [vmem:[%s302 + $0x48] sm:$0xf]
      %v442 = vld [vmem:[%s302 + $0x4c] sm:$0xf]
      %v443 = vld [vmem:[%s302 + $0x50] sm:$0xf]
      %v444 = vld [vmem:[%s302 + $0x54] sm:$0xf]
      %v445 = vld [vmem:[%s302 + $0x58] sm:$0xf]
      %v446 = vld [vmem:[%s302 + $0x5c] sm:$0xf]
      %v447 = vld [vmem:[%s302 + $0x60] sm:$0xf]
      %v448 = vld [vmem:[%s302 + $0x64] sm:$0xf]
      %v449 = vld [vmem:[%s302 + $0x68] sm:$0xf]
      %v450 = vld [vmem:[%s302 + $0x6c] sm:$0xf]
      %v451 = vld [vmem:[%s302 + $0x70] sm:$0xf]
      %v452 = vld [vmem:[%s302 + $0x74] sm:$0xf]
      %v453 = vld [vmem:[%s302 + $0x78] sm:$0xf]
      %v454 = vld [vmem:[%s302 + $0x7c] sm:$0xf]
      %v487 = vunpack.c.l.b16 %v391
      %v488 = vunpack.c.h.b16 %v391
      %v489 = vunpack.c.l.b16 %v392
      %v490 = vunpack.c.h.b16 %v392
      %v491 = vunpack.c.l.b16 %v393
      %v492 = vunpack.c.h.b16 %v393
      %v493 = vunpack.c.l.b16 %v394
      %v494 = vunpack.c.h.b16 %v394
      %v495 = vunpack.c.l.b16 %v395
      %v496 = vunpack.c.h.b16 %v395
      %v497 = vunpack.c.l.b16 %v396
      %v498 = vunpack.c.h.b16 %v396
      %v499 = vunpack.c.l.b16 %v397
      %v500 = vunpack.c.h.b16 %v397
      %v501 = vunpack.c.l.b16 %v398
      %v502 = vunpack.c.h.b16 %v398
      %v503 = vunpack.c.l.b16 %v399
      %v504 = vunpack.c.h.b16 %v399
      %v505 = vunpack.c.l.b16 %v400
      %v506 = vunpack.c.h.b16 %v400
      %v507 = vunpack.c.l.b16 %v401
      %v508 = vunpack.c.h.b16 %v401
      %v509 = vunpack.c.l.b16 %v402
      %v510 = vunpack.c.h.b16 %v402
      %v511 = vunpack.c.l.b16 %v403
      %v512 = vunpack.c.h.b16 %v403
      %v513 = vunpack.c.l.b16 %v404
      %v514 = vunpack.c.h.b16 %v404
      %v515 = vunpack.c.l.b16 %v405
      %v516 = vunpack.c.h.b16 %v405
      %v517 = vunpack.c.l.b16 %v406
      %v518 = vunpack.c.h.b16 %v406
      %v519 = vunpack.c.l.b16 %v407
      %v520 = vunpack.c.h.b16 %v407
      %v521 = vunpack.c.l.b16 %v408
      %v522 = vunpack.c.h.b16 %v408
      %v523 = vunpack.c.l.b16 %v409
      %v524 = vunpack.c.h.b16 %v409
      %v525 = vunpack.c.l.b16 %v410
      %v526 = vunpack.c.h.b16 %v410
      %v527 = vunpack.c.l.b16 %v411
      %v528 = vunpack.c.h.b16 %v411
      %v529 = vunpack.c.l.b16 %v412
      %v530 = vunpack.c.h.b16 %v412
      %v531 = vunpack.c.l.b16 %v413
      %v532 = vunpack.c.h.b16 %v413
      %v533 = vunpack.c.l.b16 %v414
      %v534 = vunpack.c.h.b16 %v414
      %v535 = vunpack.c.l.b16 %v415
      %v536 = vunpack.c.h.b16 %v415
      %v537 = vunpack.c.l.b16 %v416
      %v538 = vunpack.c.h.b16 %v416
      %v539 = vunpack.c.l.b16 %v417
      %v540 = vunpack.c.h.b16 %v417
      %v541 = vunpack.c.l.b16 %v418
      %v542 = vunpack.c.h.b16 %v418
      %v543 = vunpack.c.l.b16 %v419
      %v544 = vunpack.c.h.b16 %v419
      %v545 = vunpack.c.l.b16 %v420
      %v546 = vunpack.c.h.b16 %v420
      %v547 = vunpack.c.l.b16 %v421
      %v548 = vunpack.c.h.b16 %v421
      %v549 = vunpack.c.l.b16 %v422
      %v550 = vunpack.c.h.b16 %v422
      %v551 = vpack.c.b16 %v489, %v487
      %v552 = vpack.c.b16 %v490, %v488
      %v553 = vpack.c.b16 %v493, %v491
      %v554 = vpack.c.b16 %v494, %v492
      %v555 = vpack.c.b16 %v497, %v495
      %v556 = vpack.c.b16 %v498, %v496
      %v557 = vpack.c.b16 %v501, %v499
      %v558 = vpack.c.b16 %v502, %v500
      %v559 = vpack.c.b16 %v505, %v503
      %v560 = vpack.c.b16 %v506, %v504
      %v561 = vpack.c.b16 %v509, %v507
      %v562 = vpack.c.b16 %v510, %v508
      %v563 = vpack.c.b16 %v513, %v511
      %v564 = vpack.c.b16 %v514, %v512
      %v565 = vpack.c.b16 %v517, %v515
      %v566 = vpack.c.b16 %v518, %v516
      %v567 = vpack.c.b16 %v521, %v519
      %v568 = vpack.c.b16 %v522, %v520
      %v569 = vpack.c.b16 %v525, %v523
      %v570 = vpack.c.b16 %v526, %v524
      %v571 = vpack.c.b16 %v529, %v527
      %v572 = vpack.c.b16 %v530, %v528
      %v573 = vpack.c.b16 %v533, %v531
      %v574 = vpack.c.b16 %v534, %v532
      %v575 = vpack.c.b16 %v537, %v535
      %v576 = vpack.c.b16 %v538, %v536
      %v577 = vpack.c.b16 %v541, %v539
      %v578 = vpack.c.b16 %v542, %v540
      %v579 = vpack.c.b16 %v545, %v543
      %v580 = vpack.c.b16 %v546, %v544
      %v581 = vpack.c.b16 %v549, %v547
      %v582 = vpack.c.b16 %v550, %v548
      %v647 = vunpack.c.l.b16 %v423
      %v648 = vunpack.c.l.b16 %v424
      %v649 = vunpack.c.l.b16 %v425
      %v650 = vunpack.c.l.b16 %v426
      %v651 = vunpack.c.l.b16 %v427
      %v652 = vunpack.c.l.b16 %v428
      %v653 = vunpack.c.l.b16 %v429
      %v654 = vunpack.c.l.b16 %v430
      %v655 = vunpack.c.l.b16 %v431
      %v656 = vunpack.c.l.b16 %v432
      %v657 = vunpack.c.l.b16 %v433
      %v658 = vunpack.c.l.b16 %v434
      %v659 = vunpack.c.l.b16 %v435
      %v660 = vunpack.c.l.b16 %v436
      %v661 = vunpack.c.l.b16 %v437
      %v662 = vunpack.c.l.b16 %v438
      %v663 = vunpack.c.l.b16 %v439
      %v664 = vunpack.c.l.b16 %v440
      %v665 = vunpack.c.l.b16 %v441
      %v666 = vunpack.c.l.b16 %v442
      %v667 = vunpack.c.l.b16 %v443
      %v668 = vunpack.c.l.b16 %v444
      %v669 = vunpack.c.l.b16 %v445
      %v670 = vunpack.c.l.b16 %v446
      %v671 = vunpack.c.l.b16 %v447
      %v672 = vunpack.c.l.b16 %v448
      %v673 = vunpack.c.l.b16 %v449
      %v674 = vunpack.c.l.b16 %v450
      %v675 = vunpack.c.l.b16 %v451
      %v676 = vunpack.c.l.b16 %v452
      %v677 = vunpack.c.l.b16 %v453
      %v678 = vunpack.c.l.b16 %v454
      %v679 = vpack.c.b16 %v648, %v647
      %v680 = vpack.c.b16 %v650, %v649
      %v681 = vpack.c.b16 %v652, %v651
      %v682 = vpack.c.b16 %v654, %v653
      %v683 = vpack.c.b16 %v656, %v655
      %v684 = vpack.c.b16 %v658, %v657
      %v685 = vpack.c.b16 %v660, %v659
      %v686 = vpack.c.b16 %v662, %v661
      %v687 = vpack.c.b16 %v664, %v663
      %v688 = vpack.c.b16 %v666, %v665
      %v689 = vpack.c.b16 %v668, %v667
      %v690 = vpack.c.b16 %v670, %v669
      %v691 = vpack.c.b16 %v672, %v671
      %v692 = vpack.c.b16 %v674, %v673
      %v693 = vpack.c.b16 %v676, %v675
      %v694 = vpack.c.b16 %v678, %v677
      %711 = vmatpush.bf16.msra.mxu0 %v686
      %712 = vmatpush.bf16.msra.mxu0 %v685
      %713 = vmatpush.bf16.msra.mxu0 %v684
      %714 = vmatpush.bf16.msra.mxu0 %v683
      %715 = vmatpush.bf16.msra.mxu0 %v682
      %716 = vmatpush.bf16.msra.mxu0 %v681
      %717 = vmatpush.bf16.msra.mxu0 %v680
      %718 = vmatpush.bf16.msra.mxu0 %v679
      %719 = vmatmul.bf16.gmra.mxu0 %v551
      %v720 = vpop.f32.mrf.mxu0
      %v721 = vadd.f32 0.0, %v720
      %v722 = vpop.f32.mrf.mxu0
      %v723 = vadd.f32 0.0, %v722
      %724 = vmatmul.bf16.gmra.mxu0 %v553
      %v725 = vpop.f32.mrf.mxu0
      %v726 = vadd.f32 0.0, %v725
      %v727 = vpop.f32.mrf.mxu0
      %v728 = vadd.f32 0.0, %v727
      %729 = vmatmul.bf16.gmra.mxu0 %v555
      %v730 = vpop.f32.mrf.mxu0
      %v731 = vadd.f32 0.0, %v730
      %v732 = vpop.f32.mrf.mxu0
      %v733 = vadd.f32 0.0, %v732
      %734 = vmatmul.bf16.gmra.mxu0 %v557
      %v735 = vpop.f32.mrf.mxu0
      %v736 = vadd.f32 0.0, %v735
      %v737 = vpop.f32.mrf.mxu0
      %v738 = vadd.f32 0.0, %v737
      %739 = vmatmul.bf16.gmra.mxu0 %v559
      %v740 = vpop.f32.mrf.mxu0
      %v741 = vadd.f32 0.0, %v740
      %v742 = vpop.f32.mrf.mxu0
      %v743 = vadd.f32 0.0, %v742
      %744 = vmatmul.bf16.gmra.mxu0 %v561
      %v745 = vpop.f32.mrf.mxu0
      %v746 = vadd.f32 0.0, %v745
      %v747 = vpop.f32.mrf.mxu0
      %v748 = vadd.f32 0.0, %v747
      %749 = vmatmul.bf16.gmra.mxu0 %v563
      %v750 = vpop.f32.mrf.mxu0
      %v751 = vadd.f32 0.0, %v750
      %v752 = vpop.f32.mrf.mxu0
      %v753 = vadd.f32 0.0, %v752
      %754 = vmatmul.bf16.gmra.mxu0 %v565
      %v755 = vpop.f32.mrf.mxu0
      %v756 = vadd.f32 0.0, %v755
      %v757 = vpop.f32.mrf.mxu0
      %v758 = vadd.f32 0.0, %v757
      %759 = vmatmul.bf16.gmra.mxu0 %v567
      %v760 = vpop.f32.mrf.mxu0
      %v761 = vadd.f32 0.0, %v760
      %v762 = vpop.f32.mrf.mxu0
      %v763 = vadd.f32 0.0, %v762
      %764 = vmatmul.bf16.gmra.mxu0 %v569
      %v765 = vpop.f32.mrf.mxu0
      %v766 = vadd.f32 0.0, %v765
      %v767 = vpop.f32.mrf.mxu0
      %v768 = vadd.f32 0.0, %v767
      %769 = vmatmul.bf16.gmra.mxu0 %v571
      %v770 = vpop.f32.mrf.mxu0
      %v771 = vadd.f32 0.0, %v770
      %v772 = vpop.f32.mrf.mxu0
      %v773 = vadd.f32 0.0, %v772
      %774 = vmatmul.bf16.gmra.mxu0 %v573
      %v775 = vpop.f32.mrf.mxu0
      %v776 = vadd.f32 0.0, %v775
      %v777 = vpop.f32.mrf.mxu0
      %v778 = vadd.f32 0.0, %v777
      %779 = vmatmul.bf16.gmra.mxu0 %v575
      %v780 = vpop.f32.mrf.mxu0
      %v781 = vadd.f32 0.0, %v780
      %v782 = vpop.f32.mrf.mxu0
      %v783 = vadd.f32 0.0, %v782
      %784 = vmatmul.bf16.gmra.mxu0 %v577
      %v785 = vpop.f32.mrf.mxu0
      %v786 = vadd.f32 0.0, %v785
      %v787 = vpop.f32.mrf.mxu0
      %v788 = vadd.f32 0.0, %v787
      %789 = vmatmul.bf16.gmra.mxu0 %v579
      %v790 = vpop.f32.mrf.mxu0
      %v791 = vadd.f32 0.0, %v790
      %v792 = vpop.f32.mrf.mxu0
      %v793 = vadd.f32 0.0, %v792
      %794 = vmatmul.bf16.gmra.mxu0 %v581
      %v795 = vpop.f32.mrf.mxu0
      %v796 = vadd.f32 0.0, %v795
      %v797 = vpop.f32.mrf.mxu0
      %v798 = vadd.f32 0.0, %v797
      %799 = vdwg.mxu0
      %800 = vmatpush.bf16.msra.mxu0 %v694
      %801 = vmatpush.bf16.msra.mxu0 %v693
      %802 = vmatpush.bf16.msra.mxu0 %v692
      %803 = vmatpush.bf16.msra.mxu0 %v691
      %804 = vmatpush.bf16.msra.mxu0 %v690
      %805 = vmatpush.bf16.msra.mxu0 %v689
      %806 = vmatpush.bf16.msra.mxu0 %v688
      %807 = vmatpush.bf16.msra.mxu0 %v687
      %808 = vmatmul.bf16.gmra.mxu0 %v552
      %v809 = vpop.f32.mrf.mxu0
      %v810 = vadd.f32 %v721, %v809
      %v811 = vpop.f32.mrf.mxu0
      %v812 = vadd.f32 %v723, %v811
      %813 = vmatmul.bf16.gmra.mxu0 %v554
      %v814 = vpop.f32.mrf.mxu0
      %v815 = vadd.f32 %v726, %v814
      %v816 = vpop.f32.mrf.mxu0
      %v817 = vadd.f32 %v728, %v816
      %818 = vmatmul.bf16.gmra.mxu0 %v556
      %v819 = vpop.f32.mrf.mxu0
      %v820 = vadd.f32 %v731, %v819
      %v821 = vpop.f32.mrf.mxu0
      %v822 = vadd.f32 %v733, %v821
      %823 = vmatmul.bf16.gmra.mxu0 %v558
      %v824 = vpop.f32.mrf.mxu0
      %v825 = vadd.f32 %v736, %v824
      %v826 = vpop.f32.mrf.mxu0
      %v827 = vadd.f32 %v738, %v826
      %828 = vmatmul.bf16.gmra.mxu0 %v560
      %v829 = vpop.f32.mrf.mxu0
      %v830 = vadd.f32 %v741, %v829
      %v831 = vpop.f32.mrf.mxu0
      %v832 = vadd.f32 %v743, %v831
      %833 = vmatmul.bf16.gmra.mxu0 %v562
      %v834 = vpop.f32.mrf.mxu0
      %v835 = vadd.f32 %v746, %v834
      %v836 = vpop.f32.mrf.mxu0
      %v837 = vadd.f32 %v748, %v836
      %838 = vmatmul.bf16.gmra.mxu0 %v564
      %v839 = vpop.f32.mrf.mxu0
      %v840 = vadd.f32 %v751, %v839
      %v841 = vpop.f32.mrf.mxu0
      %v842 = vadd.f32 %v753, %v841
      %843 = vmatmul.bf16.gmra.mxu0 %v566
      %v844 = vpop.f32.mrf.mxu0
      %v845 = vadd.f32 %v756, %v844
      %v846 = vpop.f32.mrf.mxu0
      %v847 = vadd.f32 %v758, %v846
      %848 = vmatmul.bf16.gmra.mxu0 %v568
      %v849 = vpop.f32.mrf.mxu0
      %v850 = vadd.f32 %v761, %v849
      %v851 = vpop.f32.mrf.mxu0
      %v852 = vadd.f32 %v763, %v851
      %853 = vmatmul.bf16.gmra.mxu0 %v570
      %v854 = vpop.f32.mrf.mxu0
      %v855 = vadd.f32 %v766, %v854
      %v856 = vpop.f32.mrf.mxu0
      %v857 = vadd.f32 %v768, %v856
      %858 = vmatmul.bf16.gmra.mxu0 %v572
      %v859 = vpop.f32.mrf.mxu0
      %v860 = vadd.f32 %v771, %v859
      %v861 = vpop.f32.mrf.mxu0
      %v862 = vadd.f32 %v773, %v861
      %863 = vmatmul.bf16.gmra.mxu0 %v574
      %v864 = vpop.f32.mrf.mxu0
      %v865 = vadd.f32 %v776, %v864
      %v866 = vpop.f32.mrf.mxu0
      %v867 = vadd.f32 %v778, %v866
      %868 = vmatmul.bf16.gmra.mxu0 %v576
      %v869 = vpop.f32.mrf.mxu0
      %v870 = vadd.f32 %v781, %v869
      %v871 = vpop.f32.mrf.mxu0
      %v872 = vadd.f32 %v783, %v871
      %873 = vmatmul.bf16.gmra.mxu0 %v578
      %v874 = vpop.f32.mrf.mxu0
      %v875 = vadd.f32 %v786, %v874
      %v876 = vpop.f32.mrf.mxu0
      %v877 = vadd.f32 %v788, %v876
      %878 = vmatmul.bf16.gmra.mxu0 %v580
      %v879 = vpop.f32.mrf.mxu0
      %v880 = vadd.f32 %v791, %v879
      %v881 = vpop.f32.mrf.mxu0
      %v882 = vadd.f32 %v793, %v881
      %883 = vmatmul.bf16.gmra.mxu0 %v582
      %v884 = vpop.f32.mrf.mxu0
      %v885 = vadd.f32 %v796, %v884
      %v886 = vpop.f32.mrf.mxu0
      %v887 = vadd.f32 %v798, %v886
      %888 = vdwg.mxu0
      %v889 = vadd.f32 %v359, %v810
      %v890 = vadd.f32 %v360, %v812
      %v891 = vadd.f32 %v361, %v815
      %v892 = vadd.f32 %v362, %v817
      %v893 = vadd.f32 %v363, %v820
      %v894 = vadd.f32 %v364, %v822
      %v895 = vadd.f32 %v365, %v825
      %v896 = vadd.f32 %v366, %v827
      %v897 = vadd.f32 %v367, %v830
      %v898 = vadd.f32 %v368, %v832
      %v899 = vadd.f32 %v369, %v835
      %v900 = vadd.f32 %v370, %v837
      %v901 = vadd.f32 %v371, %v840
      %v902 = vadd.f32 %v372, %v842
      %v903 = vadd.f32 %v373, %v845
      %v904 = vadd.f32 %v374, %v847
      %v905 = vadd.f32 %v375, %v850
      %v906 = vadd.f32 %v376, %v852
      %v907 = vadd.f32 %v377, %v855
      %v908 = vadd.f32 %v378, %v857
      %v909 = vadd.f32 %v379, %v860
      %v910 = vadd.f32 %v380, %v862
      %v911 = vadd.f32 %v381, %v865
      %v912 = vadd.f32 %v382, %v867
      %v913 = vadd.f32 %v383, %v870
      %v914 = vadd.f32 %v384, %v872
      %v915 = vadd.f32 %v385, %v875
      %v916 = vadd.f32 %v386, %v877
      %v917 = vadd.f32 %v387, %v880
      %v918 = vadd.f32 %v388, %v882
      %v919 = vadd.f32 %v389, %v885
      %v920 = vadd.f32 %v390, %v887
      %921 = vst [vmem:[#allocation2] sm:$0xff] %v889
      %922 = vst [vmem:[#allocation2 + $0x8] sm:$0xff] %v890
      %923 = vst [vmem:[#allocation2 + $0x10] sm:$0xff] %v891
      %924 = vst [vmem:[#allocation2 + $0x18] sm:$0xff] %v892
      %925 = vst [vmem:[#allocation2 + $0x20] sm:$0xff] %v893
      %926 = vst [vmem:[#allocation2 + $0x28] sm:$0xff] %v894
      %927 = vst [vmem:[#allocation2 + $0x30] sm:$0xff] %v895
      %928 = vst [vmem:[#allocation2 + $0x38] sm:$0xff] %v896
      %929 = vst [vmem:[#allocation2 + $0x40] sm:$0xff] %v897
      %930 = vst [vmem:[#allocation2 + $0x48] sm:$0xff] %v898
      %931 = vst [vmem:[#allocation2 + $0x50] sm:$0xff] %v899
      %932 = vst [vmem:[#allocation2 + $0x58] sm:$0xff] %v900
      %933 = vst [vmem:[#allocation2 + $0x60] sm:$0xff] %v901
      %934 = vst [vmem:[#allocation2 + $0x68] sm:$0xff] %v902
      %935 = vst [vmem:[#allocation2 + $0x70] sm:$0xff] %v903
      %936 = vst [vmem:[#allocation2 + $0x78] sm:$0xff] %v904
      %937 = vst [vmem:[#allocation2 + $0x80] sm:$0xff] %v905
      %938 = vst [vmem:[#allocation2 + $0x88] sm:$0xff] %v906
      %939 = vst [vmem:[#allocation2 + $0x90] sm:$0xff] %v907
      %940 = vst [vmem:[#allocation2 + $0x98] sm:$0xff] %v908
      %941 = vst [vmem:[#allocation2 + $0xa0] sm:$0xff] %v909
      %942 = vst [vmem:[#allocation2 + $0xa8] sm:$0xff] %v910
      %943 = vst [vmem:[#allocation2 + $0xb0] sm:$0xff] %v911
      %944 = vst [vmem:[#allocation2 + $0xb8] sm:$0xff] %v912
      %945 = vst [vmem:[#allocation2 + $0xc0] sm:$0xff] %v913
      %946 = vst [vmem:[#allocation2 + $0xc8] sm:$0xff] %v914
      %947 = vst [vmem:[#allocation2 + $0xd0] sm:$0xff] %v915
      %948 = vst [vmem:[#allocation2 + $0xd8] sm:$0xff] %v916
      %949 = vst [vmem:[#allocation2 + $0xe0] sm:$0xff] %v917
      %950 = vst [vmem:[#allocation2 + $0xe8] sm:$0xff] %v918
      %951 = vst [vmem:[#allocation2 + $0xf0] sm:$0xff] %v919
      %952 = vst [vmem:[#allocation2 + $0xf8] sm:$0xff] %v920
      // Predicated region
      $region37: #{forward.13} parent=31 // pred_check
        %p953 = pneg %p323
      $region38: #{forward.13} parent=31 // pred_check_branch
        %955 = sbr.rel (%p953) target = $region40
      $region39: #{forward.13} parent=31 // pred_region
        %v956 = vld [vmem:[#allocation2] sm:$0xff]
        %v957 = vld [vmem:[#allocation2 + $0x8] sm:$0xff]
        %v958 = vld [vmem:[#allocation2 + $0x10] sm:$0xff]
        %v959 = vld [vmem:[#allocation2 + $0x18] sm:$0xff]
        %v960 = vld [vmem:[#allocation2 + $0x20] sm:$0xff]
        %v961 = vld [vmem:[#allocation2 + $0x28] sm:$0xff]
        %v962 = vld [vmem:[#allocation2 + $0x30] sm:$0xff]
        %v963 = vld [vmem:[#allocation2 + $0x38] sm:$0xff]
        %v964 = vld [vmem:[#allocation2 + $0x40] sm:$0xff]
        %v965 = vld [vmem:[#allocation2 + $0x48] sm:$0xff]
        %v966 = vld [vmem:[#allocation2 + $0x50] sm:$0xff]
        %v967 = vld [vmem:[#allocation2 + $0x58] sm:$0xff]
        %v968 = vld [vmem:[#allocation2 + $0x60] sm:$0xff]
        %v969 = vld [vmem:[#allocation2 + $0x68] sm:$0xff]
        %v970 = vld [vmem:[#allocation2 + $0x70] sm:$0xff]
        %v971 = vld [vmem:[#allocation2 + $0x78] sm:$0xff]
        %v972 = vld [vmem:[#allocation2 + $0x80] sm:$0xff]
        %v973 = vld [vmem:[#allocation2 + $0x88] sm:$0xff]
        %v974 = vld [vmem:[#allocation2 + $0x90] sm:$0xff]
        %v975 = vld [vmem:[#allocation2 + $0x98] sm:$0xff]
        %v976 = vld [vmem:[#allocation2 + $0xa0] sm:$0xff]
        %v977 = vld [vmem:[#allocation2 + $0xa8] sm:$0xff]
        %v978 = vld [vmem:[#allocation2 + $0xb0] sm:$0xff]
        %v979 = vld [vmem:[#allocation2 + $0xb8] sm:$0xff]
        %v980 = vld [vmem:[#allocation2 + $0xc0] sm:$0xff]
        %v981 = vld [vmem:[#allocation2 + $0xc8] sm:$0xff]
        %v982 = vld [vmem:[#allocation2 + $0xd0] sm:$0xff]
        %v983 = vld [vmem:[#allocation2 + $0xd8] sm:$0xff]
        %v984 = vld [vmem:[#allocation2 + $0xe0] sm:$0xff]
        %v985 = vld [vmem:[#allocation2 + $0xe8] sm:$0xff]
        %v986 = vld [vmem:[#allocation2 + $0xf0] sm:$0xff]
        %v987 = vld [vmem:[#allocation2 + $0xf8] sm:$0xff]
        %v988 = vld [vmem:[%s309] sm:$0x1]
        %v990 = vperm.slane %v988, 0
        %v992 = vadd.f32 %v956, %v990
        %v993 = vadd.f32 %v957, %v990
        %v994 = vadd.f32 %v958, %v990
        %v995 = vadd.f32 %v959, %v990
        %v996 = vadd.f32 %v960, %v990
        %v997 = vadd.f32 %v961, %v990
        %v998 = vadd.f32 %v962, %v990
        %v999 = vadd.f32 %v963, %v990
        %v1000 = vadd.f32 %v964, %v990
        %v1001 = vadd.f32 %v965, %v990
        %v1002 = vadd.f32 %v966, %v990
        %v1003 = vadd.f32 %v967, %v990
        %v1004 = vadd.f32 %v968, %v990
        %v1005 = vadd.f32 %v969, %v990
        %v1006 = vadd.f32 %v970, %v990
        %v1007 = vadd.f32 %v971, %v990
        %v1008 = vadd.f32 %v972, %v990
        %v1009 = vadd.f32 %v973, %v990
        %v1010 = vadd.f32 %v974, %v990
        %v1011 = vadd.f32 %v975, %v990
        %v1012 = vadd.f32 %v976, %v990
        %v1013 = vadd.f32 %v977, %v990
        %v1014 = vadd.f32 %v978, %v990
        %v1015 = vadd.f32 %v979, %v990
        %v1016 = vadd.f32 %v980, %v990
        %v1017 = vadd.f32 %v981, %v990
        %v1018 = vadd.f32 %v982, %v990
        %v1019 = vadd.f32 %v983, %v990
        %v1020 = vadd.f32 %v984, %v990
        %v1021 = vadd.f32 %v985, %v990
        %v1022 = vadd.f32 %v986, %v990
        %v1023 = vadd.f32 %v987, %v990
        %v1024 = vtanh.pop %v992
        %v1025 = vtanh.pop %v993
        %v1026 = vtanh.pop %v994
        %v1027 = vtanh.pop %v995
        %v1028 = vtanh.pop %v996
        %v1029 = vtanh.pop %v997
        %v1030 = vtanh.pop %v998
        %v1031 = vtanh.pop %v999
        %v1032 = vtanh.pop %v1000
        %v1033 = vtanh.pop %v1001
        %v1034 = vtanh.pop %v1002
        %v1035 = vtanh.pop %v1003
        %v1036 = vtanh.pop %v1004
        %v1037 = vtanh.pop %v1005
        %v1038 = vtanh.pop %v1006
        %v1039 = vtanh.pop %v1007
        %v1040 = vtanh.pop %v1008
        %v1041 = vtanh.pop %v1009
        %v1042 = vtanh.pop %v1010
        %v1043 = vtanh.pop %v1011
        %v1044 = vtanh.pop %v1012
        %v1045 = vtanh.pop %v1013
        %v1046 = vtanh.pop %v1014
        %v1047 = vtanh.pop %v1015
        %v1048 = vtanh.pop %v1016
        %v1049 = vtanh.pop %v1017
        %v1050 = vtanh.pop %v1018
        %v1051 = vtanh.pop %v1019
        %v1052 = vtanh.pop %v1020
        %v1053 = vtanh.pop %v1021
        %v1054 = vtanh.pop %v1022
        %v1055 = vtanh.pop %v1023
        %1056 = vst [vmem:[%s321] sm:$0xff] %v1024
        %1057 = vst [vmem:[%s321 + $0x8] sm:$0xff] %v1025
        %1058 = vst [vmem:[%s321 + $0x10] sm:$0xff] %v1026
        %1059 = vst [vmem:[%s321 + $0x18] sm:$0xff] %v1027
        %1060 = vst [vmem:[%s321 + $0x20] sm:$0xff] %v1028
        %1061 = vst [vmem:[%s321 + $0x28] sm:$0xff] %v1029
        %1062 = vst [vmem:[%s321 + $0x30] sm:$0xff] %v1030
        %1063 = vst [vmem:[%s321 + $0x38] sm:$0xff] %v1031
        %1064 = vst [vmem:[%s321 + $0x40] sm:$0xff] %v1032
        %1065 = vst [vmem:[%s321 + $0x48] sm:$0xff] %v1033
        %1066 = vst [vmem:[%s321 + $0x50] sm:$0xff] %v1034
        %1067 = vst [vmem:[%s321 + $0x58] sm:$0xff] %v1035
        %1068 = vst [vmem:[%s321 + $0x60] sm:$0xff] %v1036
        %1069 = vst [vmem:[%s321 + $0x68] sm:$0xff] %v1037
        %1070 = vst [vmem:[%s321 + $0x70] sm:$0xff] %v1038
        %1071 = vst [vmem:[%s321 + $0x78] sm:$0xff] %v1039
        %1072 = vst [vmem:[%s321 + $0x80] sm:$0xff] %v1040
        %1073 = vst [vmem:[%s321 + $0x88] sm:$0xff] %v1041
        %1074 = vst [vmem:[%s321 + $0x90] sm:$0xff] %v1042
        %1075 = vst [vmem:[%s321 + $0x98] sm:$0xff] %v1043
        %1076 = vst [vmem:[%s321 + $0xa0] sm:$0xff] %v1044
        %1077 = vst [vmem:[%s321 + $0xa8] sm:$0xff] %v1045
        %1078 = vst [vmem:[%s321 + $0xb0] sm:$0xff] %v1046
        %1079 = vst [vmem:[%s321 + $0xb8] sm:$0xff] %v1047
        %1080 = vst [vmem:[%s321 + $0xc0] sm:$0xff] %v1048
        %1081 = vst [vmem:[%s321 + $0xc8] sm:$0xff] %v1049
        %1082 = vst [vmem:[%s321 + $0xd0] sm:$0xff] %v1050
        %1083 = vst [vmem:[%s321 + $0xd8] sm:$0xff] %v1051
        %1084 = vst [vmem:[%s321 + $0xe0] sm:$0xff] %v1052
        %1085 = vst [vmem:[%s321 + $0xe8] sm:$0xff] %v1053
        %1086 = vst [vmem:[%s321 + $0xf0] sm:$0xff] %v1054
        %1087 = vst [vmem:[%s321 + $0xf8] sm:$0xff] %v1055
      $region40: #{forward.13} parent=31 // pred_fallthru
        _
      %s1088 = smul.u32 32, %s21
      %p1089 = scmp.lt.s32.totalorder %s20, 3
      %s1090 = scalar_select %p1089, %s20, 3
      %p1091 = scmp.lt.s32.totalorder %s1088, 255
      %s1092 = scalar_select %p1091, %s1088, 255
      %p1093 = scmp.lt.s32.totalorder %s22, 0
      %s1094 = scalar_select %p1093, %s22, 0
      %s1095 = sadd.s32 %s1094, %s1092
      %s1096 = smul.addr %s1090, 256
      %s1097 = sadd.s32 %s1095, %s1096
      %s1098 = smul.addr %s1097, 8
      %s1099 = scalar_lea.vmem %s3, %s1098
      // Predicated region
      $region41: #{forward.13} parent=31 // pred_check
        %p1100 = pneg %p150
      $region42: #{forward.13} parent=31 // pred_check_branch
        %1102 = sbr.rel (%p1100) target = $region44
      $region43: #{forward.13} parent=31 // pred_region
        %s1103 = smul.u32 32, %s21
      $region44: #{forward.13} parent=31 // pred_fallthru
        _
    $region32: #{forward.13} parent=5 // pred_fallthru
      _
    %p1104 = scmp.le.s32.totalorder 2, %s9
    // Predicated region
    $region45: #{forward.13} parent=5 // pred_check
      %p1105 = pneg %p1104
    $region46: #{forward.13} parent=5 // pred_check_branch
      %1107 = sbr.rel (%p1105) target = $region48
    $region47: #{forward.13} parent=5 // pred_region
      %s1108 = ssub.s32 %s9, 2
      // Predicated region
      $region49: #{forward.13} parent=47 // pred_check
        %p1109 = pneg %p156
      $region50: #{forward.13} parent=47 // pred_check_branch
        %1111 = sbr.rel (%p1109) target = $region52
      $region51: #{forward.13} parent=47 // pred_region
        %s1112 = smul.u32 32, %s25
        %p1113 = scmp.lt.s32.totalorder %s24, 3
        %s1114 = scalar_select %p1113, %s24, 3
        %p1115 = scmp.lt.s32.totalorder %s1112, 255
        %s1116 = scalar_select %p1115, %s1112, 255
        %p1117 = scmp.lt.s32.totalorder %s26, 0
        %s1118 = scalar_select %p1117, %s26, 0
        %s1119 = sadd.s32 %s1118, %s1116
        %s1120 = smul.addr %s1114, 256
        %s1121 = sadd.s32 %s1119, %s1120
        %s1122 = smul.addr %s1121, 8
        %s1123 = scalar_lea.vmem %s3, %s1122
      $region52: #{forward.13} parent=47 // pred_fallthru
        _
    $region48: #{forward.13} parent=5 // pred_fallthru
      _
  $region6: #{forward.13} parent=0 // loop_footer
    %s13 = sadd.s32 1, %s9
  $region7: #{forward.13} parent=0 // loop_footer_branch
    %8 = sbr.rel target = $region3
  $region8: #{forward.13} parent=0 // loop_exit
    _

// kernel: forward.14
$region0: #{forward.14}
  #allocation0 [shape = 'u32[]', space=smem, size = 0x4, offset = 0x4, fixed_abs, tag = 'smem constant byte address 0x4 - core index']
  #allocation1 [shape = 'u32[72,128]{1,0:T(1,128)}', space=vmem, size = 0x9000, scoped, tag = 'internal scratch']
  #allocation2 [shape = 'f32[256,128]{1,0:T(8,128)}', space=vmem, size = 0x20000, scoped, tag = 'scratch operand']
  %s0 = inlined_call_operand.vmem [shape: bf16[4,1024,128], index: 0, kind: input, shape index: {}]
  %s1 = inlined_call_operand.vmem [shape: bf16[4,128,128], index: 1, kind: input, shape index: {}]
  %s2 = inlined_call_operand.vmem [shape: f32[4,1,128], index: 2, kind: input, shape index: {}]
  %s3 = inlined_call_operand.vmem [shape: f32[4,1024,128], index: 3, kind: output, shape index: {}]
  %s4 = sld [smem:[#allocation0]]
  $region53: #{forward.14} parent=0
    _
  %s6 = ssub.s32 1, %s4
  %s7 = scalar_select 0, %s6, %s4
  loop: start=0, step=1, limit=18
  $region2: #{forward.14} parent=0 // loop_pre_header
    _
  $region3: #{forward.14} parent=0 // loop_header
    %s9 = sphi 0, %s13
    %p10 = scmp.ge.s32.totalorder %s9, 18
    %s16 = sphi 0, %s42
    %s17 = sphi 0, %s38
    %s18 = sphi 0, %s34
    %s19 = sphi 0, %s30
    %s20 = sphi 0, %s16
    %s21 = sphi 0, %s17
    %s22 = sphi 0, %s18
    %s23 = sphi 0, %s19
    %s24 = sphi 0, %s20
    %s25 = sphi 0, %s21
    %s26 = sphi 0, %s22
    %s27 = sphi 0, %s23
    %s49 = sphi 0, %s51
    %s52 = sphi 0, %s49
    %s53 = sphi 0, %s52
    %s69 = sphi 0, %s53
    %s79 = sphi 0, %s81
    %s82 = sphi 0, %s79
    %s83 = sphi 0, %s82
    %s99 = sphi 0, %s83
    %s107 = sphi 0, %s109
    %s110 = sphi 0, %s107
    %s111 = sphi 0, %s110
    %s127 = sphi 0, %s111
    %s137 = sphi 0, %s139
    %s140 = sphi 0, %s137
    %s141 = sphi 0, %s140
    %s157 = sphi 0, %s141
  $region4: #{forward.14} parent=0 // loop_header_branch
    %12 = sbr.rel (%p10) target = $region8
  $region5: #{forward.14} parent=0 // loop_body
    %s14 = ssub.s32 %s9, 1
    %s15 = ssub.s32 %s9, 2
    %s28 = sadd.s32 1, %s19
    %p29 = scmp.ge.s32.totalorder %s28, 1
    %s30 = scalar_select %p29, 0, %s28
    %s31 = sadd.s32 1, %s18
    %s32 = scalar_select %p29, %s31, %s18
    %p33 = scmp.ge.s32.totalorder %s32, 1
    %s34 = scalar_select %p33, 0, %s32
    %s35 = sadd.s32 1, %s17
    %s36 = scalar_select %p33, %s35, %s17
    %p37 = scmp.ge.s32.totalorder %s36, 4
    %s38 = scalar_select %p37, 0, %s36
    %s39 = sadd.s32 1, %s16
    %s40 = scalar_select %p37, %s39, %s16
    %p41 = scmp.ge.s32.totalorder %s40, 4
    %s42 = scalar_select %p41, 0, %s40
    %s43 = ssub.s32 %s16, %s42
    %s44 = ssub.s32 %s17, %s38
    %s45 = sor.u32 %s43, %s44
    %s46 = ssub.s32 %s19, %s30
    %s47 = sor.u32 %s45, %s46
    %p48 = scmp.eq.s32.totalorder %s47, 0
    %s50 = sadd.s32 %s49, 1
    %s51 = scalar_select %p48, %s49, %s50
    %p54 = pneg %p48
    %p55 = scmp.eq.s32.totalorder %s9, 15
    %p56 = por %p54, %p55
    %p57 = scmp.ne.s32.totalorder %s49, %s52
    %p58 = scmp.eq.s32.totalorder %s9, 0
    %p59 = por %p57, %p58
    %p60 = scmp.ne.s32.totalorder %s49, %s52
    %p61 = scmp.eq.s32.totalorder %s14, 15
    %p62 = por %p60, %p61
    %p63 = scmp.ne.s32.totalorder %s52, %s53
    %p64 = scmp.eq.s32.totalorder %s14, 0
    %p65 = por %p63, %p64
    %p66 = scmp.ne.s32.totalorder %s52, %s53
    %p67 = scmp.eq.s32.totalorder %s15, 15
    %p68 = por %p66, %p67
    %p70 = scmp.ne.s32.totalorder %s53, %s69
    %p71 = scmp.eq.s32.totalorder %s15, 0
    %p72 = por %p70, %p71
    %s73 = ssub.s32 %s16, %s42
    %s74 = ssub.s32 %s19, %s30
    %s75 = sor.u32 %s73, %s74
    %s76 = ssub.s32 %s18, %s34
    %s77 = sor.u32 %s75, %s76
    %p78 = scmp.eq.s32.totalorder %s77, 0
    %s80 = sadd.s32 %s79, 1
    %s81 = scalar_select %p78, %s79, %s80
    %p84 = pneg %p78
    %p85 = scmp.eq.s32.totalorder %s9, 15
    %p86 = por %p84, %p85
    %p87 = scmp.ne.s32.totalorder %s79, %s82
    %p88 = scmp.eq.s32.totalorder %s9, 0
    %p89 = por %p87, %p88
    %p90 = scmp.ne.s32.totalorder %s79, %s82
    %p91 = scmp.eq.s32.totalorder %s14, 15
    %p92 = por %p90, %p91
    %p93 = scmp.ne.s32.totalorder %s82, %s83
    %p94 = scmp.eq.s32.totalorder %s14, 0
    %p95 = por %p93, %p94
    %p96 = scmp.ne.s32.totalorder %s82, %s83
    %p97 = scmp.eq.s32.totalorder %s15, 15
    %p98 = por %p96, %p97
    %p100 = scmp.ne.s32.totalorder %s83, %s99
    %p101 = scmp.eq.s32.totalorder %s15, 0
    %p102 = por %p100, %p101
    %s103 = ssub.s32 %s16, %s42
    %s104 = ssub.s32 %s18, %s34
    %s105 = sor.u32 %s103, %s104
    %p106 = scmp.eq.s32.totalorder %s105, 0
    %s108 = sadd.s32 %s107, 1
    %s109 = scalar_select %p106, %s107, %s108
    %p112 = pneg %p106
    %p113 = scmp.eq.s32.totalorder %s9, 15
    %p114 = por %p112, %p113
    %p115 = scmp.ne.s32.totalorder %s107, %s110
    %p116 = scmp.eq.s32.totalorder %s9, 0
    %p117 = por %p115, %p116
    %p118 = scmp.ne.s32.totalorder %s107, %s110
    %p119 = scmp.eq.s32.totalorder %s14, 15
    %p120 = por %p118, %p119
    %p121 = scmp.ne.s32.totalorder %s110, %s111
    %p122 = scmp.eq.s32.totalorder %s14, 0
    %p123 = por %p121, %p122
    %p124 = scmp.ne.s32.totalorder %s110, %s111
    %p125 = scmp.eq.s32.totalorder %s15, 15
    %p126 = por %p124, %p125
    %p128 = scmp.ne.s32.totalorder %s111, %s127
    %p129 = scmp.eq.s32.totalorder %s15, 0
    %p130 = por %p128, %p129
    %s131 = ssub.s32 %s16, %s42
    %s132 = ssub.s32 %s17, %s38
    %s133 = sor.u32 %s131, %s132
    %s134 = ssub.s32 %s18, %s34
    %s135 = sor.u32 %s133, %s134
    %p136 = scmp.eq.s32.totalorder %s135, 0
    %s138 = sadd.s32 %s137, 1
    %s139 = scalar_select %p136, %s137, %s138
    %p142 = pneg %p136
    %p143 = scmp.eq.s32.totalorder %s9, 15
    %p144 = por %p142, %p143
    %p145 = scmp.ne.s32.totalorder %s137, %s140
    %p146 = scmp.eq.s32.totalorder %s9, 0
    %p147 = por %p145, %p146
    %p148 = scmp.ne.s32.totalorder %s137, %s140
    %p149 = scmp.eq.s32.totalorder %s14, 15
    %p150 = por %p148, %p149
    %p151 = scmp.ne.s32.totalorder %s140, %s141
    %p152 = scmp.eq.s32.totalorder %s14, 0
    %p153 = por %p151, %p152
    %p154 = scmp.ne.s32.totalorder %s140, %s141
    %p155 = scmp.eq.s32.totalorder %s15, 15
    %p156 = por %p154, %p155
    %p158 = scmp.ne.s32.totalorder %s141, %s157
    %p159 = scmp.eq.s32.totalorder %s15, 0
    %p160 = por %p158, %p159
    %p161 = scmp.le.s32.totalorder 1, %s9
    %p162 = scmp.lt.s32.totalorder %s9, 17
    %p163 = pnand %p161, %p162
    %p164 = pneg %p163
    // Predicated region
    $region9: #{forward.14} parent=5 // pred_check
      _
    $region10: #{forward.14} parent=5 // pred_check_branch
      %166 = sbr.rel (%p163) target = $region12
    $region11: #{forward.14} parent=5 // pred_region
      %s167 = ssub.s32 %s9, 1
    $region12: #{forward.14} parent=5 // pred_fallthru
      _
    %p168 = scmp.lt.s32.totalorder %s9, 16
    // Predicated region
    $region13: #{forward.14} parent=5 // pred_check
      %p169 = pneg %p168
    $region14: #{forward.14} parent=5 // pred_check_branch
      %171 = sbr.rel (%p169) target = $region16
    $region15: #{forward.14} parent=5 // pred_region
      // Predicated region
      $region17: #{forward.14} parent=15 // pred_check
        %p172 = pneg %p59
      $region18: #{forward.14} parent=15 // pred_check_branch
        %174 = sbr.rel (%p172) target = $region20
      $region19: #{forward.14} parent=15 // pred_region
        %s175 = smul.u32 32, %s17
        %p176 = scmp.lt.s32.totalorder %s16, 3
        %s177 = scalar_select %p176, %s16, 3
        %p178 = scmp.lt.s32.totalorder %s175, 127
        %s179 = scalar_select %p178, %s175, 127
        %p180 = scmp.lt.s32.totalorder %s19, 0
        %s181 = scalar_select %p180, %s19, 0
        %s182 = sadd.s32 %s181, %s179
        %s183 = smul.addr %s177, 128
        %s184 = sadd.s32 %s182, %s183
        %s185 = smul.addr %s184, 4
        %s186 = scalar_lea.vmem %s0, %s185
        %s187 = smul.u32 32, %s17
      $region20: #{forward.14} parent=15 // pred_fallthru
        _
      // Predicated region
      $region21: #{forward.14} parent=15 // pred_check
        %p188 = pneg %p89
      $region22: #{forward.14} parent=15 // pred_check_branch
        %190 = sbr.rel (%p188) target = $region24
      $region23: #{forward.14} parent=15 // pred_region
        %s191 = smul.u32 16, %s19
        %p192 = scmp.lt.s32.totalorder %s16, 3
        %s193 = scalar_select %p192, %s16, 3
        %p194 = scmp.lt.s32.totalorder %s191, 15
        %s195 = scalar_select %p194, %s191, 15
        %p196 = scmp.lt.s32.totalorder %s18, 0
        %s197 = scalar_select %p196, %s18, 0
        %s198 = sadd.s32 %s197, %s195
        %s199 = smul.addr %s193, 16
        %s200 = sadd.s32 %s198, %s199
        %s201 = smul.addr %s200, 4
        %s202 = scalar_lea.vmem %s1, %s201
        %s203 = smul.u32 16, %s19
      $region24: #{forward.14} parent=15 // pred_fallthru
        _
      // Predicated region
      $region25: #{forward.14} parent=15 // pred_check
        %p204 = pneg %p117
      $region26: #{forward.14} parent=15 // pred_check_branch
        %206 = sbr.rel (%p204) target = $region28
      $region27: #{forward.14} parent=15 // pred_region
        %p207 = scmp.lt.s32.totalorder %s16, 3
        %s208 = scalar_select %p207, %s16, 3
        %p209 = scmp.lt.s32.totalorder %s18, 0
        %s210 = scalar_select %p209, %s18, 0
        %s211 = sadd.s32 %s210, %s208
        %s212 = scalar_lea.vmem %s2, %s211
      $region28: #{forward.14} parent=15 // pred_fallthru
        _
    $region16: #{forward.14} parent=5 // pred_fallthru
      _
    %p213 = scmp.le.s32.totalorder 1, %s9
    %p214 = scmp.lt.s32.totalorder %s9, 17
    %p215 = pnand %p213, %p214
    %p216 = pneg %p215
    // Predicated region
    $region29: #{forward.14} parent=5 // pred_check
      _
    $region30: #{forward.14} parent=5 // pred_check_branch
      %218 = sbr.rel (%p215) target = $region32
    $region31: #{forward.14} parent=5 // pred_region
      %s219 = ssub.s32 %s9, 1
      %s220 = smul.u32 32, %s21
      %p221 = scmp.lt.s32.totalorder %s20, 3
      %s222 = scalar_select %p221, %s20, 3
      %p223 = scmp.lt.s32.totalorder %s220, 127
      %s224 = scalar_select %p223, %s220, 127
      %p225 = scmp.lt.s32.totalorder %s23, 0
      %s226 = scalar_select %p225, %s23, 0
      %s227 = sadd.s32 %s226, %s224
      %s228 = smul.addr %s222, 128
      %s229 = sadd.s32 %s227, %s228
      %s230 = smul.addr %s229, 4
      %s231 = scalar_lea.vmem %s0, %s230
      %p232 = pneg %p65
      %p233 = pneg %p62
      %s234 = smul.u32 16, %s23
      %p235 = scmp.lt.s32.totalorder %s20, 3
      %s236 = scalar_select %p235, %s20, 3
      %p237 = scmp.lt.s32.totalorder %s234, 15
      %s238 = scalar_select %p237, %s234, 15
      %p239 = scmp.lt.s32.totalorder %s22, 0
      %s240 = scalar_select %p239, %s22, 0
      %s241 = sadd.s32 %s240, %s238
      %s242 = smul.addr %s236, 16
      %s243 = sadd.s32 %s241, %s242
      %s244 = smul.addr %s243, 4
      %s245 = scalar_lea.vmem %s1, %s244
      %p246 = pneg %p95
      %p247 = pneg %p92
      %p248 = scmp.lt.s32.totalorder %s20, 3
      %s249 = scalar_select %p248, %s20, 3
      %p250 = scmp.lt.s32.totalorder %s22, 0
      %s251 = scalar_select %p250, %s22, 0
      %s252 = sadd.s32 %s251, %s249
      %s253 = scalar_lea.vmem %s2, %s252
      %p254 = pneg %p123
      %p255 = pneg %p120
      %p256 = pneg %p153
      %p257 = pneg %p150
      %s258 = smul.u32 32, %s21
      %p259 = scmp.lt.s32.totalorder %s20, 3
      %s260 = scalar_select %p259, %s20, 3
      %p261 = scmp.lt.s32.totalorder %s258, 127
      %s262 = scalar_select %p261, %s258, 127
      %p263 = scmp.lt.s32.totalorder %s22, 0
      %s264 = scalar_select %p263, %s22, 0
      %s265 = sadd.s32 %s264, %s262
      %s266 = smul.addr %s260, 128
      %s267 = sadd.s32 %s265, %s266
      %s268 = smul.addr %s267, 8
      %s269 = scalar_lea.vmem %s3, %s268
      %s270 = smul.u32 32, %s21
      %p271 = scmp.lt.s32.totalorder %s20, 3
      %s272 = scalar_select %p271, %s20, 3
      %p273 = scmp.lt.s32.totalorder %s270, 127
      %s274 = scalar_select %p273, %s270, 127
      %p275 = scmp.lt.s32.totalorder %s23, 0
      %s276 = scalar_select %p275, %s23, 0
      %s277 = sadd.s32 %s276, %s274
      %s278 = smul.addr %s272, 128
      %s279 = sadd.s32 %s277, %s278
      %s280 = smul.addr %s279, 4
      %s281 = scalar_lea.vmem %s0, %s280
      %s282 = smul.u32 32, %s21
      %s283 = smul.u32 16, %s23
      %p284 = scmp.lt.s32.totalorder %s20, 3
      %s285 = scalar_select %p284, %s20, 3
      %p286 = scmp.lt.s32.totalorder %s283, 15
      %s287 = scalar_select %p286, %s283, 15
      %p288 = scmp.lt.s32.totalorder %s22, 0
      %s289 = scalar_select %p288, %s22, 0
      %s290 = sadd.s32 %s289, %s287
      %s291 = smul.addr %s285, 16
      %s292 = sadd.s32 %s290, %s291
      %s293 = smul.addr %s292, 4
      %s294 = scalar_lea.vmem %s1, %s293
      %s295 = smul.u32 16, %s23
      %p296 = scmp.lt.s32.totalorder %s20, 3
      %s297 = scalar_select %p296, %s20, 3
      %p298 = scmp.lt.s32.totalorder %s22, 0
      %s299 = scalar_select %p298, %s22, 0
      %s300 = sadd.s32 %s299, %s297
      %s301 = scalar_lea.vmem %s2, %s300
      %s302 = smul.u32 32, %s21
      %p303 = scmp.lt.s32.totalorder %s20, 3
      %s304 = scalar_select %p303, %s20, 3
      %p305 = scmp.lt.s32.totalorder %s302, 127
      %s306 = scalar_select %p305, %s302, 127
      %p307 = scmp.lt.s32.totalorder %s22, 0
      %s308 = scalar_select %p307, %s22, 0
      %s309 = sadd.s32 %s308, %s306
      %s310 = smul.addr %s304, 128
      %s311 = sadd.s32 %s309, %s310
      %s312 = smul.addr %s311, 8
      %s313 = scalar_lea.vmem %s3, %s312
      %s314 = smul.u32 32, %s21
      %p315 = scmp.eq.s32.totalorder %s23, 0
      // Predicated region
      $region33: #{forward.14} parent=31 // pred_check
        %p316 = pneg %p315
      $region34: #{forward.14} parent=31 // pred_check_branch
        %318 = sbr.rel (%p316) target = $region36
      $region35: #{forward.14} parent=31 // pred_region
        %319 = vst [vmem:[#allocation2] sm:$0xff] 0.0
        %320 = vst [vmem:[#allocation2 + $0x8] sm:$0xff] 0.0
        %321 = vst [vmem:[#allocation2 + $0x10] sm:$0xff] 0.0
        %322 = vst [vmem:[#allocation2 + $0x18] sm:$0xff] 0.0
        %323 = vst [vmem:[#allocation2 + $0x20] sm:$0xff] 0.0
        %324 = vst [vmem:[#allocation2 + $0x28] sm:$0xff] 0.0
        %325 = vst [vmem:[#allocation2 + $0x30] sm:$0xff] 0.0
        %326 = vst [vmem:[#allocation2 + $0x38] sm:$0xff] 0.0
        %327 = vst [vmem:[#allocation2 + $0x40] sm:$0xff] 0.0
        %328 = vst [vmem:[#allocation2 + $0x48] sm:$0xff] 0.0
        %329 = vst [vmem:[#allocation2 + $0x50] sm:$0xff] 0.0
        %330 = vst [vmem:[#allocation2 + $0x58] sm:$0xff] 0.0
        %331 = vst [vmem:[#allocation2 + $0x60] sm:$0xff] 0.0
        %332 = vst [vmem:[#allocation2 + $0x68] sm:$0xff] 0.0
        %333 = vst [vmem:[#allocation2 + $0x70] sm:$0xff] 0.0
        %334 = vst [vmem:[#allocation2 + $0x78] sm:$0xff] 0.0
        %335 = vst [vmem:[#allocation2 + $0x80] sm:$0xff] 0.0
        %336 = vst [vmem:[#allocation2 + $0x88] sm:$0xff] 0.0
        %337 = vst [vmem:[#allocation2 + $0x90] sm:$0xff] 0.0
        %338 = vst [vmem:[#allocation2 + $0x98] sm:$0xff] 0.0
        %339 = vst [vmem:[#allocation2 + $0xa0] sm:$0xff] 0.0
        %340 = vst [vmem:[#allocation2 + $0xa8] sm:$0xff] 0.0
        %341 = vst [vmem:[#allocation2 + $0xb0] sm:$0xff] 0.0
        %342 = vst [vmem:[#allocation2 + $0xb8] sm:$0xff] 0.0
        %343 = vst [vmem:[#allocation2 + $0xc0] sm:$0xff] 0.0
        %344 = vst [vmem:[#allocation2 + $0xc8] sm:$0xff] 0.0
        %345 = vst [vmem:[#allocation2 + $0xd0] sm:$0xff] 0.0
        %346 = vst [vmem:[#allocation2 + $0xd8] sm:$0xff] 0.0
        %347 = vst [vmem:[#allocation2 + $0xe0] sm:$0xff] 0.0
        %348 = vst [vmem:[#allocation2 + $0xe8] sm:$0xff] 0.0
        %349 = vst [vmem:[#allocation2 + $0xf0] sm:$0xff] 0.0
        %350 = vst [vmem:[#allocation2 + $0xf8] sm:$0xff] 0.0
      $region36: #{forward.14} parent=31 // pred_fallthru
        _
      %v351 = vld [vmem:[#allocation2] sm:$0xff]
      %v352 = vld [vmem:[#allocation2 + $0x8] sm:$0xff]
      %v353 = vld [vmem:[#allocation2 + $0x10] sm:$0xff]
      %v354 = vld [vmem:[#allocation2 + $0x18] sm:$0xff]
      %v355 = vld [vmem:[#allocation2 + $0x20] sm:$0xff]
      %v356 = vld [vmem:[#allocation2 + $0x28] sm:$0xff]
      %v357 = vld [vmem:[#allocation2 + $0x30] sm:$0xff]
      %v358 = vld [vmem:[#allocation2 + $0x38] sm:$0xff]
      %v359 = vld [vmem:[#allocation2 + $0x40] sm:$0xff]
      %v360 = vld [vmem:[#allocation2 + $0x48] sm:$0xff]
      %v361 = vld [vmem:[#allocation2 + $0x50] sm:$0xff]
      %v362 = vld [vmem:[#allocation2 + $0x58] sm:$0xff]
      %v363 = vld [vmem:[#allocation2 + $0x60] sm:$0xff]
      %v364 = vld [vmem:[#allocation2 + $0x68] sm:$0xff]
      %v365 = vld [vmem:[#allocation2 + $0x70] sm:$0xff]
      %v366 = vld [vmem:[#allocation2 + $0x78] sm:$0xff]
      %v367 = vld [vmem:[#allocation2 + $0x80] sm:$0xff]
      %v368 = vld [vmem:[#allocation2 + $0x88] sm:$0xff]
      %v369 = vld [vmem:[#allocation2 + $0x90] sm:$0xff]
      %v370 = vld [vmem:[#allocation2 + $0x98] sm:$0xff]
      %v371 = vld [vmem:[#allocation2 + $0xa0] sm:$0xff]
      %v372 = vld [vmem:[#allocation2 + $0xa8] sm:$0xff]
      %v373 = vld [vmem:[#allocation2 + $0xb0] sm:$0xff]
      %v374 = vld [vmem:[#allocation2 + $0xb8] sm:$0xff]
      %v375 = vld [vmem:[#allocation2 + $0xc0] sm:$0xff]
      %v376 = vld [vmem:[#allocation2 + $0xc8] sm:$0xff]
      %v377 = vld [vmem:[#allocation2 + $0xd0] sm:$0xff]
      %v378 = vld [vmem:[#allocation2 + $0xd8] sm:$0xff]
      %v379 = vld [vmem:[#allocation2 + $0xe0] sm:$0xff]
      %v380 = vld [vmem:[#allocation2 + $0xe8] sm:$0xff]
      %v381 = vld [vmem:[#allocation2 + $0xf0] sm:$0xff]
      %v382 = vld [vmem:[#allocation2 + $0xf8] sm:$0xff]
      %v383 = vld [vmem:[%s281] sm:$0xf]
      %v384 = vld [vmem:[%s281 + $0x4] sm:$0xf]
      %v385 = vld [vmem:[%s281 + $0x8] sm:$0xf]
      %v386 = vld [vmem:[%s281 + $0xc] sm:$0xf]
      %v387 = vld [vmem:[%s281 + $0x10] sm:$0xf]
      %v388 = vld [vmem:[%s281 + $0x14] sm:$0xf]
      %v389 = vld [vmem:[%s281 + $0x18] sm:$0xf]
      %v390 = vld [vmem:[%s281 + $0x1c] sm:$0xf]
      %v391 = vld [vmem:[%s281 + $0x20] sm:$0xf]
      %v392 = vld [vmem:[%s281 + $0x24] sm:$0xf]
      %v393 = vld [vmem:[%s281 + $0x28] sm:$0xf]
      %v394 = vld [vmem:[%s281 + $0x2c] sm:$0xf]
      %v395 = vld [vmem:[%s281 + $0x30] sm:$0xf]
      %v396 = vld [vmem:[%s281 + $0x34] sm:$0xf]
      %v397 = vld [vmem:[%s281 + $0x38] sm:$0xf]
      %v398 = vld [vmem:[%s281 + $0x3c] sm:$0xf]
      %v399 = vld [vmem:[%s281 + $0x40] sm:$0xf]
      %v400 = vld [vmem:[%s281 + $0x44] sm:$0xf]
      %v401 = vld [vmem:[%s281 + $0x48] sm:$0xf]
      %v402 = vld [vmem:[%s281 + $0x4c] sm:$0xf]
      %v403 = vld [vmem:[%s281 + $0x50] sm:$0xf]
      %v404 = vld [vmem:[%s281 + $0x54] sm:$0xf]
      %v405 = vld [vmem:[%s281 + $0x58] sm:$0xf]
      %v406 = vld [vmem:[%s281 + $0x5c] sm:$0xf]
      %v407 = vld [vmem:[%s281 + $0x60] sm:$0xf]
      %v408 = vld [vmem:[%s281 + $0x64] sm:$0xf]
      %v409 = vld [vmem:[%s281 + $0x68] sm:$0xf]
      %v410 = vld [vmem:[%s281 + $0x6c] sm:$0xf]
      %v411 = vld [vmem:[%s281 + $0x70] sm:$0xf]
      %v412 = vld [vmem:[%s281 + $0x74] sm:$0xf]
      %v413 = vld [vmem:[%s281 + $0x78] sm:$0xf]
      %v414 = vld [vmem:[%s281 + $0x7c] sm:$0xf]
      %v415 = vld [vmem:[%s294] sm:$0xf]
      %v416 = vld [vmem:[%s294 + $0x4] sm:$0xf]
      %v417 = vld [vmem:[%s294 + $0x8] sm:$0xf]
      %v418 = vld [vmem:[%s294 + $0xc] sm:$0xf]
      %v419 = vld [vmem:[%s294 + $0x10] sm:$0xf]
      %v420 = vld [vmem:[%s294 + $0x14] sm:$0xf]
      %v421 = vld [vmem:[%s294 + $0x18] sm:$0xf]
      %v422 = vld [vmem:[%s294 + $0x1c] sm:$0xf]
      %v423 = vld [vmem:[%s294 + $0x20] sm:$0xf]
      %v424 = vld [vmem:[%s294 + $0x24] sm:$0xf]
      %v425 = vld [vmem:[%s294 + $0x28] sm:$0xf]
      %v426 = vld [vmem:[%s294 + $0x2c] sm:$0xf]
      %v427 = vld [vmem:[%s294 + $0x30] sm:$0xf]
      %v428 = vld [vmem:[%s294 + $0x34] sm:$0xf]
      %v429 = vld [vmem:[%s294 + $0x38] sm:$0xf]
      %v430 = vld [vmem:[%s294 + $0x3c] sm:$0xf]
      %v463 = vunpack.c.l.b16 %v383
      %v464 = vunpack.c.l.b16 %v384
      %v465 = vunpack.c.l.b16 %v385
      %v466 = vunpack.c.l.b16 %v386
      %v467 = vunpack.c.l.b16 %v387
      %v468 = vunpack.c.l.b16 %v388
      %v469 = vunpack.c.l.b16 %v389
      %v470 = vunpack.c.l.b16 %v390
      %v471 = vunpack.c.l.b16 %v391
      %v472 = vunpack.c.l.b16 %v392
      %v473 = vunpack.c.l.b16 %v393
      %v474 = vunpack.c.l.b16 %v394
      %v475 = vunpack.c.l.b16 %v395
      %v476 = vunpack.c.l.b16 %v396
      %v477 = vunpack.c.l.b16 %v397
      %v478 = vunpack.c.l.b16 %v398
      %v479 = vunpack.c.l.b16 %v399
      %v480 = vunpack.c.l.b16 %v400
      %v481 = vunpack.c.l.b16 %v401
      %v482 = vunpack.c.l.b16 %v402
      %v483 = vunpack.c.l.b16 %v403
      %v484 = vunpack.c.l.b16 %v404
      %v485 = vunpack.c.l.b16 %v405
      %v486 = vunpack.c.l.b16 %v406
      %v487 = vunpack.c.l.b16 %v407
      %v488 = vunpack.c.l.b16 %v408
      %v489 = vunpack.c.l.b16 %v409
      %v490 = vunpack.c.l.b16 %v410
      %v491 = vunpack.c.l.b16 %v411
      %v492 = vunpack.c.l.b16 %v412
      %v493 = vunpack.c.l.b16 %v413
      %v494 = vunpack.c.l.b16 %v414
      %v495 = vpack.c.b16 %v464, %v463
      %v496 = vpack.c.b16 %v466, %v465
      %v497 = vpack.c.b16 %v468, %v467
      %v498 = vpack.c.b16 %v470, %v469
      %v499 = vpack.c.b16 %v472, %v471
      %v500 = vpack.c.b16 %v474, %v473
      %v501 = vpack.c.b16 %v476, %v475
      %v502 = vpack.c.b16 %v478, %v477
      %v503 = vpack.c.b16 %v480, %v479
      %v504 = vpack.c.b16 %v482, %v481
      %v505 = vpack.c.b16 %v484, %v483
      %v506 = vpack.c.b16 %v486, %v485
      %v507 = vpack.c.b16 %v488, %v487
      %v508 = vpack.c.b16 %v490, %v489
      %v509 = vpack.c.b16 %v492, %v491
      %v510 = vpack.c.b16 %v494, %v493
      %v543 = vunpack.c.l.b16 %v415
      %v544 = vunpack.c.l.b16 %v416
      %v545 = vunpack.c.l.b16 %v417
      %v546 = vunpack.c.l.b16 %v418
      %v547 = vunpack.c.l.b16 %v419
      %v548 = vunpack.c.l.b16 %v420
      %v549 = vunpack.c.l.b16 %v421
      %v550 = vunpack.c.l.b16 %v422
      %v551 = vunpack.c.l.b16 %v423
      %v552 = vunpack.c.l.b16 %v424
      %v553 = vunpack.c.l.b16 %v425
      %v554 = vunpack.c.l.b16 %v426
      %v555 = vunpack.c.l.b16 %v427
      %v556 = vunpack.c.l.b16 %v428
      %v557 = vunpack.c.l.b16 %v429
      %v558 = vunpack.c.l.b16 %v430
      %v559 = vpack.c.b16 %v544, %v543
      %v560 = vpack.c.b16 %v546, %v545
      %v561 = vpack.c.b16 %v548, %v547
      %v562 = vpack.c.b16 %v550, %v549
      %v563 = vpack.c.b16 %v552, %v551
      %v564 = vpack.c.b16 %v554, %v553
      %v565 = vpack.c.b16 %v556, %v555
      %v566 = vpack.c.b16 %v558, %v557
      %575 = vmatpush.bf16.msra.mxu0 %v566
      %576 = vmatpush.bf16.msra.mxu0 %v565
      %577 = vmatpush.bf16.msra.mxu0 %v564
      %578 = vmatpush.bf16.msra.mxu0 %v563
      %579 = vmatpush.bf16.msra.mxu0 %v562
      %580 = vmatpush.bf16.msra.mxu0 %v561
      %581 = vmatpush.bf16.msra.mxu0 %v560
      %582 = vmatpush.bf16.msra.mxu0 %v559
      %583 = vmatmul.bf16.gmra.mxu0 %v495
      %v584 = vpop.f32.mrf.mxu0
      %v585 = vadd.f32 0.0, %v584
      %v586 = vpop.f32.mrf.mxu0
      %v587 = vadd.f32 0.0, %v586
      %588 = vmatmul.bf16.gmra.mxu0 %v496
      %v589 = vpop.f32.mrf.mxu0
      %v590 = vadd.f32 0.0, %v589
      %v591 = vpop.f32.mrf.mxu0
      %v592 = vadd.f32 0.0, %v591
      %593 = vmatmul.bf16.gmra.mxu0 %v497
      %v594 = vpop.f32.mrf.mxu0
      %v595 = vadd.f32 0.0, %v594
      %v596 = vpop.f32.mrf.mxu0
      %v597 = vadd.f32 0.0, %v596
      %598 = vmatmul.bf16.gmra.mxu0 %v498
      %v599 = vpop.f32.mrf.mxu0
      %v600 = vadd.f32 0.0, %v599
      %v601 = vpop.f32.mrf.mxu0
      %v602 = vadd.f32 0.0, %v601
      %603 = vmatmul.bf16.gmra.mxu0 %v499
      %v604 = vpop.f32.mrf.mxu0
      %v605 = vadd.f32 0.0, %v604
      %v606 = vpop.f32.mrf.mxu0
      %v607 = vadd.f32 0.0, %v606
      %608 = vmatmul.bf16.gmra.mxu0 %v500
      %v609 = vpop.f32.mrf.mxu0
      %v610 = vadd.f32 0.0, %v609
      %v611 = vpop.f32.mrf.mxu0
      %v612 = vadd.f32 0.0, %v611
      %613 = vmatmul.bf16.gmra.mxu0 %v501
      %v614 = vpop.f32.mrf.mxu0
      %v615 = vadd.f32 0.0, %v614
      %v616 = vpop.f32.mrf.mxu0
      %v617 = vadd.f32 0.0, %v616
      %618 = vmatmul.bf16.gmra.mxu0 %v502
      %v619 = vpop.f32.mrf.mxu0
      %v620 = vadd.f32 0.0, %v619
      %v621 = vpop.f32.mrf.mxu0
      %v622 = vadd.f32 0.0, %v621
      %623 = vmatmul.bf16.gmra.mxu0 %v503
      %v624 = vpop.f32.mrf.mxu0
      %v625 = vadd.f32 0.0, %v624
      %v626 = vpop.f32.mrf.mxu0
      %v627 = vadd.f32 0.0, %v626
      %628 = vmatmul.bf16.gmra.mxu0 %v504
      %v629 = vpop.f32.mrf.mxu0
      %v630 = vadd.f32 0.0, %v629
      %v631 = vpop.f32.mrf.mxu0
      %v632 = vadd.f32 0.0, %v631
      %633 = vmatmul.bf16.gmra.mxu0 %v505
      %v634 = vpop.f32.mrf.mxu0
      %v635 = vadd.f32 0.0, %v634
      %v636 = vpop.f32.mrf.mxu0
      %v637 = vadd.f32 0.0, %v636
      %638 = vmatmul.bf16.gmra.mxu0 %v506
      %v639 = vpop.f32.mrf.mxu0
      %v640 = vadd.f32 0.0, %v639
      %v641 = vpop.f32.mrf.mxu0
      %v642 = vadd.f32 0.0, %v641
      %643 = vmatmul.bf16.gmra.mxu0 %v507
      %v644 = vpop.f32.mrf.mxu0
      %v645 = vadd.f32 0.0, %v644
      %v646 = vpop.f32.mrf.mxu0
      %v647 = vadd.f32 0.0, %v646
      %648 = vmatmul.bf16.gmra.mxu0 %v508
      %v649 = vpop.f32.mrf.mxu0
      %v650 = vadd.f32 0.0, %v649
      %v651 = vpop.f32.mrf.mxu0
      %v652 = vadd.f32 0.0, %v651
      %653 = vmatmul.bf16.gmra.mxu0 %v509
      %v654 = vpop.f32.mrf.mxu0
      %v655 = vadd.f32 0.0, %v654
      %v656 = vpop.f32.mrf.mxu0
      %v657 = vadd.f32 0.0, %v656
      %658 = vmatmul.bf16.gmra.mxu0 %v510
      %v659 = vpop.f32.mrf.mxu0
      %v660 = vadd.f32 0.0, %v659
      %v661 = vpop.f32.mrf.mxu0
      %v662 = vadd.f32 0.0, %v661
      %663 = vdwg.mxu0
      %v664 = vadd.f32 %v351, %v585
      %v665 = vadd.f32 %v352, %v587
      %v666 = vadd.f32 %v353, %v590
      %v667 = vadd.f32 %v354, %v592
      %v668 = vadd.f32 %v355, %v595
      %v669 = vadd.f32 %v356, %v597
      %v670 = vadd.f32 %v357, %v600
      %v671 = vadd.f32 %v358, %v602
      %v672 = vadd.f32 %v359, %v605
      %v673 = vadd.f32 %v360, %v607
      %v674 = vadd.f32 %v361, %v610
      %v675 = vadd.f32 %v362, %v612
      %v676 = vadd.f32 %v363, %v615
      %v677 = vadd.f32 %v364, %v617
      %v678 = vadd.f32 %v365, %v620
      %v679 = vadd.f32 %v366, %v622
      %v680 = vadd.f32 %v367, %v625
      %v681 = vadd.f32 %v368, %v627
      %v682 = vadd.f32 %v369, %v630
      %v683 = vadd.f32 %v370, %v632
      %v684 = vadd.f32 %v371, %v635
      %v685 = vadd.f32 %v372, %v637
      %v686 = vadd.f32 %v373, %v640
      %v687 = vadd.f32 %v374, %v642
      %v688 = vadd.f32 %v375, %v645
      %v689 = vadd.f32 %v376, %v647
      %v690 = vadd.f32 %v377, %v650
      %v691 = vadd.f32 %v378, %v652
      %v692 = vadd.f32 %v379, %v655
      %v693 = vadd.f32 %v380, %v657
      %v694 = vadd.f32 %v381, %v660
      %v695 = vadd.f32 %v382, %v662
      %696 = vst [vmem:[#allocation2] sm:$0xff] %v664
      %697 = vst [vmem:[#allocation2 + $0x8] sm:$0xff] %v665
      %698 = vst [vmem:[#allocation2 + $0x10] sm:$0xff] %v666
      %699 = vst [vmem:[#allocation2 + $0x18] sm:$0xff] %v667
      %700 = vst [vmem:[#allocation2 + $0x20] sm:$0xff] %v668
      %701 = vst [vmem:[#allocation2 + $0x28] sm:$0xff] %v669
      %702 = vst [vmem:[#allocation2 + $0x30] sm:$0xff] %v670
      %703 = vst [vmem:[#allocation2 + $0x38] sm:$0xff] %v671
      %704 = vst [vmem:[#allocation2 + $0x40] sm:$0xff] %v672
      %705 = vst [vmem:[#allocation2 + $0x48] sm:$0xff] %v673
      %706 = vst [vmem:[#allocation2 + $0x50] sm:$0xff] %v674
      %707 = vst [vmem:[#allocation2 + $0x58] sm:$0xff] %v675
      %708 = vst [vmem:[#allocation2 + $0x60] sm:$0xff] %v676
      %709 = vst [vmem:[#allocation2 + $0x68] sm:$0xff] %v677
      %710 = vst [vmem:[#allocation2 + $0x70] sm:$0xff] %v678
      %711 = vst [vmem:[#allocation2 + $0x78] sm:$0xff] %v679
      %712 = vst [vmem:[#allocation2 + $0x80] sm:$0xff] %v680
      %713 = vst [vmem:[#allocation2 + $0x88] sm:$0xff] %v681
      %714 = vst [vmem:[#allocation2 + $0x90] sm:$0xff] %v682
      %715 = vst [vmem:[#allocation2 + $0x98] sm:$0xff] %v683
      %716 = vst [vmem:[#allocation2 + $0xa0] sm:$0xff] %v684
      %717 = vst [vmem:[#allocation2 + $0xa8] sm:$0xff] %v685
      %718 = vst [vmem:[#allocation2 + $0xb0] sm:$0xff] %v686
      %719 = vst [vmem:[#allocation2 + $0xb8] sm:$0xff] %v687
      %720 = vst [vmem:[#allocation2 + $0xc0] sm:$0xff] %v688
      %721 = vst [vmem:[#allocation2 + $0xc8] sm:$0xff] %v689
      %722 = vst [vmem:[#allocation2 + $0xd0] sm:$0xff] %v690
      %723 = vst [vmem:[#allocation2 + $0xd8] sm:$0xff] %v691
      %724 = vst [vmem:[#allocation2 + $0xe0] sm:$0xff] %v692
      %725 = vst [vmem:[#allocation2 + $0xe8] sm:$0xff] %v693
      %726 = vst [vmem:[#allocation2 + $0xf0] sm:$0xff] %v694
      %727 = vst [vmem:[#allocation2 + $0xf8] sm:$0xff] %v695
      // Predicated region
      $region37: #{forward.14} parent=31 // pred_check
        %p728 = pneg %p315
      $region38: #{forward.14} parent=31 // pred_check_branch
        %730 = sbr.rel (%p728) target = $region40
      $region39: #{forward.14} parent=31 // pred_region
        %v731 = vld [vmem:[#allocation2] sm:$0xff]
        %v732 = vld [vmem:[#allocation2 + $0x8] sm:$0xff]
        %v733 = vld [vmem:[#allocation2 + $0x10] sm:$0xff]
        %v734 = vld [vmem:[#allocation2 + $0x18] sm:$0xff]
        %v735 = vld [vmem:[#allocation2 + $0x20] sm:$0xff]
        %v736 = vld [vmem:[#allocation2 + $0x28] sm:$0xff]
        %v737 = vld [vmem:[#allocation2 + $0x30] sm:$0xff]
        %v738 = vld [vmem:[#allocation2 + $0x38] sm:$0xff]
        %v739 = vld [vmem:[#allocation2 + $0x40] sm:$0xff]
        %v740 = vld [vmem:[#allocation2 + $0x48] sm:$0xff]
        %v741 = vld [vmem:[#allocation2 + $0x50] sm:$0xff]
        %v742 = vld [vmem:[#allocation2 + $0x58] sm:$0xff]
        %v743 = vld [vmem:[#allocation2 + $0x60] sm:$0xff]
        %v744 = vld [vmem:[#allocation2 + $0x68] sm:$0xff]
        %v745 = vld [vmem:[#allocation2 + $0x70] sm:$0xff]
        %v746 = vld [vmem:[#allocation2 + $0x78] sm:$0xff]
        %v747 = vld [vmem:[#allocation2 + $0x80] sm:$0xff]
        %v748 = vld [vmem:[#allocation2 + $0x88] sm:$0xff]
        %v749 = vld [vmem:[#allocation2 + $0x90] sm:$0xff]
        %v750 = vld [vmem:[#allocation2 + $0x98] sm:$0xff]
        %v751 = vld [vmem:[#allocation2 + $0xa0] sm:$0xff]
        %v752 = vld [vmem:[#allocation2 + $0xa8] sm:$0xff]
        %v753 = vld [vmem:[#allocation2 + $0xb0] sm:$0xff]
        %v754 = vld [vmem:[#allocation2 + $0xb8] sm:$0xff]
        %v755 = vld [vmem:[#allocation2 + $0xc0] sm:$0xff]
        %v756 = vld [vmem:[#allocation2 + $0xc8] sm:$0xff]
        %v757 = vld [vmem:[#allocation2 + $0xd0] sm:$0xff]
        %v758 = vld [vmem:[#allocation2 + $0xd8] sm:$0xff]
        %v759 = vld [vmem:[#allocation2 + $0xe0] sm:$0xff]
        %v760 = vld [vmem:[#allocation2 + $0xe8] sm:$0xff]
        %v761 = vld [vmem:[#allocation2 + $0xf0] sm:$0xff]
        %v762 = vld [vmem:[#allocation2 + $0xf8] sm:$0xff]
        %v763 = vld [vmem:[%s301] sm:$0x1]
        %v765 = vperm.slane %v763, 0
        %v767 = vadd.f32 %v731, %v765
        %v768 = vadd.f32 %v732, %v765
        %v769 = vadd.f32 %v733, %v765
        %v770 = vadd.f32 %v734, %v765
        %v771 = vadd.f32 %v735, %v765
        %v772 = vadd.f32 %v736, %v765
        %v773 = vadd.f32 %v737, %v765
        %v774 = vadd.f32 %v738, %v765
        %v775 = vadd.f32 %v739, %v765
        %v776 = vadd.f32 %v740, %v765
        %v777 = vadd.f32 %v741, %v765
        %v778 = vadd.f32 %v742, %v765
        %v779 = vadd.f32 %v743, %v765
        %v780 = vadd.f32 %v744, %v765
        %v781 = vadd.f32 %v745, %v765
        %v782 = vadd.f32 %v746, %v765
        %v783 = vadd.f32 %v747, %v765
        %v784 = vadd.f32 %v748, %v765
        %v785 = vadd.f32 %v749, %v765
        %v786 = vadd.f32 %v750, %v765
        %v787 = vadd.f32 %v751, %v765
        %v788 = vadd.f32 %v752, %v765
        %v789 = vadd.f32 %v753, %v765
        %v790 = vadd.f32 %v754, %v765
        %v791 = vadd.f32 %v755, %v765
        %v792 = vadd.f32 %v756, %v765
        %v793 = vadd.f32 %v757, %v765
        %v794 = vadd.f32 %v758, %v765
        %v795 = vadd.f32 %v759, %v765
        %v796 = vadd.f32 %v760, %v765
        %v797 = vadd.f32 %v761, %v765
        %v798 = vadd.f32 %v762, %v765
        %v799 = vmax.f32 %v767, 0.0
        %v800 = vmax.f32 %v768, 0.0
        %v801 = vmax.f32 %v769, 0.0
        %v802 = vmax.f32 %v770, 0.0
        %v803 = vmax.f32 %v771, 0.0
        %v804 = vmax.f32 %v772, 0.0
        %v805 = vmax.f32 %v773, 0.0
        %v806 = vmax.f32 %v774, 0.0
        %v807 = vmax.f32 %v775, 0.0
        %v808 = vmax.f32 %v776, 0.0
        %v809 = vmax.f32 %v777, 0.0
        %v810 = vmax.f32 %v778, 0.0
        %v811 = vmax.f32 %v779, 0.0
        %v812 = vmax.f32 %v780, 0.0
        %v813 = vmax.f32 %v781, 0.0
        %v814 = vmax.f32 %v782, 0.0
        %v815 = vmax.f32 %v783, 0.0
        %v816 = vmax.f32 %v784, 0.0
        %v817 = vmax.f32 %v785, 0.0
        %v818 = vmax.f32 %v786, 0.0
        %v819 = vmax.f32 %v787, 0.0
        %v820 = vmax.f32 %v788, 0.0
        %v821 = vmax.f32 %v789, 0.0
        %v822 = vmax.f32 %v790, 0.0
        %v823 = vmax.f32 %v791, 0.0
        %v824 = vmax.f32 %v792, 0.0
        %v825 = vmax.f32 %v793, 0.0
        %v826 = vmax.f32 %v794, 0.0
        %v827 = vmax.f32 %v795, 0.0
        %v828 = vmax.f32 %v796, 0.0
        %v829 = vmax.f32 %v797, 0.0
        %v830 = vmax.f32 %v798, 0.0
        %831 = vst [vmem:[%s313] sm:$0xff] %v799
        %832 = vst [vmem:[%s313 + $0x8] sm:$0xff] %v800
        %833 = vst [vmem:[%s313 + $0x10] sm:$0xff] %v801
        %834 = vst [vmem:[%s313 + $0x18] sm:$0xff] %v802
        %835 = vst [vmem:[%s313 + $0x20] sm:$0xff] %v803
        %836 = vst [vmem:[%s313 + $0x28] sm:$0xff] %v804
        %837 = vst [vmem:[%s313 + $0x30] sm:$0xff] %v805
        %838 = vst [vmem:[%s313 + $0x38] sm:$0xff] %v806
        %839 = vst [vmem:[%s313 + $0x40] sm:$0xff] %v807
        %840 = vst [vmem:[%s313 + $0x48] sm:$0xff] %v808
        %841 = vst [vmem:[%s313 + $0x50] sm:$0xff] %v809
        %842 = vst [vmem:[%s313 + $0x58] sm:$0xff] %v810
        %843 = vst [vmem:[%s313 + $0x60] sm:$0xff] %v811
        %844 = vst [vmem:[%s313 + $0x68] sm:$0xff] %v812
        %845 = vst [vmem:[%s313 + $0x70] sm:$0xff] %v813
        %846 = vst [vmem:[%s313 + $0x78] sm:$0xff] %v814
        %847 = vst [vmem:[%s313 + $0x80] sm:$0xff] %v815
        %848 = vst [vmem:[%s313 + $0x88] sm:$0xff] %v816
        %849 = vst [vmem:[%s313 + $0x90] sm:$0xff] %v817
        %850 = vst [vmem:[%s313 + $0x98] sm:$0xff] %v818
        %851 = vst [vmem:[%s313 + $0xa0] sm:$0xff] %v819
        %852 = vst [vmem:[%s313 + $0xa8] sm:$0xff] %v820
        %853 = vst [vmem:[%s313 + $0xb0] sm:$0xff] %v821
        %854 = vst [vmem:[%s313 + $0xb8] sm:$0xff] %v822
        %855 = vst [vmem:[%s313 + $0xc0] sm:$0xff] %v823
        %856 = vst [vmem:[%s313 + $0xc8] sm:$0xff] %v824
        %857 = vst [vmem:[%s313 + $0xd0] sm:$0xff] %v825
        %858 = vst [vmem:[%s313 + $0xd8] sm:$0xff] %v826
        %859 = vst [vmem:[%s313 + $0xe0] sm:$0xff] %v827
        %860 = vst [vmem:[%s313 + $0xe8] sm:$0xff] %v828
        %861 = vst [vmem:[%s313 + $0xf0] sm:$0xff] %v829
        %862 = vst [vmem:[%s313 + $0xf8] sm:$0xff] %v830
      $region40: #{forward.14} parent=31 // pred_fallthru
        _
      %s863 = smul.u32 32, %s21
      %p864 = scmp.lt.s32.totalorder %s20, 3
      %s865 = scalar_select %p864, %s20, 3
      %p866 = scmp.lt.s32.totalorder %s863, 127
      %s867 = scalar_select %p866, %s863, 127
      %p868 = scmp.lt.s32.totalorder %s22, 0
      %s869 = scalar_select %p868, %s22, 0
      %s870 = sadd.s32 %s869, %s867
      %s871 = smul.addr %s865, 128
      %s872 = sadd.s32 %s870, %s871
      %s873 = smul.addr %s872, 8
      %s874 = scalar_lea.vmem %s3, %s873
      // Predicated region
      $region41: #{forward.14} parent=31 // pred_check
        %p875 = pneg %p150
      $region42: #{forward.14} parent=31 // pred_check_branch
        %877 = sbr.rel (%p875) target = $region44
      $region43: #{forward.14} parent=31 // pred_region
        %s878 = smul.u32 32, %s21
      $region44: #{forward.14} parent=31 // pred_fallthru
        _
    $region32: #{forward.14} parent=5 // pred_fallthru
      _
    %p879 = scmp.le.s32.totalorder 2, %s9
    // Predicated region
    $region45: #{forward.14} parent=5 // pred_check
      %p880 = pneg %p879
    $region46: #{forward.14} parent=5 // pred_check_branch
      %882 = sbr.rel (%p880) target = $region48
    $region47: #{forward.14} parent=5 // pred_region
      %s883 = ssub.s32 %s9, 2
      // Predicated region
      $region49: #{forward.14} parent=47 // pred_check
        %p884 = pneg %p156
      $region50: #{forward.14} parent=47 // pred_check_branch
        %886 = sbr.rel (%p884) target = $region52
      $region51: #{forward.14} parent=47 // pred_region
        %s887 = smul.u32 32, %s25
        %p888 = scmp.lt.s32.totalorder %s24, 3
        %s889 = scalar_select %p888, %s24, 3
        %p890 = scmp.lt.s32.totalorder %s887, 127
        %s891 = scalar_select %p890, %s887, 127
        %p892 = scmp.lt.s32.totalorder %s26, 0
        %s893 = scalar_select %p892, %s26, 0
        %s894 = sadd.s32 %s893, %s891
        %s895 = smul.addr %s889, 128
        %s896 = sadd.s32 %s894, %s895
        %s897 = smul.addr %s896, 8
        %s898 = scalar_lea.vmem %s3, %s897
      $region52: #{forward.14} parent=47 // pred_fallthru
        _
    $region48: #{forward.14} parent=5 // pred_fallthru
      _
  $region6: #{forward.14} parent=0 // loop_footer
    %s13 = sadd.s32 1, %s9
  $region7: #{forward.14} parent=0 // loop_footer_branch
    %8 = sbr.rel target = $region3
  $region8: #{forward.14} parent=0 // loop_exit
    _

// kernel: forward.15
$region0: #{forward.15}
  #allocation0 [shape = 'u32[]', space=smem, size = 0x4, offset = 0x4, fixed_abs, tag = 'smem constant byte address 0x4 - core index']
  #allocation1 [shape = 'u32[72,128]{1,0:T(1,128)}', space=vmem, size = 0x9000, scoped, tag = 'internal scratch']
  #allocation2 [shape = 'f32[256,128]{1,0:T(8,128)}', space=vmem, size = 0x20000, scoped, tag = 'scratch operand']
  %s0 = inlined_call_operand.vmem [shape: bf16[4,256,256], index: 0, kind: input, shape index: {}]
  %s1 = inlined_call_operand.vmem [shape: bf16[4,256,128], index: 1, kind: input, shape index: {}]
  %s2 = inlined_call_operand.vmem [shape: f32[4,1,128], index: 2, kind: input, shape index: {}]
  %s3 = inlined_call_operand.vmem [shape: f32[4,256,128], index: 3, kind: output, shape index: {}]
  %s4 = sld [smem:[#allocation0]]
  $region53: #{forward.15} parent=0
    _
  %s6 = ssub.s32 1, %s4
  %s7 = scalar_select 0, %s6, %s4
  loop: start=0, step=1, limit=6
  $region2: #{forward.15} parent=0 // loop_pre_header
    _
  $region3: #{forward.15} parent=0 // loop_header
    %s9 = sphi 0, %s13
    %p10 = scmp.ge.s32.totalorder %s9, 6
    %s16 = sphi 0, %s42
    %s17 = sphi 0, %s38
    %s18 = sphi 0, %s34
    %s19 = sphi 0, %s30
    %s20 = sphi 0, %s16
    %s21 = sphi 0, %s17
    %s22 = sphi 0, %s18
    %s23 = sphi 0, %s19
    %s24 = sphi 0, %s20
    %s25 = sphi 0, %s21
    %s26 = sphi 0, %s22
    %s27 = sphi 0, %s23
    %s49 = sphi 0, %s51
    %s52 = sphi 0, %s49
    %s53 = sphi 0, %s52
    %s69 = sphi 0, %s53
    %s79 = sphi 0, %s81
    %s82 = sphi 0, %s79
    %s83 = sphi 0, %s82
    %s99 = sphi 0, %s83
    %s107 = sphi 0, %s109
    %s110 = sphi 0, %s107
    %s111 = sphi 0, %s110
    %s127 = sphi 0, %s111
    %s137 = sphi 0, %s139
    %s140 = sphi 0, %s137
    %s141 = sphi 0, %s140
    %s157 = sphi 0, %s141
  $region4: #{forward.15} parent=0 // loop_header_branch
    %12 = sbr.rel (%p10) target = $region8
  $region5: #{forward.15} parent=0 // loop_body
    %s14 = ssub.s32 %s9, 1
    %s15 = ssub.s32 %s9, 2
    %s28 = sadd.s32 1, %s19
    %p29 = scmp.ge.s32.totalorder %s28, 1
    %s30 = scalar_select %p29, 0, %s28
    %s31 = sadd.s32 1, %s18
    %s32 = scalar_select %p29, %s31, %s18
    %p33 = scmp.ge.s32.totalorder %s32, 1
    %s34 = scalar_select %p33, 0, %s32
    %s35 = sadd.s32 1, %s17
    %s36 = scalar_select %p33, %s35, %s17
    %p37 = scmp.ge.s32.totalorder %s36, 1
    %s38 = scalar_select %p37, 0, %s36
    %s39 = sadd.s32 1, %s16
    %s40 = scalar_select %p37, %s39, %s16
    %p41 = scmp.ge.s32.totalorder %s40, 4
    %s42 = scalar_select %p41, 0, %s40
    %s43 = ssub.s32 %s16, %s42
    %s44 = ssub.s32 %s17, %s38
    %s45 = sor.u32 %s43, %s44
    %s46 = ssub.s32 %s19, %s30
    %s47 = sor.u32 %s45, %s46
    %p48 = scmp.eq.s32.totalorder %s47, 0
    %s50 = sadd.s32 %s49, 1
    %s51 = scalar_select %p48, %s49, %s50
    %p54 = pneg %p48
    %p55 = scmp.eq.s32.totalorder %s9, 3
    %p56 = por %p54, %p55
    %p57 = scmp.ne.s32.totalorder %s49, %s52
    %p58 = scmp.eq.s32.totalorder %s9, 0
    %p59 = por %p57, %p58
    %p60 = scmp.ne.s32.totalorder %s49, %s52
    %p61 = scmp.eq.s32.totalorder %s14, 3
    %p62 = por %p60, %p61
    %p63 = scmp.ne.s32.totalorder %s52, %s53
    %p64 = scmp.eq.s32.totalorder %s14, 0
    %p65 = por %p63, %p64
    %p66 = scmp.ne.s32.totalorder %s52, %s53
    %p67 = scmp.eq.s32.totalorder %s15, 3
    %p68 = por %p66, %p67
    %p70 = scmp.ne.s32.totalorder %s53, %s69
    %p71 = scmp.eq.s32.totalorder %s15, 0
    %p72 = por %p70, %p71
    %s73 = ssub.s32 %s16, %s42
    %s74 = ssub.s32 %s19, %s30
    %s75 = sor.u32 %s73, %s74
    %s76 = ssub.s32 %s18, %s34
    %s77 = sor.u32 %s75, %s76
    %p78 = scmp.eq.s32.totalorder %s77, 0
    %s80 = sadd.s32 %s79, 1
    %s81 = scalar_select %p78, %s79, %s80
    %p84 = pneg %p78
    %p85 = scmp.eq.s32.totalorder %s9, 3
    %p86 = por %p84, %p85
    %p87 = scmp.ne.s32.totalorder %s79, %s82
    %p88 = scmp.eq.s32.totalorder %s9, 0
    %p89 = por %p87, %p88
    %p90 = scmp.ne.s32.totalorder %s79, %s82
    %p91 = scmp.eq.s32.totalorder %s14, 3
    %p92 = por %p90, %p91
    %p93 = scmp.ne.s32.totalorder %s82, %s83
    %p94 = scmp.eq.s32.totalorder %s14, 0
    %p95 = por %p93, %p94
    %p96 = scmp.ne.s32.totalorder %s82, %s83
    %p97 = scmp.eq.s32.totalorder %s15, 3
    %p98 = por %p96, %p97
    %p100 = scmp.ne.s32.totalorder %s83, %s99
    %p101 = scmp.eq.s32.totalorder %s15, 0
    %p102 = por %p100, %p101
    %s103 = ssub.s32 %s16, %s42
    %s104 = ssub.s32 %s18, %s34
    %s105 = sor.u32 %s103, %s104
    %p106 = scmp.eq.s32.totalorder %s105, 0
    %s108 = sadd.s32 %s107, 1
    %s109 = scalar_select %p106, %s107, %s108
    %p112 = pneg %p106
    %p113 = scmp.eq.s32.totalorder %s9, 3
    %p114 = por %p112, %p113
    %p115 = scmp.ne.s32.totalorder %s107, %s110
    %p116 = scmp.eq.s32.totalorder %s9, 0
    %p117 = por %p115, %p116
    %p118 = scmp.ne.s32.totalorder %s107, %s110
    %p119 = scmp.eq.s32.totalorder %s14, 3
    %p120 = por %p118, %p119
    %p121 = scmp.ne.s32.totalorder %s110, %s111
    %p122 = scmp.eq.s32.totalorder %s14, 0
    %p123 = por %p121, %p122
    %p124 = scmp.ne.s32.totalorder %s110, %s111
    %p125 = scmp.eq.s32.totalorder %s15, 3
    %p126 = por %p124, %p125
    %p128 = scmp.ne.s32.totalorder %s111, %s127
    %p129 = scmp.eq.s32.totalorder %s15, 0
    %p130 = por %p128, %p129
    %s131 = ssub.s32 %s16, %s42
    %s132 = ssub.s32 %s17, %s38
    %s133 = sor.u32 %s131, %s132
    %s134 = ssub.s32 %s18, %s34
    %s135 = sor.u32 %s133, %s134
    %p136 = scmp.eq.s32.totalorder %s135, 0
    %s138 = sadd.s32 %s137, 1
    %s139 = scalar_select %p136, %s137, %s138
    %p142 = pneg %p136
    %p143 = scmp.eq.s32.totalorder %s9, 3
    %p144 = por %p142, %p143
    %p145 = scmp.ne.s32.totalorder %s137, %s140
    %p146 = scmp.eq.s32.totalorder %s9, 0
    %p147 = por %p145, %p146
    %p148 = scmp.ne.s32.totalorder %s137, %s140
    %p149 = scmp.eq.s32.totalorder %s14, 3
    %p150 = por %p148, %p149
    %p151 = scmp.ne.s32.totalorder %s140, %s141
    %p152 = scmp.eq.s32.totalorder %s14, 0
    %p153 = por %p151, %p152
    %p154 = scmp.ne.s32.totalorder %s140, %s141
    %p155 = scmp.eq.s32.totalorder %s15, 3
    %p156 = por %p154, %p155
    %p158 = scmp.ne.s32.totalorder %s141, %s157
    %p159 = scmp.eq.s32.totalorder %s15, 0
    %p160 = por %p158, %p159
    %p161 = scmp.le.s32.totalorder 1, %s9
    %p162 = scmp.lt.s32.totalorder %s9, 5
    %p163 = pnand %p161, %p162
    %p164 = pneg %p163
    // Predicated region
    $region9: #{forward.15} parent=5 // pred_check
      _
    $region10: #{forward.15} parent=5 // pred_check_branch
      %166 = sbr.rel (%p163) target = $region12
    $region11: #{forward.15} parent=5 // pred_region
      %s167 = ssub.s32 %s9, 1
    $region12: #{forward.15} parent=5 // pred_fallthru
      _
    %p168 = scmp.lt.s32.totalorder %s9, 4
    // Predicated region
    $region13: #{forward.15} parent=5 // pred_check
      %p169 = pneg %p168
    $region14: #{forward.15} parent=5 // pred_check_branch
      %171 = sbr.rel (%p169) target = $region16
    $region15: #{forward.15} parent=5 // pred_region
      // Predicated region
      $region17: #{forward.15} parent=15 // pred_check
        %p172 = pneg %p59
      $region18: #{forward.15} parent=15 // pred_check_branch
        %174 = sbr.rel (%p172) target = $region20
      $region19: #{forward.15} parent=15 // pred_region
        %s175 = smul.u32 32, %s17
        %s176 = smul.u32 2, %s19
        %p177 = scmp.lt.s32.totalorder %s16, 3
        %s178 = scalar_select %p177, %s16, 3
        %p179 = scmp.lt.s32.totalorder %s175, 31
        %s180 = scalar_select %p179, %s175, 31
        %p181 = scmp.lt.s32.totalorder %s176, 1
        %s182 = scalar_select %p181, %s176, 1
        %s183 = smul.addr %s180, 2
        %s184 = sadd.s32 %s182, %s183
        %s185 = smul.addr %s178, 64
        %s186 = sadd.s32 %s184, %s185
        %s187 = smul.addr %s186, 4
        %s188 = scalar_lea.vmem %s0, %s187
        %s189 = smul.u32 32, %s17
        %s190 = smul.u32 2, %s19
      $region20: #{forward.15} parent=15 // pred_fallthru
        _
      // Predicated region
      $region21: #{forward.15} parent=15 // pred_check
        %p191 = pneg %p89
      $region22: #{forward.15} parent=15 // pred_check_branch
        %193 = sbr.rel (%p191) target = $region24
      $region23: #{forward.15} parent=15 // pred_region
        %s194 = smul.u32 32, %s19
        %p195 = scmp.lt.s32.totalorder %s16, 3
        %s196 = scalar_select %p195, %s16, 3
        %p197 = scmp.lt.s32.totalorder %s194, 31
        %s198 = scalar_select %p197, %s194, 31
        %p199 = scmp.lt.s32.totalorder %s18, 0
        %s200 = scalar_select %p199, %s18, 0
        %s201 = sadd.s32 %s200, %s198
        %s202 = smul.addr %s196, 32
        %s203 = sadd.s32 %s201, %s202
        %s204 = smul.addr %s203, 4
        %s205 = scalar_lea.vmem %s1, %s204
        %s206 = smul.u32 32, %s19
      $region24: #{forward.15} parent=15 // pred_fallthru
        _
      // Predicated region
      $region25: #{forward.15} parent=15 // pred_check
        %p207 = pneg %p117
      $region26: #{forward.15} parent=15 // pred_check_branch
        %209 = sbr.rel (%p207) target = $region28
      $region27: #{forward.15} parent=15 // pred_region
        %p210 = scmp.lt.s32.totalorder %s16, 3
        %s211 = scalar_select %p210, %s16, 3
        %p212 = scmp.lt.s32.totalorder %s18, 0
        %s213 = scalar_select %p212, %s18, 0
        %s214 = sadd.s32 %s213, %s211
        %s215 = scalar_lea.vmem %s2, %s214
      $region28: #{forward.15} parent=15 // pred_fallthru
        _
    $region16: #{forward.15} parent=5 // pred_fallthru
      _
    %p216 = scmp.le.s32.totalorder 1, %s9
    %p217 = scmp.lt.s32.totalorder %s9, 5
    %p218 = pnand %p216, %p217
    %p219 = pneg %p218
    // Predicated region
    $region29: #{forward.15} parent=5 // pred_check
      _
    $region30: #{forward.15} parent=5 // pred_check_branch
      %221 = sbr.rel (%p218) target = $region32
    $region31: #{forward.15} parent=5 // pred_region
      %s222 = ssub.s32 %s9, 1
      %s223 = smul.u32 32, %s21
      %s224 = smul.u32 2, %s23
      %p225 = scmp.lt.s32.totalorder %s20, 3
      %s226 = scalar_select %p225, %s20, 3
      %p227 = scmp.lt.s32.totalorder %s223, 31
      %s228 = scalar_select %p227, %s223, 31
      %p229 = scmp.lt.s32.totalorder %s224, 1
      %s230 = scalar_select %p229, %s224, 1
      %s231 = smul.addr %s228, 2
      %s232 = sadd.s32 %s230, %s231
      %s233 = smul.addr %s226, 64
      %s234 = sadd.s32 %s232, %s233
      %s235 = smul.addr %s234, 4
      %s236 = scalar_lea.vmem %s0, %s235
      %p237 = pneg %p65
      %p238 = pneg %p62
      %s239 = smul.u32 32, %s23
      %p240 = scmp.lt.s32.totalorder %s20, 3
      %s241 = scalar_select %p240, %s20, 3
      %p242 = scmp.lt.s32.totalorder %s239, 31
      %s243 = scalar_select %p242, %s239, 31
      %p244 = scmp.lt.s32.totalorder %s22, 0
      %s245 = scalar_select %p244, %s22, 0
      %s246 = sadd.s32 %s245, %s243
      %s247 = smul.addr %s241, 32
      %s248 = sadd.s32 %s246, %s247
      %s249 = smul.addr %s248, 4
      %s250 = scalar_lea.vmem %s1, %s249
      %p251 = pneg %p95
      %p252 = pneg %p92
      %p253 = scmp.lt.s32.totalorder %s20, 3
      %s254 = scalar_select %p253, %s20, 3
      %p255 = scmp.lt.s32.totalorder %s22, 0
      %s256 = scalar_select %p255, %s22, 0
      %s257 = sadd.s32 %s256, %s254
      %s258 = scalar_lea.vmem %s2, %s257
      %p259 = pneg %p123
      %p260 = pneg %p120
      %p261 = pneg %p153
      %p262 = pneg %p150
      %s263 = smul.u32 32, %s21
      %p264 = scmp.lt.s32.totalorder %s20, 3
      %s265 = scalar_select %p264, %s20, 3
      %p266 = scmp.lt.s32.totalorder %s263, 31
      %s267 = scalar_select %p266, %s263, 31
      %p268 = scmp.lt.s32.totalorder %s22, 0
      %s269 = scalar_select %p268, %s22, 0
      %s270 = sadd.s32 %s269, %s267
      %s271 = smul.addr %s265, 32
      %s272 = sadd.s32 %s270, %s271
      %s273 = smul.addr %s272, 8
      %s274 = scalar_lea.vmem %s3, %s273
      %s275 = smul.u32 32, %s21
      %s276 = smul.u32 2, %s23
      %p277 = scmp.lt.s32.totalorder %s20, 3
      %s278 = scalar_select %p277, %s20, 3
      %p279 = scmp.lt.s32.totalorder %s275, 31
      %s280 = scalar_select %p279, %s275, 31
      %p281 = scmp.lt.s32.totalorder %s276, 1
      %s282 = scalar_select %p281, %s276, 1
      %s283 = smul.addr %s280, 2
      %s284 = sadd.s32 %s282, %s283
      %s285 = smul.addr %s278, 64
      %s286 = sadd.s32 %s284, %s285
      %s287 = smul.addr %s286, 4
      %s288 = scalar_lea.vmem %s0, %s287
      %s289 = smul.u32 32, %s21
      %s290 = smul.u32 2, %s23
      %s291 = smul.u32 32, %s23
      %p292 = scmp.lt.s32.totalorder %s20, 3
      %s293 = scalar_select %p292, %s20, 3
      %p294 = scmp.lt.s32.totalorder %s291, 31
      %s295 = scalar_select %p294, %s291, 31
      %p296 = scmp.lt.s32.totalorder %s22, 0
      %s297 = scalar_select %p296, %s22, 0
      %s298 = sadd.s32 %s297, %s295
      %s299 = smul.addr %s293, 32
      %s300 = sadd.s32 %s298, %s299
      %s301 = smul.addr %s300, 4
      %s302 = scalar_lea.vmem %s1, %s301
      %s303 = smul.u32 32, %s23
      %p304 = scmp.lt.s32.totalorder %s20, 3
      %s305 = scalar_select %p304, %s20, 3
      %p306 = scmp.lt.s32.totalorder %s22, 0
      %s307 = scalar_select %p306, %s22, 0
      %s308 = sadd.s32 %s307, %s305
      %s309 = scalar_lea.vmem %s2, %s308
      %s310 = smul.u32 32, %s21
      %p311 = scmp.lt.s32.totalorder %s20, 3
      %s312 = scalar_select %p311, %s20, 3
      %p313 = scmp.lt.s32.totalorder %s310, 31
      %s314 = scalar_select %p313, %s310, 31
      %p315 = scmp.lt.s32.totalorder %s22, 0
      %s316 = scalar_select %p315, %s22, 0
      %s317 = sadd.s32 %s316, %s314
      %s318 = smul.addr %s312, 32
      %s319 = sadd.s32 %s317, %s318
      %s320 = smul.addr %s319, 8
      %s321 = scalar_lea.vmem %s3, %s320
      %s322 = smul.u32 32, %s21
      %p323 = scmp.eq.s32.totalorder %s23, 0
      // Predicated region
      $region33: #{forward.15} parent=31 // pred_check
        %p324 = pneg %p323
      $region34: #{forward.15} parent=31 // pred_check_branch
        %326 = sbr.rel (%p324) target = $region36
      $region35: #{forward.15} parent=31 // pred_region
        %327 = vst [vmem:[#allocation2] sm:$0xff] 0.0
        %328 = vst [vmem:[#allocation2 + $0x8] sm:$0xff] 0.0
        %329 = vst [vmem:[#allocation2 + $0x10] sm:$0xff] 0.0
        %330 = vst [vmem:[#allocation2 + $0x18] sm:$0xff] 0.0
        %331 = vst [vmem:[#allocation2 + $0x20] sm:$0xff] 0.0
        %332 = vst [vmem:[#allocation2 + $0x28] sm:$0xff] 0.0
        %333 = vst [vmem:[#allocation2 + $0x30] sm:$0xff] 0.0
        %334 = vst [vmem:[#allocation2 + $0x38] sm:$0xff] 0.0
        %335 = vst [vmem:[#allocation2 + $0x40] sm:$0xff] 0.0
        %336 = vst [vmem:[#allocation2 + $0x48] sm:$0xff] 0.0
        %337 = vst [vmem:[#allocation2 + $0x50] sm:$0xff] 0.0
        %338 = vst [vmem:[#allocation2 + $0x58] sm:$0xff] 0.0
        %339 = vst [vmem:[#allocation2 + $0x60] sm:$0xff] 0.0
        %340 = vst [vmem:[#allocation2 + $0x68] sm:$0xff] 0.0
        %341 = vst [vmem:[#allocation2 + $0x70] sm:$0xff] 0.0
        %342 = vst [vmem:[#allocation2 + $0x78] sm:$0xff] 0.0
        %343 = vst [vmem:[#allocation2 + $0x80] sm:$0xff] 0.0
        %344 = vst [vmem:[#allocation2 + $0x88] sm:$0xff] 0.0
        %345 = vst [vmem:[#allocation2 + $0x90] sm:$0xff] 0.0
        %346 = vst [vmem:[#allocation2 + $0x98] sm:$0xff] 0.0
        %347 = vst [vmem:[#allocation2 + $0xa0] sm:$0xff] 0.0
        %348 = vst [vmem:[#allocation2 + $0xa8] sm:$0xff] 0.0
        %349 = vst [vmem:[#allocation2 + $0xb0] sm:$0xff] 0.0
        %350 = vst [vmem:[#allocation2 + $0xb8] sm:$0xff] 0.0
        %351 = vst [vmem:[#allocation2 + $0xc0] sm:$0xff] 0.0
        %352 = vst [vmem:[#allocation2 + $0xc8] sm:$0xff] 0.0
        %353 = vst [vmem:[#allocation2 + $0xd0] sm:$0xff] 0.0
        %354 = vst [vmem:[#allocation2 + $0xd8] sm:$0xff] 0.0
        %355 = vst [vmem:[#allocation2 + $0xe0] sm:$0xff] 0.0
        %356 = vst [vmem:[#allocation2 + $0xe8] sm:$0xff] 0.0
        %357 = vst [vmem:[#allocation2 + $0xf0] sm:$0xff] 0.0
        %358 = vst [vmem:[#allocation2 + $0xf8] sm:$0xff] 0.0
      $region36: #{forward.15} parent=31 // pred_fallthru
        _
      %v359 = vld [vmem:[#allocation2] sm:$0xff]
      %v360 = vld [vmem:[#allocation2 + $0x8] sm:$0xff]
      %v361 = vld [vmem:[#allocation2 + $0x10] sm:$0xff]
      %v362 = vld [vmem:[#allocation2 + $0x18] sm:$0xff]
      %v363 = vld [vmem:[#allocation2 + $0x20] sm:$0xff]
      %v364 = vld [vmem:[#allocation2 + $0x28] sm:$0xff]
      %v365 = vld [vmem:[#allocation2 + $0x30] sm:$0xff]
      %v366 = vld [vmem:[#allocation2 + $0x38] sm:$0xff]
      %v367 = vld [vmem:[#allocation2 + $0x40] sm:$0xff]
      %v368 = vld [vmem:[#allocation2 + $0x48] sm:$0xff]
      %v369 = vld [vmem:[#allocation2 + $0x50] sm:$0xff]
      %v370 = vld [vmem:[#allocation2 + $0x58] sm:$0xff]
      %v371 = vld [vmem:[#allocation2 + $0x60] sm:$0xff]
      %v372 = vld [vmem:[#allocation2 + $0x68] sm:$0xff]
      %v373 = vld [vmem:[#allocation2 + $0x70] sm:$0xff]
      %v374 = vld [vmem:[#allocation2 + $0x78] sm:$0xff]
      %v375 = vld [vmem:[#allocation2 + $0x80] sm:$0xff]
      %v376 = vld [vmem:[#allocation2 + $0x88] sm:$0xff]
      %v377 = vld [vmem:[#allocation2 + $0x90] sm:$0xff]
      %v378 = vld [vmem:[#allocation2 + $0x98] sm:$0xff]
      %v379 = vld [vmem:[#allocation2 + $0xa0] sm:$0xff]
      %v380 = vld [vmem:[#allocation2 + $0xa8] sm:$0xff]
      %v381 = vld [vmem:[#allocation2 + $0xb0] sm:$0xff]
      %v382 = vld [vmem:[#allocation2 + $0xb8] sm:$0xff]
      %v383 = vld [vmem:[#allocation2 + $0xc0] sm:$0xff]
      %v384 = vld [vmem:[#allocation2 + $0xc8] sm:$0xff]
      %v385 = vld [vmem:[#allocation2 + $0xd0] sm:$0xff]
      %v386 = vld [vmem:[#allocation2 + $0xd8] sm:$0xff]
      %v387 = vld [vmem:[#allocation2 + $0xe0] sm:$0xff]
      %v388 = vld [vmem:[#allocation2 + $0xe8] sm:$0xff]
      %v389 = vld [vmem:[#allocation2 + $0xf0] sm:$0xff]
      %v390 = vld [vmem:[#allocation2 + $0xf8] sm:$0xff]
      %v391 = vld [vmem:[%s288] sm:$0xff]
      %v392 = vld [vmem:[%s288 + $0x8] sm:$0xff]
      %v393 = vld [vmem:[%s288 + $0x10] sm:$0xff]
      %v394 = vld [vmem:[%s288 + $0x18] sm:$0xff]
      %v395 = vld [vmem:[%s288 + $0x20] sm:$0xff]
      %v396 = vld [vmem:[%s288 + $0x28] sm:$0xff]
      %v397 = vld [vmem:[%s288 + $0x30] sm:$0xff]
      %v398 = vld [vmem:[%s288 + $0x38] sm:$0xff]
      %v399 = vld [vmem:[%s288 + $0x40] sm:$0xff]
      %v400 = vld [vmem:[%s288 + $0x48] sm:$0xff]
      %v401 = vld [vmem:[%s288 + $0x50] sm:$0xff]
      %v402 = vld [vmem:[%s288 + $0x58] sm:$0xff]
      %v403 = vld [vmem:[%s288 + $0x60] sm:$0xff]
      %v404 = vld [vmem:[%s288 + $0x68] sm:$0xff]
      %v405 = vld [vmem:[%s288 + $0x70] sm:$0xff]
      %v406 = vld [vmem:[%s288 + $0x78] sm:$0xff]
      %v407 = vld [vmem:[%s288 + $0x80] sm:$0xff]
      %v408 = vld [vmem:[%s288 + $0x88] sm:$0xff]
      %v409 = vld [vmem:[%s288 + $0x90] sm:$0xff]
      %v410 = vld [vmem:[%s288 + $0x98] sm:$0xff]
      %v411 = vld [vmem:[%s288 + $0xa0] sm:$0xff]
      %v412 = vld [vmem:[%s288 + $0xa8] sm:$0xff]
      %v413 = vld [vmem:[%s288 + $0xb0] sm:$0xff]
      %v414 = vld [vmem:[%s288 + $0xb8] sm:$0xff]
      %v415 = vld [vmem:[%s288 + $0xc0] sm:$0xff]
      %v416 = vld [vmem:[%s288 + $0xc8] sm:$0xff]
      %v417 = vld [vmem:[%s288 + $0xd0] sm:$0xff]
      %v418 = vld [vmem:[%s288 + $0xd8] sm:$0xff]
      %v419 = vld [vmem:[%s288 + $0xe0] sm:$0xff]
      %v420 = vld [vmem:[%s288 + $0xe8] sm:$0xff]
      %v421 = vld [vmem:[%s288 + $0xf0] sm:$0xff]
      %v422 = vld [vmem:[%s288 + $0xf8] sm:$0xff]
      %v423 = vld [vmem:[%s302] sm:$0xf]
      %v424 = vld [vmem:[%s302 + $0x4] sm:$0xf]
      %v425 = vld [vmem:[%s302 + $0x8] sm:$0xf]
      %v426 = vld [vmem:[%s302 + $0xc] sm:$0xf]
      %v427 = vld [vmem:[%s302 + $0x10] sm:$0xf]
      %v428 = vld [vmem:[%s302 + $0x14] sm:$0xf]
      %v429 = vld [vmem:[%s302 + $0x18] sm:$0xf]
      %v430 = vld [vmem:[%s302 + $0x1c] sm:$0xf]
      %v431 = vld [vmem:[%s302 + $0x20] sm:$0xf]
      %v432 = vld [vmem:[%s302 + $0x24] sm:$0xf]
      %v433 = vld [vmem:[%s302 + $0x28] sm:$0xf]
      %v434 = vld [vmem:[%s302 + $0x2c] sm:$0xf]
      %v435 = vld [vmem:[%s302 + $0x30] sm:$0xf]
      %v436 = vld [vmem:[%s302 + $0x34] sm:$0xf]
      %v437 = vld [vmem:[%s302 + $0x38] sm:$0xf]
      %v438 = vld [vmem:[%s302 + $0x3c] sm:$0xf]
      %v439 = vld [vmem:[%s302 + $0x40] sm:$0xf]
      %v440 = vld [vmem:[%s302 + $0x44] sm:$0xf]
      %v441 = vld [vmem:[%s302 + $0x48] sm:$0xf]
      %v442 = vld [vmem:[%s302 + $0x4c] sm:$0xf]
      %v443 = vld [vmem:[%s302 + $0x50] sm:$0xf]
      %v444 = vld [vmem:[%s302 + $0x54] sm:$0xf]
      %v445 = vld [vmem:[%s302 + $0x58] sm:$0xf]
      %v446 = vld [vmem:[%s302 + $0x5c] sm:$0xf]
      %v447 = vld [vmem:[%s302 + $0x60] sm:$0xf]
      %v448 = vld [vmem:[%s302 + $0x64] sm:$0xf]
      %v449 = vld [vmem:[%s302 + $0x68] sm:$0xf]
      %v450 = vld [vmem:[%s302 + $0x6c] sm:$0xf]
      %v451 = vld [vmem:[%s302 + $0x70] sm:$0xf]
      %v452 = vld [vmem:[%s302 + $0x74] sm:$0xf]
      %v453 = vld [vmem:[%s302 + $0x78] sm:$0xf]
      %v454 = vld [vmem:[%s302 + $0x7c] sm:$0xf]
      %v487 = vunpack.c.l.b16 %v391
      %v488 = vunpack.c.h.b16 %v391
      %v489 = vunpack.c.l.b16 %v392
      %v490 = vunpack.c.h.b16 %v392
      %v491 = vunpack.c.l.b16 %v393
      %v492 = vunpack.c.h.b16 %v393
      %v493 = vunpack.c.l.b16 %v394
      %v494 = vunpack.c.h.b16 %v394
      %v495 = vunpack.c.l.b16 %v395
      %v496 = vunpack.c.h.b16 %v395
      %v497 = vunpack.c.l.b16 %v396
      %v498 = vunpack.c.h.b16 %v396
      %v499 = vunpack.c.l.b16 %v397
      %v500 = vunpack.c.h.b16 %v397
      %v501 = vunpack.c.l.b16 %v398
      %v502 = vunpack.c.h.b16 %v398
      %v503 = vunpack.c.l.b16 %v399
      %v504 = vunpack.c.h.b16 %v399
      %v505 = vunpack.c.l.b16 %v400
      %v506 = vunpack.c.h.b16 %v400
      %v507 = vunpack.c.l.b16 %v401
      %v508 = vunpack.c.h.b16 %v401
      %v509 = vunpack.c.l.b16 %v402
      %v510 = vunpack.c.h.b16 %v402
      %v511 = vunpack.c.l.b16 %v403
      %v512 = vunpack.c.h.b16 %v403
      %v513 = vunpack.c.l.b16 %v404
      %v514 = vunpack.c.h.b16 %v404
      %v515 = vunpack.c.l.b16 %v405
      %v516 = vunpack.c.h.b16 %v405
      %v517 = vunpack.c.l.b16 %v406
      %v518 = vunpack.c.h.b16 %v406
      %v519 = vunpack.c.l.b16 %v407
      %v520 = vunpack.c.h.b16 %v407
      %v521 = vunpack.c.l.b16 %v408
      %v522 = vunpack.c.h.b16 %v408
      %v523 = vunpack.c.l.b16 %v409
      %v524 = vunpack.c.h.b16 %v409
      %v525 = vunpack.c.l.b16 %v410
      %v526 = vunpack.c.h.b16 %v410
      %v527 = vunpack.c.l.b16 %v411
      %v528 = vunpack.c.h.b16 %v411
      %v529 = vunpack.c.l.b16 %v412
      %v530 = vunpack.c.h.b16 %v412
      %v531 = vunpack.c.l.b16 %v413
      %v532 = vunpack.c.h.b16 %v413
      %v533 = vunpack.c.l.b16 %v414
      %v534 = vunpack.c.h.b16 %v414
      %v535 = vunpack.c.l.b16 %v415
      %v536 = vunpack.c.h.b16 %v415
      %v537 = vunpack.c.l.b16 %v416
      %v538 = vunpack.c.h.b16 %v416
      %v539 = vunpack.c.l.b16 %v417
      %v540 = vunpack.c.h.b16 %v417
      %v541 = vunpack.c.l.b16 %v418
      %v542 = vunpack.c.h.b16 %v418
      %v543 = vunpack.c.l.b16 %v419
      %v544 = vunpack.c.h.b16 %v419
      %v545 = vunpack.c.l.b16 %v420
      %v546 = vunpack.c.h.b16 %v420
      %v547 = vunpack.c.l.b16 %v421
      %v548 = vunpack.c.h.b16 %v421
      %v549 = vunpack.c.l.b16 %v422
      %v550 = vunpack.c.h.b16 %v422
      %v551 = vpack.c.b16 %v489, %v487
      %v552 = vpack.c.b16 %v490, %v488
      %v553 = vpack.c.b16 %v493, %v491
      %v554 = vpack.c.b16 %v494, %v492
      %v555 = vpack.c.b16 %v497, %v495
      %v556 = vpack.c.b16 %v498, %v496
      %v557 = vpack.c.b16 %v501, %v499
      %v558 = vpack.c.b16 %v502, %v500
      %v559 = vpack.c.b16 %v505, %v503
      %v560 = vpack.c.b16 %v506, %v504
      %v561 = vpack.c.b16 %v509, %v507
      %v562 = vpack.c.b16 %v510, %v508
      %v563 = vpack.c.b16 %v513, %v511
      %v564 = vpack.c.b16 %v514, %v512
      %v565 = vpack.c.b16 %v517, %v515
      %v566 = vpack.c.b16 %v518, %v516
      %v567 = vpack.c.b16 %v521, %v519
      %v568 = vpack.c.b16 %v522, %v520
      %v569 = vpack.c.b16 %v525, %v523
      %v570 = vpack.c.b16 %v526, %v524
      %v571 = vpack.c.b16 %v529, %v527
      %v572 = vpack.c.b16 %v530, %v528
      %v573 = vpack.c.b16 %v533, %v531
      %v574 = vpack.c.b16 %v534, %v532
      %v575 = vpack.c.b16 %v537, %v535
      %v576 = vpack.c.b16 %v538, %v536
      %v577 = vpack.c.b16 %v541, %v539
      %v578 = vpack.c.b16 %v542, %v540
      %v579 = vpack.c.b16 %v545, %v543
      %v580 = vpack.c.b16 %v546, %v544
      %v581 = vpack.c.b16 %v549, %v547
      %v582 = vpack.c.b16 %v550, %v548
      %v647 = vunpack.c.l.b16 %v423
      %v648 = vunpack.c.l.b16 %v424
      %v649 = vunpack.c.l.b16 %v425
      %v650 = vunpack.c.l.b16 %v426
      %v651 = vunpack.c.l.b16 %v427
      %v652 = vunpack.c.l.b16 %v428
      %v653 = vunpack.c.l.b16 %v429
      %v654 = vunpack.c.l.b16 %v430
      %v655 = vunpack.c.l.b16 %v431
      %v656 = vunpack.c.l.b16 %v432
      %v657 = vunpack.c.l.b16 %v433
      %v658 = vunpack.c.l.b16 %v434
      %v659 = vunpack.c.l.b16 %v435
      %v660 = vunpack.c.l.b16 %v436
      %v661 = vunpack.c.l.b16 %v437
      %v662 = vunpack.c.l.b16 %v438
      %v663 = vunpack.c.l.b16 %v439
      %v664 = vunpack.c.l.b16 %v440
      %v665 = vunpack.c.l.b16 %v441
      %v666 = vunpack.c.l.b16 %v442
      %v667 = vunpack.c.l.b16 %v443
      %v668 = vunpack.c.l.b16 %v444
      %v669 = vunpack.c.l.b16 %v445
      %v670 = vunpack.c.l.b16 %v446
      %v671 = vunpack.c.l.b16 %v447
      %v672 = vunpack.c.l.b16 %v448
      %v673 = vunpack.c.l.b16 %v449
      %v674 = vunpack.c.l.b16 %v450
      %v675 = vunpack.c.l.b16 %v451
      %v676 = vunpack.c.l.b16 %v452
      %v677 = vunpack.c.l.b16 %v453
      %v678 = vunpack.c.l.b16 %v454
      %v679 = vpack.c.b16 %v648, %v647
      %v680 = vpack.c.b16 %v650, %v649
      %v681 = vpack.c.b16 %v652, %v651
      %v682 = vpack.c.b16 %v654, %v653
      %v683 = vpack.c.b16 %v656, %v655
      %v684 = vpack.c.b16 %v658, %v657
      %v685 = vpack.c.b16 %v660, %v659
      %v686 = vpack.c.b16 %v662, %v661
      %v687 = vpack.c.b16 %v664, %v663
      %v688 = vpack.c.b16 %v666, %v665
      %v689 = vpack.c.b16 %v668, %v667
      %v690 = vpack.c.b16 %v670, %v669
      %v691 = vpack.c.b16 %v672, %v671
      %v692 = vpack.c.b16 %v674, %v673
      %v693 = vpack.c.b16 %v676, %v675
      %v694 = vpack.c.b16 %v678, %v677
      %711 = vmatpush.bf16.msra.mxu0 %v686
      %712 = vmatpush.bf16.msra.mxu0 %v685
      %713 = vmatpush.bf16.msra.mxu0 %v684
      %714 = vmatpush.bf16.msra.mxu0 %v683
      %715 = vmatpush.bf16.msra.mxu0 %v682
      %716 = vmatpush.bf16.msra.mxu0 %v681
      %717 = vmatpush.bf16.msra.mxu0 %v680
      %718 = vmatpush.bf16.msra.mxu0 %v679
      %719 = vmatmul.bf16.gmra.mxu0 %v551
      %v720 = vpop.f32.mrf.mxu0
      %v721 = vadd.f32 0.0, %v720
      %v722 = vpop.f32.mrf.mxu0
      %v723 = vadd.f32 0.0, %v722
      %724 = vmatmul.bf16.gmra.mxu0 %v553
      %v725 = vpop.f32.mrf.mxu0
      %v726 = vadd.f32 0.0, %v725
      %v727 = vpop.f32.mrf.mxu0
      %v728 = vadd.f32 0.0, %v727
      %729 = vmatmul.bf16.gmra.mxu0 %v555
      %v730 = vpop.f32.mrf.mxu0
      %v731 = vadd.f32 0.0, %v730
      %v732 = vpop.f32.mrf.mxu0
      %v733 = vadd.f32 0.0, %v732
      %734 = vmatmul.bf16.gmra.mxu0 %v557
      %v735 = vpop.f32.mrf.mxu0
      %v736 = vadd.f32 0.0, %v735
      %v737 = vpop.f32.mrf.mxu0
      %v738 = vadd.f32 0.0, %v737
      %739 = vmatmul.bf16.gmra.mxu0 %v559
      %v740 = vpop.f32.mrf.mxu0
      %v741 = vadd.f32 0.0, %v740
      %v742 = vpop.f32.mrf.mxu0
      %v743 = vadd.f32 0.0, %v742
      %744 = vmatmul.bf16.gmra.mxu0 %v561
      %v745 = vpop.f32.mrf.mxu0
      %v746 = vadd.f32 0.0, %v745
      %v747 = vpop.f32.mrf.mxu0
      %v748 = vadd.f32 0.0, %v747
      %749 = vmatmul.bf16.gmra.mxu0 %v563
      %v750 = vpop.f32.mrf.mxu0
      %v751 = vadd.f32 0.0, %v750
      %v752 = vpop.f32.mrf.mxu0
      %v753 = vadd.f32 0.0, %v752
      %754 = vmatmul.bf16.gmra.mxu0 %v565
      %v755 = vpop.f32.mrf.mxu0
      %v756 = vadd.f32 0.0, %v755
      %v757 = vpop.f32.mrf.mxu0
      %v758 = vadd.f32 0.0, %v757
      %759 = vmatmul.bf16.gmra.mxu0 %v567
      %v760 = vpop.f32.mrf.mxu0
      %v761 = vadd.f32 0.0, %v760
      %v762 = vpop.f32.mrf.mxu0
      %v763 = vadd.f32 0.0, %v762
      %764 = vmatmul.bf16.gmra.mxu0 %v569
      %v765 = vpop.f32.mrf.mxu0
      %v766 = vadd.f32 0.0, %v765
      %v767 = vpop.f32.mrf.mxu0
      %v768 = vadd.f32 0.0, %v767
      %769 = vmatmul.bf16.gmra.mxu0 %v571
      %v770 = vpop.f32.mrf.mxu0
      %v771 = vadd.f32 0.0, %v770
      %v772 = vpop.f32.mrf.mxu0
      %v773 = vadd.f32 0.0, %v772
      %774 = vmatmul.bf16.gmra.mxu0 %v573
      %v775 = vpop.f32.mrf.mxu0
      %v776 = vadd.f32 0.0, %v775
      %v777 = vpop.f32.mrf.mxu0
      %v778 = vadd.f32 0.0, %v777
      %779 = vmatmul.bf16.gmra.mxu0 %v575
      %v780 = vpop.f32.mrf.mxu0
      %v781 = vadd.f32 0.0, %v780
      %v782 = vpop.f32.mrf.mxu0
      %v783 = vadd.f32 0.0, %v782
      %784 = vmatmul.bf16.gmra.mxu0 %v577
      %v785 = vpop.f32.mrf.mxu0
      %v786 = vadd.f32 0.0, %v785
      %v787 = vpop.f32.mrf.mxu0
      %v788 = vadd.f32 0.0, %v787
      %789 = vmatmul.bf16.gmra.mxu0 %v579
      %v790 = vpop.f32.mrf.mxu0
      %v791 = vadd.f32 0.0, %v790
      %v792 = vpop.f32.mrf.mxu0
      %v793 = vadd.f32 0.0, %v792
      %794 = vmatmul.bf16.gmra.mxu0 %v581
      %v795 = vpop.f32.mrf.mxu0
      %v796 = vadd.f32 0.0, %v795
      %v797 = vpop.f32.mrf.mxu0
      %v798 = vadd.f32 0.0, %v797
      %799 = vdwg.mxu0
      %800 = vmatpush.bf16.msra.mxu0 %v694
      %801 = vmatpush.bf16.msra.mxu0 %v693
      %802 = vmatpush.bf16.msra.mxu0 %v692
      %803 = vmatpush.bf16.msra.mxu0 %v691
      %804 = vmatpush.bf16.msra.mxu0 %v690
      %805 = vmatpush.bf16.msra.mxu0 %v689
      %806 = vmatpush.bf16.msra.mxu0 %v688
      %807 = vmatpush.bf16.msra.mxu0 %v687
      %808 = vmatmul.bf16.gmra.mxu0 %v552
      %v809 = vpop.f32.mrf.mxu0
      %v810 = vadd.f32 %v721, %v809
      %v811 = vpop.f32.mrf.mxu0
      %v812 = vadd.f32 %v723, %v811
      %813 = vmatmul.bf16.gmra.mxu0 %v554
      %v814 = vpop.f32.mrf.mxu0
      %v815 = vadd.f32 %v726, %v814
      %v816 = vpop.f32.mrf.mxu0
      %v817 = vadd.f32 %v728, %v816
      %818 = vmatmul.bf16.gmra.mxu0 %v556
      %v819 = vpop.f32.mrf.mxu0
      %v820 = vadd.f32 %v731, %v819
      %v821 = vpop.f32.mrf.mxu0
      %v822 = vadd.f32 %v733, %v821
      %823 = vmatmul.bf16.gmra.mxu0 %v558
      %v824 = vpop.f32.mrf.mxu0
      %v825 = vadd.f32 %v736, %v824
      %v826 = vpop.f32.mrf.mxu0
      %v827 = vadd.f32 %v738, %v826
      %828 = vmatmul.bf16.gmra.mxu0 %v560
      %v829 = vpop.f32.mrf.mxu0
      %v830 = vadd.f32 %v741, %v829
      %v831 = vpop.f32.mrf.mxu0
      %v832 = vadd.f32 %v743, %v831
      %833 = vmatmul.bf16.gmra.mxu0 %v562
      %v834 = vpop.f32.mrf.mxu0
      %v835 = vadd.f32 %v746, %v834
      %v836 = vpop.f32.mrf.mxu0
      %v837 = vadd.f32 %v748, %v836
      %838 = vmatmul.bf16.gmra.mxu0 %v564
      %v839 = vpop.f32.mrf.mxu0
      %v840 = vadd.f32 %v751, %v839
      %v841 = vpop.f32.mrf.mxu0
      %v842 = vadd.f32 %v753, %v841
      %843 = vmatmul.bf16.gmra.mxu0 %v566
      %v844 = vpop.f32.mrf.mxu0
      %v845 = vadd.f32 %v756, %v844
      %v846 = vpop.f32.mrf.mxu0
      %v847 = vadd.f32 %v758, %v846
      %848 = vmatmul.bf16.gmra.mxu0 %v568
      %v849 = vpop.f32.mrf.mxu0
      %v850 = vadd.f32 %v761, %v849
      %v851 = vpop.f32.mrf.mxu0
      %v852 = vadd.f32 %v763, %v851
      %853 = vmatmul.bf16.gmra.mxu0 %v570
      %v854 = vpop.f32.mrf.mxu0
      %v855 = vadd.f32 %v766, %v854
      %v856 = vpop.f32.mrf.mxu0
      %v857 = vadd.f32 %v768, %v856
      %858 = vmatmul.bf16.gmra.mxu0 %v572
      %v859 = vpop.f32.mrf.mxu0
      %v860 = vadd.f32 %v771, %v859
      %v861 = vpop.f32.mrf.mxu0
      %v862 = vadd.f32 %v773, %v861
      %863 = vmatmul.bf16.gmra.mxu0 %v574
      %v864 = vpop.f32.mrf.mxu0
      %v865 = vadd.f32 %v776, %v864
      %v866 = vpop.f32.mrf.mxu0
      %v867 = vadd.f32 %v778, %v866
      %868 = vmatmul.bf16.gmra.mxu0 %v576
      %v869 = vpop.f32.mrf.mxu0
      %v870 = vadd.f32 %v781, %v869
      %v871 = vpop.f32.mrf.mxu0
      %v872 = vadd.f32 %v783, %v871
      %873 = vmatmul.bf16.gmra.mxu0 %v578
      %v874 = vpop.f32.mrf.mxu0
      %v875 = vadd.f32 %v786, %v874
      %v876 = vpop.f32.mrf.mxu0
      %v877 = vadd.f32 %v788, %v876
      %878 = vmatmul.bf16.gmra.mxu0 %v580
      %v879 = vpop.f32.mrf.mxu0
      %v880 = vadd.f32 %v791, %v879
      %v881 = vpop.f32.mrf.mxu0
      %v882 = vadd.f32 %v793, %v881
      %883 = vmatmul.bf16.gmra.mxu0 %v582
      %v884 = vpop.f32.mrf.mxu0
      %v885 = vadd.f32 %v796, %v884
      %v886 = vpop.f32.mrf.mxu0
      %v887 = vadd.f32 %v798, %v886
      %888 = vdwg.mxu0
      %v889 = vadd.f32 %v359, %v810
      %v890 = vadd.f32 %v360, %v812
      %v891 = vadd.f32 %v361, %v815
      %v892 = vadd.f32 %v362, %v817
      %v893 = vadd.f32 %v363, %v820
      %v894 = vadd.f32 %v364, %v822
      %v895 = vadd.f32 %v365, %v825
      %v896 = vadd.f32 %v366, %v827
      %v897 = vadd.f32 %v367, %v830
      %v898 = vadd.f32 %v368, %v832
      %v899 = vadd.f32 %v369, %v835
      %v900 = vadd.f32 %v370, %v837
      %v901 = vadd.f32 %v371, %v840
      %v902 = vadd.f32 %v372, %v842
      %v903 = vadd.f32 %v373, %v845
      %v904 = vadd.f32 %v374, %v847
      %v905 = vadd.f32 %v375, %v850
      %v906 = vadd.f32 %v376, %v852
      %v907 = vadd.f32 %v377, %v855
      %v908 = vadd.f32 %v378, %v857
      %v909 = vadd.f32 %v379, %v860
      %v910 = vadd.f32 %v380, %v862
      %v911 = vadd.f32 %v381, %v865
      %v912 = vadd.f32 %v382, %v867
      %v913 = vadd.f32 %v383, %v870
      %v914 = vadd.f32 %v384, %v872
      %v915 = vadd.f32 %v385, %v875
      %v916 = vadd.f32 %v386, %v877
      %v917 = vadd.f32 %v387, %v880
      %v918 = vadd.f32 %v388, %v882
      %v919 = vadd.f32 %v389, %v885
      %v920 = vadd.f32 %v390, %v887
      %921 = vst [vmem:[#allocation2] sm:$0xff] %v889
      %922 = vst [vmem:[#allocation2 + $0x8] sm:$0xff] %v890
      %923 = vst [vmem:[#allocation2 + $0x10] sm:$0xff] %v891
      %924 = vst [vmem:[#allocation2 + $0x18] sm:$0xff] %v892
      %925 = vst [vmem:[#allocation2 + $0x20] sm:$0xff] %v893
      %926 = vst [vmem:[#allocation2 + $0x28] sm:$0xff] %v894
      %927 = vst [vmem:[#allocation2 + $0x30] sm:$0xff] %v895
      %928 = vst [vmem:[#allocation2 + $0x38] sm:$0xff] %v896
      %929 = vst [vmem:[#allocation2 + $0x40] sm:$0xff] %v897
      %930 = vst [vmem:[#allocation2 + $0x48] sm:$0xff] %v898
      %931 = vst [vmem:[#allocation2 + $0x50] sm:$0xff] %v899
      %932 = vst [vmem:[#allocation2 + $0x58] sm:$0xff] %v900
      %933 = vst [vmem:[#allocation2 + $0x60] sm:$0xff] %v901
      %934 = vst [vmem:[#allocation2 + $0x68] sm:$0xff] %v902
      %935 = vst [vmem:[#allocation2 + $0x70] sm:$0xff] %v903
      %936 = vst [vmem:[#allocation2 + $0x78] sm:$0xff] %v904
      %937 = vst [vmem:[#allocation2 + $0x80] sm:$0xff] %v905
      %938 = vst [vmem:[#allocation2 + $0x88] sm:$0xff] %v906
      %939 = vst [vmem:[#allocation2 + $0x90] sm:$0xff] %v907
      %940 = vst [vmem:[#allocation2 + $0x98] sm:$0xff] %v908
      %941 = vst [vmem:[#allocation2 + $0xa0] sm:$0xff] %v909
      %942 = vst [vmem:[#allocation2 + $0xa8] sm:$0xff] %v910
      %943 = vst [vmem:[#allocation2 + $0xb0] sm:$0xff] %v911
      %944 = vst [vmem:[#allocation2 + $0xb8] sm:$0xff] %v912
      %945 = vst [vmem:[#allocation2 + $0xc0] sm:$0xff] %v913
      %946 = vst [vmem:[#allocation2 + $0xc8] sm:$0xff] %v914
      %947 = vst [vmem:[#allocation2 + $0xd0] sm:$0xff] %v915
      %948 = vst [vmem:[#allocation2 + $0xd8] sm:$0xff] %v916
      %949 = vst [vmem:[#allocation2 + $0xe0] sm:$0xff] %v917
      %950 = vst [vmem:[#allocation2 + $0xe8] sm:$0xff] %v918
      %951 = vst [vmem:[#allocation2 + $0xf0] sm:$0xff] %v919
      %952 = vst [vmem:[#allocation2 + $0xf8] sm:$0xff] %v920
      // Predicated region
      $region37: #{forward.15} parent=31 // pred_check
        %p953 = pneg %p323
      $region38: #{forward.15} parent=31 // pred_check_branch
        %955 = sbr.rel (%p953) target = $region40
      $region39: #{forward.15} parent=31 // pred_region
        %v956 = vld [vmem:[#allocation2] sm:$0xff]
        %v957 = vld [vmem:[#allocation2 + $0x8] sm:$0xff]
        %v958 = vld [vmem:[#allocation2 + $0x10] sm:$0xff]
        %v959 = vld [vmem:[#allocation2 + $0x18] sm:$0xff]
        %v960 = vld [vmem:[#allocation2 + $0x20] sm:$0xff]
        %v961 = vld [vmem:[#allocation2 + $0x28] sm:$0xff]
        %v962 = vld [vmem:[#allocation2 + $0x30] sm:$0xff]
        %v963 = vld [vmem:[#allocation2 + $0x38] sm:$0xff]
        %v964 = vld [vmem:[#allocation2 + $0x40] sm:$0xff]
        %v965 = vld [vmem:[#allocation2 + $0x48] sm:$0xff]
        %v966 = vld [vmem:[#allocation2 + $0x50] sm:$0xff]
        %v967 = vld [vmem:[#allocation2 + $0x58] sm:$0xff]
        %v968 = vld [vmem:[#allocation2 + $0x60] sm:$0xff]
        %v969 = vld [vmem:[#allocation2 + $0x68] sm:$0xff]
        %v970 = vld [vmem:[#allocation2 + $0x70] sm:$0xff]
        %v971 = vld [vmem:[#allocation2 + $0x78] sm:$0xff]
        %v972 = vld [vmem:[#allocation2 + $0x80] sm:$0xff]
        %v973 = vld [vmem:[#allocation2 + $0x88] sm:$0xff]
        %v974 = vld [vmem:[#allocation2 + $0x90] sm:$0xff]
        %v975 = vld [vmem:[#allocation2 + $0x98] sm:$0xff]
        %v976 = vld [vmem:[#allocation2 + $0xa0] sm:$0xff]
        %v977 = vld [vmem:[#allocation2 + $0xa8] sm:$0xff]
        %v978 = vld [vmem:[#allocation2 + $0xb0] sm:$0xff]
        %v979 = vld [vmem:[#allocation2 + $0xb8] sm:$0xff]
        %v980 = vld [vmem:[#allocation2 + $0xc0] sm:$0xff]
        %v981 = vld [vmem:[#allocation2 + $0xc8] sm:$0xff]
        %v982 = vld [vmem:[#allocation2 + $0xd0] sm:$0xff]
        %v983 = vld [vmem:[#allocation2 + $0xd8] sm:$0xff]
        %v984 = vld [vmem:[#allocation2 + $0xe0] sm:$0xff]
        %v985 = vld [vmem:[#allocation2 + $0xe8] sm:$0xff]
        %v986 = vld [vmem:[#allocation2 + $0xf0] sm:$0xff]
        %v987 = vld [vmem:[#allocation2 + $0xf8] sm:$0xff]
        %v988 = vld [vmem:[%s309] sm:$0x1]
        %v990 = vperm.slane %v988, 0
        %v992 = vadd.f32 %v956, %v990
        %v993 = vadd.f32 %v957, %v990
        %v994 = vadd.f32 %v958, %v990
        %v995 = vadd.f32 %v959, %v990
        %v996 = vadd.f32 %v960, %v990
        %v997 = vadd.f32 %v961, %v990
        %v998 = vadd.f32 %v962, %v990
        %v999 = vadd.f32 %v963, %v990
        %v1000 = vadd.f32 %v964, %v990
        %v1001 = vadd.f32 %v965, %v990
        %v1002 = vadd.f32 %v966, %v990
        %v1003 = vadd.f32 %v967, %v990
        %v1004 = vadd.f32 %v968, %v990
        %v1005 = vadd.f32 %v969, %v990
        %v1006 = vadd.f32 %v970, %v990
        %v1007 = vadd.f32 %v971, %v990
        %v1008 = vadd.f32 %v972, %v990
        %v1009 = vadd.f32 %v973, %v990
        %v1010 = vadd.f32 %v974, %v990
        %v1011 = vadd.f32 %v975, %v990
        %v1012 = vadd.f32 %v976, %v990
        %v1013 = vadd.f32 %v977, %v990
        %v1014 = vadd.f32 %v978, %v990
        %v1015 = vadd.f32 %v979, %v990
        %v1016 = vadd.f32 %v980, %v990
        %v1017 = vadd.f32 %v981, %v990
        %v1018 = vadd.f32 %v982, %v990
        %v1019 = vadd.f32 %v983, %v990
        %v1020 = vadd.f32 %v984, %v990
        %v1021 = vadd.f32 %v985, %v990
        %v1022 = vadd.f32 %v986, %v990
        %v1023 = vadd.f32 %v987, %v990
        %v1024 = vmax.f32 %v992, 0.0
        %v1025 = vmax.f32 %v993, 0.0
        %v1026 = vmax.f32 %v994, 0.0
        %v1027 = vmax.f32 %v995, 0.0
        %v1028 = vmax.f32 %v996, 0.0
        %v1029 = vmax.f32 %v997, 0.0
        %v1030 = vmax.f32 %v998, 0.0
        %v1031 = vmax.f32 %v999, 0.0
        %v1032 = vmax.f32 %v1000, 0.0
        %v1033 = vmax.f32 %v1001, 0.0
        %v1034 = vmax.f32 %v1002, 0.0
        %v1035 = vmax.f32 %v1003, 0.0
        %v1036 = vmax.f32 %v1004, 0.0
        %v1037 = vmax.f32 %v1005, 0.0
        %v1038 = vmax.f32 %v1006, 0.0
        %v1039 = vmax.f32 %v1007, 0.0
        %v1040 = vmax.f32 %v1008, 0.0
        %v1041 = vmax.f32 %v1009, 0.0
        %v1042 = vmax.f32 %v1010, 0.0
        %v1043 = vmax.f32 %v1011, 0.0
        %v1044 = vmax.f32 %v1012, 0.0
        %v1045 = vmax.f32 %v1013, 0.0
        %v1046 = vmax.f32 %v1014, 0.0
        %v1047 = vmax.f32 %v1015, 0.0
        %v1048 = vmax.f32 %v1016, 0.0
        %v1049 = vmax.f32 %v1017, 0.0
        %v1050 = vmax.f32 %v1018, 0.0
        %v1051 = vmax.f32 %v1019, 0.0
        %v1052 = vmax.f32 %v1020, 0.0
        %v1053 = vmax.f32 %v1021, 0.0
        %v1054 = vmax.f32 %v1022, 0.0
        %v1055 = vmax.f32 %v1023, 0.0
        %1056 = vst [vmem:[%s321] sm:$0xff] %v1024
        %1057 = vst [vmem:[%s321 + $0x8] sm:$0xff] %v1025
        %1058 = vst [vmem:[%s321 + $0x10] sm:$0xff] %v1026
        %1059 = vst [vmem:[%s321 + $0x18] sm:$0xff] %v1027
        %1060 = vst [vmem:[%s321 + $0x20] sm:$0xff] %v1028
        %1061 = vst [vmem:[%s321 + $0x28] sm:$0xff] %v1029
        %1062 = vst [vmem:[%s321 + $0x30] sm:$0xff] %v1030
        %1063 = vst [vmem:[%s321 + $0x38] sm:$0xff] %v1031
        %1064 = vst [vmem:[%s321 + $0x40] sm:$0xff] %v1032
        %1065 = vst [vmem:[%s321 + $0x48] sm:$0xff] %v1033
        %1066 = vst [vmem:[%s321 + $0x50] sm:$0xff] %v1034
        %1067 = vst [vmem:[%s321 + $0x58] sm:$0xff] %v1035
        %1068 = vst [vmem:[%s321 + $0x60] sm:$0xff] %v1036
        %1069 = vst [vmem:[%s321 + $0x68] sm:$0xff] %v1037
        %1070 = vst [vmem:[%s321 + $0x70] sm:$0xff] %v1038
        %1071 = vst [vmem:[%s321 + $0x78] sm:$0xff] %v1039
        %1072 = vst [vmem:[%s321 + $0x80] sm:$0xff] %v1040
        %1073 = vst [vmem:[%s321 + $0x88] sm:$0xff] %v1041
        %1074 = vst [vmem:[%s321 + $0x90] sm:$0xff] %v1042
        %1075 = vst [vmem:[%s321 + $0x98] sm:$0xff] %v1043
        %1076 = vst [vmem:[%s321 + $0xa0] sm:$0xff] %v1044
        %1077 = vst [vmem:[%s321 + $0xa8] sm:$0xff] %v1045
        %1078 = vst [vmem:[%s321 + $0xb0] sm:$0xff] %v1046
        %1079 = vst [vmem:[%s321 + $0xb8] sm:$0xff] %v1047
        %1080 = vst [vmem:[%s321 + $0xc0] sm:$0xff] %v1048
        %1081 = vst [vmem:[%s321 + $0xc8] sm:$0xff] %v1049
        %1082 = vst [vmem:[%s321 + $0xd0] sm:$0xff] %v1050
        %1083 = vst [vmem:[%s321 + $0xd8] sm:$0xff] %v1051
        %1084 = vst [vmem:[%s321 + $0xe0] sm:$0xff] %v1052
        %1085 = vst [vmem:[%s321 + $0xe8] sm:$0xff] %v1053
        %1086 = vst [vmem:[%s321 + $0xf0] sm:$0xff] %v1054
        %1087 = vst [vmem:[%s321 + $0xf8] sm:$0xff] %v1055
      $region40: #{forward.15} parent=31 // pred_fallthru
        _
      %s1088 = smul.u32 32, %s21
      %p1089 = scmp.lt.s32.totalorder %s20, 3
      %s1090 = scalar_select %p1089, %s20, 3
      %p1091 = scmp.lt.s32.totalorder %s1088, 31
      %s1092 = scalar_select %p1091, %s1088, 31
      %p1093 = scmp.lt.s32.totalorder %s22, 0
      %s1094 = scalar_select %p1093, %s22, 0
      %s1095 = sadd.s32 %s1094, %s1092
      %s1096 = smul.addr %s1090, 32
      %s1097 = sadd.s32 %s1095, %s1096
      %s1098 = smul.addr %s1097, 8
      %s1099 = scalar_lea.vmem %s3, %s1098
      // Predicated region
      $region41: #{forward.15} parent=31 // pred_check
        %p1100 = pneg %p150
      $region42: #{forward.15} parent=31 // pred_check_branch
        %1102 = sbr.rel (%p1100) target = $region44
      $region43: #{forward.15} parent=31 // pred_region
        %s1103 = smul.u32 32, %s21
      $region44: #{forward.15} parent=31 // pred_fallthru
        _
    $region32: #{forward.15} parent=5 // pred_fallthru
      _
    %p1104 = scmp.le.s32.totalorder 2, %s9
    // Predicated region
    $region45: #{forward.15} parent=5 // pred_check
      %p1105 = pneg %p1104
    $region46: #{forward.15} parent=5 // pred_check_branch
      %1107 = sbr.rel (%p1105) target = $region48
    $region47: #{forward.15} parent=5 // pred_region
      %s1108 = ssub.s32 %s9, 2
      // Predicated region
      $region49: #{forward.15} parent=47 // pred_check
        %p1109 = pneg %p156
      $region50: #{forward.15} parent=47 // pred_check_branch
        %1111 = sbr.rel (%p1109) target = $region52
      $region51: #{forward.15} parent=47 // pred_region
        %s1112 = smul.u32 32, %s25
        %p1113 = scmp.lt.s32.totalorder %s24, 3
        %s1114 = scalar_select %p1113, %s24, 3
        %p1115 = scmp.lt.s32.totalorder %s1112, 31
        %s1116 = scalar_select %p1115, %s1112, 31
        %p1117 = scmp.lt.s32.totalorder %s26, 0
        %s1118 = scalar_select %p1117, %s26, 0
        %s1119 = sadd.s32 %s1118, %s1116
        %s1120 = smul.addr %s1114, 32
        %s1121 = sadd.s32 %s1119, %s1120
        %s1122 = smul.addr %s1121, 8
        %s1123 = scalar_lea.vmem %s3, %s1122
      $region52: #{forward.15} parent=47 // pred_fallthru
        _
    $region48: #{forward.15} parent=5 // pred_fallthru
      _
  $region6: #{forward.15} parent=0 // loop_footer
    %s13 = sadd.s32 1, %s9
  $region7: #{forward.15} parent=0 // loop_footer_branch
    %8 = sbr.rel target = $region3
  $region8: #{forward.15} parent=0 // loop_exit
    _

</llo_original>
